<compile_context>
chip_gen: v7x
topology: tpu7x:2x2x1
jax: 0.10.0
libtpu: 0.0.40
codegen_flags: <defaults>
</compile_context>

<pallas_src>
import jax
import jax.numpy as jnp
from jax.experimental import pallas as pl
from jax.experimental.pallas import tpu as pltpu

K_SIZE = 4
STRIDE = 2
PAD = 1
NPAD = 8          # batch padded to one full sublane group
CIN_PAD = 8       # input channels padded 3 -> 8 so layer-1 matmul K = 16*8 = 128
REC_C_PAD = 4     # reconstruction channels padded 3 -> 4 in the packed output

# ConvTranspose2d(k=4, s=2, p=1) taps: output row 2*m + q gets contributions
# from input row m + dh through kernel row i, for (i, dh) in _UP_TAPS[q].
_UP_TAPS = {0: ((1, 0), (3, -1)), 1: ((0, 1), (2, 0))}


# ---------------------------------------------------------------------------
# In-kernel helpers (operate on jnp values held in VMEM / vregs)
# ---------------------------------------------------------------------------
def _conv_down(ap, w, b):
    """Conv2d(k=4, s=2, p=1) + bias + ReLU.

    ap: spatially pre-padded input (H+2, W+2, B, Cin), f32.
    w:  (16*Cin, Cout) bf16 weight, row order (i*4 + j)*Cin + ci.
    b:  (1, Cout) f32 bias.
    Returns (H//2, W//2, B, Cout) f32.
    """
    Hp, Wp, B, Cin = ap.shape
    Ho, Wo = (Hp - 2) // 2, (Wp - 2) // 2
    taps = {}
    for pi in range(2):                                       # kernel-row parity
        rows = ap.reshape(Ho + 1, 2, Wp, B, Cin)[:, pi]       # padded rows 2m+pi
        for pj in range(2):                                   # kernel-col parity
            cols = rows.reshape(Ho + 1, Wo + 1, 2, B, Cin)[:, :, pj]
            for di in range(2):
                for dj in range(2):
                    i, j = 2 * di + pi, 2 * dj + pj
                    t = cols[di:di + Ho, dj:dj + Wo]          # (Ho, Wo, B, Cin)
                    taps[(i, j)] = t.reshape(Ho * Wo * B, Cin)
    patch = jnp.concatenate(
        [taps[(i, j)] for i in range(4) for j in range(4)], axis=-1)
    acc = jnp.dot(patch.astype(jnp.bfloat16), w,
                  preferred_element_type=jnp.float32) + b
    return jnp.maximum(acc, 0.0).reshape(Ho, Wo, B, w.shape[1])


def _conv_up(ap, w, b4, act):
    """ConvTranspose2d(k=4, s=2, p=1) + bias + activation, one merged matmul.

    ap: spatially pre-padded input (Hi+2, Wi+2, B, Cin), f32.
    w:  merged (9*Cin, 4*Cout') bf16 weight; tap rows ordered (dh+1)*3+(dw+1),
        lane blocks q = 2*qh + qw for output parity (qh, qw).
    b4: (1, 4*Cout') f32 (per-parity tiled bias).
    Returns (Hi, Wi, B, 4*Cout') f32 in parity-blocked lane layout:
      out[2m+qh, 2n+qw, b, c] == ret[m, n, b, (2*qh+qw)*Cout' + c].
    """
    Hp, Wp, B, Cin = ap.shape
    Hi, Wi = Hp - 2, Wp - 2
    M = Hi * Wi * B
    taps = [ap[1 + dh:1 + dh + Hi, 1 + dw:1 + dw + Wi].reshape(M, Cin)
            for dh in (-1, 0, 1) for dw in (-1, 0, 1)]
    patch = jnp.concatenate(taps, axis=-1)                    # (M, 9*Cin)
    o = jnp.dot(patch.astype(jnp.bfloat16), w,
                preferred_element_type=jnp.float32) + b4
    return act(o).reshape(Hi, Wi, B, w.shape[1])


def _interleave2(a, b, axis):
    """Interleave two equal-shape arrays along a leading axis (size doubles)."""
    sh = a.shape
    exp = sh[:axis + 1] + (1,) + sh[axis + 1:]
    s = jnp.concatenate([a.reshape(exp), b.reshape(exp)], axis=axis + 1)
    return s.reshape(sh[:axis] + (2 * sh[axis],) + sh[axis + 1:])


def _deinterleave(o, cout):
    """Parity-blocked (Hi, Wi, B, 4*cout) -> interleaved (2Hi, 2Wi, B, cout)."""
    c = {(qh, qw): o[..., (2 * qh + qw) * cout:(2 * qh + qw + 1) * cout]
         for qh in range(2) for qw in range(2)}
    row0 = _interleave2(c[(0, 0)], c[(0, 1)], axis=1)         # even output rows
    row1 = _interleave2(c[(1, 0)], c[(1, 1)], axis=1)         # odd output rows
    return _interleave2(row0, row1, axis=0)


def _store_interior(pref, val):
    """Write `val` into the interior of a pre-zeroed spatially padded scratch."""
    h, w = val.shape[0], val.shape[1]
    pref[1:1 + h, 1:1 + w, :, :] = val


# ---------------------------------------------------------------------------
# The fused whole-network kernel (built for a fixed packed-weight layout)
# ---------------------------------------------------------------------------
def _make_kernel(offs, ks, ns):
    def kernel(xp_ref, w_ref, b_ref, xo_ref, zo_ref,
               h1p, h2p, zp, d1p, d2p):
        def wmat(i):                                          # (K_i, N_i) bf16
            return w_ref[offs[i]:offs[i] + ks[i], 0:ns[i]]

        bias = b_ref[...]                                     # (8, 128) f32

        def bvec(i):                                          # (1, N_i) f32
            return bias[i:i + 1, 0:ns[i]]

        relu = lambda v: jnp.maximum(v, 0.0)
        sigm = lambda v: pl.reciprocal(1.0 + jnp.exp(-v), approx=True)

        # Pre-zero the padded scratches; producers only write interiors, the
        # 1-pixel halo stays zero (replaces the old per-layer concat padding).
        for r in (h1p, h2p, zp, d1p, d2p):
            r[...] = jnp.zeros(r.shape, r.dtype)

        # ---------------- encoder ----------------
        h1 = _conv_down(xp_ref[...], wmat(0), bvec(0))        # (H/2, W/2, B, 12)
        _store_interior(h1p, h1)
        h2 = _conv_down(h1p[...], wmat(1), bvec(1))           # (H/4, W/4, B, 24)
        _store_interior(h2p, h2)
        z = _conv_down(h2p[...], wmat(2), bvec(2))            # (H/8, W/8, B, 48)
        zo_ref[...] = z
        _store_interior(zp, z)

        # ---------------- decoder ----------------
        d1 = _conv_up(zp[...], wmat(3), bvec(3), relu)        # parity-blocked
        _store_interior(d1p, _deinterleave(d1, ns[3] // 4))   # (H/4, W/4, B, 24)
        d2 = _conv_up(d1p[...], wmat(4), bvec(4), relu)
        _store_interior(d2p, _deinterleave(d2, ns[4] // 4))   # (H/2, W/2, B, 12)
        # Widest layer goes to HBM parity-blocked; the wrapper folds the
        # de-interleave into its output transpose (no 128-lane padding).
        xo_ref[...] = _conv_up(d2p[...], wmat(5), bvec(5), sigm)

    return kernel


# ---------------------------------------------------------------------------
# Wrapper: weight/layout preparation (tiny one-off XLA ops) + pallas_call
# ---------------------------------------------------------------------------
def _conv_weight_mat(w_oihw, cin_pad=None):
    """PyTorch Conv2d weight (Cout, Cin, kh, kw) -> (kh*kw*Cin', Cout)."""
    cout, cin = w_oihw.shape[0], w_oihw.shape[1]
    if cin_pad is not None and cin_pad > cin:
        w_oihw = jnp.pad(w_oihw, ((0, 0), (0, cin_pad - cin), (0, 0), (0, 0)))
    return jnp.transpose(w_oihw, (2, 3, 1, 0)).reshape(-1, cout)


def _deconv_weight_merged(w_iohw, cout_pad=None):
    """ConvTranspose2d weight (Cin, Cout, kh, kw) -> merged (9*Cin, 4*Cout').

    Row block t = (dh+1)*3 + (dw+1) holds input-offset (dh, dw) taps; lane
    block q = 2*qh + qw holds output parity (qh, qw).  Taps unused by a parity
    stay zero (4 of 9 taps contribute per parity)."""
    cin, cout = w_iohw.shape[0], w_iohw.shape[1]
    cp = cout_pad if cout_pad is not None else cout
    wm = jnp.zeros((9 * cin, 4 * cp), w_iohw.dtype)
    for qh in range(2):
        for qw in range(2):
            q = 2 * qh + qw
            for (i, dh) in _UP_TAPS[qh]:
                for (j, dw) in _UP_TAPS[qw]:
                    t = (dh + 1) * 3 + (dw + 1)
                    wm = wm.at[t * cin:(t + 1) * cin,
                               q * cp:q * cp + cout].set(w_iohw[:, :, i, j])
    return wm


def _bias4(b, cout_pad=None):
    cp = cout_pad if cout_pad is not None else b.shape[0]
    if cp > b.shape[0]:
        b = jnp.pad(b, (0, cp - b.shape[0]))
    return jnp.tile(b, 4)


def _pack_params(params):
    """Pack the 12 weight/bias arrays into one bf16 weight slab + one f32 bias
    buffer (2 input DMAs instead of 13)."""
    w_list = [
        _conv_weight_mat(params["enc1_w"], cin_pad=CIN_PAD),          # (128, 12)
        _conv_weight_mat(params["enc2_w"]),                           # (192, 24)
        _conv_weight_mat(params["enc3_w"]),                           # (384, 48)
        _deconv_weight_merged(params["dec1_w"]),                      # (432, 96)
        _deconv_weight_merged(params["dec2_w"]),                      # (216, 48)
        _deconv_weight_merged(params["dec3_w"], cout_pad=REC_C_PAD),  # (108, 16)
    ]
    b_list = [
        params["enc1_b"], params["enc2_b"], params["enc3_b"],
        _bias4(params["dec1_b"]), _bias4(params["dec2_b"]),
        _bias4(params["dec3_b"], cout_pad=REC_C_PAD),
    ]
    offs, ks, ns, off = [], [], [], 0
    for w in w_list:
        offs.append(off)
        ks.append(w.shape[0])
        ns.append(w.shape[1])
        off += -(-w.shape[0] // 8) * 8                        # 8-row aligned blocks
    wbuf = jnp.zeros((off, 128), jnp.bfloat16)
    for o, w in zip(offs, w_list):
        wbuf = wbuf.at[o:o + w.shape[0], :w.shape[1]].set(w.astype(jnp.bfloat16))
    bbuf = jnp.zeros((8, 128), jnp.float32)
    for i, b in enumerate(b_list):
        bbuf = bbuf.at[i, :b.shape[0]].set(b.astype(jnp.float32))
    return wbuf, bbuf, tuple(offs), tuple(ks), tuple(ns)


@jax.jit
def conv_autoencoder_forward(params, x_nchw):
    N, Cin, H, W = x_nchw.shape
    assert Cin == 3 and H % 8 == 0 and W % 8 == 0 and N <= NPAD

    c1 = params["enc1_w"].shape[0]
    c2 = params["enc2_w"].shape[0]
    c3 = params["enc3_w"].shape[0]
    d1c = params["dec1_w"].shape[1]
    d2c = params["dec2_w"].shape[1]

    # NCHW -> (H, W, B, C); pad batch -> 8 sublanes, channels 3 -> 8 (layer-1
    # matmul K = 128), and pre-pad the spatial halo here in the wrapper.
    xk = jnp.transpose(x_nchw, (2, 3, 0, 1))
    xk = jnp.pad(xk, ((1, 1), (1, 1), (0, NPAD - N), (0, CIN_PAD - Cin)))

    wbuf, bbuf, offs, ks, ns = _pack_params(params)

    scratch = [
        pltpu.VMEM((H // 2 + 2, W // 2 + 2, NPAD, c1), jnp.float32),   # enc1 (padded)
        pltpu.VMEM((H // 4 + 2, W // 4 + 2, NPAD, c2), jnp.float32),   # enc2 (padded)
        pltpu.VMEM((H // 8 + 2, W // 8 + 2, NPAD, c3), jnp.float32),   # latent (padded)
        pltpu.VMEM((H // 4 + 2, W // 4 + 2, NPAD, d1c), jnp.float32),  # dec1 (padded)
        pltpu.VMEM((H // 2 + 2, W // 2 + 2, NPAD, d2c), jnp.float32),  # dec2 (padded)
    ]

    x_out, z_out = pl.pallas_call(
        _make_kernel(offs, ks, ns),
        out_shape=(
            # Packed parity-blocked reconstruction: (H/2, W/2, B, 2*2*4) lanes,
            # ~4/3x the useful bytes instead of the old 128/3x lane padding.
            jax.ShapeDtypeStruct((H // 2, W // 2, NPAD, 4 * REC_C_PAD), jnp.float32),
            jax.ShapeDtypeStruct((H // 8, W // 8, NPAD, c3), jnp.float32),
        ),
        scratch_shapes=scratch,
        compiler_params=pltpu.CompilerParams(vmem_limit_bytes=32 * 1024 * 1024),
    )(xk, wbuf, bbuf)

    # Fold the final de-interleave into the wrapper's NCHW transpose.
    xo = x_out.reshape(H // 2, W // 2, NPAD, 2, 2, REC_C_PAD)
    xo = jnp.transpose(xo, (2, 5, 0, 3, 1, 4)).reshape(NPAD, REC_C_PAD, H, W)
    x_rec = xo[:N, :3]
    z = jnp.transpose(z_out, (2, 3, 0, 1))[:N]
    return x_rec, z


def init_params(key):
    params = {}
    layer_defs = [
        ("enc1", "conv", 3, 12), ("enc2", "conv", 12, 24), ("enc3", "conv", 24, 48),
        ("dec1", "tconv", 48, 24), ("dec2", "tconv", 24, 12), ("dec3", "tconv", 12, 3),
    ]
    for name, kind, cin, cout in layer_defs:
        key, kw, kb = jax.random.split(key, 3)
        wshape = (cout, cin, K_SIZE, K_SIZE) if kind == "conv" \
            else (cin, cout, K_SIZE, K_SIZE)
        bound = 1.0 / float(cin * K_SIZE * K_SIZE) ** 0.5
        params[name + "_w"] = jax.random.uniform(kw, wshape, jnp.float32, -bound, bound)
        params[name + "_b"] = jax.random.uniform(kb, (cout,), jnp.float32, -bound, bound)
    return params


if __name__ == "__main__":
    key = jax.random.PRNGKey(0)
    k_params, k_x = jax.random.split(key)
    params = init_params(k_params)
    x = jax.random.uniform(k_x, (2, 3, 16, 16), jnp.float32)     # NCHW

    x_rec, z = conv_autoencoder_forward(params, x)
    jax.block_until_ready((x_rec, z))

    assert x_rec.shape == (2, 3, 16, 16), x_rec.shape
    assert z.shape == (2, 48, 2, 2), z.shape
    assert bool(jnp.all(jnp.isfinite(x_rec))) and bool(jnp.all(jnp.isfinite(z)))
    print("KERNEL_OK")
</pallas_src>

<mosaic_0001>
module attributes {stable_mosaic.version = 11 : i64} {
  func.func @kernel(%arg0: memref<18x18x8x8xf32, #tpu.memory_space<vmem>>, %arg1: memref<1464x128xbf16, #tpu.memory_space<vmem>>, %arg2: memref<8x128xf32, #tpu.memory_space<vmem>>, %arg3: memref<8x8x8x16xf32, #tpu.memory_space<vmem>>, %arg4: memref<2x2x8x48xf32, #tpu.memory_space<vmem>>, %arg5: memref<10x10x8x12xf32, #tpu.memory_space<vmem>>, %arg6: memref<6x6x8x24xf32, #tpu.memory_space<vmem>>, %arg7: memref<4x4x8x48xf32, #tpu.memory_space<vmem>>, %arg8: memref<6x6x8x24xf32, #tpu.memory_space<vmem>>, %arg9: memref<10x10x8x12xf32, #tpu.memory_space<vmem>>) attributes {dimension_semantics = [], scalar_prefetch = 0 : i64, scratch_operands = 5 : i64, tpu.core_type = #tpu.core_type<tc>} {
    %c0 = arith.constant 0 : index
    %c0_0 = arith.constant 0 : index
    %0 = vector.load %arg2[%c0, %c0_0] : memref<8x128xf32, #tpu.memory_space<vmem>>, vector<8x128xf32>
    %cst = arith.constant 0.000000e+00 : f32
    %1 = vector.broadcast %cst : f32 to vector<10x10x8x12xf32>
    %c0_1 = arith.constant 0 : index
    %c0_2 = arith.constant 0 : index
    %c0_3 = arith.constant 0 : index
    %c0_4 = arith.constant 0 : index
    %2 = vector.load %arg5[%c0_1, %c0_2, %c0_3, %c0_4] : memref<10x10x8x12xf32, #tpu.memory_space<vmem>>, vector<10x10x8x12xf32>
    tpu.vector_store %arg5[%c0_1, %c0_2, %c0_3, %c0_4], %1 {strides = array<i32>} : memref<10x10x8x12xf32, #tpu.memory_space<vmem>>, vector<10x10x8x12xf32>,
    %cst_5 = arith.constant 0.000000e+00 : f32
    %3 = vector.broadcast %cst_5 : f32 to vector<6x6x8x24xf32>
    %c0_6 = arith.constant 0 : index
    %c0_7 = arith.constant 0 : index
    %c0_8 = arith.constant 0 : index
    %c0_9 = arith.constant 0 : index
    %4 = vector.load %arg6[%c0_6, %c0_7, %c0_8, %c0_9] : memref<6x6x8x24xf32, #tpu.memory_space<vmem>>, vector<6x6x8x24xf32>
    tpu.vector_store %arg6[%c0_6, %c0_7, %c0_8, %c0_9], %3 {strides = array<i32>} : memref<6x6x8x24xf32, #tpu.memory_space<vmem>>, vector<6x6x8x24xf32>,
    %cst_10 = arith.constant 0.000000e+00 : f32
    %5 = vector.broadcast %cst_10 : f32 to vector<4x4x8x48xf32>
    %c0_11 = arith.constant 0 : index
    %c0_12 = arith.constant 0 : index
    %c0_13 = arith.constant 0 : index
    %c0_14 = arith.constant 0 : index
    %6 = vector.load %arg7[%c0_11, %c0_12, %c0_13, %c0_14] : memref<4x4x8x48xf32, #tpu.memory_space<vmem>>, vector<4x4x8x48xf32>
    tpu.vector_store %arg7[%c0_11, %c0_12, %c0_13, %c0_14], %5 {strides = array<i32>} : memref<4x4x8x48xf32, #tpu.memory_space<vmem>>, vector<4x4x8x48xf32>,
    %cst_15 = arith.constant 0.000000e+00 : f32
    %7 = vector.broadcast %cst_15 : f32 to vector<6x6x8x24xf32>
    %c0_16 = arith.constant 0 : index
    %c0_17 = arith.constant 0 : index
    %c0_18 = arith.constant 0 : index
    %c0_19 = arith.constant 0 : index
    %8 = vector.load %arg8[%c0_16, %c0_17, %c0_18, %c0_19] : memref<6x6x8x24xf32, #tpu.memory_space<vmem>>, vector<6x6x8x24xf32>
    tpu.vector_store %arg8[%c0_16, %c0_17, %c0_18, %c0_19], %7 {strides = array<i32>} : memref<6x6x8x24xf32, #tpu.memory_space<vmem>>, vector<6x6x8x24xf32>,
    %cst_20 = arith.constant 0.000000e+00 : f32
    %9 = vector.broadcast %cst_20 : f32 to vector<10x10x8x12xf32>
    %c0_21 = arith.constant 0 : index
    %c0_22 = arith.constant 0 : index
    %c0_23 = arith.constant 0 : index
    %c0_24 = arith.constant 0 : index
    %10 = vector.load %arg9[%c0_21, %c0_22, %c0_23, %c0_24] : memref<10x10x8x12xf32, #tpu.memory_space<vmem>>, vector<10x10x8x12xf32>
    tpu.vector_store %arg9[%c0_21, %c0_22, %c0_23, %c0_24], %9 {strides = array<i32>} : memref<10x10x8x12xf32, #tpu.memory_space<vmem>>, vector<10x10x8x12xf32>,
    %c0_25 = arith.constant 0 : index
    %c0_26 = arith.constant 0 : index
    %c0_27 = arith.constant 0 : index
    %c0_28 = arith.constant 0 : index
    %11 = vector.load %arg0[%c0_25, %c0_26, %c0_27, %c0_28] : memref<18x18x8x8xf32, #tpu.memory_space<vmem>>, vector<18x18x8x8xf32>
    %c0_29 = arith.constant 0 : index
    %c0_30 = arith.constant 0 : index
    %12 = vector.load %arg1[%c0_29, %c0_30] : memref<1464x128xbf16, #tpu.memory_space<vmem>>, vector<128x12xbf16>
    %13 = vector.extract_strided_slice %0 {offsets = [0, 0], sizes = [1, 12], strides = [1, 1]} : vector<8x128xf32> to vector<1x12xf32>
    %14 = vector.shape_cast %11 : vector<18x18x8x8xf32> to vector<9x2x18x8x8xf32>
    %15 = vector.extract_strided_slice %14 {offsets = [0, 0, 0, 0, 0], sizes = [9, 1, 18, 8, 8], strides = [1, 1, 1, 1, 1]} : vector<9x2x18x8x8xf32> to vector<9x1x18x8x8xf32>
    %16 = vector.shape_cast %15 : vector<9x1x18x8x8xf32> to vector<9x18x8x8xf32>
    %17 = vector.shape_cast %16 : vector<9x18x8x8xf32> to vector<9x9x2x8x8xf32>
    %18 = vector.extract_strided_slice %17 {offsets = [0, 0, 0, 0, 0], sizes = [9, 9, 1, 8, 8], strides = [1, 1, 1, 1, 1]} : vector<9x9x2x8x8xf32> to vector<9x9x1x8x8xf32>
    %19 = vector.shape_cast %18 : vector<9x9x1x8x8xf32> to vector<9x9x8x8xf32>
    %20 = vector.extract_strided_slice %19 {offsets = [0, 0, 0, 0], sizes = [8, 8, 8, 8], strides = [1, 1, 1, 1]} : vector<9x9x8x8xf32> to vector<8x8x8x8xf32>
    %21 = vector.shape_cast %20 : vector<8x8x8x8xf32> to vector<512x8xf32>
    %22 = vector.extract_strided_slice %19 {offsets = [0, 1, 0, 0], sizes = [8, 8, 8, 8], strides = [1, 1, 1, 1]} : vector<9x9x8x8xf32> to vector<8x8x8x8xf32>
    %23 = vector.shape_cast %22 : vector<8x8x8x8xf32> to vector<512x8xf32>
    %24 = vector.extract_strided_slice %19 {offsets = [1, 0, 0, 0], sizes = [8, 8, 8, 8], strides = [1, 1, 1, 1]} : vector<9x9x8x8xf32> to vector<8x8x8x8xf32>
    %25 = vector.shape_cast %24 : vector<8x8x8x8xf32> to vector<512x8xf32>
    %26 = vector.extract_strided_slice %19 {offsets = [1, 1, 0, 0], sizes = [8, 8, 8, 8], strides = [1, 1, 1, 1]} : vector<9x9x8x8xf32> to vector<8x8x8x8xf32>
    %27 = vector.shape_cast %26 : vector<8x8x8x8xf32> to vector<512x8xf32>
    %28 = vector.shape_cast %16 : vector<9x18x8x8xf32> to vector<9x9x2x8x8xf32>
    %29 = vector.extract_strided_slice %28 {offsets = [0, 0, 1, 0, 0], sizes = [9, 9, 1, 8, 8], strides = [1, 1, 1, 1, 1]} : vector<9x9x2x8x8xf32> to vector<9x9x1x8x8xf32>
    %30 = vector.shape_cast %29 : vector<9x9x1x8x8xf32> to vector<9x9x8x8xf32>
    %31 = vector.extract_strided_slice %30 {offsets = [0, 0, 0, 0], sizes = [8, 8, 8, 8], strides = [1, 1, 1, 1]} : vector<9x9x8x8xf32> to vector<8x8x8x8xf32>
    %32 = vector.shape_cast %31 : vector<8x8x8x8xf32> to vector<512x8xf32>
    %33 = vector.extract_strided_slice %30 {offsets = [0, 1, 0, 0], sizes = [8, 8, 8, 8], strides = [1, 1, 1, 1]} : vector<9x9x8x8xf32> to vector<8x8x8x8xf32>
    %34 = vector.shape_cast %33 : vector<8x8x8x8xf32> to vector<512x8xf32>
    %35 = vector.extract_strided_slice %30 {offsets = [1, 0, 0, 0], sizes = [8, 8, 8, 8], strides = [1, 1, 1, 1]} : vector<9x9x8x8xf32> to vector<8x8x8x8xf32>
    %36 = vector.shape_cast %35 : vector<8x8x8x8xf32> to vector<512x8xf32>
    %37 = vector.extract_strided_slice %30 {offsets = [1, 1, 0, 0], sizes = [8, 8, 8, 8], strides = [1, 1, 1, 1]} : vector<9x9x8x8xf32> to vector<8x8x8x8xf32>
    %38 = vector.shape_cast %37 : vector<8x8x8x8xf32> to vector<512x8xf32>
    %39 = vector.shape_cast %11 : vector<18x18x8x8xf32> to vector<9x2x18x8x8xf32>
    %40 = vector.extract_strided_slice %39 {offsets = [0, 1, 0, 0, 0], sizes = [9, 1, 18, 8, 8], strides = [1, 1, 1, 1, 1]} : vector<9x2x18x8x8xf32> to vector<9x1x18x8x8xf32>
    %41 = vector.shape_cast %40 : vector<9x1x18x8x8xf32> to vector<9x18x8x8xf32>
    %42 = vector.shape_cast %41 : vector<9x18x8x8xf32> to vector<9x9x2x8x8xf32>
    %43 = vector.extract_strided_slice %42 {offsets = [0, 0, 0, 0, 0], sizes = [9, 9, 1, 8, 8], strides = [1, 1, 1, 1, 1]} : vector<9x9x2x8x8xf32> to vector<9x9x1x8x8xf32>
    %44 = vector.shape_cast %43 : vector<9x9x1x8x8xf32> to vector<9x9x8x8xf32>
    %45 = vector.extract_strided_slice %44 {offsets = [0, 0, 0, 0], sizes = [8, 8, 8, 8], strides = [1, 1, 1, 1]} : vector<9x9x8x8xf32> to vector<8x8x8x8xf32>
    %46 = vector.shape_cast %45 : vector<8x8x8x8xf32> to vector<512x8xf32>
    %47 = vector.extract_strided_slice %44 {offsets = [0, 1, 0, 0], sizes = [8, 8, 8, 8], strides = [1, 1, 1, 1]} : vector<9x9x8x8xf32> to vector<8x8x8x8xf32>
    %48 = vector.shape_cast %47 : vector<8x8x8x8xf32> to vector<512x8xf32>
    %49 = vector.extract_strided_slice %44 {offsets = [1, 0, 0, 0], sizes = [8, 8, 8, 8], strides = [1, 1, 1, 1]} : vector<9x9x8x8xf32> to vector<8x8x8x8xf32>
    %50 = vector.shape_cast %49 : vector<8x8x8x8xf32> to vector<512x8xf32>
    %51 = vector.extract_strided_slice %44 {offsets = [1, 1, 0, 0], sizes = [8, 8, 8, 8], strides = [1, 1, 1, 1]} : vector<9x9x8x8xf32> to vector<8x8x8x8xf32>
    %52 = vector.shape_cast %51 : vector<8x8x8x8xf32> to vector<512x8xf32>
    %53 = vector.shape_cast %41 : vector<9x18x8x8xf32> to vector<9x9x2x8x8xf32>
    %54 = vector.extract_strided_slice %53 {offsets = [0, 0, 1, 0, 0], sizes = [9, 9, 1, 8, 8], strides = [1, 1, 1, 1, 1]} : vector<9x9x2x8x8xf32> to vector<9x9x1x8x8xf32>
    %55 = vector.shape_cast %54 : vector<9x9x1x8x8xf32> to vector<9x9x8x8xf32>
    %56 = vector.extract_strided_slice %55 {offsets = [0, 0, 0, 0], sizes = [8, 8, 8, 8], strides = [1, 1, 1, 1]} : vector<9x9x8x8xf32> to vector<8x8x8x8xf32>
    %57 = vector.shape_cast %56 : vector<8x8x8x8xf32> to vector<512x8xf32>
    %58 = vector.extract_strided_slice %55 {offsets = [0, 1, 0, 0], sizes = [8, 8, 8, 8], strides = [1, 1, 1, 1]} : vector<9x9x8x8xf32> to vector<8x8x8x8xf32>
    %59 = vector.shape_cast %58 : vector<8x8x8x8xf32> to vector<512x8xf32>
    %60 = vector.extract_strided_slice %55 {offsets = [1, 0, 0, 0], sizes = [8, 8, 8, 8], strides = [1, 1, 1, 1]} : vector<9x9x8x8xf32> to vector<8x8x8x8xf32>
    %61 = vector.shape_cast %60 : vector<8x8x8x8xf32> to vector<512x8xf32>
    %62 = vector.extract_strided_slice %55 {offsets = [1, 1, 0, 0], sizes = [8, 8, 8, 8], strides = [1, 1, 1, 1]} : vector<9x9x8x8xf32> to vector<8x8x8x8xf32>
    %63 = vector.shape_cast %62 : vector<8x8x8x8xf32> to vector<512x8xf32>
    %64 = tpu.concatenate %21, %32, %23, %34, %46, %57, %48, %59, %25, %36, %27, %38, %50, %61, %52, %63 in 1 : vector<512x8xf32>, vector<512x8xf32>, vector<512x8xf32>, vector<512x8xf32>, vector<512x8xf32>, vector<512x8xf32>, vector<512x8xf32>, vector<512x8xf32>, vector<512x8xf32>, vector<512x8xf32>, vector<512x8xf32>, vector<512x8xf32>, vector<512x8xf32>, vector<512x8xf32>, vector<512x8xf32>, vector<512x8xf32> -> vector<512x128xf32>
    %65 = arith.truncf %64 : vector<512x128xf32> to vector<512x128xbf16>
    %cst_31 = arith.constant dense<0.000000e+00> : vector<512x12xf32>
    %66 = tpu.matmul %65, %12, %cst_31 {dimension_numbers = #tpu.dot_dimension_numbers<[1], [0], [0], [1], [0, 0, 1, 1], [], []>} : vector<512x128xbf16>, vector<128x12xbf16>, vector<512x12xf32> -> vector<512x12xf32>
    %67 = vector.broadcast %13 : vector<1x12xf32> to vector<512x12xf32>
    %68 = arith.addf %66, %67 : vector<512x12xf32>
    %cst_32 = arith.constant 0.000000e+00 : f32
    %69 = vector.broadcast %cst_32 : f32 to vector<512x12xf32>
    %70 = arith.maximumf %68, %69 : vector<512x12xf32>
    %71 = vector.shape_cast %70 : vector<512x12xf32> to vector<8x8x8x12xf32>
    %c1 = arith.constant 1 : index
    %c1_33 = arith.constant 1 : index
    %c0_34 = arith.constant 0 : index
    %c0_35 = arith.constant 0 : index
    %72 = vector.load %arg5[%c1, %c1_33, %c0_34, %c0_35] : memref<10x10x8x12xf32, #tpu.memory_space<vmem>>, vector<8x8x8x12xf32>
    tpu.vector_store %arg5[%c1, %c1_33, %c0_34, %c0_35], %71 {strides = array<i32>} : memref<10x10x8x12xf32, #tpu.memory_space<vmem>>, vector<8x8x8x12xf32>,
    %c0_36 = arith.constant 0 : index
    %c0_37 = arith.constant 0 : index
    %c0_38 = arith.constant 0 : index
    %c0_39 = arith.constant 0 : index
    %73 = vector.load %arg5[%c0_36, %c0_37, %c0_38, %c0_39] : memref<10x10x8x12xf32, #tpu.memory_space<vmem>>, vector<10x10x8x12xf32>
    %c128 = arith.constant 128 : index
    %c0_40 = arith.constant 0 : index
    %74 = vector.load %arg1[%c128, %c0_40] : memref<1464x128xbf16, #tpu.memory_space<vmem>>, vector<192x24xbf16>
    %75 = vector.extract_strided_slice %0 {offsets = [1, 0], sizes = [1, 24], strides = [1, 1]} : vector<8x128xf32> to vector<1x24xf32>
    %76 = vector.shape_cast %73 : vector<10x10x8x12xf32> to vector<5x2x10x8x12xf32>
    %77 = vector.extract_strided_slice %76 {offsets = [0, 0, 0, 0, 0], sizes = [5, 1, 10, 8, 12], strides = [1, 1, 1, 1, 1]} : vector<5x2x10x8x12xf32> to vector<5x1x10x8x12xf32>
    %78 = vector.shape_cast %77 : vector<5x1x10x8x12xf32> to vector<5x10x8x12xf32>
    %79 = vector.shape_cast %78 : vector<5x10x8x12xf32> to vector<5x5x2x8x12xf32>
    %80 = vector.extract_strided_slice %79 {offsets = [0, 0, 0, 0, 0], sizes = [5, 5, 1, 8, 12], strides = [1, 1, 1, 1, 1]} : vector<5x5x2x8x12xf32> to vector<5x5x1x8x12xf32>
    %81 = vector.shape_cast %80 : vector<5x5x1x8x12xf32> to vector<5x5x8x12xf32>
    %82 = vector.extract_strided_slice %81 {offsets = [0, 0, 0, 0], sizes = [4, 4, 8, 12], strides = [1, 1, 1, 1]} : vector<5x5x8x12xf32> to vector<4x4x8x12xf32>
    %83 = vector.shape_cast %82 : vector<4x4x8x12xf32> to vector<128x12xf32>
    %84 = vector.extract_strided_slice %81 {offsets = [0, 1, 0, 0], sizes = [4, 4, 8, 12], strides = [1, 1, 1, 1]} : vector<5x5x8x12xf32> to vector<4x4x8x12xf32>
    %85 = vector.shape_cast %84 : vector<4x4x8x12xf32> to vector<128x12xf32>
    %86 = vector.extract_strided_slice %81 {offsets = [1, 0, 0, 0], sizes = [4, 4, 8, 12], strides = [1, 1, 1, 1]} : vector<5x5x8x12xf32> to vector<4x4x8x12xf32>
    %87 = vector.shape_cast %86 : vector<4x4x8x12xf32> to vector<128x12xf32>
    %88 = vector.extract_strided_slice %81 {offsets = [1, 1, 0, 0], sizes = [4, 4, 8, 12], strides = [1, 1, 1, 1]} : vector<5x5x8x12xf32> to vector<4x4x8x12xf32>
    %89 = vector.shape_cast %88 : vector<4x4x8x12xf32> to vector<128x12xf32>
    %90 = vector.shape_cast %78 : vector<5x10x8x12xf32> to vector<5x5x2x8x12xf32>
    %91 = vector.extract_strided_slice %90 {offsets = [0, 0, 1, 0, 0], sizes = [5, 5, 1, 8, 12], strides = [1, 1, 1, 1, 1]} : vector<5x5x2x8x12xf32> to vector<5x5x1x8x12xf32>
    %92 = vector.shape_cast %91 : vector<5x5x1x8x12xf32> to vector<5x5x8x12xf32>
    %93 = vector.extract_strided_slice %92 {offsets = [0, 0, 0, 0], sizes = [4, 4, 8, 12], strides = [1, 1, 1, 1]} : vector<5x5x8x12xf32> to vector<4x4x8x12xf32>
    %94 = vector.shape_cast %93 : vector<4x4x8x12xf32> to vector<128x12xf32>
    %95 = vector.extract_strided_slice %92 {offsets = [0, 1, 0, 0], sizes = [4, 4, 8, 12], strides = [1, 1, 1, 1]} : vector<5x5x8x12xf32> to vector<4x4x8x12xf32>
    %96 = vector.shape_cast %95 : vector<4x4x8x12xf32> to vector<128x12xf32>
    %97 = vector.extract_strided_slice %92 {offsets = [1, 0, 0, 0], sizes = [4, 4, 8, 12], strides = [1, 1, 1, 1]} : vector<5x5x8x12xf32> to vector<4x4x8x12xf32>
    %98 = vector.shape_cast %97 : vector<4x4x8x12xf32> to vector<128x12xf32>
    %99 = vector.extract_strided_slice %92 {offsets = [1, 1, 0, 0], sizes = [4, 4, 8, 12], strides = [1, 1, 1, 1]} : vector<5x5x8x12xf32> to vector<4x4x8x12xf32>
    %100 = vector.shape_cast %99 : vector<4x4x8x12xf32> to vector<128x12xf32>
    %101 = vector.shape_cast %73 : vector<10x10x8x12xf32> to vector<5x2x10x8x12xf32>
    %102 = vector.extract_strided_slice %101 {offsets = [0, 1, 0, 0, 0], sizes = [5, 1, 10, 8, 12], strides = [1, 1, 1, 1, 1]} : vector<5x2x10x8x12xf32> to vector<5x1x10x8x12xf32>
    %103 = vector.shape_cast %102 : vector<5x1x10x8x12xf32> to vector<5x10x8x12xf32>
    %104 = vector.shape_cast %103 : vector<5x10x8x12xf32> to vector<5x5x2x8x12xf32>
    %105 = vector.extract_strided_slice %104 {offsets = [0, 0, 0, 0, 0], sizes = [5, 5, 1, 8, 12], strides = [1, 1, 1, 1, 1]} : vector<5x5x2x8x12xf32> to vector<5x5x1x8x12xf32>
    %106 = vector.shape_cast %105 : vector<5x5x1x8x12xf32> to vector<5x5x8x12xf32>
    %107 = vector.extract_strided_slice %106 {offsets = [0, 0, 0, 0], sizes = [4, 4, 8, 12], strides = [1, 1, 1, 1]} : vector<5x5x8x12xf32> to vector<4x4x8x12xf32>
    %108 = vector.shape_cast %107 : vector<4x4x8x12xf32> to vector<128x12xf32>
    %109 = vector.extract_strided_slice %106 {offsets = [0, 1, 0, 0], sizes = [4, 4, 8, 12], strides = [1, 1, 1, 1]} : vector<5x5x8x12xf32> to vector<4x4x8x12xf32>
    %110 = vector.shape_cast %109 : vector<4x4x8x12xf32> to vector<128x12xf32>
    %111 = vector.extract_strided_slice %106 {offsets = [1, 0, 0, 0], sizes = [4, 4, 8, 12], strides = [1, 1, 1, 1]} : vector<5x5x8x12xf32> to vector<4x4x8x12xf32>
    %112 = vector.shape_cast %111 : vector<4x4x8x12xf32> to vector<128x12xf32>
    %113 = vector.extract_strided_slice %106 {offsets = [1, 1, 0, 0], sizes = [4, 4, 8, 12], strides = [1, 1, 1, 1]} : vector<5x5x8x12xf32> to vector<4x4x8x12xf32>
    %114 = vector.shape_cast %113 : vector<4x4x8x12xf32> to vector<128x12xf32>
    %115 = vector.shape_cast %103 : vector<5x10x8x12xf32> to vector<5x5x2x8x12xf32>
    %116 = vector.extract_strided_slice %115 {offsets = [0, 0, 1, 0, 0], sizes = [5, 5, 1, 8, 12], strides = [1, 1, 1, 1, 1]} : vector<5x5x2x8x12xf32> to vector<5x5x1x8x12xf32>
    %117 = vector.shape_cast %116 : vector<5x5x1x8x12xf32> to vector<5x5x8x12xf32>
    %118 = vector.extract_strided_slice %117 {offsets = [0, 0, 0, 0], sizes = [4, 4, 8, 12], strides = [1, 1, 1, 1]} : vector<5x5x8x12xf32> to vector<4x4x8x12xf32>
    %119 = vector.shape_cast %118 : vector<4x4x8x12xf32> to vector<128x12xf32>
    %120 = vector.extract_strided_slice %117 {offsets = [0, 1, 0, 0], sizes = [4, 4, 8, 12], strides = [1, 1, 1, 1]} : vector<5x5x8x12xf32> to vector<4x4x8x12xf32>
    %121 = vector.shape_cast %120 : vector<4x4x8x12xf32> to vector<128x12xf32>
    %122 = vector.extract_strided_slice %117 {offsets = [1, 0, 0, 0], sizes = [4, 4, 8, 12], strides = [1, 1, 1, 1]} : vector<5x5x8x12xf32> to vector<4x4x8x12xf32>
    %123 = vector.shape_cast %122 : vector<4x4x8x12xf32> to vector<128x12xf32>
    %124 = vector.extract_strided_slice %117 {offsets = [1, 1, 0, 0], sizes = [4, 4, 8, 12], strides = [1, 1, 1, 1]} : vector<5x5x8x12xf32> to vector<4x4x8x12xf32>
    %125 = vector.shape_cast %124 : vector<4x4x8x12xf32> to vector<128x12xf32>
    %126 = tpu.concatenate %83, %94, %85, %96, %108, %119, %110, %121, %87, %98, %89, %100, %112, %123, %114, %125 in 1 : vector<128x12xf32>, vector<128x12xf32>, vector<128x12xf32>, vector<128x12xf32>, vector<128x12xf32>, vector<128x12xf32>, vector<128x12xf32>, vector<128x12xf32>, vector<128x12xf32>, vector<128x12xf32>, vector<128x12xf32>, vector<128x12xf32>, vector<128x12xf32>, vector<128x12xf32>, vector<128x12xf32>, vector<128x12xf32> -> vector<128x192xf32>
    %127 = arith.truncf %126 : vector<128x192xf32> to vector<128x192xbf16>
    %cst_41 = arith.constant dense<0.000000e+00> : vector<128x24xf32>
    %128 = tpu.matmul %127, %74, %cst_41 {dimension_numbers = #tpu.dot_dimension_numbers<[1], [0], [0], [1], [0, 0, 1, 1], [], []>} : vector<128x192xbf16>, vector<192x24xbf16>, vector<128x24xf32> -> vector<128x24xf32>
    %129 = vector.broadcast %75 : vector<1x24xf32> to vector<128x24xf32>
    %130 = arith.addf %128, %129 : vector<128x24xf32>
    %cst_42 = arith.constant 0.000000e+00 : f32
    %131 = vector.broadcast %cst_42 : f32 to vector<128x24xf32>
    %132 = arith.maximumf %130, %131 : vector<128x24xf32>
    %133 = vector.shape_cast %132 : vector<128x24xf32> to vector<4x4x8x24xf32>
    %c1_43 = arith.constant 1 : index
    %c1_44 = arith.constant 1 : index
    %c0_45 = arith.constant 0 : index
    %c0_46 = arith.constant 0 : index
    %134 = vector.load %arg6[%c1_43, %c1_44, %c0_45, %c0_46] : memref<6x6x8x24xf32, #tpu.memory_space<vmem>>, vector<4x4x8x24xf32>
    tpu.vector_store %arg6[%c1_43, %c1_44, %c0_45, %c0_46], %133 {strides = array<i32>} : memref<6x6x8x24xf32, #tpu.memory_space<vmem>>, vector<4x4x8x24xf32>,
    %c0_47 = arith.constant 0 : index
    %c0_48 = arith.constant 0 : index
    %c0_49 = arith.constant 0 : index
    %c0_50 = arith.constant 0 : index
    %135 = vector.load %arg6[%c0_47, %c0_48, %c0_49, %c0_50] : memref<6x6x8x24xf32, #tpu.memory_space<vmem>>, vector<6x6x8x24xf32>
    %c320 = arith.constant 320 : index
    %c0_51 = arith.constant 0 : index
    %136 = vector.load %arg1[%c320, %c0_51] : memref<1464x128xbf16, #tpu.memory_space<vmem>>, vector<384x48xbf16>
    %137 = vector.extract_strided_slice %0 {offsets = [2, 0], sizes = [1, 48], strides = [1, 1]} : vector<8x128xf32> to vector<1x48xf32>
    %138 = vector.shape_cast %135 : vector<6x6x8x24xf32> to vector<3x2x6x8x24xf32>
    %139 = vector.extract_strided_slice %138 {offsets = [0, 0, 0, 0, 0], sizes = [3, 1, 6, 8, 24], strides = [1, 1, 1, 1, 1]} : vector<3x2x6x8x24xf32> to vector<3x1x6x8x24xf32>
    %140 = vector.shape_cast %139 : vector<3x1x6x8x24xf32> to vector<3x6x8x24xf32>
    %141 = vector.shape_cast %140 : vector<3x6x8x24xf32> to vector<3x3x2x8x24xf32>
    %142 = vector.extract_strided_slice %141 {offsets = [0, 0, 0, 0, 0], sizes = [3, 3, 1, 8, 24], strides = [1, 1, 1, 1, 1]} : vector<3x3x2x8x24xf32> to vector<3x3x1x8x24xf32>
    %143 = vector.shape_cast %142 : vector<3x3x1x8x24xf32> to vector<3x3x8x24xf32>
    %144 = vector.extract_strided_slice %143 {offsets = [0, 0, 0, 0], sizes = [2, 2, 8, 24], strides = [1, 1, 1, 1]} : vector<3x3x8x24xf32> to vector<2x2x8x24xf32>
    %145 = vector.shape_cast %144 : vector<2x2x8x24xf32> to vector<32x24xf32>
    %146 = vector.extract_strided_slice %143 {offsets = [0, 1, 0, 0], sizes = [2, 2, 8, 24], strides = [1, 1, 1, 1]} : vector<3x3x8x24xf32> to vector<2x2x8x24xf32>
    %147 = vector.shape_cast %146 : vector<2x2x8x24xf32> to vector<32x24xf32>
    %148 = vector.extract_strided_slice %143 {offsets = [1, 0, 0, 0], sizes = [2, 2, 8, 24], strides = [1, 1, 1, 1]} : vector<3x3x8x24xf32> to vector<2x2x8x24xf32>
    %149 = vector.shape_cast %148 : vector<2x2x8x24xf32> to vector<32x24xf32>
    %150 = vector.extract_strided_slice %143 {offsets = [1, 1, 0, 0], sizes = [2, 2, 8, 24], strides = [1, 1, 1, 1]} : vector<3x3x8x24xf32> to vector<2x2x8x24xf32>
    %151 = vector.shape_cast %150 : vector<2x2x8x24xf32> to vector<32x24xf32>
    %152 = vector.shape_cast %140 : vector<3x6x8x24xf32> to vector<3x3x2x8x24xf32>
    %153 = vector.extract_strided_slice %152 {offsets = [0, 0, 1, 0, 0], sizes = [3, 3, 1, 8, 24], strides = [1, 1, 1, 1, 1]} : vector<3x3x2x8x24xf32> to vector<3x3x1x8x24xf32>
    %154 = vector.shape_cast %153 : vector<3x3x1x8x24xf32> to vector<3x3x8x24xf32>
    %155 = vector.extract_strided_slice %154 {offsets = [0, 0, 0, 0], sizes = [2, 2, 8, 24], strides = [1, 1, 1, 1]} : vector<3x3x8x24xf32> to vector<2x2x8x24xf32>
    %156 = vector.shape_cast %155 : vector<2x2x8x24xf32> to vector<32x24xf32>
    %157 = vector.extract_strided_slice %154 {offsets = [0, 1, 0, 0], sizes = [2, 2, 8, 24], strides = [1, 1, 1, 1]} : vector<3x3x8x24xf32> to vector<2x2x8x24xf32>
    %158 = vector.shape_cast %157 : vector<2x2x8x24xf32> to vector<32x24xf32>
    %159 = vector.extract_strided_slice %154 {offsets = [1, 0, 0, 0], sizes = [2, 2, 8, 24], strides = [1, 1, 1, 1]} : vector<3x3x8x24xf32> to vector<2x2x8x24xf32>
    %160 = vector.shape_cast %159 : vector<2x2x8x24xf32> to vector<32x24xf32>
    %161 = vector.extract_strided_slice %154 {offsets = [1, 1, 0, 0], sizes = [2, 2, 8, 24], strides = [1, 1, 1, 1]} : vector<3x3x8x24xf32> to vector<2x2x8x24xf32>
    %162 = vector.shape_cast %161 : vector<2x2x8x24xf32> to vector<32x24xf32>
    %163 = vector.shape_cast %135 : vector<6x6x8x24xf32> to vector<3x2x6x8x24xf32>
    %164 = vector.extract_strided_slice %163 {offsets = [0, 1, 0, 0, 0], sizes = [3, 1, 6, 8, 24], strides = [1, 1, 1, 1, 1]} : vector<3x2x6x8x24xf32> to vector<3x1x6x8x24xf32>
    %165 = vector.shape_cast %164 : vector<3x1x6x8x24xf32> to vector<3x6x8x24xf32>
    %166 = vector.shape_cast %165 : vector<3x6x8x24xf32> to vector<3x3x2x8x24xf32>
    %167 = vector.extract_strided_slice %166 {offsets = [0, 0, 0, 0, 0], sizes = [3, 3, 1, 8, 24], strides = [1, 1, 1, 1, 1]} : vector<3x3x2x8x24xf32> to vector<3x3x1x8x24xf32>
    %168 = vector.shape_cast %167 : vector<3x3x1x8x24xf32> to vector<3x3x8x24xf32>
    %169 = vector.extract_strided_slice %168 {offsets = [0, 0, 0, 0], sizes = [2, 2, 8, 24], strides = [1, 1, 1, 1]} : vector<3x3x8x24xf32> to vector<2x2x8x24xf32>
    %170 = vector.shape_cast %169 : vector<2x2x8x24xf32> to vector<32x24xf32>
    %171 = vector.extract_strided_slice %168 {offsets = [0, 1, 0, 0], sizes = [2, 2, 8, 24], strides = [1, 1, 1, 1]} : vector<3x3x8x24xf32> to vector<2x2x8x24xf32>
    %172 = vector.shape_cast %171 : vector<2x2x8x24xf32> to vector<32x24xf32>
    %173 = vector.extract_strided_slice %168 {offsets = [1, 0, 0, 0], sizes = [2, 2, 8, 24], strides = [1, 1, 1, 1]} : vector<3x3x8x24xf32> to vector<2x2x8x24xf32>
    %174 = vector.shape_cast %173 : vector<2x2x8x24xf32> to vector<32x24xf32>
    %175 = vector.extract_strided_slice %168 {offsets = [1, 1, 0, 0], sizes = [2, 2, 8, 24], strides = [1, 1, 1, 1]} : vector<3x3x8x24xf32> to vector<2x2x8x24xf32>
    %176 = vector.shape_cast %175 : vector<2x2x8x24xf32> to vector<32x24xf32>
    %177 = vector.shape_cast %165 : vector<3x6x8x24xf32> to vector<3x3x2x8x24xf32>
    %178 = vector.extract_strided_slice %177 {offsets = [0, 0, 1, 0, 0], sizes = [3, 3, 1, 8, 24], strides = [1, 1, 1, 1, 1]} : vector<3x3x2x8x24xf32> to vector<3x3x1x8x24xf32>
    %179 = vector.shape_cast %178 : vector<3x3x1x8x24xf32> to vector<3x3x8x24xf32>
    %180 = vector.extract_strided_slice %179 {offsets = [0, 0, 0, 0], sizes = [2, 2, 8, 24], strides = [1, 1, 1, 1]} : vector<3x3x8x24xf32> to vector<2x2x8x24xf32>
    %181 = vector.shape_cast %180 : vector<2x2x8x24xf32> to vector<32x24xf32>
    %182 = vector.extract_strided_slice %179 {offsets = [0, 1, 0, 0], sizes = [2, 2, 8, 24], strides = [1, 1, 1, 1]} : vector<3x3x8x24xf32> to vector<2x2x8x24xf32>
    %183 = vector.shape_cast %182 : vector<2x2x8x24xf32> to vector<32x24xf32>
    %184 = vector.extract_strided_slice %179 {offsets = [1, 0, 0, 0], sizes = [2, 2, 8, 24], strides = [1, 1, 1, 1]} : vector<3x3x8x24xf32> to vector<2x2x8x24xf32>
    %185 = vector.shape_cast %184 : vector<2x2x8x24xf32> to vector<32x24xf32>
    %186 = vector.extract_strided_slice %179 {offsets = [1, 1, 0, 0], sizes = [2, 2, 8, 24], strides = [1, 1, 1, 1]} : vector<3x3x8x24xf32> to vector<2x2x8x24xf32>
    %187 = vector.shape_cast %186 : vector<2x2x8x24xf32> to vector<32x24xf32>
    %188 = tpu.concatenate %145, %156, %147, %158, %170, %181, %172, %183, %149, %160, %151, %162, %174, %185, %176, %187 in 1 : vector<32x24xf32>, vector<32x24xf32>, vector<32x24xf32>, vector<32x24xf32>, vector<32x24xf32>, vector<32x24xf32>, vector<32x24xf32>, vector<32x24xf32>, vector<32x24xf32>, vector<32x24xf32>, vector<32x24xf32>, vector<32x24xf32>, vector<32x24xf32>, vector<32x24xf32>, vector<32x24xf32>, vector<32x24xf32> -> vector<32x384xf32>
    %189 = arith.truncf %188 : vector<32x384xf32> to vector<32x384xbf16>
    %cst_52 = arith.constant dense<0.000000e+00> : vector<32x48xf32>
    %190 = tpu.matmul %189, %136, %cst_52 {dimension_numbers = #tpu.dot_dimension_numbers<[1], [0], [0], [1], [0, 0, 1, 1], [], []>} : vector<32x384xbf16>, vector<384x48xbf16>, vector<32x48xf32> -> vector<32x48xf32>
    %191 = vector.broadcast %137 : vector<1x48xf32> to vector<32x48xf32>
    %192 = arith.addf %190, %191 : vector<32x48xf32>
    %cst_53 = arith.constant 0.000000e+00 : f32
    %193 = vector.broadcast %cst_53 : f32 to vector<32x48xf32>
    %194 = arith.maximumf %192, %193 : vector<32x48xf32>
    %195 = vector.shape_cast %194 : vector<32x48xf32> to vector<2x2x8x48xf32>
    %c0_54 = arith.constant 0 : index
    %c0_55 = arith.constant 0 : index
    %c0_56 = arith.constant 0 : index
    %c0_57 = arith.constant 0 : index
    %196 = vector.load %arg4[%c0_54, %c0_55, %c0_56, %c0_57] : memref<2x2x8x48xf32, #tpu.memory_space<vmem>>, vector<2x2x8x48xf32>
    tpu.vector_store %arg4[%c0_54, %c0_55, %c0_56, %c0_57], %195 {strides = array<i32>} : memref<2x2x8x48xf32, #tpu.memory_space<vmem>>, vector<2x2x8x48xf32>,
    %c1_58 = arith.constant 1 : index
    %c1_59 = arith.constant 1 : index
    %c0_60 = arith.constant 0 : index
    %c0_61 = arith.constant 0 : index
    %197 = vector.load %arg7[%c1_58, %c1_59, %c0_60, %c0_61] : memref<4x4x8x48xf32, #tpu.memory_space<vmem>>, vector<2x2x8x48xf32>
    tpu.vector_store %arg7[%c1_58, %c1_59, %c0_60, %c0_61], %195 {strides = array<i32>} : memref<4x4x8x48xf32, #tpu.memory_space<vmem>>, vector<2x2x8x48xf32>,
    %c0_62 = arith.constant 0 : index
    %c0_63 = arith.constant 0 : index
    %c0_64 = arith.constant 0 : index
    %c0_65 = arith.constant 0 : index
    %198 = vector.load %arg7[%c0_62, %c0_63, %c0_64, %c0_65] : memref<4x4x8x48xf32, #tpu.memory_space<vmem>>, vector<4x4x8x48xf32>
    %c704 = arith.constant 704 : index
    %c0_66 = arith.constant 0 : index
    %199 = vector.load %arg1[%c704, %c0_66] : memref<1464x128xbf16, #tpu.memory_space<vmem>>, vector<432x96xbf16>
    %200 = vector.extract_strided_slice %0 {offsets = [3, 0], sizes = [1, 96], strides = [1, 1]} : vector<8x128xf32> to vector<1x96xf32>
    %201 = vector.extract_strided_slice %198 {offsets = [0, 0, 0, 0], sizes = [2, 2, 8, 48], strides = [1, 1, 1, 1]} : vector<4x4x8x48xf32> to vector<2x2x8x48xf32>
    %202 = vector.shape_cast %201 : vector<2x2x8x48xf32> to vector<32x48xf32>
    %203 = vector.extract_strided_slice %198 {offsets = [0, 1, 0, 0], sizes = [2, 2, 8, 48], strides = [1, 1, 1, 1]} : vector<4x4x8x48xf32> to vector<2x2x8x48xf32>
    %204 = vector.shape_cast %203 : vector<2x2x8x48xf32> to vector<32x48xf32>
    %205 = vector.extract_strided_slice %198 {offsets = [0, 2, 0, 0], sizes = [2, 2, 8, 48], strides = [1, 1, 1, 1]} : vector<4x4x8x48xf32> to vector<2x2x8x48xf32>
    %206 = vector.shape_cast %205 : vector<2x2x8x48xf32> to vector<32x48xf32>
    %207 = vector.extract_strided_slice %198 {offsets = [1, 0, 0, 0], sizes = [2, 2, 8, 48], strides = [1, 1, 1, 1]} : vector<4x4x8x48xf32> to vector<2x2x8x48xf32>
    %208 = vector.shape_cast %207 : vector<2x2x8x48xf32> to vector<32x48xf32>
    %209 = vector.extract_strided_slice %198 {offsets = [1, 1, 0, 0], sizes = [2, 2, 8, 48], strides = [1, 1, 1, 1]} : vector<4x4x8x48xf32> to vector<2x2x8x48xf32>
    %210 = vector.shape_cast %209 : vector<2x2x8x48xf32> to vector<32x48xf32>
    %211 = vector.extract_strided_slice %198 {offsets = [1, 2, 0, 0], sizes = [2, 2, 8, 48], strides = [1, 1, 1, 1]} : vector<4x4x8x48xf32> to vector<2x2x8x48xf32>
    %212 = vector.shape_cast %211 : vector<2x2x8x48xf32> to vector<32x48xf32>
    %213 = vector.extract_strided_slice %198 {offsets = [2, 0, 0, 0], sizes = [2, 2, 8, 48], strides = [1, 1, 1, 1]} : vector<4x4x8x48xf32> to vector<2x2x8x48xf32>
    %214 = vector.shape_cast %213 : vector<2x2x8x48xf32> to vector<32x48xf32>
    %215 = vector.extract_strided_slice %198 {offsets = [2, 1, 0, 0], sizes = [2, 2, 8, 48], strides = [1, 1, 1, 1]} : vector<4x4x8x48xf32> to vector<2x2x8x48xf32>
    %216 = vector.shape_cast %215 : vector<2x2x8x48xf32> to vector<32x48xf32>
    %217 = vector.extract_strided_slice %198 {offsets = [2, 2, 0, 0], sizes = [2, 2, 8, 48], strides = [1, 1, 1, 1]} : vector<4x4x8x48xf32> to vector<2x2x8x48xf32>
    %218 = vector.shape_cast %217 : vector<2x2x8x48xf32> to vector<32x48xf32>
    %219 = tpu.concatenate %202, %204, %206, %208, %210, %212, %214, %216, %218 in 1 : vector<32x48xf32>, vector<32x48xf32>, vector<32x48xf32>, vector<32x48xf32>, vector<32x48xf32>, vector<32x48xf32>, vector<32x48xf32>, vector<32x48xf32>, vector<32x48xf32> -> vector<32x432xf32>
    %220 = arith.truncf %219 : vector<32x432xf32> to vector<32x432xbf16>
    %cst_67 = arith.constant dense<0.000000e+00> : vector<32x96xf32>
    %221 = tpu.matmul %220, %199, %cst_67 {dimension_numbers = #tpu.dot_dimension_numbers<[1], [0], [0], [1], [0, 0, 1, 1], [], []>} : vector<32x432xbf16>, vector<432x96xbf16>, vector<32x96xf32> -> vector<32x96xf32>
    %222 = vector.broadcast %200 : vector<1x96xf32> to vector<32x96xf32>
    %223 = arith.addf %221, %222 : vector<32x96xf32>
    %cst_68 = arith.constant 0.000000e+00 : f32
    %224 = vector.broadcast %cst_68 : f32 to vector<32x96xf32>
    %225 = arith.maximumf %223, %224 : vector<32x96xf32>
    %226 = vector.shape_cast %225 : vector<32x96xf32> to vector<2x2x8x96xf32>
    %227 = vector.extract_strided_slice %226 {offsets = [0, 0, 0, 0], sizes = [2, 2, 8, 24], strides = [1, 1, 1, 1]} : vector<2x2x8x96xf32> to vector<2x2x8x24xf32>
    %228 = vector.extract_strided_slice %226 {offsets = [0, 0, 0, 24], sizes = [2, 2, 8, 24], strides = [1, 1, 1, 1]} : vector<2x2x8x96xf32> to vector<2x2x8x24xf32>
    %229 = vector.extract_strided_slice %226 {offsets = [0, 0, 0, 48], sizes = [2, 2, 8, 24], strides = [1, 1, 1, 1]} : vector<2x2x8x96xf32> to vector<2x2x8x24xf32>
    %230 = vector.extract_strided_slice %226 {offsets = [0, 0, 0, 72], sizes = [2, 2, 8, 24], strides = [1, 1, 1, 1]} : vector<2x2x8x96xf32> to vector<2x2x8x24xf32>
    %231 = vector.shape_cast %227 : vector<2x2x8x24xf32> to vector<2x2x1x8x24xf32>
    %232 = vector.shape_cast %228 : vector<2x2x8x24xf32> to vector<2x2x1x8x24xf32>
    %233 = tpu.concatenate %231, %232 in 2 : vector<2x2x1x8x24xf32>, vector<2x2x1x8x24xf32> -> vector<2x2x2x8x24xf32>
    %234 = vector.shape_cast %233 : vector<2x2x2x8x24xf32> to vector<2x4x8x24xf32>
    %235 = vector.shape_cast %229 : vector<2x2x8x24xf32> to vector<2x2x1x8x24xf32>
    %236 = vector.shape_cast %230 : vector<2x2x8x24xf32> to vector<2x2x1x8x24xf32>
    %237 = tpu.concatenate %235, %236 in 2 : vector<2x2x1x8x24xf32>, vector<2x2x1x8x24xf32> -> vector<2x2x2x8x24xf32>
    %238 = vector.shape_cast %237 : vector<2x2x2x8x24xf32> to vector<2x4x8x24xf32>
    %239 = vector.shape_cast %234 : vector<2x4x8x24xf32> to vector<2x1x4x8x24xf32>
    %240 = vector.shape_cast %238 : vector<2x4x8x24xf32> to vector<2x1x4x8x24xf32>
    %241 = tpu.concatenate %239, %240 in 1 : vector<2x1x4x8x24xf32>, vector<2x1x4x8x24xf32> -> vector<2x2x4x8x24xf32>
    %242 = vector.shape_cast %241 : vector<2x2x4x8x24xf32> to vector<4x4x8x24xf32>
    %c1_69 = arith.constant 1 : index
    %c1_70 = arith.constant 1 : index
    %c0_71 = arith.constant 0 : index
    %c0_72 = arith.constant 0 : index
    %243 = vector.load %arg8[%c1_69, %c1_70, %c0_71, %c0_72] : memref<6x6x8x24xf32, #tpu.memory_space<vmem>>, vector<4x4x8x24xf32>
    tpu.vector_store %arg8[%c1_69, %c1_70, %c0_71, %c0_72], %242 {strides = array<i32>} : memref<6x6x8x24xf32, #tpu.memory_space<vmem>>, vector<4x4x8x24xf32>,
    %c0_73 = arith.constant 0 : index
    %c0_74 = arith.constant 0 : index
    %c0_75 = arith.constant 0 : index
    %c0_76 = arith.constant 0 : index
    %244 = vector.load %arg8[%c0_73, %c0_74, %c0_75, %c0_76] : memref<6x6x8x24xf32, #tpu.memory_space<vmem>>, vector<6x6x8x24xf32>
    %c1136 = arith.constant 1136 : index
    %c0_77 = arith.constant 0 : index
    %245 = vector.load %arg1[%c1136, %c0_77] : memref<1464x128xbf16, #tpu.memory_space<vmem>>, vector<216x48xbf16>
    %246 = vector.extract_strided_slice %0 {offsets = [4, 0], sizes = [1, 48], strides = [1, 1]} : vector<8x128xf32> to vector<1x48xf32>
    %247 = vector.extract_strided_slice %244 {offsets = [0, 0, 0, 0], sizes = [4, 4, 8, 24], strides = [1, 1, 1, 1]} : vector<6x6x8x24xf32> to vector<4x4x8x24xf32>
    %248 = vector.shape_cast %247 : vector<4x4x8x24xf32> to vector<128x24xf32>
    %249 = vector.extract_strided_slice %244 {offsets = [0, 1, 0, 0], sizes = [4, 4, 8, 24], strides = [1, 1, 1, 1]} : vector<6x6x8x24xf32> to vector<4x4x8x24xf32>
    %250 = vector.shape_cast %249 : vector<4x4x8x24xf32> to vector<128x24xf32>
    %251 = vector.extract_strided_slice %244 {offsets = [0, 2, 0, 0], sizes = [4, 4, 8, 24], strides = [1, 1, 1, 1]} : vector<6x6x8x24xf32> to vector<4x4x8x24xf32>
    %252 = vector.shape_cast %251 : vector<4x4x8x24xf32> to vector<128x24xf32>
    %253 = vector.extract_strided_slice %244 {offsets = [1, 0, 0, 0], sizes = [4, 4, 8, 24], strides = [1, 1, 1, 1]} : vector<6x6x8x24xf32> to vector<4x4x8x24xf32>
    %254 = vector.shape_cast %253 : vector<4x4x8x24xf32> to vector<128x24xf32>
    %255 = vector.extract_strided_slice %244 {offsets = [1, 1, 0, 0], sizes = [4, 4, 8, 24], strides = [1, 1, 1, 1]} : vector<6x6x8x24xf32> to vector<4x4x8x24xf32>
    %256 = vector.shape_cast %255 : vector<4x4x8x24xf32> to vector<128x24xf32>
    %257 = vector.extract_strided_slice %244 {offsets = [1, 2, 0, 0], sizes = [4, 4, 8, 24], strides = [1, 1, 1, 1]} : vector<6x6x8x24xf32> to vector<4x4x8x24xf32>
    %258 = vector.shape_cast %257 : vector<4x4x8x24xf32> to vector<128x24xf32>
    %259 = vector.extract_strided_slice %244 {offsets = [2, 0, 0, 0], sizes = [4, 4, 8, 24], strides = [1, 1, 1, 1]} : vector<6x6x8x24xf32> to vector<4x4x8x24xf32>
    %260 = vector.shape_cast %259 : vector<4x4x8x24xf32> to vector<128x24xf32>
    %261 = vector.extract_strided_slice %244 {offsets = [2, 1, 0, 0], sizes = [4, 4, 8, 24], strides = [1, 1, 1, 1]} : vector<6x6x8x24xf32> to vector<4x4x8x24xf32>
    %262 = vector.shape_cast %261 : vector<4x4x8x24xf32> to vector<128x24xf32>
    %263 = vector.extract_strided_slice %244 {offsets = [2, 2, 0, 0], sizes = [4, 4, 8, 24], strides = [1, 1, 1, 1]} : vector<6x6x8x24xf32> to vector<4x4x8x24xf32>
    %264 = vector.shape_cast %263 : vector<4x4x8x24xf32> to vector<128x24xf32>
    %265 = tpu.concatenate %248, %250, %252, %254, %256, %258, %260, %262, %264 in 1 : vector<128x24xf32>, vector<128x24xf32>, vector<128x24xf32>, vector<128x24xf32>, vector<128x24xf32>, vector<128x24xf32>, vector<128x24xf32>, vector<128x24xf32>, vector<128x24xf32> -> vector<128x216xf32>
    %266 = arith.truncf %265 : vector<128x216xf32> to vector<128x216xbf16>
    %cst_78 = arith.constant dense<0.000000e+00> : vector<128x48xf32>
    %267 = tpu.matmul %266, %245, %cst_78 {dimension_numbers = #tpu.dot_dimension_numbers<[1], [0], [0], [1], [0, 0, 1, 1], [], []>} : vector<128x216xbf16>, vector<216x48xbf16>, vector<128x48xf32> -> vector<128x48xf32>
    %268 = vector.broadcast %246 : vector<1x48xf32> to vector<128x48xf32>
    %269 = arith.addf %267, %268 : vector<128x48xf32>
    %cst_79 = arith.constant 0.000000e+00 : f32
    %270 = vector.broadcast %cst_79 : f32 to vector<128x48xf32>
    %271 = arith.maximumf %269, %270 : vector<128x48xf32>
    %272 = vector.shape_cast %271 : vector<128x48xf32> to vector<4x4x8x48xf32>
    %273 = vector.extract_strided_slice %272 {offsets = [0, 0, 0, 0], sizes = [4, 4, 8, 12], strides = [1, 1, 1, 1]} : vector<4x4x8x48xf32> to vector<4x4x8x12xf32>
    %274 = vector.extract_strided_slice %272 {offsets = [0, 0, 0, 12], sizes = [4, 4, 8, 12], strides = [1, 1, 1, 1]} : vector<4x4x8x48xf32> to vector<4x4x8x12xf32>
    %275 = vector.extract_strided_slice %272 {offsets = [0, 0, 0, 24], sizes = [4, 4, 8, 12], strides = [1, 1, 1, 1]} : vector<4x4x8x48xf32> to vector<4x4x8x12xf32>
    %276 = vector.extract_strided_slice %272 {offsets = [0, 0, 0, 36], sizes = [4, 4, 8, 12], strides = [1, 1, 1, 1]} : vector<4x4x8x48xf32> to vector<4x4x8x12xf32>
    %277 = vector.shape_cast %273 : vector<4x4x8x12xf32> to vector<4x4x1x8x12xf32>
    %278 = vector.shape_cast %274 : vector<4x4x8x12xf32> to vector<4x4x1x8x12xf32>
    %279 = tpu.concatenate %277, %278 in 2 : vector<4x4x1x8x12xf32>, vector<4x4x1x8x12xf32> -> vector<4x4x2x8x12xf32>
    %280 = vector.shape_cast %279 : vector<4x4x2x8x12xf32> to vector<4x8x8x12xf32>
    %281 = vector.shape_cast %275 : vector<4x4x8x12xf32> to vector<4x4x1x8x12xf32>
    %282 = vector.shape_cast %276 : vector<4x4x8x12xf32> to vector<4x4x1x8x12xf32>
    %283 = tpu.concatenate %281, %282 in 2 : vector<4x4x1x8x12xf32>, vector<4x4x1x8x12xf32> -> vector<4x4x2x8x12xf32>
    %284 = vector.shape_cast %283 : vector<4x4x2x8x12xf32> to vector<4x8x8x12xf32>
    %285 = vector.shape_cast %280 : vector<4x8x8x12xf32> to vector<4x1x8x8x12xf32>
    %286 = vector.shape_cast %284 : vector<4x8x8x12xf32> to vector<4x1x8x8x12xf32>
    %287 = tpu.concatenate %285, %286 in 1 : vector<4x1x8x8x12xf32>, vector<4x1x8x8x12xf32> -> vector<4x2x8x8x12xf32>
    %288 = vector.shape_cast %287 : vector<4x2x8x8x12xf32> to vector<8x8x8x12xf32>
    %c1_80 = arith.constant 1 : index
    %c1_81 = arith.constant 1 : index
    %c0_82 = arith.constant 0 : index
    %c0_83 = arith.constant 0 : index
    %289 = vector.load %arg9[%c1_80, %c1_81, %c0_82, %c0_83] : memref<10x10x8x12xf32, #tpu.memory_space<vmem>>, vector<8x8x8x12xf32>
    tpu.vector_store %arg9[%c1_80, %c1_81, %c0_82, %c0_83], %288 {strides = array<i32>} : memref<10x10x8x12xf32, #tpu.memory_space<vmem>>, vector<8x8x8x12xf32>,
    %c0_84 = arith.constant 0 : index
    %c0_85 = arith.constant 0 : index
    %c0_86 = arith.constant 0 : index
    %c0_87 = arith.constant 0 : index
    %290 = vector.load %arg9[%c0_84, %c0_85, %c0_86, %c0_87] : memref<10x10x8x12xf32, #tpu.memory_space<vmem>>, vector<10x10x8x12xf32>
    %c1352 = arith.constant 1352 : index
    %c0_88 = arith.constant 0 : index
    %291 = vector.load %arg1[%c1352, %c0_88] : memref<1464x128xbf16, #tpu.memory_space<vmem>>, vector<108x16xbf16>
    %292 = vector.extract_strided_slice %0 {offsets = [5, 0], sizes = [1, 16], strides = [1, 1]} : vector<8x128xf32> to vector<1x16xf32>
    %293 = vector.extract_strided_slice %290 {offsets = [0, 0, 0, 0], sizes = [8, 8, 8, 12], strides = [1, 1, 1, 1]} : vector<10x10x8x12xf32> to vector<8x8x8x12xf32>
    %294 = vector.shape_cast %293 : vector<8x8x8x12xf32> to vector<512x12xf32>
    %295 = vector.extract_strided_slice %290 {offsets = [0, 1, 0, 0], sizes = [8, 8, 8, 12], strides = [1, 1, 1, 1]} : vector<10x10x8x12xf32> to vector<8x8x8x12xf32>
    %296 = vector.shape_cast %295 : vector<8x8x8x12xf32> to vector<512x12xf32>
    %297 = vector.extract_strided_slice %290 {offsets = [0, 2, 0, 0], sizes = [8, 8, 8, 12], strides = [1, 1, 1, 1]} : vector<10x10x8x12xf32> to vector<8x8x8x12xf32>
    %298 = vector.shape_cast %297 : vector<8x8x8x12xf32> to vector<512x12xf32>
    %299 = vector.extract_strided_slice %290 {offsets = [1, 0, 0, 0], sizes = [8, 8, 8, 12], strides = [1, 1, 1, 1]} : vector<10x10x8x12xf32> to vector<8x8x8x12xf32>
    %300 = vector.shape_cast %299 : vector<8x8x8x12xf32> to vector<512x12xf32>
    %301 = vector.extract_strided_slice %290 {offsets = [1, 1, 0, 0], sizes = [8, 8, 8, 12], strides = [1, 1, 1, 1]} : vector<10x10x8x12xf32> to vector<8x8x8x12xf32>
    %302 = vector.shape_cast %301 : vector<8x8x8x12xf32> to vector<512x12xf32>
    %303 = vector.extract_strided_slice %290 {offsets = [1, 2, 0, 0], sizes = [8, 8, 8, 12], strides = [1, 1, 1, 1]} : vector<10x10x8x12xf32> to vector<8x8x8x12xf32>
    %304 = vector.shape_cast %303 : vector<8x8x8x12xf32> to vector<512x12xf32>
    %305 = vector.extract_strided_slice %290 {offsets = [2, 0, 0, 0], sizes = [8, 8, 8, 12], strides = [1, 1, 1, 1]} : vector<10x10x8x12xf32> to vector<8x8x8x12xf32>
    %306 = vector.shape_cast %305 : vector<8x8x8x12xf32> to vector<512x12xf32>
    %307 = vector.extract_strided_slice %290 {offsets = [2, 1, 0, 0], sizes = [8, 8, 8, 12], strides = [1, 1, 1, 1]} : vector<10x10x8x12xf32> to vector<8x8x8x12xf32>
    %308 = vector.shape_cast %307 : vector<8x8x8x12xf32> to vector<512x12xf32>
    %309 = vector.extract_strided_slice %290 {offsets = [2, 2, 0, 0], sizes = [8, 8, 8, 12], strides = [1, 1, 1, 1]} : vector<10x10x8x12xf32> to vector<8x8x8x12xf32>
    %310 = vector.shape_cast %309 : vector<8x8x8x12xf32> to vector<512x12xf32>
    %311 = tpu.concatenate %294, %296, %298, %300, %302, %304, %306, %308, %310 in 1 : vector<512x12xf32>, vector<512x12xf32>, vector<512x12xf32>, vector<512x12xf32>, vector<512x12xf32>, vector<512x12xf32>, vector<512x12xf32>, vector<512x12xf32>, vector<512x12xf32> -> vector<512x108xf32>
    %312 = arith.truncf %311 : vector<512x108xf32> to vector<512x108xbf16>
    %cst_89 = arith.constant dense<0.000000e+00> : vector<512x16xf32>
    %313 = tpu.matmul %312, %291, %cst_89 {dimension_numbers = #tpu.dot_dimension_numbers<[1], [0], [0], [1], [0, 0, 1, 1], [], []>} : vector<512x108xbf16>, vector<108x16xbf16>, vector<512x16xf32> -> vector<512x16xf32>
    %314 = vector.broadcast %292 : vector<1x16xf32> to vector<512x16xf32>
    %315 = arith.addf %313, %314 : vector<512x16xf32>
    %cst_90 = arith.constant 0.000000e+00 : f32
    %316 = vector.broadcast %cst_90 : f32 to vector<512x16xf32>
    %317 = arith.subf %316, %315 : vector<512x16xf32>
    %318 = math.exp %317 : vector<512x16xf32>
    %cst_91 = arith.constant 1.000000e+00 : f32
    %319 = vector.broadcast %cst_91 : f32 to vector<512x16xf32>
    %320 = arith.addf %319, %318 : vector<512x16xf32>
    %321 = tpu.reciprocal %320 {approx = true} : vector<512x16xf32> -> vector<512x16xf32>
    %322 = vector.shape_cast %321 : vector<512x16xf32> to vector<8x8x8x16xf32>
    %c0_92 = arith.constant 0 : index
    %c0_93 = arith.constant 0 : index
    %c0_94 = arith.constant 0 : index
    %c0_95 = arith.constant 0 : index
    %323 = vector.load %arg3[%c0_92, %c0_93, %c0_94, %c0_95] : memref<8x8x8x16xf32, #tpu.memory_space<vmem>>, vector<8x8x8x16xf32>
    tpu.vector_store %arg3[%c0_92, %c0_93, %c0_94, %c0_95], %322 {strides = array<i32>} : memref<8x8x8x16xf32, #tpu.memory_space<vmem>>, vector<8x8x8x16xf32>,
    return
  }
}

</mosaic_0001>

<llo_original>
// kernel: tile.28
$region0: #{tile.28}
  #allocation0 [shape = 's32[1]{0}', space=sflag, size = 0x4, scoped, tag = 'scoped memory for tile.28']
  %s0 = inlined_call_operand.vmem [shape: f32[4], index: 0, kind: input, shape index: {}]
  %s1 = inlined_call_operand.vmem [shape: f32[4,4], index: 1, kind: output, shape index: {}]
  // Predicated region
  $region2: #{tile.28} parent=0 // pred_check
    _
  $region3: #{tile.28} parent=0 // pred_check_branch
    %3 = sbr.rel (0) target = $region5
  $region4: #{tile.28} parent=0 // pred_region
    _
  $region5: #{tile.28} parent=0 // pred_fallthru
    _
  %v4 = vld [vmem:[%s0] ss:$0 sm:$0xff]
  %5 = vst [vmem:[%s1] sm:$0xf] %v4

// kernel: tile.18
$region0: #{tile.18}
  #allocation2 [shape = 's32[1]{0}', space=sflag, size = 0x4, scoped, tag = 'scoped memory for tile.18']
  %s0 = inlined_call_operand.hbm [shape: f32[24], index: 0, kind: input, shape index: {}]
  %s1 = inlined_call_operand.vmem [shape: f32[4,24], index: 1, kind: output, shape index: {}]
  $region1: #{tile.18} parent=0
    #allocation0 [shape = 'u8[512]{0}', space=vmem, size = 0x400, scoped, tag = 'operand span for operand 0']
    #allocation1 [shape = 's32[1]{0}', space=sflag, size = 0x4, scoped, tag = 'scoped memory for tile.18']
    %2 = vsyncpa [#allocation1], 0
    // Predicated region
    $region2: #{tile.18} parent=1 // pred_check
      _
    $region3: #{tile.18} parent=1 // pred_check_branch
      %4 = sbr.rel (0) target = $region5
    $region4: #{tile.18} parent=1 // pred_region
      %s6 = ssub.s32 16, 16
      %7 = vsyncadd [#allocation1], %s6
      %s9 = sshll.u32 [#allocation0], 4
      %s10 = int_to_ptr.vmem [resolvable:$true] %s9
      %12 = dma.hbm_to_vmem [thread:$0]  %s0, 16, %s10, [#allocation1]
    $region5: #{tile.18} parent=1 // pred_fallthru
      _
    // Predicated region
    $region6: #{tile.18} parent=1 // pred_check
      _
    $region7: #{tile.18} parent=1 // pred_check_branch
      %14 = sbr.rel (0) target = $region9
    $region8: #{tile.18} parent=1 // pred_region
      %15 = dma.done [#allocation1], 16
    $region9: #{tile.18} parent=1 // pred_fallthru
      _
    %v16 = vld [vmem:[#allocation0] ss:$0 sm:$0xff]
    %17 = vst [vmem:[%s1] sm:$0xf] %v16
    %18 = vsyncpa [#allocation1], 1

// kernel: tile.23
$region0: #{tile.23}
  #allocation2 [shape = 's32[1]{0}', space=sflag, size = 0x4, scoped, tag = 'scoped memory for tile.23']
  %s0 = inlined_call_operand.hbm [shape: f32[12], index: 0, kind: input, shape index: {}]
  %s1 = inlined_call_operand.vmem [shape: f32[4,12], index: 1, kind: output, shape index: {}]
  $region1: #{tile.23} parent=0
    #allocation0 [shape = 'u8[512]{0}', space=vmem, size = 0x400, scoped, tag = 'operand span for operand 0']
    #allocation1 [shape = 's32[1]{0}', space=sflag, size = 0x4, scoped, tag = 'scoped memory for tile.23']
    %2 = vsyncpa [#allocation1], 0
    // Predicated region
    $region2: #{tile.23} parent=1 // pred_check
      _
    $region3: #{tile.23} parent=1 // pred_check_branch
      %4 = sbr.rel (0) target = $region5
    $region4: #{tile.23} parent=1 // pred_region
      %s6 = ssub.s32 16, 16
      %7 = vsyncadd [#allocation1], %s6
      %s9 = sshll.u32 [#allocation0], 4
      %s10 = int_to_ptr.vmem [resolvable:$true] %s9
      %12 = dma.hbm_to_vmem [thread:$0]  %s0, 16, %s10, [#allocation1]
    $region5: #{tile.23} parent=1 // pred_fallthru
      _
    // Predicated region
    $region6: #{tile.23} parent=1 // pred_check
      _
    $region7: #{tile.23} parent=1 // pred_check_branch
      %14 = sbr.rel (0) target = $region9
    $region8: #{tile.23} parent=1 // pred_region
      %15 = dma.done [#allocation1], 16
    $region9: #{tile.23} parent=1 // pred_fallthru
      _
    %v16 = vld [vmem:[#allocation0] ss:$0 sm:$0xff]
    %17 = vst [vmem:[%s1] sm:$0xf] %v16
    %18 = vsyncpa [#allocation1], 1

// kernel: conv_autoencoder_forward.1
$region0: #{conv_autoencoder_forward.1}
  #allocation0 [shape = 'u32[]', space=smem, size = 0x4, offset = 0x4, fixed_abs, tag = 'smem constant byte address 0x4 - core index']
  #allocation1 [shape = 'u32[144,128]{1,0:T(1,128)}', space=vmem, size = 0x12000, scoped, tag = 'internal scratch']
  #allocation2 [shape = 'f32[10,10,8,12]{3,2,1,0:T(8,128)}', space=vmem, size = 0x64000, scoped, tag = 'scratch operand']
  #allocation3 [shape = 'f32[6,6,8,24]{3,2,1,0:T(8,128)}', space=vmem, size = 0x24000, scoped, tag = 'scratch operand']
  #allocation4 [shape = 'f32[4,4,8,48]{3,2,1,0:T(8,128)}', space=vmem, size = 0x10000, scoped, tag = 'scratch operand']
  #allocation5 [shape = 'f32[6,6,8,24]{3,2,1,0:T(8,128)}', space=vmem, size = 0x24000, scoped, tag = 'scratch operand']
  #allocation6 [shape = 'f32[10,10,8,12]{3,2,1,0:T(8,128)}', space=vmem, size = 0x64000, scoped, tag = 'scratch operand']
  %s0 = inlined_call_operand.vmem [shape: f32[18,18,8,8], index: 0, kind: input, shape index: {}]
  %s1 = inlined_call_operand.vmem [shape: bf16[1464,128], index: 1, kind: input, shape index: {}]
  %s2 = inlined_call_operand.vmem [shape: f32[8,128], index: 2, kind: input, shape index: {}]
  %s3 = inlined_call_operand.vmem [shape: f32[8,8,8,16], index: 3, kind: output, shape index: {0}]
  %s4 = inlined_call_operand.vmem [shape: f32[2,2,8,48], index: 4, kind: output, shape index: {1}]
  %5 = xla_tuple %s3, %s4
  %s6 = sld [smem:[#allocation0]]
  $region30: #{conv_autoencoder_forward.1} parent=0
    _
  %s8 = ssub.s32 1, %s6
  %s9 = scalar_select 0, %s8, %s6
  // Predicated region
  $region2: #{conv_autoencoder_forward.1} parent=0 // pred_check
    _
  $region3: #{conv_autoencoder_forward.1} parent=0 // pred_check_branch
    %11 = sbr.rel (0) target = $region5
  $region4: #{conv_autoencoder_forward.1} parent=0 // pred_region
    _
  $region5: #{conv_autoencoder_forward.1} parent=0 // pred_fallthru
    _
  // Predicated region
  $region6: #{conv_autoencoder_forward.1} parent=0 // pred_check
    _
  $region7: #{conv_autoencoder_forward.1} parent=0 // pred_check_branch
    %13 = sbr.rel (0) target = $region9
  $region8: #{conv_autoencoder_forward.1} parent=0 // pred_region
    _
  $region9: #{conv_autoencoder_forward.1} parent=0 // pred_fallthru
    _
  // Predicated region
  $region10: #{conv_autoencoder_forward.1} parent=0 // pred_check
    _
  $region11: #{conv_autoencoder_forward.1} parent=0 // pred_check_branch
    %15 = sbr.rel (0) target = $region13
  $region12: #{conv_autoencoder_forward.1} parent=0 // pred_region
    _
  $region13: #{conv_autoencoder_forward.1} parent=0 // pred_fallthru
    _
  %v17 = vld [vmem:[%s2] sm:$0xff]
  %vm18 = vcmask 97280
  %19 = vst.msk [vmem:[#allocation2] sm:$0xff] %vm18, 0.0
  %20 = vst.msk [vmem:[#allocation2 + $0x8] sm:$0xff] %vm18, 0.0
  %21 = vst.msk [vmem:[#allocation2 + $0x10] sm:$0xff] %vm18, 0.0
  %22 = vst.msk [vmem:[#allocation2 + $0x18] sm:$0xff] %vm18, 0.0
  %23 = vst.msk [vmem:[#allocation2 + $0x20] sm:$0xff] %vm18, 0.0
  %24 = vst.msk [vmem:[#allocation2 + $0x28] sm:$0xff] %vm18, 0.0
  %25 = vst.msk [vmem:[#allocation2 + $0x30] sm:$0xff] %vm18, 0.0
  %26 = vst.msk [vmem:[#allocation2 + $0x38] sm:$0xff] %vm18, 0.0
  %27 = vst.msk [vmem:[#allocation2 + $0x40] sm:$0xff] %vm18, 0.0
  %28 = vst.msk [vmem:[#allocation2 + $0x48] sm:$0xff] %vm18, 0.0
  %29 = vst.msk [vmem:[#allocation2 + $0x50] sm:$0xff] %vm18, 0.0
  %30 = vst.msk [vmem:[#allocation2 + $0x58] sm:$0xff] %vm18, 0.0
  %31 = vst.msk [vmem:[#allocation2 + $0x60] sm:$0xff] %vm18, 0.0
  %32 = vst.msk [vmem:[#allocation2 + $0x68] sm:$0xff] %vm18, 0.0
  %33 = vst.msk [vmem:[#allocation2 + $0x70] sm:$0xff] %vm18, 0.0
  %34 = vst.msk [vmem:[#allocation2 + $0x78] sm:$0xff] %vm18, 0.0
  %35 = vst.msk [vmem:[#allocation2 + $0x80] sm:$0xff] %vm18, 0.0
  %36 = vst.msk [vmem:[#allocation2 + $0x88] sm:$0xff] %vm18, 0.0
  %37 = vst.msk [vmem:[#allocation2 + $0x90] sm:$0xff] %vm18, 0.0
  %38 = vst.msk [vmem:[#allocation2 + $0x98] sm:$0xff] %vm18, 0.0
  %39 = vst.msk [vmem:[#allocation2 + $0xa0] sm:$0xff] %vm18, 0.0
  %40 = vst.msk [vmem:[#allocation2 + $0xa8] sm:$0xff] %vm18, 0.0
  %41 = vst.msk [vmem:[#allocation2 + $0xb0] sm:$0xff] %vm18, 0.0
  %42 = vst.msk [vmem:[#allocation2 + $0xb8] sm:$0xff] %vm18, 0.0
  %43 = vst.msk [vmem:[#allocation2 + $0xc0] sm:$0xff] %vm18, 0.0
  %44 = vst.msk [vmem:[#allocation2 + $0xc8] sm:$0xff] %vm18, 0.0
  %45 = vst.msk [vmem:[#allocation2 + $0xd0] sm:$0xff] %vm18, 0.0
  %46 = vst.msk [vmem:[#allocation2 + $0xd8] sm:$0xff] %vm18, 0.0
  %47 = vst.msk [vmem:[#allocation2 + $0xe0] sm:$0xff] %vm18, 0.0
  %48 = vst.msk [vmem:[#allocation2 + $0xe8] sm:$0xff] %vm18, 0.0
  %49 = vst.msk [vmem:[#allocation2 + $0xf0] sm:$0xff] %vm18, 0.0
  %50 = vst.msk [vmem:[#allocation2 + $0xf8] sm:$0xff] %vm18, 0.0
  %51 = vst.msk [vmem:[#allocation2 + $0x100] sm:$0xff] %vm18, 0.0
  %52 = vst.msk [vmem:[#allocation2 + $0x108] sm:$0xff] %vm18, 0.0
  %53 = vst.msk [vmem:[#allocation2 + $0x110] sm:$0xff] %vm18, 0.0
  %54 = vst.msk [vmem:[#allocation2 + $0x118] sm:$0xff] %vm18, 0.0
  %55 = vst.msk [vmem:[#allocation2 + $0x120] sm:$0xff] %vm18, 0.0
  %56 = vst.msk [vmem:[#allocation2 + $0x128] sm:$0xff] %vm18, 0.0
  %57 = vst.msk [vmem:[#allocation2 + $0x130] sm:$0xff] %vm18, 0.0
  %58 = vst.msk [vmem:[#allocation2 + $0x138] sm:$0xff] %vm18, 0.0
  %59 = vst.msk [vmem:[#allocation2 + $0x140] sm:$0xff] %vm18, 0.0
  %60 = vst.msk [vmem:[#allocation2 + $0x148] sm:$0xff] %vm18, 0.0
  %61 = vst.msk [vmem:[#allocation2 + $0x150] sm:$0xff] %vm18, 0.0
  %62 = vst.msk [vmem:[#allocation2 + $0x158] sm:$0xff] %vm18, 0.0
  %63 = vst.msk [vmem:[#allocation2 + $0x160] sm:$0xff] %vm18, 0.0
  %64 = vst.msk [vmem:[#allocation2 + $0x168] sm:$0xff] %vm18, 0.0
  %65 = vst.msk [vmem:[#allocation2 + $0x170] sm:$0xff] %vm18, 0.0
  %66 = vst.msk [vmem:[#allocation2 + $0x178] sm:$0xff] %vm18, 0.0
  %67 = vst.msk [vmem:[#allocation2 + $0x180] sm:$0xff] %vm18, 0.0
  %68 = vst.msk [vmem:[#allocation2 + $0x188] sm:$0xff] %vm18, 0.0
  %69 = vst.msk [vmem:[#allocation2 + $0x190] sm:$0xff] %vm18, 0.0
  %70 = vst.msk [vmem:[#allocation2 + $0x198] sm:$0xff] %vm18, 0.0
  %71 = vst.msk [vmem:[#allocation2 + $0x1a0] sm:$0xff] %vm18, 0.0
  %72 = vst.msk [vmem:[#allocation2 + $0x1a8] sm:$0xff] %vm18, 0.0
  %73 = vst.msk [vmem:[#allocation2 + $0x1b0] sm:$0xff] %vm18, 0.0
  %74 = vst.msk [vmem:[#allocation2 + $0x1b8] sm:$0xff] %vm18, 0.0
  %75 = vst.msk [vmem:[#allocation2 + $0x1c0] sm:$0xff] %vm18, 0.0
  %76 = vst.msk [vmem:[#allocation2 + $0x1c8] sm:$0xff] %vm18, 0.0
  %77 = vst.msk [vmem:[#allocation2 + $0x1d0] sm:$0xff] %vm18, 0.0
  %78 = vst.msk [vmem:[#allocation2 + $0x1d8] sm:$0xff] %vm18, 0.0
  %79 = vst.msk [vmem:[#allocation2 + $0x1e0] sm:$0xff] %vm18, 0.0
  %80 = vst.msk [vmem:[#allocation2 + $0x1e8] sm:$0xff] %vm18, 0.0
  %81 = vst.msk [vmem:[#allocation2 + $0x1f0] sm:$0xff] %vm18, 0.0
  %82 = vst.msk [vmem:[#allocation2 + $0x1f8] sm:$0xff] %vm18, 0.0
  %83 = vst.msk [vmem:[#allocation2 + $0x200] sm:$0xff] %vm18, 0.0
  %84 = vst.msk [vmem:[#allocation2 + $0x208] sm:$0xff] %vm18, 0.0
  %85 = vst.msk [vmem:[#allocation2 + $0x210] sm:$0xff] %vm18, 0.0
  %86 = vst.msk [vmem:[#allocation2 + $0x218] sm:$0xff] %vm18, 0.0
  %87 = vst.msk [vmem:[#allocation2 + $0x220] sm:$0xff] %vm18, 0.0
  %88 = vst.msk [vmem:[#allocation2 + $0x228] sm:$0xff] %vm18, 0.0
  %89 = vst.msk [vmem:[#allocation2 + $0x230] sm:$0xff] %vm18, 0.0
  %90 = vst.msk [vmem:[#allocation2 + $0x238] sm:$0xff] %vm18, 0.0
  %91 = vst.msk [vmem:[#allocation2 + $0x240] sm:$0xff] %vm18, 0.0
  %92 = vst.msk [vmem:[#allocation2 + $0x248] sm:$0xff] %vm18, 0.0
  %93 = vst.msk [vmem:[#allocation2 + $0x250] sm:$0xff] %vm18, 0.0
  %94 = vst.msk [vmem:[#allocation2 + $0x258] sm:$0xff] %vm18, 0.0
  %95 = vst.msk [vmem:[#allocation2 + $0x260] sm:$0xff] %vm18, 0.0
  %96 = vst.msk [vmem:[#allocation2 + $0x268] sm:$0xff] %vm18, 0.0
  %97 = vst.msk [vmem:[#allocation2 + $0x270] sm:$0xff] %vm18, 0.0
  %98 = vst.msk [vmem:[#allocation2 + $0x278] sm:$0xff] %vm18, 0.0
  %99 = vst.msk [vmem:[#allocation2 + $0x280] sm:$0xff] %vm18, 0.0
  %100 = vst.msk [vmem:[#allocation2 + $0x288] sm:$0xff] %vm18, 0.0
  %101 = vst.msk [vmem:[#allocation2 + $0x290] sm:$0xff] %vm18, 0.0
  %102 = vst.msk [vmem:[#allocation2 + $0x298] sm:$0xff] %vm18, 0.0
  %103 = vst.msk [vmem:[#allocation2 + $0x2a0] sm:$0xff] %vm18, 0.0
  %104 = vst.msk [vmem:[#allocation2 + $0x2a8] sm:$0xff] %vm18, 0.0
  %105 = vst.msk [vmem:[#allocation2 + $0x2b0] sm:$0xff] %vm18, 0.0
  %106 = vst.msk [vmem:[#allocation2 + $0x2b8] sm:$0xff] %vm18, 0.0
  %107 = vst.msk [vmem:[#allocation2 + $0x2c0] sm:$0xff] %vm18, 0.0
  %108 = vst.msk [vmem:[#allocation2 + $0x2c8] sm:$0xff] %vm18, 0.0
  %109 = vst.msk [vmem:[#allocation2 + $0x2d0] sm:$0xff] %vm18, 0.0
  %110 = vst.msk [vmem:[#allocation2 + $0x2d8] sm:$0xff] %vm18, 0.0
  %111 = vst.msk [vmem:[#allocation2 + $0x2e0] sm:$0xff] %vm18, 0.0
  %112 = vst.msk [vmem:[#allocation2 + $0x2e8] sm:$0xff] %vm18, 0.0
  %113 = vst.msk [vmem:[#allocation2 + $0x2f0] sm:$0xff] %vm18, 0.0
  %114 = vst.msk [vmem:[#allocation2 + $0x2f8] sm:$0xff] %vm18, 0.0
  %115 = vst.msk [vmem:[#allocation2 + $0x300] sm:$0xff] %vm18, 0.0
  %116 = vst.msk [vmem:[#allocation2 + $0x308] sm:$0xff] %vm18, 0.0
  %117 = vst.msk [vmem:[#allocation2 + $0x310] sm:$0xff] %vm18, 0.0
  %118 = vst.msk [vmem:[#allocation2 + $0x318] sm:$0xff] %vm18, 0.0
  %vm119 = vcmask 195584
  %120 = vst.msk [vmem:[#allocation3] sm:$0xff] %vm119, 0.0
  %121 = vst.msk [vmem:[#allocation3 + $0x8] sm:$0xff] %vm119, 0.0
  %122 = vst.msk [vmem:[#allocation3 + $0x10] sm:$0xff] %vm119, 0.0
  %123 = vst.msk [vmem:[#allocation3 + $0x18] sm:$0xff] %vm119, 0.0
  %124 = vst.msk [vmem:[#allocation3 + $0x20] sm:$0xff] %vm119, 0.0
  %125 = vst.msk [vmem:[#allocation3 + $0x28] sm:$0xff] %vm119, 0.0
  %126 = vst.msk [vmem:[#allocation3 + $0x30] sm:$0xff] %vm119, 0.0
  %127 = vst.msk [vmem:[#allocation3 + $0x38] sm:$0xff] %vm119, 0.0
  %128 = vst.msk [vmem:[#allocation3 + $0x40] sm:$0xff] %vm119, 0.0
  %129 = vst.msk [vmem:[#allocation3 + $0x48] sm:$0xff] %vm119, 0.0
  %130 = vst.msk [vmem:[#allocation3 + $0x50] sm:$0xff] %vm119, 0.0
  %131 = vst.msk [vmem:[#allocation3 + $0x58] sm:$0xff] %vm119, 0.0
  %132 = vst.msk [vmem:[#allocation3 + $0x60] sm:$0xff] %vm119, 0.0
  %133 = vst.msk [vmem:[#allocation3 + $0x68] sm:$0xff] %vm119, 0.0
  %134 = vst.msk [vmem:[#allocation3 + $0x70] sm:$0xff] %vm119, 0.0
  %135 = vst.msk [vmem:[#allocation3 + $0x78] sm:$0xff] %vm119, 0.0
  %136 = vst.msk [vmem:[#allocation3 + $0x80] sm:$0xff] %vm119, 0.0
  %137 = vst.msk [vmem:[#allocation3 + $0x88] sm:$0xff] %vm119, 0.0
  %138 = vst.msk [vmem:[#allocation3 + $0x90] sm:$0xff] %vm119, 0.0
  %139 = vst.msk [vmem:[#allocation3 + $0x98] sm:$0xff] %vm119, 0.0
  %140 = vst.msk [vmem:[#allocation3 + $0xa0] sm:$0xff] %vm119, 0.0
  %141 = vst.msk [vmem:[#allocation3 + $0xa8] sm:$0xff] %vm119, 0.0
  %142 = vst.msk [vmem:[#allocation3 + $0xb0] sm:$0xff] %vm119, 0.0
  %143 = vst.msk [vmem:[#allocation3 + $0xb8] sm:$0xff] %vm119, 0.0
  %144 = vst.msk [vmem:[#allocation3 + $0xc0] sm:$0xff] %vm119, 0.0
  %145 = vst.msk [vmem:[#allocation3 + $0xc8] sm:$0xff] %vm119, 0.0
  %146 = vst.msk [vmem:[#allocation3 + $0xd0] sm:$0xff] %vm119, 0.0
  %147 = vst.msk [vmem:[#allocation3 + $0xd8] sm:$0xff] %vm119, 0.0
  %148 = vst.msk [vmem:[#allocation3 + $0xe0] sm:$0xff] %vm119, 0.0
  %149 = vst.msk [vmem:[#allocation3 + $0xe8] sm:$0xff] %vm119, 0.0
  %150 = vst.msk [vmem:[#allocation3 + $0xf0] sm:$0xff] %vm119, 0.0
  %151 = vst.msk [vmem:[#allocation3 + $0xf8] sm:$0xff] %vm119, 0.0
  %152 = vst.msk [vmem:[#allocation3 + $0x100] sm:$0xff] %vm119, 0.0
  %153 = vst.msk [vmem:[#allocation3 + $0x108] sm:$0xff] %vm119, 0.0
  %154 = vst.msk [vmem:[#allocation3 + $0x110] sm:$0xff] %vm119, 0.0
  %155 = vst.msk [vmem:[#allocation3 + $0x118] sm:$0xff] %vm119, 0.0
  %vm156 = vcmask 392192
  %157 = vst.msk [vmem:[#allocation4] sm:$0xff] %vm156, 0.0
  %158 = vst.msk [vmem:[#allocation4 + $0x8] sm:$0xff] %vm156, 0.0
  %159 = vst.msk [vmem:[#allocation4 + $0x10] sm:$0xff] %vm156, 0.0
  %160 = vst.msk [vmem:[#allocation4 + $0x18] sm:$0xff] %vm156, 0.0
  %161 = vst.msk [vmem:[#allocation4 + $0x20] sm:$0xff] %vm156, 0.0
  %162 = vst.msk [vmem:[#allocation4 + $0x28] sm:$0xff] %vm156, 0.0
  %163 = vst.msk [vmem:[#allocation4 + $0x30] sm:$0xff] %vm156, 0.0
  %164 = vst.msk [vmem:[#allocation4 + $0x38] sm:$0xff] %vm156, 0.0
  %165 = vst.msk [vmem:[#allocation4 + $0x40] sm:$0xff] %vm156, 0.0
  %166 = vst.msk [vmem:[#allocation4 + $0x48] sm:$0xff] %vm156, 0.0
  %167 = vst.msk [vmem:[#allocation4 + $0x50] sm:$0xff] %vm156, 0.0
  %168 = vst.msk [vmem:[#allocation4 + $0x58] sm:$0xff] %vm156, 0.0
  %169 = vst.msk [vmem:[#allocation4 + $0x60] sm:$0xff] %vm156, 0.0
  %170 = vst.msk [vmem:[#allocation4 + $0x68] sm:$0xff] %vm156, 0.0
  %171 = vst.msk [vmem:[#allocation4 + $0x70] sm:$0xff] %vm156, 0.0
  %172 = vst.msk [vmem:[#allocation4 + $0x78] sm:$0xff] %vm156, 0.0
  %173 = vst.msk [vmem:[#allocation5] sm:$0xff] %vm119, 0.0
  %174 = vst.msk [vmem:[#allocation5 + $0x8] sm:$0xff] %vm119, 0.0
  %175 = vst.msk [vmem:[#allocation5 + $0x10] sm:$0xff] %vm119, 0.0
  %176 = vst.msk [vmem:[#allocation5 + $0x18] sm:$0xff] %vm119, 0.0
  %177 = vst.msk [vmem:[#allocation5 + $0x20] sm:$0xff] %vm119, 0.0
  %178 = vst.msk [vmem:[#allocation5 + $0x28] sm:$0xff] %vm119, 0.0
  %179 = vst.msk [vmem:[#allocation5 + $0x30] sm:$0xff] %vm119, 0.0
  %180 = vst.msk [vmem:[#allocation5 + $0x38] sm:$0xff] %vm119, 0.0
  %181 = vst.msk [vmem:[#allocation5 + $0x40] sm:$0xff] %vm119, 0.0
  %182 = vst.msk [vmem:[#allocation5 + $0x48] sm:$0xff] %vm119, 0.0
  %183 = vst.msk [vmem:[#allocation5 + $0x50] sm:$0xff] %vm119, 0.0
  %184 = vst.msk [vmem:[#allocation5 + $0x58] sm:$0xff] %vm119, 0.0
  %185 = vst.msk [vmem:[#allocation5 + $0x60] sm:$0xff] %vm119, 0.0
  %186 = vst.msk [vmem:[#allocation5 + $0x68] sm:$0xff] %vm119, 0.0
  %187 = vst.msk [vmem:[#allocation5 + $0x70] sm:$0xff] %vm119, 0.0
  %188 = vst.msk [vmem:[#allocation5 + $0x78] sm:$0xff] %vm119, 0.0
  %189 = vst.msk [vmem:[#allocation5 + $0x80] sm:$0xff] %vm119, 0.0
  %190 = vst.msk [vmem:[#allocation5 + $0x88] sm:$0xff] %vm119, 0.0
  %191 = vst.msk [vmem:[#allocation5 + $0x90] sm:$0xff] %vm119, 0.0
  %192 = vst.msk [vmem:[#allocation5 + $0x98] sm:$0xff] %vm119, 0.0
  %193 = vst.msk [vmem:[#allocation5 + $0xa0] sm:$0xff] %vm119, 0.0
  %194 = vst.msk [vmem:[#allocation5 + $0xa8] sm:$0xff] %vm119, 0.0
  %195 = vst.msk [vmem:[#allocation5 + $0xb0] sm:$0xff] %vm119, 0.0
  %196 = vst.msk [vmem:[#allocation5 + $0xb8] sm:$0xff] %vm119, 0.0
  %197 = vst.msk [vmem:[#allocation5 + $0xc0] sm:$0xff] %vm119, 0.0
  %198 = vst.msk [vmem:[#allocation5 + $0xc8] sm:$0xff] %vm119, 0.0
  %199 = vst.msk [vmem:[#allocation5 + $0xd0] sm:$0xff] %vm119, 0.0
  %200 = vst.msk [vmem:[#allocation5 + $0xd8] sm:$0xff] %vm119, 0.0
  %201 = vst.msk [vmem:[#allocation5 + $0xe0] sm:$0xff] %vm119, 0.0
  %202 = vst.msk [vmem:[#allocation5 + $0xe8] sm:$0xff] %vm119, 0.0
  %203 = vst.msk [vmem:[#allocation5 + $0xf0] sm:$0xff] %vm119, 0.0
  %204 = vst.msk [vmem:[#allocation5 + $0xf8] sm:$0xff] %vm119, 0.0
  %205 = vst.msk [vmem:[#allocation5 + $0x100] sm:$0xff] %vm119, 0.0
  %206 = vst.msk [vmem:[#allocation5 + $0x108] sm:$0xff] %vm119, 0.0
  %207 = vst.msk [vmem:[#allocation5 + $0x110] sm:$0xff] %vm119, 0.0
  %208 = vst.msk [vmem:[#allocation5 + $0x118] sm:$0xff] %vm119, 0.0
  %209 = vst.msk [vmem:[#allocation6] sm:$0xff] %vm18, 0.0
  %210 = vst.msk [vmem:[#allocation6 + $0x8] sm:$0xff] %vm18, 0.0
  %211 = vst.msk [vmem:[#allocation6 + $0x10] sm:$0xff] %vm18, 0.0
  %212 = vst.msk [vmem:[#allocation6 + $0x18] sm:$0xff] %vm18, 0.0
  %213 = vst.msk [vmem:[#allocation6 + $0x20] sm:$0xff] %vm18, 0.0
  %214 = vst.msk [vmem:[#allocation6 + $0x28] sm:$0xff] %vm18, 0.0
  %215 = vst.msk [vmem:[#allocation6 + $0x30] sm:$0xff] %vm18, 0.0
  %216 = vst.msk [vmem:[#allocation6 + $0x38] sm:$0xff] %vm18, 0.0
  %217 = vst.msk [vmem:[#allocation6 + $0x40] sm:$0xff] %vm18, 0.0
  %218 = vst.msk [vmem:[#allocation6 + $0x48] sm:$0xff] %vm18, 0.0
  %219 = vst.msk [vmem:[#allocation6 + $0x50] sm:$0xff] %vm18, 0.0
  %220 = vst.msk [vmem:[#allocation6 + $0x58] sm:$0xff] %vm18, 0.0
  %221 = vst.msk [vmem:[#allocation6 + $0x60] sm:$0xff] %vm18, 0.0
  %222 = vst.msk [vmem:[#allocation6 + $0x68] sm:$0xff] %vm18, 0.0
  %223 = vst.msk [vmem:[#allocation6 + $0x70] sm:$0xff] %vm18, 0.0
  %224 = vst.msk [vmem:[#allocation6 + $0x78] sm:$0xff] %vm18, 0.0
  %225 = vst.msk [vmem:[#allocation6 + $0x80] sm:$0xff] %vm18, 0.0
  %226 = vst.msk [vmem:[#allocation6 + $0x88] sm:$0xff] %vm18, 0.0
  %227 = vst.msk [vmem:[#allocation6 + $0x90] sm:$0xff] %vm18, 0.0
  %228 = vst.msk [vmem:[#allocation6 + $0x98] sm:$0xff] %vm18, 0.0
  %229 = vst.msk [vmem:[#allocation6 + $0xa0] sm:$0xff] %vm18, 0.0
  %230 = vst.msk [vmem:[#allocation6 + $0xa8] sm:$0xff] %vm18, 0.0
  %231 = vst.msk [vmem:[#allocation6 + $0xb0] sm:$0xff] %vm18, 0.0
  %232 = vst.msk [vmem:[#allocation6 + $0xb8] sm:$0xff] %vm18, 0.0
  %233 = vst.msk [vmem:[#allocation6 + $0xc0] sm:$0xff] %vm18, 0.0
  %234 = vst.msk [vmem:[#allocation6 + $0xc8] sm:$0xff] %vm18, 0.0
  %235 = vst.msk [vmem:[#allocation6 + $0xd0] sm:$0xff] %vm18, 0.0
  %236 = vst.msk [vmem:[#allocation6 + $0xd8] sm:$0xff] %vm18, 0.0
  %237 = vst.msk [vmem:[#allocation6 + $0xe0] sm:$0xff] %vm18, 0.0
  %238 = vst.msk [vmem:[#allocation6 + $0xe8] sm:$0xff] %vm18, 0.0
  %239 = vst.msk [vmem:[#allocation6 + $0xf0] sm:$0xff] %vm18, 0.0
  %240 = vst.msk [vmem:[#allocation6 + $0xf8] sm:$0xff] %vm18, 0.0
  %241 = vst.msk [vmem:[#allocation6 + $0x100] sm:$0xff] %vm18, 0.0
  %242 = vst.msk [vmem:[#allocation6 + $0x108] sm:$0xff] %vm18, 0.0
  %243 = vst.msk [vmem:[#allocation6 + $0x110] sm:$0xff] %vm18, 0.0
  %244 = vst.msk [vmem:[#allocation6 + $0x118] sm:$0xff] %vm18, 0.0
  %245 = vst.msk [vmem:[#allocation6 + $0x120] sm:$0xff] %vm18, 0.0
  %246 = vst.msk [vmem:[#allocation6 + $0x128] sm:$0xff] %vm18, 0.0
  %247 = vst.msk [vmem:[#allocation6 + $0x130] sm:$0xff] %vm18, 0.0
  %248 = vst.msk [vmem:[#allocation6 + $0x138] sm:$0xff] %vm18, 0.0
  %249 = vst.msk [vmem:[#allocation6 + $0x140] sm:$0xff] %vm18, 0.0
  %250 = vst.msk [vmem:[#allocation6 + $0x148] sm:$0xff] %vm18, 0.0
  %251 = vst.msk [vmem:[#allocation6 + $0x150] sm:$0xff] %vm18, 0.0
  %252 = vst.msk [vmem:[#allocation6 + $0x158] sm:$0xff] %vm18, 0.0
  %253 = vst.msk [vmem:[#allocation6 + $0x160] sm:$0xff] %vm18, 0.0
  %254 = vst.msk [vmem:[#allocation6 + $0x168] sm:$0xff] %vm18, 0.0
  %255 = vst.msk [vmem:[#allocation6 + $0x170] sm:$0xff] %vm18, 0.0
  %256 = vst.msk [vmem:[#allocation6 + $0x178] sm:$0xff] %vm18, 0.0
  %257 = vst.msk [vmem:[#allocation6 + $0x180] sm:$0xff] %vm18, 0.0
  %258 = vst.msk [vmem:[#allocation6 + $0x188] sm:$0xff] %vm18, 0.0
  %259 = vst.msk [vmem:[#allocation6 + $0x190] sm:$0xff] %vm18, 0.0
  %260 = vst.msk [vmem:[#allocation6 + $0x198] sm:$0xff] %vm18, 0.0
  %261 = vst.msk [vmem:[#allocation6 + $0x1a0] sm:$0xff] %vm18, 0.0
  %262 = vst.msk [vmem:[#allocation6 + $0x1a8] sm:$0xff] %vm18, 0.0
  %263 = vst.msk [vmem:[#allocation6 + $0x1b0] sm:$0xff] %vm18, 0.0
  %264 = vst.msk [vmem:[#allocation6 + $0x1b8] sm:$0xff] %vm18, 0.0
  %265 = vst.msk [vmem:[#allocation6 + $0x1c0] sm:$0xff] %vm18, 0.0
  %266 = vst.msk [vmem:[#allocation6 + $0x1c8] sm:$0xff] %vm18, 0.0
  %267 = vst.msk [vmem:[#allocation6 + $0x1d0] sm:$0xff] %vm18, 0.0
  %268 = vst.msk [vmem:[#allocation6 + $0x1d8] sm:$0xff] %vm18, 0.0
  %269 = vst.msk [vmem:[#allocation6 + $0x1e0] sm:$0xff] %vm18, 0.0
  %270 = vst.msk [vmem:[#allocation6 + $0x1e8] sm:$0xff] %vm18, 0.0
  %271 = vst.msk [vmem:[#allocation6 + $0x1f0] sm:$0xff] %vm18, 0.0
  %272 = vst.msk [vmem:[#allocation6 + $0x1f8] sm:$0xff] %vm18, 0.0
  %273 = vst.msk [vmem:[#allocation6 + $0x200] sm:$0xff] %vm18, 0.0
  %274 = vst.msk [vmem:[#allocation6 + $0x208] sm:$0xff] %vm18, 0.0
  %275 = vst.msk [vmem:[#allocation6 + $0x210] sm:$0xff] %vm18, 0.0
  %276 = vst.msk [vmem:[#allocation6 + $0x218] sm:$0xff] %vm18, 0.0
  %277 = vst.msk [vmem:[#allocation6 + $0x220] sm:$0xff] %vm18, 0.0
  %278 = vst.msk [vmem:[#allocation6 + $0x228] sm:$0xff] %vm18, 0.0
  %279 = vst.msk [vmem:[#allocation6 + $0x230] sm:$0xff] %vm18, 0.0
  %280 = vst.msk [vmem:[#allocation6 + $0x238] sm:$0xff] %vm18, 0.0
  %281 = vst.msk [vmem:[#allocation6 + $0x240] sm:$0xff] %vm18, 0.0
  %282 = vst.msk [vmem:[#allocation6 + $0x248] sm:$0xff] %vm18, 0.0
  %283 = vst.msk [vmem:[#allocation6 + $0x250] sm:$0xff] %vm18, 0.0
  %284 = vst.msk [vmem:[#allocation6 + $0x258] sm:$0xff] %vm18, 0.0
  %285 = vst.msk [vmem:[#allocation6 + $0x260] sm:$0xff] %vm18, 0.0
  %286 = vst.msk [vmem:[#allocation6 + $0x268] sm:$0xff] %vm18, 0.0
  %287 = vst.msk [vmem:[#allocation6 + $0x270] sm:$0xff] %vm18, 0.0
  %288 = vst.msk [vmem:[#allocation6 + $0x278] sm:$0xff] %vm18, 0.0
  %289 = vst.msk [vmem:[#allocation6 + $0x280] sm:$0xff] %vm18, 0.0
  %290 = vst.msk [vmem:[#allocation6 + $0x288] sm:$0xff] %vm18, 0.0
  %291 = vst.msk [vmem:[#allocation6 + $0x290] sm:$0xff] %vm18, 0.0
  %292 = vst.msk [vmem:[#allocation6 + $0x298] sm:$0xff] %vm18, 0.0
  %293 = vst.msk [vmem:[#allocation6 + $0x2a0] sm:$0xff] %vm18, 0.0
  %294 = vst.msk [vmem:[#allocation6 + $0x2a8] sm:$0xff] %vm18, 0.0
  %295 = vst.msk [vmem:[#allocation6 + $0x2b0] sm:$0xff] %vm18, 0.0
  %296 = vst.msk [vmem:[#allocation6 + $0x2b8] sm:$0xff] %vm18, 0.0
  %297 = vst.msk [vmem:[#allocation6 + $0x2c0] sm:$0xff] %vm18, 0.0
  %298 = vst.msk [vmem:[#allocation6 + $0x2c8] sm:$0xff] %vm18, 0.0
  %299 = vst.msk [vmem:[#allocation6 + $0x2d0] sm:$0xff] %vm18, 0.0
  %300 = vst.msk [vmem:[#allocation6 + $0x2d8] sm:$0xff] %vm18, 0.0
  %301 = vst.msk [vmem:[#allocation6 + $0x2e0] sm:$0xff] %vm18, 0.0
  %302 = vst.msk [vmem:[#allocation6 + $0x2e8] sm:$0xff] %vm18, 0.0
  %303 = vst.msk [vmem:[#allocation6 + $0x2f0] sm:$0xff] %vm18, 0.0
  %304 = vst.msk [vmem:[#allocation6 + $0x2f8] sm:$0xff] %vm18, 0.0
  %305 = vst.msk [vmem:[#allocation6 + $0x300] sm:$0xff] %vm18, 0.0
  %306 = vst.msk [vmem:[#allocation6 + $0x308] sm:$0xff] %vm18, 0.0
  %307 = vst.msk [vmem:[#allocation6 + $0x310] sm:$0xff] %vm18, 0.0
  %308 = vst.msk [vmem:[#allocation6 + $0x318] sm:$0xff] %vm18, 0.0
  %v309 = vld [vmem:[%s0] sm:$0xff]
  %v310 = vld [vmem:[%s0 + $0x8] sm:$0xff]
  %v311 = vld [vmem:[%s0 + $0x10] sm:$0xff]
  %v312 = vld [vmem:[%s0 + $0x18] sm:$0xff]
  %v313 = vld [vmem:[%s0 + $0x20] sm:$0xff]
  %v314 = vld [vmem:[%s0 + $0x28] sm:$0xff]
  %v315 = vld [vmem:[%s0 + $0x30] sm:$0xff]
  %v316 = vld [vmem:[%s0 + $0x38] sm:$0xff]
  %v317 = vld [vmem:[%s0 + $0x40] sm:$0xff]
  %v318 = vld [vmem:[%s0 + $0x48] sm:$0xff]
  %v319 = vld [vmem:[%s0 + $0x50] sm:$0xff]
  %v320 = vld [vmem:[%s0 + $0x58] sm:$0xff]
  %v321 = vld [vmem:[%s0 + $0x60] sm:$0xff]
  %v322 = vld [vmem:[%s0 + $0x68] sm:$0xff]
  %v323 = vld [vmem:[%s0 + $0x70] sm:$0xff]
  %v324 = vld [vmem:[%s0 + $0x78] sm:$0xff]
  %v325 = vld [vmem:[%s0 + $0x80] sm:$0xff]
  %v326 = vld [vmem:[%s0 + $0x88] sm:$0xff]
  %v327 = vld [vmem:[%s0 + $0x90] sm:$0xff]
  %v328 = vld [vmem:[%s0 + $0x98] sm:$0xff]
  %v329 = vld [vmem:[%s0 + $0xa0] sm:$0xff]
  %v330 = vld [vmem:[%s0 + $0xa8] sm:$0xff]
  %v331 = vld [vmem:[%s0 + $0xb0] sm:$0xff]
  %v332 = vld [vmem:[%s0 + $0xb8] sm:$0xff]
  %v333 = vld [vmem:[%s0 + $0xc0] sm:$0xff]
  %v334 = vld [vmem:[%s0 + $0xc8] sm:$0xff]
  %v335 = vld [vmem:[%s0 + $0xd0] sm:$0xff]
  %v336 = vld [vmem:[%s0 + $0xd8] sm:$0xff]
  %v337 = vld [vmem:[%s0 + $0xe0] sm:$0xff]
  %v338 = vld [vmem:[%s0 + $0xe8] sm:$0xff]
  %v339 = vld [vmem:[%s0 + $0xf0] sm:$0xff]
  %v340 = vld [vmem:[%s0 + $0xf8] sm:$0xff]
  %v341 = vld [vmem:[%s0 + $0x100] sm:$0xff]
  %v342 = vld [vmem:[%s0 + $0x108] sm:$0xff]
  %v343 = vld [vmem:[%s0 + $0x110] sm:$0xff]
  %v344 = vld [vmem:[%s0 + $0x118] sm:$0xff]
  %v345 = vld [vmem:[%s0 + $0x120] sm:$0xff]
  %v346 = vld [vmem:[%s0 + $0x128] sm:$0xff]
  %v347 = vld [vmem:[%s0 + $0x130] sm:$0xff]
  %v348 = vld [vmem:[%s0 + $0x138] sm:$0xff]
  %v349 = vld [vmem:[%s0 + $0x140] sm:$0xff]
  %v350 = vld [vmem:[%s0 + $0x148] sm:$0xff]
  %v351 = vld [vmem:[%s0 + $0x150] sm:$0xff]
  %v352 = vld [vmem:[%s0 + $0x158] sm:$0xff]
  %v353 = vld [vmem:[%s0 + $0x160] sm:$0xff]
  %v354 = vld [vmem:[%s0 + $0x168] sm:$0xff]
  %v355 = vld [vmem:[%s0 + $0x170] sm:$0xff]
  %v356 = vld [vmem:[%s0 + $0x178] sm:$0xff]
  %v357 = vld [vmem:[%s0 + $0x180] sm:$0xff]
  %v358 = vld [vmem:[%s0 + $0x188] sm:$0xff]
  %v359 = vld [vmem:[%s0 + $0x190] sm:$0xff]
  %v360 = vld [vmem:[%s0 + $0x198] sm:$0xff]
  %v361 = vld [vmem:[%s0 + $0x1a0] sm:$0xff]
  %v362 = vld [vmem:[%s0 + $0x1a8] sm:$0xff]
  %v363 = vld [vmem:[%s0 + $0x1b0] sm:$0xff]
  %v364 = vld [vmem:[%s0 + $0x1b8] sm:$0xff]
  %v365 = vld [vmem:[%s0 + $0x1c0] sm:$0xff]
  %v366 = vld [vmem:[%s0 + $0x1c8] sm:$0xff]
  %v367 = vld [vmem:[%s0 + $0x1d0] sm:$0xff]
  %v368 = vld [vmem:[%s0 + $0x1d8] sm:$0xff]
  %v369 = vld [vmem:[%s0 + $0x1e0] sm:$0xff]
  %v370 = vld [vmem:[%s0 + $0x1e8] sm:$0xff]
  %v371 = vld [vmem:[%s0 + $0x1f0] sm:$0xff]
  %v372 = vld [vmem:[%s0 + $0x1f8] sm:$0xff]
  %v373 = vld [vmem:[%s0 + $0x200] sm:$0xff]
  %v374 = vld [vmem:[%s0 + $0x208] sm:$0xff]
  %v375 = vld [vmem:[%s0 + $0x210] sm:$0xff]
  %v376 = vld [vmem:[%s0 + $0x218] sm:$0xff]
  %v377 = vld [vmem:[%s0 + $0x220] sm:$0xff]
  %v378 = vld [vmem:[%s0 + $0x228] sm:$0xff]
  %v379 = vld [vmem:[%s0 + $0x230] sm:$0xff]
  %v380 = vld [vmem:[%s0 + $0x238] sm:$0xff]
  %v381 = vld [vmem:[%s0 + $0x240] sm:$0xff]
  %v382 = vld [vmem:[%s0 + $0x248] sm:$0xff]
  %v383 = vld [vmem:[%s0 + $0x250] sm:$0xff]
  %v384 = vld [vmem:[%s0 + $0x258] sm:$0xff]
  %v385 = vld [vmem:[%s0 + $0x260] sm:$0xff]
  %v386 = vld [vmem:[%s0 + $0x268] sm:$0xff]
  %v387 = vld [vmem:[%s0 + $0x270] sm:$0xff]
  %v388 = vld [vmem:[%s0 + $0x278] sm:$0xff]
  %v389 = vld [vmem:[%s0 + $0x280] sm:$0xff]
  %v390 = vld [vmem:[%s0 + $0x288] sm:$0xff]
  %v391 = vld [vmem:[%s0 + $0x290] sm:$0xff]
  %v392 = vld [vmem:[%s0 + $0x298] sm:$0xff]
  %v393 = vld [vmem:[%s0 + $0x2a0] sm:$0xff]
  %v394 = vld [vmem:[%s0 + $0x2a8] sm:$0xff]
  %v395 = vld [vmem:[%s0 + $0x2b0] sm:$0xff]
  %v396 = vld [vmem:[%s0 + $0x2b8] sm:$0xff]
  %v397 = vld [vmem:[%s0 + $0x2c0] sm:$0xff]
  %v398 = vld [vmem:[%s0 + $0x2c8] sm:$0xff]
  %v399 = vld [vmem:[%s0 + $0x2d0] sm:$0xff]
  %v400 = vld [vmem:[%s0 + $0x2d8] sm:$0xff]
  %v401 = vld [vmem:[%s0 + $0x2e0] sm:$0xff]
  %v402 = vld [vmem:[%s0 + $0x2e8] sm:$0xff]
  %v403 = vld [vmem:[%s0 + $0x2f0] sm:$0xff]
  %v404 = vld [vmem:[%s0 + $0x2f8] sm:$0xff]
  %v405 = vld [vmem:[%s0 + $0x300] sm:$0xff]
  %v406 = vld [vmem:[%s0 + $0x308] sm:$0xff]
  %v407 = vld [vmem:[%s0 + $0x310] sm:$0xff]
  %v408 = vld [vmem:[%s0 + $0x318] sm:$0xff]
  %v409 = vld [vmem:[%s0 + $0x320] sm:$0xff]
  %v410 = vld [vmem:[%s0 + $0x328] sm:$0xff]
  %v411 = vld [vmem:[%s0 + $0x330] sm:$0xff]
  %v412 = vld [vmem:[%s0 + $0x338] sm:$0xff]
  %v413 = vld [vmem:[%s0 + $0x340] sm:$0xff]
  %v414 = vld [vmem:[%s0 + $0x348] sm:$0xff]
  %v415 = vld [vmem:[%s0 + $0x350] sm:$0xff]
  %v416 = vld [vmem:[%s0 + $0x358] sm:$0xff]
  %v417 = vld [vmem:[%s0 + $0x360] sm:$0xff]
  %v418 = vld [vmem:[%s0 + $0x368] sm:$0xff]
  %v419 = vld [vmem:[%s0 + $0x370] sm:$0xff]
  %v420 = vld [vmem:[%s0 + $0x378] sm:$0xff]
  %v421 = vld [vmem:[%s0 + $0x380] sm:$0xff]
  %v422 = vld [vmem:[%s0 + $0x388] sm:$0xff]
  %v423 = vld [vmem:[%s0 + $0x390] sm:$0xff]
  %v424 = vld [vmem:[%s0 + $0x398] sm:$0xff]
  %v425 = vld [vmem:[%s0 + $0x3a0] sm:$0xff]
  %v426 = vld [vmem:[%s0 + $0x3a8] sm:$0xff]
  %v427 = vld [vmem:[%s0 + $0x3b0] sm:$0xff]
  %v428 = vld [vmem:[%s0 + $0x3b8] sm:$0xff]
  %v429 = vld [vmem:[%s0 + $0x3c0] sm:$0xff]
  %v430 = vld [vmem:[%s0 + $0x3c8] sm:$0xff]
  %v431 = vld [vmem:[%s0 + $0x3d0] sm:$0xff]
  %v432 = vld [vmem:[%s0 + $0x3d8] sm:$0xff]
  %v433 = vld [vmem:[%s0 + $0x3e0] sm:$0xff]
  %v434 = vld [vmem:[%s0 + $0x3e8] sm:$0xff]
  %v435 = vld [vmem:[%s0 + $0x3f0] sm:$0xff]
  %v436 = vld [vmem:[%s0 + $0x3f8] sm:$0xff]
  %v437 = vld [vmem:[%s0 + $0x400] sm:$0xff]
  %v438 = vld [vmem:[%s0 + $0x408] sm:$0xff]
  %v439 = vld [vmem:[%s0 + $0x410] sm:$0xff]
  %v440 = vld [vmem:[%s0 + $0x418] sm:$0xff]
  %v441 = vld [vmem:[%s0 + $0x420] sm:$0xff]
  %v442 = vld [vmem:[%s0 + $0x428] sm:$0xff]
  %v443 = vld [vmem:[%s0 + $0x430] sm:$0xff]
  %v444 = vld [vmem:[%s0 + $0x438] sm:$0xff]
  %v445 = vld [vmem:[%s0 + $0x440] sm:$0xff]
  %v446 = vld [vmem:[%s0 + $0x448] sm:$0xff]
  %v447 = vld [vmem:[%s0 + $0x450] sm:$0xff]
  %v448 = vld [vmem:[%s0 + $0x458] sm:$0xff]
  %v449 = vld [vmem:[%s0 + $0x460] sm:$0xff]
  %v450 = vld [vmem:[%s0 + $0x468] sm:$0xff]
  %v451 = vld [vmem:[%s0 + $0x470] sm:$0xff]
  %v452 = vld [vmem:[%s0 + $0x478] sm:$0xff]
  %v453 = vld [vmem:[%s0 + $0x480] sm:$0xff]
  %v454 = vld [vmem:[%s0 + $0x488] sm:$0xff]
  %v455 = vld [vmem:[%s0 + $0x490] sm:$0xff]
  %v456 = vld [vmem:[%s0 + $0x498] sm:$0xff]
  %v457 = vld [vmem:[%s0 + $0x4a0] sm:$0xff]
  %v458 = vld [vmem:[%s0 + $0x4a8] sm:$0xff]
  %v459 = vld [vmem:[%s0 + $0x4b0] sm:$0xff]
  %v460 = vld [vmem:[%s0 + $0x4b8] sm:$0xff]
  %v461 = vld [vmem:[%s0 + $0x4c0] sm:$0xff]
  %v462 = vld [vmem:[%s0 + $0x4c8] sm:$0xff]
  %v463 = vld [vmem:[%s0 + $0x4d0] sm:$0xff]
  %v464 = vld [vmem:[%s0 + $0x4d8] sm:$0xff]
  %v465 = vld [vmem:[%s0 + $0x4e0] sm:$0xff]
  %v466 = vld [vmem:[%s0 + $0x4e8] sm:$0xff]
  %v467 = vld [vmem:[%s0 + $0x4f0] sm:$0xff]
  %v468 = vld [vmem:[%s0 + $0x4f8] sm:$0xff]
  %v469 = vld [vmem:[%s0 + $0x500] sm:$0xff]
  %v470 = vld [vmem:[%s0 + $0x508] sm:$0xff]
  %v471 = vld [vmem:[%s0 + $0x510] sm:$0xff]
  %v472 = vld [vmem:[%s0 + $0x518] sm:$0xff]
  %v473 = vld [vmem:[%s0 + $0x520] sm:$0xff]
  %v474 = vld [vmem:[%s0 + $0x528] sm:$0xff]
  %v475 = vld [vmem:[%s0 + $0x530] sm:$0xff]
  %v476 = vld [vmem:[%s0 + $0x538] sm:$0xff]
  %v477 = vld [vmem:[%s0 + $0x540] sm:$0xff]
  %v478 = vld [vmem:[%s0 + $0x548] sm:$0xff]
  %v479 = vld [vmem:[%s0 + $0x550] sm:$0xff]
  %v480 = vld [vmem:[%s0 + $0x558] sm:$0xff]
  %v481 = vld [vmem:[%s0 + $0x560] sm:$0xff]
  %v482 = vld [vmem:[%s0 + $0x568] sm:$0xff]
  %v483 = vld [vmem:[%s0 + $0x570] sm:$0xff]
  %v484 = vld [vmem:[%s0 + $0x578] sm:$0xff]
  %v485 = vld [vmem:[%s0 + $0x580] sm:$0xff]
  %v486 = vld [vmem:[%s0 + $0x588] sm:$0xff]
  %v487 = vld [vmem:[%s0 + $0x590] sm:$0xff]
  %v488 = vld [vmem:[%s0 + $0x598] sm:$0xff]
  %v489 = vld [vmem:[%s0 + $0x5a0] sm:$0xff]
  %v490 = vld [vmem:[%s0 + $0x5a8] sm:$0xff]
  %v491 = vld [vmem:[%s0 + $0x5b0] sm:$0xff]
  %v492 = vld [vmem:[%s0 + $0x5b8] sm:$0xff]
  %v493 = vld [vmem:[%s0 + $0x5c0] sm:$0xff]
  %v494 = vld [vmem:[%s0 + $0x5c8] sm:$0xff]
  %v495 = vld [vmem:[%s0 + $0x5d0] sm:$0xff]
  %v496 = vld [vmem:[%s0 + $0x5d8] sm:$0xff]
  %v497 = vld [vmem:[%s0 + $0x5e0] sm:$0xff]
  %v498 = vld [vmem:[%s0 + $0x5e8] sm:$0xff]
  %v499 = vld [vmem:[%s0 + $0x5f0] sm:$0xff]
  %v500 = vld [vmem:[%s0 + $0x5f8] sm:$0xff]
  %v501 = vld [vmem:[%s0 + $0x600] sm:$0xff]
  %v502 = vld [vmem:[%s0 + $0x608] sm:$0xff]
  %v503 = vld [vmem:[%s0 + $0x610] sm:$0xff]
  %v504 = vld [vmem:[%s0 + $0x618] sm:$0xff]
  %v505 = vld [vmem:[%s0 + $0x620] sm:$0xff]
  %v506 = vld [vmem:[%s0 + $0x628] sm:$0xff]
  %v507 = vld [vmem:[%s0 + $0x630] sm:$0xff]
  %v508 = vld [vmem:[%s0 + $0x638] sm:$0xff]
  %v509 = vld [vmem:[%s0 + $0x640] sm:$0xff]
  %v510 = vld [vmem:[%s0 + $0x648] sm:$0xff]
  %v511 = vld [vmem:[%s0 + $0x650] sm:$0xff]
  %v512 = vld [vmem:[%s0 + $0x658] sm:$0xff]
  %v513 = vld [vmem:[%s0 + $0x660] sm:$0xff]
  %v514 = vld [vmem:[%s0 + $0x668] sm:$0xff]
  %v515 = vld [vmem:[%s0 + $0x670] sm:$0xff]
  %v516 = vld [vmem:[%s0 + $0x678] sm:$0xff]
  %v517 = vld [vmem:[%s0 + $0x680] sm:$0xff]
  %v518 = vld [vmem:[%s0 + $0x688] sm:$0xff]
  %v519 = vld [vmem:[%s0 + $0x690] sm:$0xff]
  %v520 = vld [vmem:[%s0 + $0x698] sm:$0xff]
  %v521 = vld [vmem:[%s0 + $0x6a0] sm:$0xff]
  %v522 = vld [vmem:[%s0 + $0x6a8] sm:$0xff]
  %v523 = vld [vmem:[%s0 + $0x6b0] sm:$0xff]
  %v524 = vld [vmem:[%s0 + $0x6b8] sm:$0xff]
  %v525 = vld [vmem:[%s0 + $0x6c0] sm:$0xff]
  %v526 = vld [vmem:[%s0 + $0x6c8] sm:$0xff]
  %v527 = vld [vmem:[%s0 + $0x6d0] sm:$0xff]
  %v528 = vld [vmem:[%s0 + $0x6d8] sm:$0xff]
  %v529 = vld [vmem:[%s0 + $0x6e0] sm:$0xff]
  %v530 = vld [vmem:[%s0 + $0x6e8] sm:$0xff]
  %v531 = vld [vmem:[%s0 + $0x6f0] sm:$0xff]
  %v532 = vld [vmem:[%s0 + $0x6f8] sm:$0xff]
  %v533 = vld [vmem:[%s0 + $0x700] sm:$0xff]
  %v534 = vld [vmem:[%s0 + $0x708] sm:$0xff]
  %v535 = vld [vmem:[%s0 + $0x710] sm:$0xff]
  %v536 = vld [vmem:[%s0 + $0x718] sm:$0xff]
  %v537 = vld [vmem:[%s0 + $0x720] sm:$0xff]
  %v538 = vld [vmem:[%s0 + $0x728] sm:$0xff]
  %v539 = vld [vmem:[%s0 + $0x730] sm:$0xff]
  %v540 = vld [vmem:[%s0 + $0x738] sm:$0xff]
  %v541 = vld [vmem:[%s0 + $0x740] sm:$0xff]
  %v542 = vld [vmem:[%s0 + $0x748] sm:$0xff]
  %v543 = vld [vmem:[%s0 + $0x750] sm:$0xff]
  %v544 = vld [vmem:[%s0 + $0x758] sm:$0xff]
  %v545 = vld [vmem:[%s0 + $0x760] sm:$0xff]
  %v546 = vld [vmem:[%s0 + $0x768] sm:$0xff]
  %v547 = vld [vmem:[%s0 + $0x770] sm:$0xff]
  %v548 = vld [vmem:[%s0 + $0x778] sm:$0xff]
  %v549 = vld [vmem:[%s0 + $0x780] sm:$0xff]
  %v550 = vld [vmem:[%s0 + $0x788] sm:$0xff]
  %v551 = vld [vmem:[%s0 + $0x790] sm:$0xff]
  %v552 = vld [vmem:[%s0 + $0x798] sm:$0xff]
  %v553 = vld [vmem:[%s0 + $0x7a0] sm:$0xff]
  %v554 = vld [vmem:[%s0 + $0x7a8] sm:$0xff]
  %v555 = vld [vmem:[%s0 + $0x7b0] sm:$0xff]
  %v556 = vld [vmem:[%s0 + $0x7b8] sm:$0xff]
  %v557 = vld [vmem:[%s0 + $0x7c0] sm:$0xff]
  %v558 = vld [vmem:[%s0 + $0x7c8] sm:$0xff]
  %v559 = vld [vmem:[%s0 + $0x7d0] sm:$0xff]
  %v560 = vld [vmem:[%s0 + $0x7d8] sm:$0xff]
  %v561 = vld [vmem:[%s0 + $0x7e0] sm:$0xff]
  %v562 = vld [vmem:[%s0 + $0x7e8] sm:$0xff]
  %v563 = vld [vmem:[%s0 + $0x7f0] sm:$0xff]
  %v564 = vld [vmem:[%s0 + $0x7f8] sm:$0xff]
  %v565 = vld [vmem:[%s0 + $0x800] sm:$0xff]
  %v566 = vld [vmem:[%s0 + $0x808] sm:$0xff]
  %v567 = vld [vmem:[%s0 + $0x810] sm:$0xff]
  %v568 = vld [vmem:[%s0 + $0x818] sm:$0xff]
  %v569 = vld [vmem:[%s0 + $0x820] sm:$0xff]
  %v570 = vld [vmem:[%s0 + $0x828] sm:$0xff]
  %v571 = vld [vmem:[%s0 + $0x830] sm:$0xff]
  %v572 = vld [vmem:[%s0 + $0x838] sm:$0xff]
  %v573 = vld [vmem:[%s0 + $0x840] sm:$0xff]
  %v574 = vld [vmem:[%s0 + $0x848] sm:$0xff]
  %v575 = vld [vmem:[%s0 + $0x850] sm:$0xff]
  %v576 = vld [vmem:[%s0 + $0x858] sm:$0xff]
  %v577 = vld [vmem:[%s0 + $0x860] sm:$0xff]
  %v578 = vld [vmem:[%s0 + $0x868] sm:$0xff]
  %v579 = vld [vmem:[%s0 + $0x870] sm:$0xff]
  %v580 = vld [vmem:[%s0 + $0x878] sm:$0xff]
  %v581 = vld [vmem:[%s0 + $0x880] sm:$0xff]
  %v582 = vld [vmem:[%s0 + $0x888] sm:$0xff]
  %v583 = vld [vmem:[%s0 + $0x890] sm:$0xff]
  %v584 = vld [vmem:[%s0 + $0x898] sm:$0xff]
  %v585 = vld [vmem:[%s0 + $0x8a0] sm:$0xff]
  %v586 = vld [vmem:[%s0 + $0x8a8] sm:$0xff]
  %v587 = vld [vmem:[%s0 + $0x8b0] sm:$0xff]
  %v588 = vld [vmem:[%s0 + $0x8b8] sm:$0xff]
  %v589 = vld [vmem:[%s0 + $0x8c0] sm:$0xff]
  %v590 = vld [vmem:[%s0 + $0x8c8] sm:$0xff]
  %v591 = vld [vmem:[%s0 + $0x8d0] sm:$0xff]
  %v592 = vld [vmem:[%s0 + $0x8d8] sm:$0xff]
  %v593 = vld [vmem:[%s0 + $0x8e0] sm:$0xff]
  %v594 = vld [vmem:[%s0 + $0x8e8] sm:$0xff]
  %v595 = vld [vmem:[%s0 + $0x8f0] sm:$0xff]
  %v596 = vld [vmem:[%s0 + $0x8f8] sm:$0xff]
  %v597 = vld [vmem:[%s0 + $0x900] sm:$0xff]
  %v598 = vld [vmem:[%s0 + $0x908] sm:$0xff]
  %v599 = vld [vmem:[%s0 + $0x910] sm:$0xff]
  %v600 = vld [vmem:[%s0 + $0x918] sm:$0xff]
  %v601 = vld [vmem:[%s0 + $0x920] sm:$0xff]
  %v602 = vld [vmem:[%s0 + $0x928] sm:$0xff]
  %v603 = vld [vmem:[%s0 + $0x930] sm:$0xff]
  %v604 = vld [vmem:[%s0 + $0x938] sm:$0xff]
  %v605 = vld [vmem:[%s0 + $0x940] sm:$0xff]
  %v606 = vld [vmem:[%s0 + $0x948] sm:$0xff]
  %v607 = vld [vmem:[%s0 + $0x950] sm:$0xff]
  %v608 = vld [vmem:[%s0 + $0x958] sm:$0xff]
  %v609 = vld [vmem:[%s0 + $0x960] sm:$0xff]
  %v610 = vld [vmem:[%s0 + $0x968] sm:$0xff]
  %v611 = vld [vmem:[%s0 + $0x970] sm:$0xff]
  %v612 = vld [vmem:[%s0 + $0x978] sm:$0xff]
  %v613 = vld [vmem:[%s0 + $0x980] sm:$0xff]
  %v614 = vld [vmem:[%s0 + $0x988] sm:$0xff]
  %v615 = vld [vmem:[%s0 + $0x990] sm:$0xff]
  %v616 = vld [vmem:[%s0 + $0x998] sm:$0xff]
  %v617 = vld [vmem:[%s0 + $0x9a0] sm:$0xff]
  %v618 = vld [vmem:[%s0 + $0x9a8] sm:$0xff]
  %v619 = vld [vmem:[%s0 + $0x9b0] sm:$0xff]
  %v620 = vld [vmem:[%s0 + $0x9b8] sm:$0xff]
  %v621 = vld [vmem:[%s0 + $0x9c0] sm:$0xff]
  %v622 = vld [vmem:[%s0 + $0x9c8] sm:$0xff]
  %v623 = vld [vmem:[%s0 + $0x9d0] sm:$0xff]
  %v624 = vld [vmem:[%s0 + $0x9d8] sm:$0xff]
  %v625 = vld [vmem:[%s0 + $0x9e0] sm:$0xff]
  %v626 = vld [vmem:[%s0 + $0x9e8] sm:$0xff]
  %v627 = vld [vmem:[%s0 + $0x9f0] sm:$0xff]
  %v628 = vld [vmem:[%s0 + $0x9f8] sm:$0xff]
  %v629 = vld [vmem:[%s0 + $0xa00] sm:$0xff]
  %v630 = vld [vmem:[%s0 + $0xa08] sm:$0xff]
  %v631 = vld [vmem:[%s0 + $0xa10] sm:$0xff]
  %v632 = vld [vmem:[%s0 + $0xa18] sm:$0xff]
  %v633 = vld [vmem:[%s1] sm:$0xf]
  %v634 = vld [vmem:[%s1 + $0x4] sm:$0xf]
  %v635 = vld [vmem:[%s1 + $0x8] sm:$0xf]
  %v636 = vld [vmem:[%s1 + $0xc] sm:$0xf]
  %v637 = vld [vmem:[%s1 + $0x10] sm:$0xf]
  %v638 = vld [vmem:[%s1 + $0x14] sm:$0xf]
  %v639 = vld [vmem:[%s1 + $0x18] sm:$0xf]
  %v640 = vld [vmem:[%s1 + $0x1c] sm:$0xf]
  %v641 = vld [vmem:[%s1 + $0x20] sm:$0xf]
  %v642 = vld [vmem:[%s1 + $0x24] sm:$0xf]
  %v643 = vld [vmem:[%s1 + $0x28] sm:$0xf]
  %v644 = vld [vmem:[%s1 + $0x2c] sm:$0xf]
  %v645 = vld [vmem:[%s1 + $0x30] sm:$0xf]
  %v646 = vld [vmem:[%s1 + $0x34] sm:$0xf]
  %v647 = vld [vmem:[%s1 + $0x38] sm:$0xf]
  %v648 = vld [vmem:[%s1 + $0x3c] sm:$0xf]
  %713 = vrot.lane.b32.xlu0 %v310, 8
  %v714 = vpop.permute.xlu0 %713
  %715 = vrot.lane.b32.xlu0 %v312, 8
  %v716 = vpop.permute.xlu0 %715
  %717 = vrot.lane.b32.xlu0 %v314, 8
  %v718 = vpop.permute.xlu0 %717
  %719 = vrot.lane.b32.xlu0 %v316, 8
  %v720 = vpop.permute.xlu0 %719
  %721 = vrot.lane.b32.xlu0 %v318, 8
  %v722 = vpop.permute.xlu0 %721
  %723 = vrot.lane.b32.xlu0 %v320, 8
  %v724 = vpop.permute.xlu0 %723
  %725 = vrot.lane.b32.xlu0 %v322, 8
  %v726 = vpop.permute.xlu0 %725
  %727 = vrot.lane.b32.xlu0 %v324, 8
  %v728 = vpop.permute.xlu0 %727
  %729 = vrot.lane.b32.xlu0 %v346, 8
  %v730 = vpop.permute.xlu0 %729
  %731 = vrot.lane.b32.xlu0 %v348, 8
  %v732 = vpop.permute.xlu0 %731
  %733 = vrot.lane.b32.xlu0 %v350, 8
  %v734 = vpop.permute.xlu0 %733
  %735 = vrot.lane.b32.xlu0 %v352, 8
  %v736 = vpop.permute.xlu0 %735
  %737 = vrot.lane.b32.xlu0 %v354, 8
  %v738 = vpop.permute.xlu0 %737
  %739 = vrot.lane.b32.xlu0 %v356, 8
  %v740 = vpop.permute.xlu0 %739
  %741 = vrot.lane.b32.xlu0 %v358, 8
  %v742 = vpop.permute.xlu0 %741
  %743 = vrot.lane.b32.xlu0 %v360, 8
  %v744 = vpop.permute.xlu0 %743
  %745 = vrot.lane.b32.xlu0 %v382, 8
  %v746 = vpop.permute.xlu0 %745
  %747 = vrot.lane.b32.xlu0 %v384, 8
  %v748 = vpop.permute.xlu0 %747
  %749 = vrot.lane.b32.xlu0 %v386, 8
  %v750 = vpop.permute.xlu0 %749
  %751 = vrot.lane.b32.xlu0 %v388, 8
  %v752 = vpop.permute.xlu0 %751
  %753 = vrot.lane.b32.xlu0 %v390, 8
  %v754 = vpop.permute.xlu0 %753
  %755 = vrot.lane.b32.xlu0 %v392, 8
  %v756 = vpop.permute.xlu0 %755
  %757 = vrot.lane.b32.xlu0 %v394, 8
  %v758 = vpop.permute.xlu0 %757
  %759 = vrot.lane.b32.xlu0 %v396, 8
  %v760 = vpop.permute.xlu0 %759
  %761 = vrot.lane.b32.xlu0 %v418, 8
  %v762 = vpop.permute.xlu0 %761
  %763 = vrot.lane.b32.xlu0 %v420, 8
  %v764 = vpop.permute.xlu0 %763
  %765 = vrot.lane.b32.xlu0 %v422, 8
  %v766 = vpop.permute.xlu0 %765
  %767 = vrot.lane.b32.xlu0 %v424, 8
  %v768 = vpop.permute.xlu0 %767
  %769 = vrot.lane.b32.xlu0 %v426, 8
  %v770 = vpop.permute.xlu0 %769
  %771 = vrot.lane.b32.xlu0 %v428, 8
  %v772 = vpop.permute.xlu0 %771
  %773 = vrot.lane.b32.xlu0 %v430, 8
  %v774 = vpop.permute.xlu0 %773
  %775 = vrot.lane.b32.xlu0 %v432, 8
  %v776 = vpop.permute.xlu0 %775
  %777 = vrot.lane.b32.xlu0 %v454, 8
  %v778 = vpop.permute.xlu0 %777
  %779 = vrot.lane.b32.xlu0 %v456, 8
  %v780 = vpop.permute.xlu0 %779
  %781 = vrot.lane.b32.xlu0 %v458, 8
  %v782 = vpop.permute.xlu0 %781
  %783 = vrot.lane.b32.xlu0 %v460, 8
  %v784 = vpop.permute.xlu0 %783
  %785 = vrot.lane.b32.xlu0 %v462, 8
  %v786 = vpop.permute.xlu0 %785
  %787 = vrot.lane.b32.xlu0 %v464, 8
  %v788 = vpop.permute.xlu0 %787
  %789 = vrot.lane.b32.xlu0 %v466, 8
  %v790 = vpop.permute.xlu0 %789
  %791 = vrot.lane.b32.xlu0 %v468, 8
  %v792 = vpop.permute.xlu0 %791
  %793 = vrot.lane.b32.xlu0 %v490, 8
  %v794 = vpop.permute.xlu0 %793
  %795 = vrot.lane.b32.xlu0 %v492, 8
  %v796 = vpop.permute.xlu0 %795
  %797 = vrot.lane.b32.xlu0 %v494, 8
  %v798 = vpop.permute.xlu0 %797
  %799 = vrot.lane.b32.xlu0 %v496, 8
  %v800 = vpop.permute.xlu0 %799
  %801 = vrot.lane.b32.xlu0 %v498, 8
  %v802 = vpop.permute.xlu0 %801
  %803 = vrot.lane.b32.xlu0 %v500, 8
  %v804 = vpop.permute.xlu0 %803
  %805 = vrot.lane.b32.xlu0 %v502, 8
  %v806 = vpop.permute.xlu0 %805
  %807 = vrot.lane.b32.xlu0 %v504, 8
  %v808 = vpop.permute.xlu0 %807
  %809 = vrot.lane.b32.xlu0 %v526, 8
  %v810 = vpop.permute.xlu0 %809
  %811 = vrot.lane.b32.xlu0 %v528, 8
  %v812 = vpop.permute.xlu0 %811
  %813 = vrot.lane.b32.xlu0 %v530, 8
  %v814 = vpop.permute.xlu0 %813
  %815 = vrot.lane.b32.xlu0 %v532, 8
  %v816 = vpop.permute.xlu0 %815
  %817 = vrot.lane.b32.xlu0 %v534, 8
  %v818 = vpop.permute.xlu0 %817
  %819 = vrot.lane.b32.xlu0 %v536, 8
  %v820 = vpop.permute.xlu0 %819
  %821 = vrot.lane.b32.xlu0 %v538, 8
  %v822 = vpop.permute.xlu0 %821
  %823 = vrot.lane.b32.xlu0 %v540, 8
  %v824 = vpop.permute.xlu0 %823
  %825 = vrot.lane.b32.xlu0 %v562, 8
  %v826 = vpop.permute.xlu0 %825
  %827 = vrot.lane.b32.xlu0 %v564, 8
  %v828 = vpop.permute.xlu0 %827
  %829 = vrot.lane.b32.xlu0 %v566, 8
  %v830 = vpop.permute.xlu0 %829
  %831 = vrot.lane.b32.xlu0 %v568, 8
  %v832 = vpop.permute.xlu0 %831
  %833 = vrot.lane.b32.xlu0 %v570, 8
  %v834 = vpop.permute.xlu0 %833
  %835 = vrot.lane.b32.xlu0 %v572, 8
  %v836 = vpop.permute.xlu0 %835
  %837 = vrot.lane.b32.xlu0 %v574, 8
  %v838 = vpop.permute.xlu0 %837
  %839 = vrot.lane.b32.xlu0 %v576, 8
  %v840 = vpop.permute.xlu0 %839
  %969 = vrot.lane.b32.xlu0 %v311, 16
  %v970 = vpop.permute.xlu0 %969
  %971 = vrot.lane.b32.xlu0 %v313, 16
  %v972 = vpop.permute.xlu0 %971
  %973 = vrot.lane.b32.xlu0 %v315, 16
  %v974 = vpop.permute.xlu0 %973
  %975 = vrot.lane.b32.xlu0 %v317, 16
  %v976 = vpop.permute.xlu0 %975
  %977 = vrot.lane.b32.xlu0 %v319, 16
  %v978 = vpop.permute.xlu0 %977
  %979 = vrot.lane.b32.xlu0 %v321, 16
  %v980 = vpop.permute.xlu0 %979
  %981 = vrot.lane.b32.xlu0 %v323, 16
  %v982 = vpop.permute.xlu0 %981
  %983 = vrot.lane.b32.xlu0 %v325, 16
  %v984 = vpop.permute.xlu0 %983
  %985 = vrot.lane.b32.xlu0 %v347, 16
  %v986 = vpop.permute.xlu0 %985
  %987 = vrot.lane.b32.xlu0 %v349, 16
  %v988 = vpop.permute.xlu0 %987
  %989 = vrot.lane.b32.xlu0 %v351, 16
  %v990 = vpop.permute.xlu0 %989
  %991 = vrot.lane.b32.xlu0 %v353, 16
  %v992 = vpop.permute.xlu0 %991
  %993 = vrot.lane.b32.xlu0 %v355, 16
  %v994 = vpop.permute.xlu0 %993
  %995 = vrot.lane.b32.xlu0 %v357, 16
  %v996 = vpop.permute.xlu0 %995
  %997 = vrot.lane.b32.xlu0 %v359, 16
  %v998 = vpop.permute.xlu0 %997
  %999 = vrot.lane.b32.xlu0 %v361, 16
  %v1000 = vpop.permute.xlu0 %999
  %1001 = vrot.lane.b32.xlu0 %v383, 16
  %v1002 = vpop.permute.xlu0 %1001
  %1003 = vrot.lane.b32.xlu0 %v385, 16
  %v1004 = vpop.permute.xlu0 %1003
  %1005 = vrot.lane.b32.xlu0 %v387, 16
  %v1006 = vpop.permute.xlu0 %1005
  %1007 = vrot.lane.b32.xlu0 %v389, 16
  %v1008 = vpop.permute.xlu0 %1007
  %1009 = vrot.lane.b32.xlu0 %v391, 16
  %v1010 = vpop.permute.xlu0 %1009
  %1011 = vrot.lane.b32.xlu0 %v393, 16
  %v1012 = vpop.permute.xlu0 %1011
  %1013 = vrot.lane.b32.xlu0 %v395, 16
  %v1014 = vpop.permute.xlu0 %1013
  %1015 = vrot.lane.b32.xlu0 %v397, 16
  %v1016 = vpop.permute.xlu0 %1015
  %1017 = vrot.lane.b32.xlu0 %v419, 16
  %v1018 = vpop.permute.xlu0 %1017
  %1019 = vrot.lane.b32.xlu0 %v421, 16
  %v1020 = vpop.permute.xlu0 %1019
  %1021 = vrot.lane.b32.xlu0 %v423, 16
  %v1022 = vpop.permute.xlu0 %1021
  %1023 = vrot.lane.b32.xlu0 %v425, 16
  %v1024 = vpop.permute.xlu0 %1023
  %1025 = vrot.lane.b32.xlu0 %v427, 16
  %v1026 = vpop.permute.xlu0 %1025
  %1027 = vrot.lane.b32.xlu0 %v429, 16
  %v1028 = vpop.permute.xlu0 %1027
  %1029 = vrot.lane.b32.xlu0 %v431, 16
  %v1030 = vpop.permute.xlu0 %1029
  %1031 = vrot.lane.b32.xlu0 %v433, 16
  %v1032 = vpop.permute.xlu0 %1031
  %1033 = vrot.lane.b32.xlu0 %v455, 16
  %v1034 = vpop.permute.xlu0 %1033
  %1035 = vrot.lane.b32.xlu0 %v457, 16
  %v1036 = vpop.permute.xlu0 %1035
  %1037 = vrot.lane.b32.xlu0 %v459, 16
  %v1038 = vpop.permute.xlu0 %1037
  %1039 = vrot.lane.b32.xlu0 %v461, 16
  %v1040 = vpop.permute.xlu0 %1039
  %1041 = vrot.lane.b32.xlu0 %v463, 16
  %v1042 = vpop.permute.xlu0 %1041
  %1043 = vrot.lane.b32.xlu0 %v465, 16
  %v1044 = vpop.permute.xlu0 %1043
  %1045 = vrot.lane.b32.xlu0 %v467, 16
  %v1046 = vpop.permute.xlu0 %1045
  %1047 = vrot.lane.b32.xlu0 %v469, 16
  %v1048 = vpop.permute.xlu0 %1047
  %1049 = vrot.lane.b32.xlu0 %v491, 16
  %v1050 = vpop.permute.xlu0 %1049
  %1051 = vrot.lane.b32.xlu0 %v493, 16
  %v1052 = vpop.permute.xlu0 %1051
  %1053 = vrot.lane.b32.xlu0 %v495, 16
  %v1054 = vpop.permute.xlu0 %1053
  %1055 = vrot.lane.b32.xlu0 %v497, 16
  %v1056 = vpop.permute.xlu0 %1055
  %1057 = vrot.lane.b32.xlu0 %v499, 16
  %v1058 = vpop.permute.xlu0 %1057
  %1059 = vrot.lane.b32.xlu0 %v501, 16
  %v1060 = vpop.permute.xlu0 %1059
  %1061 = vrot.lane.b32.xlu0 %v503, 16
  %v1062 = vpop.permute.xlu0 %1061
  %1063 = vrot.lane.b32.xlu0 %v505, 16
  %v1064 = vpop.permute.xlu0 %1063
  %1065 = vrot.lane.b32.xlu0 %v527, 16
  %v1066 = vpop.permute.xlu0 %1065
  %1067 = vrot.lane.b32.xlu0 %v529, 16
  %v1068 = vpop.permute.xlu0 %1067
  %1069 = vrot.lane.b32.xlu0 %v531, 16
  %v1070 = vpop.permute.xlu0 %1069
  %1071 = vrot.lane.b32.xlu0 %v533, 16
  %v1072 = vpop.permute.xlu0 %1071
  %1073 = vrot.lane.b32.xlu0 %v535, 16
  %v1074 = vpop.permute.xlu0 %1073
  %1075 = vrot.lane.b32.xlu0 %v537, 16
  %v1076 = vpop.permute.xlu0 %1075
  %1077 = vrot.lane.b32.xlu0 %v539, 16
  %v1078 = vpop.permute.xlu0 %1077
  %1079 = vrot.lane.b32.xlu0 %v541, 16
  %v1080 = vpop.permute.xlu0 %1079
  %1081 = vrot.lane.b32.xlu0 %v563, 16
  %v1082 = vpop.permute.xlu0 %1081
  %1083 = vrot.lane.b32.xlu0 %v565, 16
  %v1084 = vpop.permute.xlu0 %1083
  %1085 = vrot.lane.b32.xlu0 %v567, 16
  %v1086 = vpop.permute.xlu0 %1085
  %1087 = vrot.lane.b32.xlu0 %v569, 16
  %v1088 = vpop.permute.xlu0 %1087
  %1089 = vrot.lane.b32.xlu0 %v571, 16
  %v1090 = vpop.permute.xlu0 %1089
  %1091 = vrot.lane.b32.xlu0 %v573, 16
  %v1092 = vpop.permute.xlu0 %1091
  %1093 = vrot.lane.b32.xlu0 %v575, 16
  %v1094 = vpop.permute.xlu0 %1093
  %1095 = vrot.lane.b32.xlu0 %v577, 16
  %v1096 = vpop.permute.xlu0 %1095
  %1169 = vrot.lane.b32.xlu0 %v312, 24
  %v1170 = vpop.permute.xlu0 %1169
  %1171 = vrot.lane.b32.xlu0 %v314, 24
  %v1172 = vpop.permute.xlu0 %1171
  %1173 = vrot.lane.b32.xlu0 %v316, 24
  %v1174 = vpop.permute.xlu0 %1173
  %1175 = vrot.lane.b32.xlu0 %v318, 24
  %v1176 = vpop.permute.xlu0 %1175
  %1177 = vrot.lane.b32.xlu0 %v320, 24
  %v1178 = vpop.permute.xlu0 %1177
  %1179 = vrot.lane.b32.xlu0 %v322, 24
  %v1180 = vpop.permute.xlu0 %1179
  %1181 = vrot.lane.b32.xlu0 %v324, 24
  %v1182 = vpop.permute.xlu0 %1181
  %1183 = vrot.lane.b32.xlu0 %v326, 24
  %v1184 = vpop.permute.xlu0 %1183
  %1185 = vrot.lane.b32.xlu0 %v348, 24
  %v1186 = vpop.permute.xlu0 %1185
  %1187 = vrot.lane.b32.xlu0 %v350, 24
  %v1188 = vpop.permute.xlu0 %1187
  %1189 = vrot.lane.b32.xlu0 %v352, 24
  %v1190 = vpop.permute.xlu0 %1189
  %1191 = vrot.lane.b32.xlu0 %v354, 24
  %v1192 = vpop.permute.xlu0 %1191
  %1193 = vrot.lane.b32.xlu0 %v356, 24
  %v1194 = vpop.permute.xlu0 %1193
  %1195 = vrot.lane.b32.xlu0 %v358, 24
  %v1196 = vpop.permute.xlu0 %1195
  %1197 = vrot.lane.b32.xlu0 %v360, 24
  %v1198 = vpop.permute.xlu0 %1197
  %1199 = vrot.lane.b32.xlu0 %v362, 24
  %v1200 = vpop.permute.xlu0 %1199
  %1201 = vrot.lane.b32.xlu0 %v384, 24
  %v1202 = vpop.permute.xlu0 %1201
  %1203 = vrot.lane.b32.xlu0 %v386, 24
  %v1204 = vpop.permute.xlu0 %1203
  %1205 = vrot.lane.b32.xlu0 %v388, 24
  %v1206 = vpop.permute.xlu0 %1205
  %1207 = vrot.lane.b32.xlu0 %v390, 24
  %v1208 = vpop.permute.xlu0 %1207
  %1209 = vrot.lane.b32.xlu0 %v392, 24
  %v1210 = vpop.permute.xlu0 %1209
  %1211 = vrot.lane.b32.xlu0 %v394, 24
  %v1212 = vpop.permute.xlu0 %1211
  %1213 = vrot.lane.b32.xlu0 %v396, 24
  %v1214 = vpop.permute.xlu0 %1213
  %1215 = vrot.lane.b32.xlu0 %v398, 24
  %v1216 = vpop.permute.xlu0 %1215
  %1217 = vrot.lane.b32.xlu0 %v420, 24
  %v1218 = vpop.permute.xlu0 %1217
  %1219 = vrot.lane.b32.xlu0 %v422, 24
  %v1220 = vpop.permute.xlu0 %1219
  %1221 = vrot.lane.b32.xlu0 %v424, 24
  %v1222 = vpop.permute.xlu0 %1221
  %1223 = vrot.lane.b32.xlu0 %v426, 24
  %v1224 = vpop.permute.xlu0 %1223
  %1225 = vrot.lane.b32.xlu0 %v428, 24
  %v1226 = vpop.permute.xlu0 %1225
  %1227 = vrot.lane.b32.xlu0 %v430, 24
  %v1228 = vpop.permute.xlu0 %1227
  %1229 = vrot.lane.b32.xlu0 %v432, 24
  %v1230 = vpop.permute.xlu0 %1229
  %1231 = vrot.lane.b32.xlu0 %v434, 24
  %v1232 = vpop.permute.xlu0 %1231
  %1233 = vrot.lane.b32.xlu0 %v456, 24
  %v1234 = vpop.permute.xlu0 %1233
  %1235 = vrot.lane.b32.xlu0 %v458, 24
  %v1236 = vpop.permute.xlu0 %1235
  %1237 = vrot.lane.b32.xlu0 %v460, 24
  %v1238 = vpop.permute.xlu0 %1237
  %1239 = vrot.lane.b32.xlu0 %v462, 24
  %v1240 = vpop.permute.xlu0 %1239
  %1241 = vrot.lane.b32.xlu0 %v464, 24
  %v1242 = vpop.permute.xlu0 %1241
  %1243 = vrot.lane.b32.xlu0 %v466, 24
  %v1244 = vpop.permute.xlu0 %1243
  %1245 = vrot.lane.b32.xlu0 %v468, 24
  %v1246 = vpop.permute.xlu0 %1245
  %1247 = vrot.lane.b32.xlu0 %v470, 24
  %v1248 = vpop.permute.xlu0 %1247
  %1249 = vrot.lane.b32.xlu0 %v492, 24
  %v1250 = vpop.permute.xlu0 %1249
  %1251 = vrot.lane.b32.xlu0 %v494, 24
  %v1252 = vpop.permute.xlu0 %1251
  %1253 = vrot.lane.b32.xlu0 %v496, 24
  %v1254 = vpop.permute.xlu0 %1253
  %1255 = vrot.lane.b32.xlu0 %v498, 24
  %v1256 = vpop.permute.xlu0 %1255
  %1257 = vrot.lane.b32.xlu0 %v500, 24
  %v1258 = vpop.permute.xlu0 %1257
  %1259 = vrot.lane.b32.xlu0 %v502, 24
  %v1260 = vpop.permute.xlu0 %1259
  %1261 = vrot.lane.b32.xlu0 %v504, 24
  %v1262 = vpop.permute.xlu0 %1261
  %1263 = vrot.lane.b32.xlu0 %v506, 24
  %v1264 = vpop.permute.xlu0 %1263
  %1265 = vrot.lane.b32.xlu0 %v528, 24
  %v1266 = vpop.permute.xlu0 %1265
  %1267 = vrot.lane.b32.xlu0 %v530, 24
  %v1268 = vpop.permute.xlu0 %1267
  %1269 = vrot.lane.b32.xlu0 %v532, 24
  %v1270 = vpop.permute.xlu0 %1269
  %1271 = vrot.lane.b32.xlu0 %v534, 24
  %v1272 = vpop.permute.xlu0 %1271
  %1273 = vrot.lane.b32.xlu0 %v536, 24
  %v1274 = vpop.permute.xlu0 %1273
  %1275 = vrot.lane.b32.xlu0 %v538, 24
  %v1276 = vpop.permute.xlu0 %1275
  %1277 = vrot.lane.b32.xlu0 %v540, 24
  %v1278 = vpop.permute.xlu0 %1277
  %1279 = vrot.lane.b32.xlu0 %v542, 24
  %v1280 = vpop.permute.xlu0 %1279
  %1281 = vrot.lane.b32.xlu0 %v564, 24
  %v1282 = vpop.permute.xlu0 %1281
  %1283 = vrot.lane.b32.xlu0 %v566, 24
  %v1284 = vpop.permute.xlu0 %1283
  %1285 = vrot.lane.b32.xlu0 %v568, 24
  %v1286 = vpop.permute.xlu0 %1285
  %1287 = vrot.lane.b32.xlu0 %v570, 24
  %v1288 = vpop.permute.xlu0 %1287
  %1289 = vrot.lane.b32.xlu0 %v572, 24
  %v1290 = vpop.permute.xlu0 %1289
  %1291 = vrot.lane.b32.xlu0 %v574, 24
  %v1292 = vpop.permute.xlu0 %1291
  %1293 = vrot.lane.b32.xlu0 %v576, 24
  %v1294 = vpop.permute.xlu0 %1293
  %1295 = vrot.lane.b32.xlu0 %v578, 24
  %v1296 = vpop.permute.xlu0 %1295
  %1425 = vrot.lane.b32.xlu0 %v327, 32
  %v1426 = vpop.permute.xlu0 %1425
  %1427 = vrot.lane.b32.xlu0 %v329, 32
  %v1428 = vpop.permute.xlu0 %1427
  %1429 = vrot.lane.b32.xlu0 %v331, 32
  %v1430 = vpop.permute.xlu0 %1429
  %1431 = vrot.lane.b32.xlu0 %v333, 32
  %v1432 = vpop.permute.xlu0 %1431
  %1433 = vrot.lane.b32.xlu0 %v335, 32
  %v1434 = vpop.permute.xlu0 %1433
  %1435 = vrot.lane.b32.xlu0 %v337, 32
  %v1436 = vpop.permute.xlu0 %1435
  %1437 = vrot.lane.b32.xlu0 %v339, 32
  %v1438 = vpop.permute.xlu0 %1437
  %1439 = vrot.lane.b32.xlu0 %v341, 32
  %v1440 = vpop.permute.xlu0 %1439
  %1441 = vrot.lane.b32.xlu0 %v363, 32
  %v1442 = vpop.permute.xlu0 %1441
  %1443 = vrot.lane.b32.xlu0 %v365, 32
  %v1444 = vpop.permute.xlu0 %1443
  %1445 = vrot.lane.b32.xlu0 %v367, 32
  %v1446 = vpop.permute.xlu0 %1445
  %1447 = vrot.lane.b32.xlu0 %v369, 32
  %v1448 = vpop.permute.xlu0 %1447
  %1449 = vrot.lane.b32.xlu0 %v371, 32
  %v1450 = vpop.permute.xlu0 %1449
  %1451 = vrot.lane.b32.xlu0 %v373, 32
  %v1452 = vpop.permute.xlu0 %1451
  %1453 = vrot.lane.b32.xlu0 %v375, 32
  %v1454 = vpop.permute.xlu0 %1453
  %1455 = vrot.lane.b32.xlu0 %v377, 32
  %v1456 = vpop.permute.xlu0 %1455
  %1457 = vrot.lane.b32.xlu0 %v399, 32
  %v1458 = vpop.permute.xlu0 %1457
  %1459 = vrot.lane.b32.xlu0 %v401, 32
  %v1460 = vpop.permute.xlu0 %1459
  %1461 = vrot.lane.b32.xlu0 %v403, 32
  %v1462 = vpop.permute.xlu0 %1461
  %1463 = vrot.lane.b32.xlu0 %v405, 32
  %v1464 = vpop.permute.xlu0 %1463
  %1465 = vrot.lane.b32.xlu0 %v407, 32
  %v1466 = vpop.permute.xlu0 %1465
  %1467 = vrot.lane.b32.xlu0 %v409, 32
  %v1468 = vpop.permute.xlu0 %1467
  %1469 = vrot.lane.b32.xlu0 %v411, 32
  %v1470 = vpop.permute.xlu0 %1469
  %1471 = vrot.lane.b32.xlu0 %v413, 32
  %v1472 = vpop.permute.xlu0 %1471
  %1473 = vrot.lane.b32.xlu0 %v435, 32
  %v1474 = vpop.permute.xlu0 %1473
  %1475 = vrot.lane.b32.xlu0 %v437, 32
  %v1476 = vpop.permute.xlu0 %1475
  %1477 = vrot.lane.b32.xlu0 %v439, 32
  %v1478 = vpop.permute.xlu0 %1477
  %1479 = vrot.lane.b32.xlu0 %v441, 32
  %v1480 = vpop.permute.xlu0 %1479
  %1481 = vrot.lane.b32.xlu0 %v443, 32
  %v1482 = vpop.permute.xlu0 %1481
  %1483 = vrot.lane.b32.xlu0 %v445, 32
  %v1484 = vpop.permute.xlu0 %1483
  %1485 = vrot.lane.b32.xlu0 %v447, 32
  %v1486 = vpop.permute.xlu0 %1485
  %1487 = vrot.lane.b32.xlu0 %v449, 32
  %v1488 = vpop.permute.xlu0 %1487
  %1489 = vrot.lane.b32.xlu0 %v471, 32
  %v1490 = vpop.permute.xlu0 %1489
  %1491 = vrot.lane.b32.xlu0 %v473, 32
  %v1492 = vpop.permute.xlu0 %1491
  %1493 = vrot.lane.b32.xlu0 %v475, 32
  %v1494 = vpop.permute.xlu0 %1493
  %1495 = vrot.lane.b32.xlu0 %v477, 32
  %v1496 = vpop.permute.xlu0 %1495
  %1497 = vrot.lane.b32.xlu0 %v479, 32
  %v1498 = vpop.permute.xlu0 %1497
  %1499 = vrot.lane.b32.xlu0 %v481, 32
  %v1500 = vpop.permute.xlu0 %1499
  %1501 = vrot.lane.b32.xlu0 %v483, 32
  %v1502 = vpop.permute.xlu0 %1501
  %1503 = vrot.lane.b32.xlu0 %v485, 32
  %v1504 = vpop.permute.xlu0 %1503
  %1505 = vrot.lane.b32.xlu0 %v507, 32
  %v1506 = vpop.permute.xlu0 %1505
  %1507 = vrot.lane.b32.xlu0 %v509, 32
  %v1508 = vpop.permute.xlu0 %1507
  %1509 = vrot.lane.b32.xlu0 %v511, 32
  %v1510 = vpop.permute.xlu0 %1509
  %1511 = vrot.lane.b32.xlu0 %v513, 32
  %v1512 = vpop.permute.xlu0 %1511
  %1513 = vrot.lane.b32.xlu0 %v515, 32
  %v1514 = vpop.permute.xlu0 %1513
  %1515 = vrot.lane.b32.xlu0 %v517, 32
  %v1516 = vpop.permute.xlu0 %1515
  %1517 = vrot.lane.b32.xlu0 %v519, 32
  %v1518 = vpop.permute.xlu0 %1517
  %1519 = vrot.lane.b32.xlu0 %v521, 32
  %v1520 = vpop.permute.xlu0 %1519
  %1521 = vrot.lane.b32.xlu0 %v543, 32
  %v1522 = vpop.permute.xlu0 %1521
  %1523 = vrot.lane.b32.xlu0 %v545, 32
  %v1524 = vpop.permute.xlu0 %1523
  %1525 = vrot.lane.b32.xlu0 %v547, 32
  %v1526 = vpop.permute.xlu0 %1525
  %1527 = vrot.lane.b32.xlu0 %v549, 32
  %v1528 = vpop.permute.xlu0 %1527
  %1529 = vrot.lane.b32.xlu0 %v551, 32
  %v1530 = vpop.permute.xlu0 %1529
  %1531 = vrot.lane.b32.xlu0 %v553, 32
  %v1532 = vpop.permute.xlu0 %1531
  %1533 = vrot.lane.b32.xlu0 %v555, 32
  %v1534 = vpop.permute.xlu0 %1533
  %1535 = vrot.lane.b32.xlu0 %v557, 32
  %v1536 = vpop.permute.xlu0 %1535
  %1537 = vrot.lane.b32.xlu0 %v579, 32
  %v1538 = vpop.permute.xlu0 %1537
  %1539 = vrot.lane.b32.xlu0 %v581, 32
  %v1540 = vpop.permute.xlu0 %1539
  %1541 = vrot.lane.b32.xlu0 %v583, 32
  %v1542 = vpop.permute.xlu0 %1541
  %1543 = vrot.lane.b32.xlu0 %v585, 32
  %v1544 = vpop.permute.xlu0 %1543
  %1545 = vrot.lane.b32.xlu0 %v587, 32
  %v1546 = vpop.permute.xlu0 %1545
  %1547 = vrot.lane.b32.xlu0 %v589, 32
  %v1548 = vpop.permute.xlu0 %1547
  %1549 = vrot.lane.b32.xlu0 %v591, 32
  %v1550 = vpop.permute.xlu0 %1549
  %1551 = vrot.lane.b32.xlu0 %v593, 32
  %v1552 = vpop.permute.xlu0 %1551
  %1681 = vrot.lane.b32.xlu0 %v328, 40
  %v1682 = vpop.permute.xlu0 %1681
  %1683 = vrot.lane.b32.xlu0 %v330, 40
  %v1684 = vpop.permute.xlu0 %1683
  %1685 = vrot.lane.b32.xlu0 %v332, 40
  %v1686 = vpop.permute.xlu0 %1685
  %1687 = vrot.lane.b32.xlu0 %v334, 40
  %v1688 = vpop.permute.xlu0 %1687
  %1689 = vrot.lane.b32.xlu0 %v336, 40
  %v1690 = vpop.permute.xlu0 %1689
  %1691 = vrot.lane.b32.xlu0 %v338, 40
  %v1692 = vpop.permute.xlu0 %1691
  %1693 = vrot.lane.b32.xlu0 %v340, 40
  %v1694 = vpop.permute.xlu0 %1693
  %1695 = vrot.lane.b32.xlu0 %v342, 40
  %v1696 = vpop.permute.xlu0 %1695
  %1697 = vrot.lane.b32.xlu0 %v364, 40
  %v1698 = vpop.permute.xlu0 %1697
  %1699 = vrot.lane.b32.xlu0 %v366, 40
  %v1700 = vpop.permute.xlu0 %1699
  %1701 = vrot.lane.b32.xlu0 %v368, 40
  %v1702 = vpop.permute.xlu0 %1701
  %1703 = vrot.lane.b32.xlu0 %v370, 40
  %v1704 = vpop.permute.xlu0 %1703
  %1705 = vrot.lane.b32.xlu0 %v372, 40
  %v1706 = vpop.permute.xlu0 %1705
  %1707 = vrot.lane.b32.xlu0 %v374, 40
  %v1708 = vpop.permute.xlu0 %1707
  %1709 = vrot.lane.b32.xlu0 %v376, 40
  %v1710 = vpop.permute.xlu0 %1709
  %1711 = vrot.lane.b32.xlu0 %v378, 40
  %v1712 = vpop.permute.xlu0 %1711
  %1713 = vrot.lane.b32.xlu0 %v400, 40
  %v1714 = vpop.permute.xlu0 %1713
  %1715 = vrot.lane.b32.xlu0 %v402, 40
  %v1716 = vpop.permute.xlu0 %1715
  %1717 = vrot.lane.b32.xlu0 %v404, 40
  %v1718 = vpop.permute.xlu0 %1717
  %1719 = vrot.lane.b32.xlu0 %v406, 40
  %v1720 = vpop.permute.xlu0 %1719
  %1721 = vrot.lane.b32.xlu0 %v408, 40
  %v1722 = vpop.permute.xlu0 %1721
  %1723 = vrot.lane.b32.xlu0 %v410, 40
  %v1724 = vpop.permute.xlu0 %1723
  %1725 = vrot.lane.b32.xlu0 %v412, 40
  %v1726 = vpop.permute.xlu0 %1725
  %1727 = vrot.lane.b32.xlu0 %v414, 40
  %v1728 = vpop.permute.xlu0 %1727
  %1729 = vrot.lane.b32.xlu0 %v436, 40
  %v1730 = vpop.permute.xlu0 %1729
  %1731 = vrot.lane.b32.xlu0 %v438, 40
  %v1732 = vpop.permute.xlu0 %1731
  %1733 = vrot.lane.b32.xlu0 %v440, 40
  %v1734 = vpop.permute.xlu0 %1733
  %1735 = vrot.lane.b32.xlu0 %v442, 40
  %v1736 = vpop.permute.xlu0 %1735
  %1737 = vrot.lane.b32.xlu0 %v444, 40
  %v1738 = vpop.permute.xlu0 %1737
  %1739 = vrot.lane.b32.xlu0 %v446, 40
  %v1740 = vpop.permute.xlu0 %1739
  %1741 = vrot.lane.b32.xlu0 %v448, 40
  %v1742 = vpop.permute.xlu0 %1741
  %1743 = vrot.lane.b32.xlu0 %v450, 40
  %v1744 = vpop.permute.xlu0 %1743
  %1745 = vrot.lane.b32.xlu0 %v472, 40
  %v1746 = vpop.permute.xlu0 %1745
  %1747 = vrot.lane.b32.xlu0 %v474, 40
  %v1748 = vpop.permute.xlu0 %1747
  %1749 = vrot.lane.b32.xlu0 %v476, 40
  %v1750 = vpop.permute.xlu0 %1749
  %1751 = vrot.lane.b32.xlu0 %v478, 40
  %v1752 = vpop.permute.xlu0 %1751
  %1753 = vrot.lane.b32.xlu0 %v480, 40
  %v1754 = vpop.permute.xlu0 %1753
  %1755 = vrot.lane.b32.xlu0 %v482, 40
  %v1756 = vpop.permute.xlu0 %1755
  %1757 = vrot.lane.b32.xlu0 %v484, 40
  %v1758 = vpop.permute.xlu0 %1757
  %1759 = vrot.lane.b32.xlu0 %v486, 40
  %v1760 = vpop.permute.xlu0 %1759
  %1761 = vrot.lane.b32.xlu0 %v508, 40
  %v1762 = vpop.permute.xlu0 %1761
  %1763 = vrot.lane.b32.xlu0 %v510, 40
  %v1764 = vpop.permute.xlu0 %1763
  %1765 = vrot.lane.b32.xlu0 %v512, 40
  %v1766 = vpop.permute.xlu0 %1765
  %1767 = vrot.lane.b32.xlu0 %v514, 40
  %v1768 = vpop.permute.xlu0 %1767
  %1769 = vrot.lane.b32.xlu0 %v516, 40
  %v1770 = vpop.permute.xlu0 %1769
  %1771 = vrot.lane.b32.xlu0 %v518, 40
  %v1772 = vpop.permute.xlu0 %1771
  %1773 = vrot.lane.b32.xlu0 %v520, 40
  %v1774 = vpop.permute.xlu0 %1773
  %1775 = vrot.lane.b32.xlu0 %v522, 40
  %v1776 = vpop.permute.xlu0 %1775
  %1777 = vrot.lane.b32.xlu0 %v544, 40
  %v1778 = vpop.permute.xlu0 %1777
  %1779 = vrot.lane.b32.xlu0 %v546, 40
  %v1780 = vpop.permute.xlu0 %1779
  %1781 = vrot.lane.b32.xlu0 %v548, 40
  %v1782 = vpop.permute.xlu0 %1781
  %1783 = vrot.lane.b32.xlu0 %v550, 40
  %v1784 = vpop.permute.xlu0 %1783
  %1785 = vrot.lane.b32.xlu0 %v552, 40
  %v1786 = vpop.permute.xlu0 %1785
  %1787 = vrot.lane.b32.xlu0 %v554, 40
  %v1788 = vpop.permute.xlu0 %1787
  %1789 = vrot.lane.b32.xlu0 %v556, 40
  %v1790 = vpop.permute.xlu0 %1789
  %1791 = vrot.lane.b32.xlu0 %v558, 40
  %v1792 = vpop.permute.xlu0 %1791
  %1793 = vrot.lane.b32.xlu0 %v580, 40
  %v1794 = vpop.permute.xlu0 %1793
  %1795 = vrot.lane.b32.xlu0 %v582, 40
  %v1796 = vpop.permute.xlu0 %1795
  %1797 = vrot.lane.b32.xlu0 %v584, 40
  %v1798 = vpop.permute.xlu0 %1797
  %1799 = vrot.lane.b32.xlu0 %v586, 40
  %v1800 = vpop.permute.xlu0 %1799
  %1801 = vrot.lane.b32.xlu0 %v588, 40
  %v1802 = vpop.permute.xlu0 %1801
  %1803 = vrot.lane.b32.xlu0 %v590, 40
  %v1804 = vpop.permute.xlu0 %1803
  %1805 = vrot.lane.b32.xlu0 %v592, 40
  %v1806 = vpop.permute.xlu0 %1805
  %1807 = vrot.lane.b32.xlu0 %v594, 40
  %v1808 = vpop.permute.xlu0 %1807
  %1881 = vrot.lane.b32.xlu0 %v329, 48
  %v1882 = vpop.permute.xlu0 %1881
  %1883 = vrot.lane.b32.xlu0 %v331, 48
  %v1884 = vpop.permute.xlu0 %1883
  %1885 = vrot.lane.b32.xlu0 %v333, 48
  %v1886 = vpop.permute.xlu0 %1885
  %1887 = vrot.lane.b32.xlu0 %v335, 48
  %v1888 = vpop.permute.xlu0 %1887
  %1889 = vrot.lane.b32.xlu0 %v337, 48
  %v1890 = vpop.permute.xlu0 %1889
  %1891 = vrot.lane.b32.xlu0 %v339, 48
  %v1892 = vpop.permute.xlu0 %1891
  %1893 = vrot.lane.b32.xlu0 %v341, 48
  %v1894 = vpop.permute.xlu0 %1893
  %1895 = vrot.lane.b32.xlu0 %v343, 48
  %v1896 = vpop.permute.xlu0 %1895
  %1897 = vrot.lane.b32.xlu0 %v365, 48
  %v1898 = vpop.permute.xlu0 %1897
  %1899 = vrot.lane.b32.xlu0 %v367, 48
  %v1900 = vpop.permute.xlu0 %1899
  %1901 = vrot.lane.b32.xlu0 %v369, 48
  %v1902 = vpop.permute.xlu0 %1901
  %1903 = vrot.lane.b32.xlu0 %v371, 48
  %v1904 = vpop.permute.xlu0 %1903
  %1905 = vrot.lane.b32.xlu0 %v373, 48
  %v1906 = vpop.permute.xlu0 %1905
  %1907 = vrot.lane.b32.xlu0 %v375, 48
  %v1908 = vpop.permute.xlu0 %1907
  %1909 = vrot.lane.b32.xlu0 %v377, 48
  %v1910 = vpop.permute.xlu0 %1909
  %1911 = vrot.lane.b32.xlu0 %v379, 48
  %v1912 = vpop.permute.xlu0 %1911
  %1913 = vrot.lane.b32.xlu0 %v401, 48
  %v1914 = vpop.permute.xlu0 %1913
  %1915 = vrot.lane.b32.xlu0 %v403, 48
  %v1916 = vpop.permute.xlu0 %1915
  %1917 = vrot.lane.b32.xlu0 %v405, 48
  %v1918 = vpop.permute.xlu0 %1917
  %1919 = vrot.lane.b32.xlu0 %v407, 48
  %v1920 = vpop.permute.xlu0 %1919
  %1921 = vrot.lane.b32.xlu0 %v409, 48
  %v1922 = vpop.permute.xlu0 %1921
  %1923 = vrot.lane.b32.xlu0 %v411, 48
  %v1924 = vpop.permute.xlu0 %1923
  %1925 = vrot.lane.b32.xlu0 %v413, 48
  %v1926 = vpop.permute.xlu0 %1925
  %1927 = vrot.lane.b32.xlu0 %v415, 48
  %v1928 = vpop.permute.xlu0 %1927
  %1929 = vrot.lane.b32.xlu0 %v437, 48
  %v1930 = vpop.permute.xlu0 %1929
  %1931 = vrot.lane.b32.xlu0 %v439, 48
  %v1932 = vpop.permute.xlu0 %1931
  %1933 = vrot.lane.b32.xlu0 %v441, 48
  %v1934 = vpop.permute.xlu0 %1933
  %1935 = vrot.lane.b32.xlu0 %v443, 48
  %v1936 = vpop.permute.xlu0 %1935
  %1937 = vrot.lane.b32.xlu0 %v445, 48
  %v1938 = vpop.permute.xlu0 %1937
  %1939 = vrot.lane.b32.xlu0 %v447, 48
  %v1940 = vpop.permute.xlu0 %1939
  %1941 = vrot.lane.b32.xlu0 %v449, 48
  %v1942 = vpop.permute.xlu0 %1941
  %1943 = vrot.lane.b32.xlu0 %v451, 48
  %v1944 = vpop.permute.xlu0 %1943
  %1945 = vrot.lane.b32.xlu0 %v473, 48
  %v1946 = vpop.permute.xlu0 %1945
  %1947 = vrot.lane.b32.xlu0 %v475, 48
  %v1948 = vpop.permute.xlu0 %1947
  %1949 = vrot.lane.b32.xlu0 %v477, 48
  %v1950 = vpop.permute.xlu0 %1949
  %1951 = vrot.lane.b32.xlu0 %v479, 48
  %v1952 = vpop.permute.xlu0 %1951
  %1953 = vrot.lane.b32.xlu0 %v481, 48
  %v1954 = vpop.permute.xlu0 %1953
  %1955 = vrot.lane.b32.xlu0 %v483, 48
  %v1956 = vpop.permute.xlu0 %1955
  %1957 = vrot.lane.b32.xlu0 %v485, 48
  %v1958 = vpop.permute.xlu0 %1957
  %1959 = vrot.lane.b32.xlu0 %v487, 48
  %v1960 = vpop.permute.xlu0 %1959
  %1961 = vrot.lane.b32.xlu0 %v509, 48
  %v1962 = vpop.permute.xlu0 %1961
  %1963 = vrot.lane.b32.xlu0 %v511, 48
  %v1964 = vpop.permute.xlu0 %1963
  %1965 = vrot.lane.b32.xlu0 %v513, 48
  %v1966 = vpop.permute.xlu0 %1965
  %1967 = vrot.lane.b32.xlu0 %v515, 48
  %v1968 = vpop.permute.xlu0 %1967
  %1969 = vrot.lane.b32.xlu0 %v517, 48
  %v1970 = vpop.permute.xlu0 %1969
  %1971 = vrot.lane.b32.xlu0 %v519, 48
  %v1972 = vpop.permute.xlu0 %1971
  %1973 = vrot.lane.b32.xlu0 %v521, 48
  %v1974 = vpop.permute.xlu0 %1973
  %1975 = vrot.lane.b32.xlu0 %v523, 48
  %v1976 = vpop.permute.xlu0 %1975
  %1977 = vrot.lane.b32.xlu0 %v545, 48
  %v1978 = vpop.permute.xlu0 %1977
  %1979 = vrot.lane.b32.xlu0 %v547, 48
  %v1980 = vpop.permute.xlu0 %1979
  %1981 = vrot.lane.b32.xlu0 %v549, 48
  %v1982 = vpop.permute.xlu0 %1981
  %1983 = vrot.lane.b32.xlu0 %v551, 48
  %v1984 = vpop.permute.xlu0 %1983
  %1985 = vrot.lane.b32.xlu0 %v553, 48
  %v1986 = vpop.permute.xlu0 %1985
  %1987 = vrot.lane.b32.xlu0 %v555, 48
  %v1988 = vpop.permute.xlu0 %1987
  %1989 = vrot.lane.b32.xlu0 %v557, 48
  %v1990 = vpop.permute.xlu0 %1989
  %1991 = vrot.lane.b32.xlu0 %v559, 48
  %v1992 = vpop.permute.xlu0 %1991
  %1993 = vrot.lane.b32.xlu0 %v581, 48
  %v1994 = vpop.permute.xlu0 %1993
  %1995 = vrot.lane.b32.xlu0 %v583, 48
  %v1996 = vpop.permute.xlu0 %1995
  %1997 = vrot.lane.b32.xlu0 %v585, 48
  %v1998 = vpop.permute.xlu0 %1997
  %1999 = vrot.lane.b32.xlu0 %v587, 48
  %v2000 = vpop.permute.xlu0 %1999
  %2001 = vrot.lane.b32.xlu0 %v589, 48
  %v2002 = vpop.permute.xlu0 %2001
  %2003 = vrot.lane.b32.xlu0 %v591, 48
  %v2004 = vpop.permute.xlu0 %2003
  %2005 = vrot.lane.b32.xlu0 %v593, 48
  %v2006 = vpop.permute.xlu0 %2005
  %2007 = vrot.lane.b32.xlu0 %v595, 48
  %v2008 = vpop.permute.xlu0 %2007
  %2081 = vrot.lane.b32.xlu0 %v330, 56
  %v2082 = vpop.permute.xlu0 %2081
  %2083 = vrot.lane.b32.xlu0 %v332, 56
  %v2084 = vpop.permute.xlu0 %2083
  %2085 = vrot.lane.b32.xlu0 %v334, 56
  %v2086 = vpop.permute.xlu0 %2085
  %2087 = vrot.lane.b32.xlu0 %v336, 56
  %v2088 = vpop.permute.xlu0 %2087
  %2089 = vrot.lane.b32.xlu0 %v338, 56
  %v2090 = vpop.permute.xlu0 %2089
  %2091 = vrot.lane.b32.xlu0 %v340, 56
  %v2092 = vpop.permute.xlu0 %2091
  %2093 = vrot.lane.b32.xlu0 %v342, 56
  %v2094 = vpop.permute.xlu0 %2093
  %2095 = vrot.lane.b32.xlu0 %v344, 56
  %v2096 = vpop.permute.xlu0 %2095
  %2097 = vrot.lane.b32.xlu0 %v366, 56
  %v2098 = vpop.permute.xlu0 %2097
  %2099 = vrot.lane.b32.xlu0 %v368, 56
  %v2100 = vpop.permute.xlu0 %2099
  %2101 = vrot.lane.b32.xlu0 %v370, 56
  %v2102 = vpop.permute.xlu0 %2101
  %2103 = vrot.lane.b32.xlu0 %v372, 56
  %v2104 = vpop.permute.xlu0 %2103
  %2105 = vrot.lane.b32.xlu0 %v374, 56
  %v2106 = vpop.permute.xlu0 %2105
  %2107 = vrot.lane.b32.xlu0 %v376, 56
  %v2108 = vpop.permute.xlu0 %2107
  %2109 = vrot.lane.b32.xlu0 %v378, 56
  %v2110 = vpop.permute.xlu0 %2109
  %2111 = vrot.lane.b32.xlu0 %v380, 56
  %v2112 = vpop.permute.xlu0 %2111
  %2113 = vrot.lane.b32.xlu0 %v402, 56
  %v2114 = vpop.permute.xlu0 %2113
  %2115 = vrot.lane.b32.xlu0 %v404, 56
  %v2116 = vpop.permute.xlu0 %2115
  %2117 = vrot.lane.b32.xlu0 %v406, 56
  %v2118 = vpop.permute.xlu0 %2117
  %2119 = vrot.lane.b32.xlu0 %v408, 56
  %v2120 = vpop.permute.xlu0 %2119
  %2121 = vrot.lane.b32.xlu0 %v410, 56
  %v2122 = vpop.permute.xlu0 %2121
  %2123 = vrot.lane.b32.xlu0 %v412, 56
  %v2124 = vpop.permute.xlu0 %2123
  %2125 = vrot.lane.b32.xlu0 %v414, 56
  %v2126 = vpop.permute.xlu0 %2125
  %2127 = vrot.lane.b32.xlu0 %v416, 56
  %v2128 = vpop.permute.xlu0 %2127
  %2129 = vrot.lane.b32.xlu0 %v438, 56
  %v2130 = vpop.permute.xlu0 %2129
  %2131 = vrot.lane.b32.xlu0 %v440, 56
  %v2132 = vpop.permute.xlu0 %2131
  %2133 = vrot.lane.b32.xlu0 %v442, 56
  %v2134 = vpop.permute.xlu0 %2133
  %2135 = vrot.lane.b32.xlu0 %v444, 56
  %v2136 = vpop.permute.xlu0 %2135
  %2137 = vrot.lane.b32.xlu0 %v446, 56
  %v2138 = vpop.permute.xlu0 %2137
  %2139 = vrot.lane.b32.xlu0 %v448, 56
  %v2140 = vpop.permute.xlu0 %2139
  %2141 = vrot.lane.b32.xlu0 %v450, 56
  %v2142 = vpop.permute.xlu0 %2141
  %2143 = vrot.lane.b32.xlu0 %v452, 56
  %v2144 = vpop.permute.xlu0 %2143
  %2145 = vrot.lane.b32.xlu0 %v474, 56
  %v2146 = vpop.permute.xlu0 %2145
  %2147 = vrot.lane.b32.xlu0 %v476, 56
  %v2148 = vpop.permute.xlu0 %2147
  %2149 = vrot.lane.b32.xlu0 %v478, 56
  %v2150 = vpop.permute.xlu0 %2149
  %2151 = vrot.lane.b32.xlu0 %v480, 56
  %v2152 = vpop.permute.xlu0 %2151
  %2153 = vrot.lane.b32.xlu0 %v482, 56
  %v2154 = vpop.permute.xlu0 %2153
  %2155 = vrot.lane.b32.xlu0 %v484, 56
  %v2156 = vpop.permute.xlu0 %2155
  %2157 = vrot.lane.b32.xlu0 %v486, 56
  %v2158 = vpop.permute.xlu0 %2157
  %2159 = vrot.lane.b32.xlu0 %v488, 56
  %v2160 = vpop.permute.xlu0 %2159
  %2161 = vrot.lane.b32.xlu0 %v510, 56
  %v2162 = vpop.permute.xlu0 %2161
  %2163 = vrot.lane.b32.xlu0 %v512, 56
  %v2164 = vpop.permute.xlu0 %2163
  %2165 = vrot.lane.b32.xlu0 %v514, 56
  %v2166 = vpop.permute.xlu0 %2165
  %2167 = vrot.lane.b32.xlu0 %v516, 56
  %v2168 = vpop.permute.xlu0 %2167
  %2169 = vrot.lane.b32.xlu0 %v518, 56
  %v2170 = vpop.permute.xlu0 %2169
  %2171 = vrot.lane.b32.xlu0 %v520, 56
  %v2172 = vpop.permute.xlu0 %2171
  %2173 = vrot.lane.b32.xlu0 %v522, 56
  %v2174 = vpop.permute.xlu0 %2173
  %2175 = vrot.lane.b32.xlu0 %v524, 56
  %v2176 = vpop.permute.xlu0 %2175
  %2177 = vrot.lane.b32.xlu0 %v546, 56
  %v2178 = vpop.permute.xlu0 %2177
  %2179 = vrot.lane.b32.xlu0 %v548, 56
  %v2180 = vpop.permute.xlu0 %2179
  %2181 = vrot.lane.b32.xlu0 %v550, 56
  %v2182 = vpop.permute.xlu0 %2181
  %2183 = vrot.lane.b32.xlu0 %v552, 56
  %v2184 = vpop.permute.xlu0 %2183
  %2185 = vrot.lane.b32.xlu0 %v554, 56
  %v2186 = vpop.permute.xlu0 %2185
  %2187 = vrot.lane.b32.xlu0 %v556, 56
  %v2188 = vpop.permute.xlu0 %2187
  %2189 = vrot.lane.b32.xlu0 %v558, 56
  %v2190 = vpop.permute.xlu0 %2189
  %2191 = vrot.lane.b32.xlu0 %v560, 56
  %v2192 = vpop.permute.xlu0 %2191
  %2193 = vrot.lane.b32.xlu0 %v582, 56
  %v2194 = vpop.permute.xlu0 %2193
  %2195 = vrot.lane.b32.xlu0 %v584, 56
  %v2196 = vpop.permute.xlu0 %2195
  %2197 = vrot.lane.b32.xlu0 %v586, 56
  %v2198 = vpop.permute.xlu0 %2197
  %2199 = vrot.lane.b32.xlu0 %v588, 56
  %v2200 = vpop.permute.xlu0 %2199
  %2201 = vrot.lane.b32.xlu0 %v590, 56
  %v2202 = vpop.permute.xlu0 %2201
  %2203 = vrot.lane.b32.xlu0 %v592, 56
  %v2204 = vpop.permute.xlu0 %2203
  %2205 = vrot.lane.b32.xlu0 %v594, 56
  %v2206 = vpop.permute.xlu0 %2205
  %2207 = vrot.lane.b32.xlu0 %v596, 56
  %v2208 = vpop.permute.xlu0 %2207
  %2288 = vrot.lane.b32.xlu0 %v345, 64
  %v2289 = vpop.permute.xlu0 %2288
  %2290 = vrot.lane.b32.xlu0 %v347, 64
  %v2291 = vpop.permute.xlu0 %2290
  %2292 = vrot.lane.b32.xlu0 %v349, 64
  %v2293 = vpop.permute.xlu0 %2292
  %2294 = vrot.lane.b32.xlu0 %v351, 64
  %v2295 = vpop.permute.xlu0 %2294
  %2296 = vrot.lane.b32.xlu0 %v353, 64
  %v2297 = vpop.permute.xlu0 %2296
  %2298 = vrot.lane.b32.xlu0 %v355, 64
  %v2299 = vpop.permute.xlu0 %2298
  %2300 = vrot.lane.b32.xlu0 %v357, 64
  %v2301 = vpop.permute.xlu0 %2300
  %2302 = vrot.lane.b32.xlu0 %v359, 64
  %v2303 = vpop.permute.xlu0 %2302
  %2304 = vrot.lane.b32.xlu0 %v381, 64
  %v2305 = vpop.permute.xlu0 %2304
  %2306 = vrot.lane.b32.xlu0 %v383, 64
  %v2307 = vpop.permute.xlu0 %2306
  %2308 = vrot.lane.b32.xlu0 %v385, 64
  %v2309 = vpop.permute.xlu0 %2308
  %2310 = vrot.lane.b32.xlu0 %v387, 64
  %v2311 = vpop.permute.xlu0 %2310
  %2312 = vrot.lane.b32.xlu0 %v389, 64
  %v2313 = vpop.permute.xlu0 %2312
  %2314 = vrot.lane.b32.xlu0 %v391, 64
  %v2315 = vpop.permute.xlu0 %2314
  %2316 = vrot.lane.b32.xlu0 %v393, 64
  %v2317 = vpop.permute.xlu0 %2316
  %2318 = vrot.lane.b32.xlu0 %v395, 64
  %v2319 = vpop.permute.xlu0 %2318
  %2320 = vrot.lane.b32.xlu0 %v417, 64
  %v2321 = vpop.permute.xlu0 %2320
  %2322 = vrot.lane.b32.xlu0 %v419, 64
  %v2323 = vpop.permute.xlu0 %2322
  %2324 = vrot.lane.b32.xlu0 %v421, 64
  %v2325 = vpop.permute.xlu0 %2324
  %2326 = vrot.lane.b32.xlu0 %v423, 64
  %v2327 = vpop.permute.xlu0 %2326
  %2328 = vrot.lane.b32.xlu0 %v425, 64
  %v2329 = vpop.permute.xlu0 %2328
  %2330 = vrot.lane.b32.xlu0 %v427, 64
  %v2331 = vpop.permute.xlu0 %2330
  %2332 = vrot.lane.b32.xlu0 %v429, 64
  %v2333 = vpop.permute.xlu0 %2332
  %2334 = vrot.lane.b32.xlu0 %v431, 64
  %v2335 = vpop.permute.xlu0 %2334
  %2336 = vrot.lane.b32.xlu0 %v453, 64
  %v2337 = vpop.permute.xlu0 %2336
  %2338 = vrot.lane.b32.xlu0 %v455, 64
  %v2339 = vpop.permute.xlu0 %2338
  %2340 = vrot.lane.b32.xlu0 %v457, 64
  %v2341 = vpop.permute.xlu0 %2340
  %2342 = vrot.lane.b32.xlu0 %v459, 64
  %v2343 = vpop.permute.xlu0 %2342
  %2344 = vrot.lane.b32.xlu0 %v461, 64
  %v2345 = vpop.permute.xlu0 %2344
  %2346 = vrot.lane.b32.xlu0 %v463, 64
  %v2347 = vpop.permute.xlu0 %2346
  %2348 = vrot.lane.b32.xlu0 %v465, 64
  %v2349 = vpop.permute.xlu0 %2348
  %2350 = vrot.lane.b32.xlu0 %v467, 64
  %v2351 = vpop.permute.xlu0 %2350
  %2352 = vrot.lane.b32.xlu0 %v489, 64
  %v2353 = vpop.permute.xlu0 %2352
  %2354 = vrot.lane.b32.xlu0 %v491, 64
  %v2355 = vpop.permute.xlu0 %2354
  %2356 = vrot.lane.b32.xlu0 %v493, 64
  %v2357 = vpop.permute.xlu0 %2356
  %2358 = vrot.lane.b32.xlu0 %v495, 64
  %v2359 = vpop.permute.xlu0 %2358
  %2360 = vrot.lane.b32.xlu0 %v497, 64
  %v2361 = vpop.permute.xlu0 %2360
  %2362 = vrot.lane.b32.xlu0 %v499, 64
  %v2363 = vpop.permute.xlu0 %2362
  %2364 = vrot.lane.b32.xlu0 %v501, 64
  %v2365 = vpop.permute.xlu0 %2364
  %2366 = vrot.lane.b32.xlu0 %v503, 64
  %v2367 = vpop.permute.xlu0 %2366
  %2368 = vrot.lane.b32.xlu0 %v525, 64
  %v2369 = vpop.permute.xlu0 %2368
  %2370 = vrot.lane.b32.xlu0 %v527, 64
  %v2371 = vpop.permute.xlu0 %2370
  %2372 = vrot.lane.b32.xlu0 %v529, 64
  %v2373 = vpop.permute.xlu0 %2372
  %2374 = vrot.lane.b32.xlu0 %v531, 64
  %v2375 = vpop.permute.xlu0 %2374
  %2376 = vrot.lane.b32.xlu0 %v533, 64
  %v2377 = vpop.permute.xlu0 %2376
  %2378 = vrot.lane.b32.xlu0 %v535, 64
  %v2379 = vpop.permute.xlu0 %2378
  %2380 = vrot.lane.b32.xlu0 %v537, 64
  %v2381 = vpop.permute.xlu0 %2380
  %2382 = vrot.lane.b32.xlu0 %v539, 64
  %v2383 = vpop.permute.xlu0 %2382
  %2384 = vrot.lane.b32.xlu0 %v561, 64
  %v2385 = vpop.permute.xlu0 %2384
  %2386 = vrot.lane.b32.xlu0 %v563, 64
  %v2387 = vpop.permute.xlu0 %2386
  %2388 = vrot.lane.b32.xlu0 %v565, 64
  %v2389 = vpop.permute.xlu0 %2388
  %2390 = vrot.lane.b32.xlu0 %v567, 64
  %v2391 = vpop.permute.xlu0 %2390
  %2392 = vrot.lane.b32.xlu0 %v569, 64
  %v2393 = vpop.permute.xlu0 %2392
  %2394 = vrot.lane.b32.xlu0 %v571, 64
  %v2395 = vpop.permute.xlu0 %2394
  %2396 = vrot.lane.b32.xlu0 %v573, 64
  %v2397 = vpop.permute.xlu0 %2396
  %2398 = vrot.lane.b32.xlu0 %v575, 64
  %v2399 = vpop.permute.xlu0 %2398
  %2400 = vrot.lane.b32.xlu0 %v597, 64
  %v2401 = vpop.permute.xlu0 %2400
  %2402 = vrot.lane.b32.xlu0 %v599, 64
  %v2403 = vpop.permute.xlu0 %2402
  %2404 = vrot.lane.b32.xlu0 %v601, 64
  %v2405 = vpop.permute.xlu0 %2404
  %2406 = vrot.lane.b32.xlu0 %v603, 64
  %v2407 = vpop.permute.xlu0 %2406
  %2408 = vrot.lane.b32.xlu0 %v605, 64
  %v2409 = vpop.permute.xlu0 %2408
  %2410 = vrot.lane.b32.xlu0 %v607, 64
  %v2411 = vpop.permute.xlu0 %2410
  %2412 = vrot.lane.b32.xlu0 %v609, 64
  %v2413 = vpop.permute.xlu0 %2412
  %2414 = vrot.lane.b32.xlu0 %v611, 64
  %v2415 = vpop.permute.xlu0 %2414
  %2488 = vrot.lane.b32.xlu0 %v346, 72
  %v2489 = vpop.permute.xlu0 %2488
  %2490 = vrot.lane.b32.xlu0 %v348, 72
  %v2491 = vpop.permute.xlu0 %2490
  %2492 = vrot.lane.b32.xlu0 %v350, 72
  %v2493 = vpop.permute.xlu0 %2492
  %2494 = vrot.lane.b32.xlu0 %v352, 72
  %v2495 = vpop.permute.xlu0 %2494
  %2496 = vrot.lane.b32.xlu0 %v354, 72
  %v2497 = vpop.permute.xlu0 %2496
  %2498 = vrot.lane.b32.xlu0 %v356, 72
  %v2499 = vpop.permute.xlu0 %2498
  %2500 = vrot.lane.b32.xlu0 %v358, 72
  %v2501 = vpop.permute.xlu0 %2500
  %2502 = vrot.lane.b32.xlu0 %v360, 72
  %v2503 = vpop.permute.xlu0 %2502
  %2504 = vrot.lane.b32.xlu0 %v382, 72
  %v2505 = vpop.permute.xlu0 %2504
  %2506 = vrot.lane.b32.xlu0 %v384, 72
  %v2507 = vpop.permute.xlu0 %2506
  %2508 = vrot.lane.b32.xlu0 %v386, 72
  %v2509 = vpop.permute.xlu0 %2508
  %2510 = vrot.lane.b32.xlu0 %v388, 72
  %v2511 = vpop.permute.xlu0 %2510
  %2512 = vrot.lane.b32.xlu0 %v390, 72
  %v2513 = vpop.permute.xlu0 %2512
  %2514 = vrot.lane.b32.xlu0 %v392, 72
  %v2515 = vpop.permute.xlu0 %2514
  %2516 = vrot.lane.b32.xlu0 %v394, 72
  %v2517 = vpop.permute.xlu0 %2516
  %2518 = vrot.lane.b32.xlu0 %v396, 72
  %v2519 = vpop.permute.xlu0 %2518
  %2520 = vrot.lane.b32.xlu0 %v418, 72
  %v2521 = vpop.permute.xlu0 %2520
  %2522 = vrot.lane.b32.xlu0 %v420, 72
  %v2523 = vpop.permute.xlu0 %2522
  %2524 = vrot.lane.b32.xlu0 %v422, 72
  %v2525 = vpop.permute.xlu0 %2524
  %2526 = vrot.lane.b32.xlu0 %v424, 72
  %v2527 = vpop.permute.xlu0 %2526
  %2528 = vrot.lane.b32.xlu0 %v426, 72
  %v2529 = vpop.permute.xlu0 %2528
  %2530 = vrot.lane.b32.xlu0 %v428, 72
  %v2531 = vpop.permute.xlu0 %2530
  %2532 = vrot.lane.b32.xlu0 %v430, 72
  %v2533 = vpop.permute.xlu0 %2532
  %2534 = vrot.lane.b32.xlu0 %v432, 72
  %v2535 = vpop.permute.xlu0 %2534
  %2536 = vrot.lane.b32.xlu0 %v454, 72
  %v2537 = vpop.permute.xlu0 %2536
  %2538 = vrot.lane.b32.xlu0 %v456, 72
  %v2539 = vpop.permute.xlu0 %2538
  %2540 = vrot.lane.b32.xlu0 %v458, 72
  %v2541 = vpop.permute.xlu0 %2540
  %2542 = vrot.lane.b32.xlu0 %v460, 72
  %v2543 = vpop.permute.xlu0 %2542
  %2544 = vrot.lane.b32.xlu0 %v462, 72
  %v2545 = vpop.permute.xlu0 %2544
  %2546 = vrot.lane.b32.xlu0 %v464, 72
  %v2547 = vpop.permute.xlu0 %2546
  %2548 = vrot.lane.b32.xlu0 %v466, 72
  %v2549 = vpop.permute.xlu0 %2548
  %2550 = vrot.lane.b32.xlu0 %v468, 72
  %v2551 = vpop.permute.xlu0 %2550
  %2552 = vrot.lane.b32.xlu0 %v490, 72
  %v2553 = vpop.permute.xlu0 %2552
  %2554 = vrot.lane.b32.xlu0 %v492, 72
  %v2555 = vpop.permute.xlu0 %2554
  %2556 = vrot.lane.b32.xlu0 %v494, 72
  %v2557 = vpop.permute.xlu0 %2556
  %2558 = vrot.lane.b32.xlu0 %v496, 72
  %v2559 = vpop.permute.xlu0 %2558
  %2560 = vrot.lane.b32.xlu0 %v498, 72
  %v2561 = vpop.permute.xlu0 %2560
  %2562 = vrot.lane.b32.xlu0 %v500, 72
  %v2563 = vpop.permute.xlu0 %2562
  %2564 = vrot.lane.b32.xlu0 %v502, 72
  %v2565 = vpop.permute.xlu0 %2564
  %2566 = vrot.lane.b32.xlu0 %v504, 72
  %v2567 = vpop.permute.xlu0 %2566
  %2568 = vrot.lane.b32.xlu0 %v526, 72
  %v2569 = vpop.permute.xlu0 %2568
  %2570 = vrot.lane.b32.xlu0 %v528, 72
  %v2571 = vpop.permute.xlu0 %2570
  %2572 = vrot.lane.b32.xlu0 %v530, 72
  %v2573 = vpop.permute.xlu0 %2572
  %2574 = vrot.lane.b32.xlu0 %v532, 72
  %v2575 = vpop.permute.xlu0 %2574
  %2576 = vrot.lane.b32.xlu0 %v534, 72
  %v2577 = vpop.permute.xlu0 %2576
  %2578 = vrot.lane.b32.xlu0 %v536, 72
  %v2579 = vpop.permute.xlu0 %2578
  %2580 = vrot.lane.b32.xlu0 %v538, 72
  %v2581 = vpop.permute.xlu0 %2580
  %2582 = vrot.lane.b32.xlu0 %v540, 72
  %v2583 = vpop.permute.xlu0 %2582
  %2584 = vrot.lane.b32.xlu0 %v562, 72
  %v2585 = vpop.permute.xlu0 %2584
  %2586 = vrot.lane.b32.xlu0 %v564, 72
  %v2587 = vpop.permute.xlu0 %2586
  %2588 = vrot.lane.b32.xlu0 %v566, 72
  %v2589 = vpop.permute.xlu0 %2588
  %2590 = vrot.lane.b32.xlu0 %v568, 72
  %v2591 = vpop.permute.xlu0 %2590
  %2592 = vrot.lane.b32.xlu0 %v570, 72
  %v2593 = vpop.permute.xlu0 %2592
  %2594 = vrot.lane.b32.xlu0 %v572, 72
  %v2595 = vpop.permute.xlu0 %2594
  %2596 = vrot.lane.b32.xlu0 %v574, 72
  %v2597 = vpop.permute.xlu0 %2596
  %2598 = vrot.lane.b32.xlu0 %v576, 72
  %v2599 = vpop.permute.xlu0 %2598
  %2600 = vrot.lane.b32.xlu0 %v598, 72
  %v2601 = vpop.permute.xlu0 %2600
  %2602 = vrot.lane.b32.xlu0 %v600, 72
  %v2603 = vpop.permute.xlu0 %2602
  %2604 = vrot.lane.b32.xlu0 %v602, 72
  %v2605 = vpop.permute.xlu0 %2604
  %2606 = vrot.lane.b32.xlu0 %v604, 72
  %v2607 = vpop.permute.xlu0 %2606
  %2608 = vrot.lane.b32.xlu0 %v606, 72
  %v2609 = vpop.permute.xlu0 %2608
  %2610 = vrot.lane.b32.xlu0 %v608, 72
  %v2611 = vpop.permute.xlu0 %2610
  %2612 = vrot.lane.b32.xlu0 %v610, 72
  %v2613 = vpop.permute.xlu0 %2612
  %2614 = vrot.lane.b32.xlu0 %v612, 72
  %v2615 = vpop.permute.xlu0 %2614
  %2681 = vrot.lane.b32.xlu0 %v347, 80
  %v2682 = vpop.permute.xlu0 %2681
  %2683 = vrot.lane.b32.xlu0 %v349, 80
  %v2684 = vpop.permute.xlu0 %2683
  %2685 = vrot.lane.b32.xlu0 %v351, 80
  %v2686 = vpop.permute.xlu0 %2685
  %2687 = vrot.lane.b32.xlu0 %v353, 80
  %v2688 = vpop.permute.xlu0 %2687
  %2689 = vrot.lane.b32.xlu0 %v355, 80
  %v2690 = vpop.permute.xlu0 %2689
  %2691 = vrot.lane.b32.xlu0 %v357, 80
  %v2692 = vpop.permute.xlu0 %2691
  %2693 = vrot.lane.b32.xlu0 %v359, 80
  %v2694 = vpop.permute.xlu0 %2693
  %2695 = vrot.lane.b32.xlu0 %v361, 80
  %v2696 = vpop.permute.xlu0 %2695
  %2697 = vrot.lane.b32.xlu0 %v383, 80
  %v2698 = vpop.permute.xlu0 %2697
  %2699 = vrot.lane.b32.xlu0 %v385, 80
  %v2700 = vpop.permute.xlu0 %2699
  %2701 = vrot.lane.b32.xlu0 %v387, 80
  %v2702 = vpop.permute.xlu0 %2701
  %2703 = vrot.lane.b32.xlu0 %v389, 80
  %v2704 = vpop.permute.xlu0 %2703
  %2705 = vrot.lane.b32.xlu0 %v391, 80
  %v2706 = vpop.permute.xlu0 %2705
  %2707 = vrot.lane.b32.xlu0 %v393, 80
  %v2708 = vpop.permute.xlu0 %2707
  %2709 = vrot.lane.b32.xlu0 %v395, 80
  %v2710 = vpop.permute.xlu0 %2709
  %2711 = vrot.lane.b32.xlu0 %v397, 80
  %v2712 = vpop.permute.xlu0 %2711
  %2713 = vrot.lane.b32.xlu0 %v419, 80
  %v2714 = vpop.permute.xlu0 %2713
  %2715 = vrot.lane.b32.xlu0 %v421, 80
  %v2716 = vpop.permute.xlu0 %2715
  %2717 = vrot.lane.b32.xlu0 %v423, 80
  %v2718 = vpop.permute.xlu0 %2717
  %2719 = vrot.lane.b32.xlu0 %v425, 80
  %v2720 = vpop.permute.xlu0 %2719
  %2721 = vrot.lane.b32.xlu0 %v427, 80
  %v2722 = vpop.permute.xlu0 %2721
  %2723 = vrot.lane.b32.xlu0 %v429, 80
  %v2724 = vpop.permute.xlu0 %2723
  %2725 = vrot.lane.b32.xlu0 %v431, 80
  %v2726 = vpop.permute.xlu0 %2725
  %2727 = vrot.lane.b32.xlu0 %v433, 80
  %v2728 = vpop.permute.xlu0 %2727
  %2729 = vrot.lane.b32.xlu0 %v455, 80
  %v2730 = vpop.permute.xlu0 %2729
  %2731 = vrot.lane.b32.xlu0 %v457, 80
  %v2732 = vpop.permute.xlu0 %2731
  %2733 = vrot.lane.b32.xlu0 %v459, 80
  %v2734 = vpop.permute.xlu0 %2733
  %2735 = vrot.lane.b32.xlu0 %v461, 80
  %v2736 = vpop.permute.xlu0 %2735
  %2737 = vrot.lane.b32.xlu0 %v463, 80
  %v2738 = vpop.permute.xlu0 %2737
  %2739 = vrot.lane.b32.xlu0 %v465, 80
  %v2740 = vpop.permute.xlu0 %2739
  %2741 = vrot.lane.b32.xlu0 %v467, 80
  %v2742 = vpop.permute.xlu0 %2741
  %2743 = vrot.lane.b32.xlu0 %v469, 80
  %v2744 = vpop.permute.xlu0 %2743
  %2745 = vrot.lane.b32.xlu0 %v491, 80
  %v2746 = vpop.permute.xlu0 %2745
  %2747 = vrot.lane.b32.xlu0 %v493, 80
  %v2748 = vpop.permute.xlu0 %2747
  %2749 = vrot.lane.b32.xlu0 %v495, 80
  %v2750 = vpop.permute.xlu0 %2749
  %2751 = vrot.lane.b32.xlu0 %v497, 80
  %v2752 = vpop.permute.xlu0 %2751
  %2753 = vrot.lane.b32.xlu0 %v499, 80
  %v2754 = vpop.permute.xlu0 %2753
  %2755 = vrot.lane.b32.xlu0 %v501, 80
  %v2756 = vpop.permute.xlu0 %2755
  %2757 = vrot.lane.b32.xlu0 %v503, 80
  %v2758 = vpop.permute.xlu0 %2757
  %2759 = vrot.lane.b32.xlu0 %v505, 80
  %v2760 = vpop.permute.xlu0 %2759
  %2761 = vrot.lane.b32.xlu0 %v527, 80
  %v2762 = vpop.permute.xlu0 %2761
  %2763 = vrot.lane.b32.xlu0 %v529, 80
  %v2764 = vpop.permute.xlu0 %2763
  %2765 = vrot.lane.b32.xlu0 %v531, 80
  %v2766 = vpop.permute.xlu0 %2765
  %2767 = vrot.lane.b32.xlu0 %v533, 80
  %v2768 = vpop.permute.xlu0 %2767
  %2769 = vrot.lane.b32.xlu0 %v535, 80
  %v2770 = vpop.permute.xlu0 %2769
  %2771 = vrot.lane.b32.xlu0 %v537, 80
  %v2772 = vpop.permute.xlu0 %2771
  %2773 = vrot.lane.b32.xlu0 %v539, 80
  %v2774 = vpop.permute.xlu0 %2773
  %2775 = vrot.lane.b32.xlu0 %v541, 80
  %v2776 = vpop.permute.xlu0 %2775
  %2777 = vrot.lane.b32.xlu0 %v563, 80
  %v2778 = vpop.permute.xlu0 %2777
  %2779 = vrot.lane.b32.xlu0 %v565, 80
  %v2780 = vpop.permute.xlu0 %2779
  %2781 = vrot.lane.b32.xlu0 %v567, 80
  %v2782 = vpop.permute.xlu0 %2781
  %2783 = vrot.lane.b32.xlu0 %v569, 80
  %v2784 = vpop.permute.xlu0 %2783
  %2785 = vrot.lane.b32.xlu0 %v571, 80
  %v2786 = vpop.permute.xlu0 %2785
  %2787 = vrot.lane.b32.xlu0 %v573, 80
  %v2788 = vpop.permute.xlu0 %2787
  %2789 = vrot.lane.b32.xlu0 %v575, 80
  %v2790 = vpop.permute.xlu0 %2789
  %2791 = vrot.lane.b32.xlu0 %v577, 80
  %v2792 = vpop.permute.xlu0 %2791
  %2793 = vrot.lane.b32.xlu0 %v599, 80
  %v2794 = vpop.permute.xlu0 %2793
  %2795 = vrot.lane.b32.xlu0 %v601, 80
  %v2796 = vpop.permute.xlu0 %2795
  %2797 = vrot.lane.b32.xlu0 %v603, 80
  %v2798 = vpop.permute.xlu0 %2797
  %2799 = vrot.lane.b32.xlu0 %v605, 80
  %v2800 = vpop.permute.xlu0 %2799
  %2801 = vrot.lane.b32.xlu0 %v607, 80
  %v2802 = vpop.permute.xlu0 %2801
  %2803 = vrot.lane.b32.xlu0 %v609, 80
  %v2804 = vpop.permute.xlu0 %2803
  %2805 = vrot.lane.b32.xlu0 %v611, 80
  %v2806 = vpop.permute.xlu0 %2805
  %2807 = vrot.lane.b32.xlu0 %v613, 80
  %v2808 = vpop.permute.xlu0 %2807
  %2874 = vrot.lane.b32.xlu0 %v348, 88
  %v2875 = vpop.permute.xlu0 %2874
  %2876 = vrot.lane.b32.xlu0 %v350, 88
  %v2877 = vpop.permute.xlu0 %2876
  %2878 = vrot.lane.b32.xlu0 %v352, 88
  %v2879 = vpop.permute.xlu0 %2878
  %2880 = vrot.lane.b32.xlu0 %v354, 88
  %v2881 = vpop.permute.xlu0 %2880
  %2882 = vrot.lane.b32.xlu0 %v356, 88
  %v2883 = vpop.permute.xlu0 %2882
  %2884 = vrot.lane.b32.xlu0 %v358, 88
  %v2885 = vpop.permute.xlu0 %2884
  %2886 = vrot.lane.b32.xlu0 %v360, 88
  %v2887 = vpop.permute.xlu0 %2886
  %2888 = vrot.lane.b32.xlu0 %v362, 88
  %v2889 = vpop.permute.xlu0 %2888
  %2890 = vrot.lane.b32.xlu0 %v384, 88
  %v2891 = vpop.permute.xlu0 %2890
  %2892 = vrot.lane.b32.xlu0 %v386, 88
  %v2893 = vpop.permute.xlu0 %2892
  %2894 = vrot.lane.b32.xlu0 %v388, 88
  %v2895 = vpop.permute.xlu0 %2894
  %2896 = vrot.lane.b32.xlu0 %v390, 88
  %v2897 = vpop.permute.xlu0 %2896
  %2898 = vrot.lane.b32.xlu0 %v392, 88
  %v2899 = vpop.permute.xlu0 %2898
  %2900 = vrot.lane.b32.xlu0 %v394, 88
  %v2901 = vpop.permute.xlu0 %2900
  %2902 = vrot.lane.b32.xlu0 %v396, 88
  %v2903 = vpop.permute.xlu0 %2902
  %2904 = vrot.lane.b32.xlu0 %v398, 88
  %v2905 = vpop.permute.xlu0 %2904
  %2906 = vrot.lane.b32.xlu0 %v420, 88
  %v2907 = vpop.permute.xlu0 %2906
  %2908 = vrot.lane.b32.xlu0 %v422, 88
  %v2909 = vpop.permute.xlu0 %2908
  %2910 = vrot.lane.b32.xlu0 %v424, 88
  %v2911 = vpop.permute.xlu0 %2910
  %2912 = vrot.lane.b32.xlu0 %v426, 88
  %v2913 = vpop.permute.xlu0 %2912
  %2914 = vrot.lane.b32.xlu0 %v428, 88
  %v2915 = vpop.permute.xlu0 %2914
  %2916 = vrot.lane.b32.xlu0 %v430, 88
  %v2917 = vpop.permute.xlu0 %2916
  %2918 = vrot.lane.b32.xlu0 %v432, 88
  %v2919 = vpop.permute.xlu0 %2918
  %2920 = vrot.lane.b32.xlu0 %v434, 88
  %v2921 = vpop.permute.xlu0 %2920
  %2922 = vrot.lane.b32.xlu0 %v456, 88
  %v2923 = vpop.permute.xlu0 %2922
  %2924 = vrot.lane.b32.xlu0 %v458, 88
  %v2925 = vpop.permute.xlu0 %2924
  %2926 = vrot.lane.b32.xlu0 %v460, 88
  %v2927 = vpop.permute.xlu0 %2926
  %2928 = vrot.lane.b32.xlu0 %v462, 88
  %v2929 = vpop.permute.xlu0 %2928
  %2930 = vrot.lane.b32.xlu0 %v464, 88
  %v2931 = vpop.permute.xlu0 %2930
  %2932 = vrot.lane.b32.xlu0 %v466, 88
  %v2933 = vpop.permute.xlu0 %2932
  %2934 = vrot.lane.b32.xlu0 %v468, 88
  %v2935 = vpop.permute.xlu0 %2934
  %2936 = vrot.lane.b32.xlu0 %v470, 88
  %v2937 = vpop.permute.xlu0 %2936
  %2938 = vrot.lane.b32.xlu0 %v492, 88
  %v2939 = vpop.permute.xlu0 %2938
  %2940 = vrot.lane.b32.xlu0 %v494, 88
  %v2941 = vpop.permute.xlu0 %2940
  %2942 = vrot.lane.b32.xlu0 %v496, 88
  %v2943 = vpop.permute.xlu0 %2942
  %2944 = vrot.lane.b32.xlu0 %v498, 88
  %v2945 = vpop.permute.xlu0 %2944
  %2946 = vrot.lane.b32.xlu0 %v500, 88
  %v2947 = vpop.permute.xlu0 %2946
  %2948 = vrot.lane.b32.xlu0 %v502, 88
  %v2949 = vpop.permute.xlu0 %2948
  %2950 = vrot.lane.b32.xlu0 %v504, 88
  %v2951 = vpop.permute.xlu0 %2950
  %2952 = vrot.lane.b32.xlu0 %v506, 88
  %v2953 = vpop.permute.xlu0 %2952
  %2954 = vrot.lane.b32.xlu0 %v528, 88
  %v2955 = vpop.permute.xlu0 %2954
  %2956 = vrot.lane.b32.xlu0 %v530, 88
  %v2957 = vpop.permute.xlu0 %2956
  %2958 = vrot.lane.b32.xlu0 %v532, 88
  %v2959 = vpop.permute.xlu0 %2958
  %2960 = vrot.lane.b32.xlu0 %v534, 88
  %v2961 = vpop.permute.xlu0 %2960
  %2962 = vrot.lane.b32.xlu0 %v536, 88
  %v2963 = vpop.permute.xlu0 %2962
  %2964 = vrot.lane.b32.xlu0 %v538, 88
  %v2965 = vpop.permute.xlu0 %2964
  %2966 = vrot.lane.b32.xlu0 %v540, 88
  %v2967 = vpop.permute.xlu0 %2966
  %2968 = vrot.lane.b32.xlu0 %v542, 88
  %v2969 = vpop.permute.xlu0 %2968
  %2970 = vrot.lane.b32.xlu0 %v564, 88
  %v2971 = vpop.permute.xlu0 %2970
  %2972 = vrot.lane.b32.xlu0 %v566, 88
  %v2973 = vpop.permute.xlu0 %2972
  %2974 = vrot.lane.b32.xlu0 %v568, 88
  %v2975 = vpop.permute.xlu0 %2974
  %2976 = vrot.lane.b32.xlu0 %v570, 88
  %v2977 = vpop.permute.xlu0 %2976
  %2978 = vrot.lane.b32.xlu0 %v572, 88
  %v2979 = vpop.permute.xlu0 %2978
  %2980 = vrot.lane.b32.xlu0 %v574, 88
  %v2981 = vpop.permute.xlu0 %2980
  %2982 = vrot.lane.b32.xlu0 %v576, 88
  %v2983 = vpop.permute.xlu0 %2982
  %2984 = vrot.lane.b32.xlu0 %v578, 88
  %v2985 = vpop.permute.xlu0 %2984
  %2986 = vrot.lane.b32.xlu0 %v600, 88
  %v2987 = vpop.permute.xlu0 %2986
  %2988 = vrot.lane.b32.xlu0 %v602, 88
  %v2989 = vpop.permute.xlu0 %2988
  %2990 = vrot.lane.b32.xlu0 %v604, 88
  %v2991 = vpop.permute.xlu0 %2990
  %2992 = vrot.lane.b32.xlu0 %v606, 88
  %v2993 = vpop.permute.xlu0 %2992
  %2994 = vrot.lane.b32.xlu0 %v608, 88
  %v2995 = vpop.permute.xlu0 %2994
  %2996 = vrot.lane.b32.xlu0 %v610, 88
  %v2997 = vpop.permute.xlu0 %2996
  %2998 = vrot.lane.b32.xlu0 %v612, 88
  %v2999 = vpop.permute.xlu0 %2998
  %3000 = vrot.lane.b32.xlu0 %v614, 88
  %v3001 = vpop.permute.xlu0 %3000
  %3074 = vrot.lane.b32.xlu0 %v363, 96
  %v3075 = vpop.permute.xlu0 %3074
  %3076 = vrot.lane.b32.xlu0 %v365, 96
  %v3077 = vpop.permute.xlu0 %3076
  %3078 = vrot.lane.b32.xlu0 %v367, 96
  %v3079 = vpop.permute.xlu0 %3078
  %3080 = vrot.lane.b32.xlu0 %v369, 96
  %v3081 = vpop.permute.xlu0 %3080
  %3082 = vrot.lane.b32.xlu0 %v371, 96
  %v3083 = vpop.permute.xlu0 %3082
  %3084 = vrot.lane.b32.xlu0 %v373, 96
  %v3085 = vpop.permute.xlu0 %3084
  %3086 = vrot.lane.b32.xlu0 %v375, 96
  %v3087 = vpop.permute.xlu0 %3086
  %3088 = vrot.lane.b32.xlu0 %v377, 96
  %v3089 = vpop.permute.xlu0 %3088
  %3090 = vrot.lane.b32.xlu0 %v399, 96
  %v3091 = vpop.permute.xlu0 %3090
  %3092 = vrot.lane.b32.xlu0 %v401, 96
  %v3093 = vpop.permute.xlu0 %3092
  %3094 = vrot.lane.b32.xlu0 %v403, 96
  %v3095 = vpop.permute.xlu0 %3094
  %3096 = vrot.lane.b32.xlu0 %v405, 96
  %v3097 = vpop.permute.xlu0 %3096
  %3098 = vrot.lane.b32.xlu0 %v407, 96
  %v3099 = vpop.permute.xlu0 %3098
  %3100 = vrot.lane.b32.xlu0 %v409, 96
  %v3101 = vpop.permute.xlu0 %3100
  %3102 = vrot.lane.b32.xlu0 %v411, 96
  %v3103 = vpop.permute.xlu0 %3102
  %3104 = vrot.lane.b32.xlu0 %v413, 96
  %v3105 = vpop.permute.xlu0 %3104
  %3106 = vrot.lane.b32.xlu0 %v435, 96
  %v3107 = vpop.permute.xlu0 %3106
  %3108 = vrot.lane.b32.xlu0 %v437, 96
  %v3109 = vpop.permute.xlu0 %3108
  %3110 = vrot.lane.b32.xlu0 %v439, 96
  %v3111 = vpop.permute.xlu0 %3110
  %3112 = vrot.lane.b32.xlu0 %v441, 96
  %v3113 = vpop.permute.xlu0 %3112
  %3114 = vrot.lane.b32.xlu0 %v443, 96
  %v3115 = vpop.permute.xlu0 %3114
  %3116 = vrot.lane.b32.xlu0 %v445, 96
  %v3117 = vpop.permute.xlu0 %3116
  %3118 = vrot.lane.b32.xlu0 %v447, 96
  %v3119 = vpop.permute.xlu0 %3118
  %3120 = vrot.lane.b32.xlu0 %v449, 96
  %v3121 = vpop.permute.xlu0 %3120
  %3122 = vrot.lane.b32.xlu0 %v471, 96
  %v3123 = vpop.permute.xlu0 %3122
  %3124 = vrot.lane.b32.xlu0 %v473, 96
  %v3125 = vpop.permute.xlu0 %3124
  %3126 = vrot.lane.b32.xlu0 %v475, 96
  %v3127 = vpop.permute.xlu0 %3126
  %3128 = vrot.lane.b32.xlu0 %v477, 96
  %v3129 = vpop.permute.xlu0 %3128
  %3130 = vrot.lane.b32.xlu0 %v479, 96
  %v3131 = vpop.permute.xlu0 %3130
  %3132 = vrot.lane.b32.xlu0 %v481, 96
  %v3133 = vpop.permute.xlu0 %3132
  %3134 = vrot.lane.b32.xlu0 %v483, 96
  %v3135 = vpop.permute.xlu0 %3134
  %3136 = vrot.lane.b32.xlu0 %v485, 96
  %v3137 = vpop.permute.xlu0 %3136
  %3138 = vrot.lane.b32.xlu0 %v507, 96
  %v3139 = vpop.permute.xlu0 %3138
  %3140 = vrot.lane.b32.xlu0 %v509, 96
  %v3141 = vpop.permute.xlu0 %3140
  %3142 = vrot.lane.b32.xlu0 %v511, 96
  %v3143 = vpop.permute.xlu0 %3142
  %3144 = vrot.lane.b32.xlu0 %v513, 96
  %v3145 = vpop.permute.xlu0 %3144
  %3146 = vrot.lane.b32.xlu0 %v515, 96
  %v3147 = vpop.permute.xlu0 %3146
  %3148 = vrot.lane.b32.xlu0 %v517, 96
  %v3149 = vpop.permute.xlu0 %3148
  %3150 = vrot.lane.b32.xlu0 %v519, 96
  %v3151 = vpop.permute.xlu0 %3150
  %3152 = vrot.lane.b32.xlu0 %v521, 96
  %v3153 = vpop.permute.xlu0 %3152
  %3154 = vrot.lane.b32.xlu0 %v543, 96
  %v3155 = vpop.permute.xlu0 %3154
  %3156 = vrot.lane.b32.xlu0 %v545, 96
  %v3157 = vpop.permute.xlu0 %3156
  %3158 = vrot.lane.b32.xlu0 %v547, 96
  %v3159 = vpop.permute.xlu0 %3158
  %3160 = vrot.lane.b32.xlu0 %v549, 96
  %v3161 = vpop.permute.xlu0 %3160
  %3162 = vrot.lane.b32.xlu0 %v551, 96
  %v3163 = vpop.permute.xlu0 %3162
  %3164 = vrot.lane.b32.xlu0 %v553, 96
  %v3165 = vpop.permute.xlu0 %3164
  %3166 = vrot.lane.b32.xlu0 %v555, 96
  %v3167 = vpop.permute.xlu0 %3166
  %3168 = vrot.lane.b32.xlu0 %v557, 96
  %v3169 = vpop.permute.xlu0 %3168
  %3170 = vrot.lane.b32.xlu0 %v579, 96
  %v3171 = vpop.permute.xlu0 %3170
  %3172 = vrot.lane.b32.xlu0 %v581, 96
  %v3173 = vpop.permute.xlu0 %3172
  %3174 = vrot.lane.b32.xlu0 %v583, 96
  %v3175 = vpop.permute.xlu0 %3174
  %3176 = vrot.lane.b32.xlu0 %v585, 96
  %v3177 = vpop.permute.xlu0 %3176
  %3178 = vrot.lane.b32.xlu0 %v587, 96
  %v3179 = vpop.permute.xlu0 %3178
  %3180 = vrot.lane.b32.xlu0 %v589, 96
  %v3181 = vpop.permute.xlu0 %3180
  %3182 = vrot.lane.b32.xlu0 %v591, 96
  %v3183 = vpop.permute.xlu0 %3182
  %3184 = vrot.lane.b32.xlu0 %v593, 96
  %v3185 = vpop.permute.xlu0 %3184
  %3186 = vrot.lane.b32.xlu0 %v615, 96
  %v3187 = vpop.permute.xlu0 %3186
  %3188 = vrot.lane.b32.xlu0 %v617, 96
  %v3189 = vpop.permute.xlu0 %3188
  %3190 = vrot.lane.b32.xlu0 %v619, 96
  %v3191 = vpop.permute.xlu0 %3190
  %3192 = vrot.lane.b32.xlu0 %v621, 96
  %v3193 = vpop.permute.xlu0 %3192
  %3194 = vrot.lane.b32.xlu0 %v623, 96
  %v3195 = vpop.permute.xlu0 %3194
  %3196 = vrot.lane.b32.xlu0 %v625, 96
  %v3197 = vpop.permute.xlu0 %3196
  %3198 = vrot.lane.b32.xlu0 %v627, 96
  %v3199 = vpop.permute.xlu0 %3198
  %3200 = vrot.lane.b32.xlu0 %v629, 96
  %v3201 = vpop.permute.xlu0 %3200
  %3274 = vrot.lane.b32.xlu0 %v364, 104
  %v3275 = vpop.permute.xlu0 %3274
  %3276 = vrot.lane.b32.xlu0 %v366, 104
  %v3277 = vpop.permute.xlu0 %3276
  %3278 = vrot.lane.b32.xlu0 %v368, 104
  %v3279 = vpop.permute.xlu0 %3278
  %3280 = vrot.lane.b32.xlu0 %v370, 104
  %v3281 = vpop.permute.xlu0 %3280
  %3282 = vrot.lane.b32.xlu0 %v372, 104
  %v3283 = vpop.permute.xlu0 %3282
  %3284 = vrot.lane.b32.xlu0 %v374, 104
  %v3285 = vpop.permute.xlu0 %3284
  %3286 = vrot.lane.b32.xlu0 %v376, 104
  %v3287 = vpop.permute.xlu0 %3286
  %3288 = vrot.lane.b32.xlu0 %v378, 104
  %v3289 = vpop.permute.xlu0 %3288
  %3290 = vrot.lane.b32.xlu0 %v400, 104
  %v3291 = vpop.permute.xlu0 %3290
  %3292 = vrot.lane.b32.xlu0 %v402, 104
  %v3293 = vpop.permute.xlu0 %3292
  %3294 = vrot.lane.b32.xlu0 %v404, 104
  %v3295 = vpop.permute.xlu0 %3294
  %3296 = vrot.lane.b32.xlu0 %v406, 104
  %v3297 = vpop.permute.xlu0 %3296
  %3298 = vrot.lane.b32.xlu0 %v408, 104
  %v3299 = vpop.permute.xlu0 %3298
  %3300 = vrot.lane.b32.xlu0 %v410, 104
  %v3301 = vpop.permute.xlu0 %3300
  %3302 = vrot.lane.b32.xlu0 %v412, 104
  %v3303 = vpop.permute.xlu0 %3302
  %3304 = vrot.lane.b32.xlu0 %v414, 104
  %v3305 = vpop.permute.xlu0 %3304
  %3306 = vrot.lane.b32.xlu0 %v436, 104
  %v3307 = vpop.permute.xlu0 %3306
  %3308 = vrot.lane.b32.xlu0 %v438, 104
  %v3309 = vpop.permute.xlu0 %3308
  %3310 = vrot.lane.b32.xlu0 %v440, 104
  %v3311 = vpop.permute.xlu0 %3310
  %3312 = vrot.lane.b32.xlu0 %v442, 104
  %v3313 = vpop.permute.xlu0 %3312
  %3314 = vrot.lane.b32.xlu0 %v444, 104
  %v3315 = vpop.permute.xlu0 %3314
  %3316 = vrot.lane.b32.xlu0 %v446, 104
  %v3317 = vpop.permute.xlu0 %3316
  %3318 = vrot.lane.b32.xlu0 %v448, 104
  %v3319 = vpop.permute.xlu0 %3318
  %3320 = vrot.lane.b32.xlu0 %v450, 104
  %v3321 = vpop.permute.xlu0 %3320
  %3322 = vrot.lane.b32.xlu0 %v472, 104
  %v3323 = vpop.permute.xlu0 %3322
  %3324 = vrot.lane.b32.xlu0 %v474, 104
  %v3325 = vpop.permute.xlu0 %3324
  %3326 = vrot.lane.b32.xlu0 %v476, 104
  %v3327 = vpop.permute.xlu0 %3326
  %3328 = vrot.lane.b32.xlu0 %v478, 104
  %v3329 = vpop.permute.xlu0 %3328
  %3330 = vrot.lane.b32.xlu0 %v480, 104
  %v3331 = vpop.permute.xlu0 %3330
  %3332 = vrot.lane.b32.xlu0 %v482, 104
  %v3333 = vpop.permute.xlu0 %3332
  %3334 = vrot.lane.b32.xlu0 %v484, 104
  %v3335 = vpop.permute.xlu0 %3334
  %3336 = vrot.lane.b32.xlu0 %v486, 104
  %v3337 = vpop.permute.xlu0 %3336
  %3338 = vrot.lane.b32.xlu0 %v508, 104
  %v3339 = vpop.permute.xlu0 %3338
  %3340 = vrot.lane.b32.xlu0 %v510, 104
  %v3341 = vpop.permute.xlu0 %3340
  %3342 = vrot.lane.b32.xlu0 %v512, 104
  %v3343 = vpop.permute.xlu0 %3342
  %3344 = vrot.lane.b32.xlu0 %v514, 104
  %v3345 = vpop.permute.xlu0 %3344
  %3346 = vrot.lane.b32.xlu0 %v516, 104
  %v3347 = vpop.permute.xlu0 %3346
  %3348 = vrot.lane.b32.xlu0 %v518, 104
  %v3349 = vpop.permute.xlu0 %3348
  %3350 = vrot.lane.b32.xlu0 %v520, 104
  %v3351 = vpop.permute.xlu0 %3350
  %3352 = vrot.lane.b32.xlu0 %v522, 104
  %v3353 = vpop.permute.xlu0 %3352
  %3354 = vrot.lane.b32.xlu0 %v544, 104
  %v3355 = vpop.permute.xlu0 %3354
  %3356 = vrot.lane.b32.xlu0 %v546, 104
  %v3357 = vpop.permute.xlu0 %3356
  %3358 = vrot.lane.b32.xlu0 %v548, 104
  %v3359 = vpop.permute.xlu0 %3358
  %3360 = vrot.lane.b32.xlu0 %v550, 104
  %v3361 = vpop.permute.xlu0 %3360
  %3362 = vrot.lane.b32.xlu0 %v552, 104
  %v3363 = vpop.permute.xlu0 %3362
  %3364 = vrot.lane.b32.xlu0 %v554, 104
  %v3365 = vpop.permute.xlu0 %3364
  %3366 = vrot.lane.b32.xlu0 %v556, 104
  %v3367 = vpop.permute.xlu0 %3366
  %3368 = vrot.lane.b32.xlu0 %v558, 104
  %v3369 = vpop.permute.xlu0 %3368
  %3370 = vrot.lane.b32.xlu0 %v580, 104
  %v3371 = vpop.permute.xlu0 %3370
  %3372 = vrot.lane.b32.xlu0 %v582, 104
  %v3373 = vpop.permute.xlu0 %3372
  %3374 = vrot.lane.b32.xlu0 %v584, 104
  %v3375 = vpop.permute.xlu0 %3374
  %3376 = vrot.lane.b32.xlu0 %v586, 104
  %v3377 = vpop.permute.xlu0 %3376
  %3378 = vrot.lane.b32.xlu0 %v588, 104
  %v3379 = vpop.permute.xlu0 %3378
  %3380 = vrot.lane.b32.xlu0 %v590, 104
  %v3381 = vpop.permute.xlu0 %3380
  %3382 = vrot.lane.b32.xlu0 %v592, 104
  %v3383 = vpop.permute.xlu0 %3382
  %3384 = vrot.lane.b32.xlu0 %v594, 104
  %v3385 = vpop.permute.xlu0 %3384
  %3386 = vrot.lane.b32.xlu0 %v616, 104
  %v3387 = vpop.permute.xlu0 %3386
  %3388 = vrot.lane.b32.xlu0 %v618, 104
  %v3389 = vpop.permute.xlu0 %3388
  %3390 = vrot.lane.b32.xlu0 %v620, 104
  %v3391 = vpop.permute.xlu0 %3390
  %3392 = vrot.lane.b32.xlu0 %v622, 104
  %v3393 = vpop.permute.xlu0 %3392
  %3394 = vrot.lane.b32.xlu0 %v624, 104
  %v3395 = vpop.permute.xlu0 %3394
  %3396 = vrot.lane.b32.xlu0 %v626, 104
  %v3397 = vpop.permute.xlu0 %3396
  %3398 = vrot.lane.b32.xlu0 %v628, 104
  %v3399 = vpop.permute.xlu0 %3398
  %3400 = vrot.lane.b32.xlu0 %v630, 104
  %v3401 = vpop.permute.xlu0 %3400
  %3467 = vrot.lane.b32.xlu0 %v365, 112
  %v3468 = vpop.permute.xlu0 %3467
  %3469 = vrot.lane.b32.xlu0 %v367, 112
  %v3470 = vpop.permute.xlu0 %3469
  %3471 = vrot.lane.b32.xlu0 %v369, 112
  %v3472 = vpop.permute.xlu0 %3471
  %3473 = vrot.lane.b32.xlu0 %v371, 112
  %v3474 = vpop.permute.xlu0 %3473
  %3475 = vrot.lane.b32.xlu0 %v373, 112
  %v3476 = vpop.permute.xlu0 %3475
  %3477 = vrot.lane.b32.xlu0 %v375, 112
  %v3478 = vpop.permute.xlu0 %3477
  %3479 = vrot.lane.b32.xlu0 %v377, 112
  %v3480 = vpop.permute.xlu0 %3479
  %3481 = vrot.lane.b32.xlu0 %v379, 112
  %v3482 = vpop.permute.xlu0 %3481
  %3483 = vrot.lane.b32.xlu0 %v401, 112
  %v3484 = vpop.permute.xlu0 %3483
  %3485 = vrot.lane.b32.xlu0 %v403, 112
  %v3486 = vpop.permute.xlu0 %3485
  %3487 = vrot.lane.b32.xlu0 %v405, 112
  %v3488 = vpop.permute.xlu0 %3487
  %3489 = vrot.lane.b32.xlu0 %v407, 112
  %v3490 = vpop.permute.xlu0 %3489
  %3491 = vrot.lane.b32.xlu0 %v409, 112
  %v3492 = vpop.permute.xlu0 %3491
  %3493 = vrot.lane.b32.xlu0 %v411, 112
  %v3494 = vpop.permute.xlu0 %3493
  %3495 = vrot.lane.b32.xlu0 %v413, 112
  %v3496 = vpop.permute.xlu0 %3495
  %3497 = vrot.lane.b32.xlu0 %v415, 112
  %v3498 = vpop.permute.xlu0 %3497
  %3499 = vrot.lane.b32.xlu0 %v437, 112
  %v3500 = vpop.permute.xlu0 %3499
  %3501 = vrot.lane.b32.xlu0 %v439, 112
  %v3502 = vpop.permute.xlu0 %3501
  %3503 = vrot.lane.b32.xlu0 %v441, 112
  %v3504 = vpop.permute.xlu0 %3503
  %3505 = vrot.lane.b32.xlu0 %v443, 112
  %v3506 = vpop.permute.xlu0 %3505
  %3507 = vrot.lane.b32.xlu0 %v445, 112
  %v3508 = vpop.permute.xlu0 %3507
  %3509 = vrot.lane.b32.xlu0 %v447, 112
  %v3510 = vpop.permute.xlu0 %3509
  %3511 = vrot.lane.b32.xlu0 %v449, 112
  %v3512 = vpop.permute.xlu0 %3511
  %3513 = vrot.lane.b32.xlu0 %v451, 112
  %v3514 = vpop.permute.xlu0 %3513
  %3515 = vrot.lane.b32.xlu0 %v473, 112
  %v3516 = vpop.permute.xlu0 %3515
  %3517 = vrot.lane.b32.xlu0 %v475, 112
  %v3518 = vpop.permute.xlu0 %3517
  %3519 = vrot.lane.b32.xlu0 %v477, 112
  %v3520 = vpop.permute.xlu0 %3519
  %3521 = vrot.lane.b32.xlu0 %v479, 112
  %v3522 = vpop.permute.xlu0 %3521
  %3523 = vrot.lane.b32.xlu0 %v481, 112
  %v3524 = vpop.permute.xlu0 %3523
  %3525 = vrot.lane.b32.xlu0 %v483, 112
  %v3526 = vpop.permute.xlu0 %3525
  %3527 = vrot.lane.b32.xlu0 %v485, 112
  %v3528 = vpop.permute.xlu0 %3527
  %3529 = vrot.lane.b32.xlu0 %v487, 112
  %v3530 = vpop.permute.xlu0 %3529
  %3531 = vrot.lane.b32.xlu0 %v509, 112
  %v3532 = vpop.permute.xlu0 %3531
  %3533 = vrot.lane.b32.xlu0 %v511, 112
  %v3534 = vpop.permute.xlu0 %3533
  %3535 = vrot.lane.b32.xlu0 %v513, 112
  %v3536 = vpop.permute.xlu0 %3535
  %3537 = vrot.lane.b32.xlu0 %v515, 112
  %v3538 = vpop.permute.xlu0 %3537
  %3539 = vrot.lane.b32.xlu0 %v517, 112
  %v3540 = vpop.permute.xlu0 %3539
  %3541 = vrot.lane.b32.xlu0 %v519, 112
  %v3542 = vpop.permute.xlu0 %3541
  %3543 = vrot.lane.b32.xlu0 %v521, 112
  %v3544 = vpop.permute.xlu0 %3543
  %3545 = vrot.lane.b32.xlu0 %v523, 112
  %v3546 = vpop.permute.xlu0 %3545
  %3547 = vrot.lane.b32.xlu0 %v545, 112
  %v3548 = vpop.permute.xlu0 %3547
  %3549 = vrot.lane.b32.xlu0 %v547, 112
  %v3550 = vpop.permute.xlu0 %3549
  %3551 = vrot.lane.b32.xlu0 %v549, 112
  %v3552 = vpop.permute.xlu0 %3551
  %3553 = vrot.lane.b32.xlu0 %v551, 112
  %v3554 = vpop.permute.xlu0 %3553
  %3555 = vrot.lane.b32.xlu0 %v553, 112
  %v3556 = vpop.permute.xlu0 %3555
  %3557 = vrot.lane.b32.xlu0 %v555, 112
  %v3558 = vpop.permute.xlu0 %3557
  %3559 = vrot.lane.b32.xlu0 %v557, 112
  %v3560 = vpop.permute.xlu0 %3559
  %3561 = vrot.lane.b32.xlu0 %v559, 112
  %v3562 = vpop.permute.xlu0 %3561
  %3563 = vrot.lane.b32.xlu0 %v581, 112
  %v3564 = vpop.permute.xlu0 %3563
  %3565 = vrot.lane.b32.xlu0 %v583, 112
  %v3566 = vpop.permute.xlu0 %3565
  %3567 = vrot.lane.b32.xlu0 %v585, 112
  %v3568 = vpop.permute.xlu0 %3567
  %3569 = vrot.lane.b32.xlu0 %v587, 112
  %v3570 = vpop.permute.xlu0 %3569
  %3571 = vrot.lane.b32.xlu0 %v589, 112
  %v3572 = vpop.permute.xlu0 %3571
  %3573 = vrot.lane.b32.xlu0 %v591, 112
  %v3574 = vpop.permute.xlu0 %3573
  %3575 = vrot.lane.b32.xlu0 %v593, 112
  %v3576 = vpop.permute.xlu0 %3575
  %3577 = vrot.lane.b32.xlu0 %v595, 112
  %v3578 = vpop.permute.xlu0 %3577
  %3579 = vrot.lane.b32.xlu0 %v617, 112
  %v3580 = vpop.permute.xlu0 %3579
  %3581 = vrot.lane.b32.xlu0 %v619, 112
  %v3582 = vpop.permute.xlu0 %3581
  %3583 = vrot.lane.b32.xlu0 %v621, 112
  %v3584 = vpop.permute.xlu0 %3583
  %3585 = vrot.lane.b32.xlu0 %v623, 112
  %v3586 = vpop.permute.xlu0 %3585
  %3587 = vrot.lane.b32.xlu0 %v625, 112
  %v3588 = vpop.permute.xlu0 %3587
  %3589 = vrot.lane.b32.xlu0 %v627, 112
  %v3590 = vpop.permute.xlu0 %3589
  %3591 = vrot.lane.b32.xlu0 %v629, 112
  %v3592 = vpop.permute.xlu0 %3591
  %3593 = vrot.lane.b32.xlu0 %v631, 112
  %v3594 = vpop.permute.xlu0 %3593
  %3660 = vrot.lane.b32.xlu0 %v366, 120
  %v3661 = vpop.permute.xlu0 %3660
  %3662 = vrot.lane.b32.xlu0 %v368, 120
  %v3663 = vpop.permute.xlu0 %3662
  %3664 = vrot.lane.b32.xlu0 %v370, 120
  %v3665 = vpop.permute.xlu0 %3664
  %3666 = vrot.lane.b32.xlu0 %v372, 120
  %v3667 = vpop.permute.xlu0 %3666
  %3668 = vrot.lane.b32.xlu0 %v374, 120
  %v3669 = vpop.permute.xlu0 %3668
  %3670 = vrot.lane.b32.xlu0 %v376, 120
  %v3671 = vpop.permute.xlu0 %3670
  %3672 = vrot.lane.b32.xlu0 %v378, 120
  %v3673 = vpop.permute.xlu0 %3672
  %3674 = vrot.lane.b32.xlu0 %v380, 120
  %v3675 = vpop.permute.xlu0 %3674
  %3676 = vrot.lane.b32.xlu0 %v402, 120
  %v3677 = vpop.permute.xlu0 %3676
  %3678 = vrot.lane.b32.xlu0 %v404, 120
  %v3679 = vpop.permute.xlu0 %3678
  %3680 = vrot.lane.b32.xlu0 %v406, 120
  %v3681 = vpop.permute.xlu0 %3680
  %3682 = vrot.lane.b32.xlu0 %v408, 120
  %v3683 = vpop.permute.xlu0 %3682
  %3684 = vrot.lane.b32.xlu0 %v410, 120
  %v3685 = vpop.permute.xlu0 %3684
  %3686 = vrot.lane.b32.xlu0 %v412, 120
  %v3687 = vpop.permute.xlu0 %3686
  %3688 = vrot.lane.b32.xlu0 %v414, 120
  %v3689 = vpop.permute.xlu0 %3688
  %3690 = vrot.lane.b32.xlu0 %v416, 120
  %v3691 = vpop.permute.xlu0 %3690
  %3692 = vrot.lane.b32.xlu0 %v438, 120
  %v3693 = vpop.permute.xlu0 %3692
  %3694 = vrot.lane.b32.xlu0 %v440, 120
  %v3695 = vpop.permute.xlu0 %3694
  %3696 = vrot.lane.b32.xlu0 %v442, 120
  %v3697 = vpop.permute.xlu0 %3696
  %3698 = vrot.lane.b32.xlu0 %v444, 120
  %v3699 = vpop.permute.xlu0 %3698
  %3700 = vrot.lane.b32.xlu0 %v446, 120
  %v3701 = vpop.permute.xlu0 %3700
  %3702 = vrot.lane.b32.xlu0 %v448, 120
  %v3703 = vpop.permute.xlu0 %3702
  %3704 = vrot.lane.b32.xlu0 %v450, 120
  %v3705 = vpop.permute.xlu0 %3704
  %3706 = vrot.lane.b32.xlu0 %v452, 120
  %v3707 = vpop.permute.xlu0 %3706
  %3708 = vrot.lane.b32.xlu0 %v474, 120
  %v3709 = vpop.permute.xlu0 %3708
  %3710 = vrot.lane.b32.xlu0 %v476, 120
  %v3711 = vpop.permute.xlu0 %3710
  %3712 = vrot.lane.b32.xlu0 %v478, 120
  %v3713 = vpop.permute.xlu0 %3712
  %3714 = vrot.lane.b32.xlu0 %v480, 120
  %v3715 = vpop.permute.xlu0 %3714
  %3716 = vrot.lane.b32.xlu0 %v482, 120
  %v3717 = vpop.permute.xlu0 %3716
  %3718 = vrot.lane.b32.xlu0 %v484, 120
  %v3719 = vpop.permute.xlu0 %3718
  %3720 = vrot.lane.b32.xlu0 %v486, 120
  %v3721 = vpop.permute.xlu0 %3720
  %3722 = vrot.lane.b32.xlu0 %v488, 120
  %v3723 = vpop.permute.xlu0 %3722
  %3724 = vrot.lane.b32.xlu0 %v510, 120
  %v3725 = vpop.permute.xlu0 %3724
  %3726 = vrot.lane.b32.xlu0 %v512, 120
  %v3727 = vpop.permute.xlu0 %3726
  %3728 = vrot.lane.b32.xlu0 %v514, 120
  %v3729 = vpop.permute.xlu0 %3728
  %3730 = vrot.lane.b32.xlu0 %v516, 120
  %v3731 = vpop.permute.xlu0 %3730
  %3732 = vrot.lane.b32.xlu0 %v518, 120
  %v3733 = vpop.permute.xlu0 %3732
  %3734 = vrot.lane.b32.xlu0 %v520, 120
  %v3735 = vpop.permute.xlu0 %3734
  %3736 = vrot.lane.b32.xlu0 %v522, 120
  %v3737 = vpop.permute.xlu0 %3736
  %3738 = vrot.lane.b32.xlu0 %v524, 120
  %v3739 = vpop.permute.xlu0 %3738
  %3740 = vrot.lane.b32.xlu0 %v546, 120
  %v3741 = vpop.permute.xlu0 %3740
  %3742 = vrot.lane.b32.xlu0 %v548, 120
  %v3743 = vpop.permute.xlu0 %3742
  %3744 = vrot.lane.b32.xlu0 %v550, 120
  %v3745 = vpop.permute.xlu0 %3744
  %3746 = vrot.lane.b32.xlu0 %v552, 120
  %v3747 = vpop.permute.xlu0 %3746
  %3748 = vrot.lane.b32.xlu0 %v554, 120
  %v3749 = vpop.permute.xlu0 %3748
  %3750 = vrot.lane.b32.xlu0 %v556, 120
  %v3751 = vpop.permute.xlu0 %3750
  %3752 = vrot.lane.b32.xlu0 %v558, 120
  %v3753 = vpop.permute.xlu0 %3752
  %3754 = vrot.lane.b32.xlu0 %v560, 120
  %v3755 = vpop.permute.xlu0 %3754
  %3756 = vrot.lane.b32.xlu0 %v582, 120
  %v3757 = vpop.permute.xlu0 %3756
  %3758 = vrot.lane.b32.xlu0 %v584, 120
  %v3759 = vpop.permute.xlu0 %3758
  %3760 = vrot.lane.b32.xlu0 %v586, 120
  %v3761 = vpop.permute.xlu0 %3760
  %3762 = vrot.lane.b32.xlu0 %v588, 120
  %v3763 = vpop.permute.xlu0 %3762
  %3764 = vrot.lane.b32.xlu0 %v590, 120
  %v3765 = vpop.permute.xlu0 %3764
  %3766 = vrot.lane.b32.xlu0 %v592, 120
  %v3767 = vpop.permute.xlu0 %3766
  %3768 = vrot.lane.b32.xlu0 %v594, 120
  %v3769 = vpop.permute.xlu0 %3768
  %3770 = vrot.lane.b32.xlu0 %v596, 120
  %v3771 = vpop.permute.xlu0 %3770
  %3772 = vrot.lane.b32.xlu0 %v618, 120
  %v3773 = vpop.permute.xlu0 %3772
  %3774 = vrot.lane.b32.xlu0 %v620, 120
  %v3775 = vpop.permute.xlu0 %3774
  %3776 = vrot.lane.b32.xlu0 %v622, 120
  %v3777 = vpop.permute.xlu0 %3776
  %3778 = vrot.lane.b32.xlu0 %v624, 120
  %v3779 = vpop.permute.xlu0 %3778
  %3780 = vrot.lane.b32.xlu0 %v626, 120
  %v3781 = vpop.permute.xlu0 %3780
  %3782 = vrot.lane.b32.xlu0 %v628, 120
  %v3783 = vpop.permute.xlu0 %3782
  %3784 = vrot.lane.b32.xlu0 %v630, 120
  %v3785 = vpop.permute.xlu0 %3784
  %3786 = vrot.lane.b32.xlu0 %v632, 120
  %v3787 = vpop.permute.xlu0 %3786
  %vm3852 = vcmask 64512
  %v3853 = vsel %vm3852, %v309, %v714
  %v3854 = vsel %vm3852, %v311, %v716
  %v3855 = vsel %vm3852, %v313, %v718
  %v3856 = vsel %vm3852, %v315, %v720
  %v3857 = vsel %vm3852, %v317, %v722
  %v3858 = vsel %vm3852, %v319, %v724
  %v3859 = vsel %vm3852, %v321, %v726
  %v3860 = vsel %vm3852, %v323, %v728
  %v3861 = vsel %vm3852, %v345, %v730
  %v3862 = vsel %vm3852, %v347, %v732
  %v3863 = vsel %vm3852, %v349, %v734
  %v3864 = vsel %vm3852, %v351, %v736
  %v3865 = vsel %vm3852, %v353, %v738
  %v3866 = vsel %vm3852, %v355, %v740
  %v3867 = vsel %vm3852, %v357, %v742
  %v3868 = vsel %vm3852, %v359, %v744
  %v3869 = vsel %vm3852, %v381, %v746
  %v3870 = vsel %vm3852, %v383, %v748
  %v3871 = vsel %vm3852, %v385, %v750
  %v3872 = vsel %vm3852, %v387, %v752
  %v3873 = vsel %vm3852, %v389, %v754
  %v3874 = vsel %vm3852, %v391, %v756
  %v3875 = vsel %vm3852, %v393, %v758
  %v3876 = vsel %vm3852, %v395, %v760
  %v3877 = vsel %vm3852, %v417, %v762
  %v3878 = vsel %vm3852, %v419, %v764
  %v3879 = vsel %vm3852, %v421, %v766
  %v3880 = vsel %vm3852, %v423, %v768
  %v3881 = vsel %vm3852, %v425, %v770
  %v3882 = vsel %vm3852, %v427, %v772
  %v3883 = vsel %vm3852, %v429, %v774
  %v3884 = vsel %vm3852, %v431, %v776
  %v3885 = vsel %vm3852, %v453, %v778
  %v3886 = vsel %vm3852, %v455, %v780
  %v3887 = vsel %vm3852, %v457, %v782
  %v3888 = vsel %vm3852, %v459, %v784
  %v3889 = vsel %vm3852, %v461, %v786
  %v3890 = vsel %vm3852, %v463, %v788
  %v3891 = vsel %vm3852, %v465, %v790
  %v3892 = vsel %vm3852, %v467, %v792
  %v3893 = vsel %vm3852, %v489, %v794
  %v3894 = vsel %vm3852, %v491, %v796
  %v3895 = vsel %vm3852, %v493, %v798
  %v3896 = vsel %vm3852, %v495, %v800
  %v3897 = vsel %vm3852, %v497, %v802
  %v3898 = vsel %vm3852, %v499, %v804
  %v3899 = vsel %vm3852, %v501, %v806
  %v3900 = vsel %vm3852, %v503, %v808
  %v3901 = vsel %vm3852, %v525, %v810
  %v3902 = vsel %vm3852, %v527, %v812
  %v3903 = vsel %vm3852, %v529, %v814
  %v3904 = vsel %vm3852, %v531, %v816
  %v3905 = vsel %vm3852, %v533, %v818
  %v3906 = vsel %vm3852, %v535, %v820
  %v3907 = vsel %vm3852, %v537, %v822
  %v3908 = vsel %vm3852, %v539, %v824
  %v3909 = vsel %vm3852, %v561, %v826
  %v3910 = vsel %vm3852, %v563, %v828
  %v3911 = vsel %vm3852, %v565, %v830
  %v3912 = vsel %vm3852, %v567, %v832
  %v3913 = vsel %vm3852, %v569, %v834
  %v3914 = vsel %vm3852, %v571, %v836
  %v3915 = vsel %vm3852, %v573, %v838
  %v3916 = vsel %vm3852, %v575, %v840
  %vm3917 = vcmask 130048
  %v3918 = vsel %vm3917, %v3853, %v970
  %v3919 = vsel %vm3917, %v3854, %v972
  %v3920 = vsel %vm3917, %v3855, %v974
  %v3921 = vsel %vm3917, %v3856, %v976
  %v3922 = vsel %vm3917, %v3857, %v978
  %v3923 = vsel %vm3917, %v3858, %v980
  %v3924 = vsel %vm3917, %v3859, %v982
  %v3925 = vsel %vm3917, %v3860, %v984
  %v3926 = vsel %vm3917, %v3861, %v986
  %v3927 = vsel %vm3917, %v3862, %v988
  %v3928 = vsel %vm3917, %v3863, %v990
  %v3929 = vsel %vm3917, %v3864, %v992
  %v3930 = vsel %vm3917, %v3865, %v994
  %v3931 = vsel %vm3917, %v3866, %v996
  %v3932 = vsel %vm3917, %v3867, %v998
  %v3933 = vsel %vm3917, %v3868, %v1000
  %v3934 = vsel %vm3917, %v3869, %v1002
  %v3935 = vsel %vm3917, %v3870, %v1004
  %v3936 = vsel %vm3917, %v3871, %v1006
  %v3937 = vsel %vm3917, %v3872, %v1008
  %v3938 = vsel %vm3917, %v3873, %v1010
  %v3939 = vsel %vm3917, %v3874, %v1012
  %v3940 = vsel %vm3917, %v3875, %v1014
  %v3941 = vsel %vm3917, %v3876, %v1016
  %v3942 = vsel %vm3917, %v3877, %v1018
  %v3943 = vsel %vm3917, %v3878, %v1020
  %v3944 = vsel %vm3917, %v3879, %v1022
  %v3945 = vsel %vm3917, %v3880, %v1024
  %v3946 = vsel %vm3917, %v3881, %v1026
  %v3947 = vsel %vm3917, %v3882, %v1028
  %v3948 = vsel %vm3917, %v3883, %v1030
  %v3949 = vsel %vm3917, %v3884, %v1032
  %v3950 = vsel %vm3917, %v3885, %v1034
  %v3951 = vsel %vm3917, %v3886, %v1036
  %v3952 = vsel %vm3917, %v3887, %v1038
  %v3953 = vsel %vm3917, %v3888, %v1040
  %v3954 = vsel %vm3917, %v3889, %v1042
  %v3955 = vsel %vm3917, %v3890, %v1044
  %v3956 = vsel %vm3917, %v3891, %v1046
  %v3957 = vsel %vm3917, %v3892, %v1048
  %v3958 = vsel %vm3917, %v3893, %v1050
  %v3959 = vsel %vm3917, %v3894, %v1052
  %v3960 = vsel %vm3917, %v3895, %v1054
  %v3961 = vsel %vm3917, %v3896, %v1056
  %v3962 = vsel %vm3917, %v3897, %v1058
  %v3963 = vsel %vm3917, %v3898, %v1060
  %v3964 = vsel %vm3917, %v3899, %v1062
  %v3965 = vsel %vm3917, %v3900, %v1064
  %v3966 = vsel %vm3917, %v3901, %v1066
  %v3967 = vsel %vm3917, %v3902, %v1068
  %v3968 = vsel %vm3917, %v3903, %v1070
  %v3969 = vsel %vm3917, %v3904, %v1072
  %v3970 = vsel %vm3917, %v3905, %v1074
  %v3971 = vsel %vm3917, %v3906, %v1076
  %v3972 = vsel %vm3917, %v3907, %v1078
  %v3973 = vsel %vm3917, %v3908, %v1080
  %v3974 = vsel %vm3917, %v3909, %v1082
  %v3975 = vsel %vm3917, %v3910, %v1084
  %v3976 = vsel %vm3917, %v3911, %v1086
  %v3977 = vsel %vm3917, %v3912, %v1088
  %v3978 = vsel %vm3917, %v3913, %v1090
  %v3979 = vsel %vm3917, %v3914, %v1092
  %v3980 = vsel %vm3917, %v3915, %v1094
  %v3981 = vsel %vm3917, %v3916, %v1096
  %v3982 = vsel %vm119, %v3918, %v1170
  %v3983 = vsel %vm119, %v3919, %v1172
  %v3984 = vsel %vm119, %v3920, %v1174
  %v3985 = vsel %vm119, %v3921, %v1176
  %v3986 = vsel %vm119, %v3922, %v1178
  %v3987 = vsel %vm119, %v3923, %v1180
  %v3988 = vsel %vm119, %v3924, %v1182
  %v3989 = vsel %vm119, %v3925, %v1184
  %v3990 = vsel %vm119, %v3926, %v1186
  %v3991 = vsel %vm119, %v3927, %v1188
  %v3992 = vsel %vm119, %v3928, %v1190
  %v3993 = vsel %vm119, %v3929, %v1192
  %v3994 = vsel %vm119, %v3930, %v1194
  %v3995 = vsel %vm119, %v3931, %v1196
  %v3996 = vsel %vm119, %v3932, %v1198
  %v3997 = vsel %vm119, %v3933, %v1200
  %v3998 = vsel %vm119, %v3934, %v1202
  %v3999 = vsel %vm119, %v3935, %v1204
  %v4000 = vsel %vm119, %v3936, %v1206
  %v4001 = vsel %vm119, %v3937, %v1208
  %v4002 = vsel %vm119, %v3938, %v1210
  %v4003 = vsel %vm119, %v3939, %v1212
  %v4004 = vsel %vm119, %v3940, %v1214
  %v4005 = vsel %vm119, %v3941, %v1216
  %v4006 = vsel %vm119, %v3942, %v1218
  %v4007 = vsel %vm119, %v3943, %v1220
  %v4008 = vsel %vm119, %v3944, %v1222
  %v4009 = vsel %vm119, %v3945, %v1224
  %v4010 = vsel %vm119, %v3946, %v1226
  %v4011 = vsel %vm119, %v3947, %v1228
  %v4012 = vsel %vm119, %v3948, %v1230
  %v4013 = vsel %vm119, %v3949, %v1232
  %v4014 = vsel %vm119, %v3950, %v1234
  %v4015 = vsel %vm119, %v3951, %v1236
  %v4016 = vsel %vm119, %v3952, %v1238
  %v4017 = vsel %vm119, %v3953, %v1240
  %v4018 = vsel %vm119, %v3954, %v1242
  %v4019 = vsel %vm119, %v3955, %v1244
  %v4020 = vsel %vm119, %v3956, %v1246
  %v4021 = vsel %vm119, %v3957, %v1248
  %v4022 = vsel %vm119, %v3958, %v1250
  %v4023 = vsel %vm119, %v3959, %v1252
  %v4024 = vsel %vm119, %v3960, %v1254
  %v4025 = vsel %vm119, %v3961, %v1256
  %v4026 = vsel %vm119, %v3962, %v1258
  %v4027 = vsel %vm119, %v3963, %v1260
  %v4028 = vsel %vm119, %v3964, %v1262
  %v4029 = vsel %vm119, %v3965, %v1264
  %v4030 = vsel %vm119, %v3966, %v1266
  %v4031 = vsel %vm119, %v3967, %v1268
  %v4032 = vsel %vm119, %v3968, %v1270
  %v4033 = vsel %vm119, %v3969, %v1272
  %v4034 = vsel %vm119, %v3970, %v1274
  %v4035 = vsel %vm119, %v3971, %v1276
  %v4036 = vsel %vm119, %v3972, %v1278
  %v4037 = vsel %vm119, %v3973, %v1280
  %v4038 = vsel %vm119, %v3974, %v1282
  %v4039 = vsel %vm119, %v3975, %v1284
  %v4040 = vsel %vm119, %v3976, %v1286
  %v4041 = vsel %vm119, %v3977, %v1288
  %v4042 = vsel %vm119, %v3978, %v1290
  %v4043 = vsel %vm119, %v3979, %v1292
  %v4044 = vsel %vm119, %v3980, %v1294
  %v4045 = vsel %vm119, %v3981, %v1296
  %vm4046 = vcmask 261120
  %v4047 = vsel %vm4046, %v3982, %v1426
  %v4048 = vsel %vm4046, %v3983, %v1428
  %v4049 = vsel %vm4046, %v3984, %v1430
  %v4050 = vsel %vm4046, %v3985, %v1432
  %v4051 = vsel %vm4046, %v3986, %v1434
  %v4052 = vsel %vm4046, %v3987, %v1436
  %v4053 = vsel %vm4046, %v3988, %v1438
  %v4054 = vsel %vm4046, %v3989, %v1440
  %v4055 = vsel %vm4046, %v3990, %v1442
  %v4056 = vsel %vm4046, %v3991, %v1444
  %v4057 = vsel %vm4046, %v3992, %v1446
  %v4058 = vsel %vm4046, %v3993, %v1448
  %v4059 = vsel %vm4046, %v3994, %v1450
  %v4060 = vsel %vm4046, %v3995, %v1452
  %v4061 = vsel %vm4046, %v3996, %v1454
  %v4062 = vsel %vm4046, %v3997, %v1456
  %v4063 = vsel %vm4046, %v3998, %v1458
  %v4064 = vsel %vm4046, %v3999, %v1460
  %v4065 = vsel %vm4046, %v4000, %v1462
  %v4066 = vsel %vm4046, %v4001, %v1464
  %v4067 = vsel %vm4046, %v4002, %v1466
  %v4068 = vsel %vm4046, %v4003, %v1468
  %v4069 = vsel %vm4046, %v4004, %v1470
  %v4070 = vsel %vm4046, %v4005, %v1472
  %v4071 = vsel %vm4046, %v4006, %v1474
  %v4072 = vsel %vm4046, %v4007, %v1476
  %v4073 = vsel %vm4046, %v4008, %v1478
  %v4074 = vsel %vm4046, %v4009, %v1480
  %v4075 = vsel %vm4046, %v4010, %v1482
  %v4076 = vsel %vm4046, %v4011, %v1484
  %v4077 = vsel %vm4046, %v4012, %v1486
  %v4078 = vsel %vm4046, %v4013, %v1488
  %v4079 = vsel %vm4046, %v4014, %v1490
  %v4080 = vsel %vm4046, %v4015, %v1492
  %v4081 = vsel %vm4046, %v4016, %v1494
  %v4082 = vsel %vm4046, %v4017, %v1496
  %v4083 = vsel %vm4046, %v4018, %v1498
  %v4084 = vsel %vm4046, %v4019, %v1500
  %v4085 = vsel %vm4046, %v4020, %v1502
  %v4086 = vsel %vm4046, %v4021, %v1504
  %v4087 = vsel %vm4046, %v4022, %v1506
  %v4088 = vsel %vm4046, %v4023, %v1508
  %v4089 = vsel %vm4046, %v4024, %v1510
  %v4090 = vsel %vm4046, %v4025, %v1512
  %v4091 = vsel %vm4046, %v4026, %v1514
  %v4092 = vsel %vm4046, %v4027, %v1516
  %v4093 = vsel %vm4046, %v4028, %v1518
  %v4094 = vsel %vm4046, %v4029, %v1520
  %v4095 = vsel %vm4046, %v4030, %v1522
  %v4096 = vsel %vm4046, %v4031, %v1524
  %v4097 = vsel %vm4046, %v4032, %v1526
  %v4098 = vsel %vm4046, %v4033, %v1528
  %v4099 = vsel %vm4046, %v4034, %v1530
  %v4100 = vsel %vm4046, %v4035, %v1532
  %v4101 = vsel %vm4046, %v4036, %v1534
  %v4102 = vsel %vm4046, %v4037, %v1536
  %v4103 = vsel %vm4046, %v4038, %v1538
  %v4104 = vsel %vm4046, %v4039, %v1540
  %v4105 = vsel %vm4046, %v4040, %v1542
  %v4106 = vsel %vm4046, %v4041, %v1544
  %v4107 = vsel %vm4046, %v4042, %v1546
  %v4108 = vsel %vm4046, %v4043, %v1548
  %v4109 = vsel %vm4046, %v4044, %v1550
  %v4110 = vsel %vm4046, %v4045, %v1552
  %vm4111 = vcmask 326656
  %v4112 = vsel %vm4111, %v4047, %v1682
  %v4113 = vsel %vm4111, %v4048, %v1684
  %v4114 = vsel %vm4111, %v4049, %v1686
  %v4115 = vsel %vm4111, %v4050, %v1688
  %v4116 = vsel %vm4111, %v4051, %v1690
  %v4117 = vsel %vm4111, %v4052, %v1692
  %v4118 = vsel %vm4111, %v4053, %v1694
  %v4119 = vsel %vm4111, %v4054, %v1696
  %v4120 = vsel %vm4111, %v4055, %v1698
  %v4121 = vsel %vm4111, %v4056, %v1700
  %v4122 = vsel %vm4111, %v4057, %v1702
  %v4123 = vsel %vm4111, %v4058, %v1704
  %v4124 = vsel %vm4111, %v4059, %v1706
  %v4125 = vsel %vm4111, %v4060, %v1708
  %v4126 = vsel %vm4111, %v4061, %v1710
  %v4127 = vsel %vm4111, %v4062, %v1712
  %v4128 = vsel %vm4111, %v4063, %v1714
  %v4129 = vsel %vm4111, %v4064, %v1716
  %v4130 = vsel %vm4111, %v4065, %v1718
  %v4131 = vsel %vm4111, %v4066, %v1720
  %v4132 = vsel %vm4111, %v4067, %v1722
  %v4133 = vsel %vm4111, %v4068, %v1724
  %v4134 = vsel %vm4111, %v4069, %v1726
  %v4135 = vsel %vm4111, %v4070, %v1728
  %v4136 = vsel %vm4111, %v4071, %v1730
  %v4137 = vsel %vm4111, %v4072, %v1732
  %v4138 = vsel %vm4111, %v4073, %v1734
  %v4139 = vsel %vm4111, %v4074, %v1736
  %v4140 = vsel %vm4111, %v4075, %v1738
  %v4141 = vsel %vm4111, %v4076, %v1740
  %v4142 = vsel %vm4111, %v4077, %v1742
  %v4143 = vsel %vm4111, %v4078, %v1744
  %v4144 = vsel %vm4111, %v4079, %v1746
  %v4145 = vsel %vm4111, %v4080, %v1748
  %v4146 = vsel %vm4111, %v4081, %v1750
  %v4147 = vsel %vm4111, %v4082, %v1752
  %v4148 = vsel %vm4111, %v4083, %v1754
  %v4149 = vsel %vm4111, %v4084, %v1756
  %v4150 = vsel %vm4111, %v4085, %v1758
  %v4151 = vsel %vm4111, %v4086, %v1760
  %v4152 = vsel %vm4111, %v4087, %v1762
  %v4153 = vsel %vm4111, %v4088, %v1764
  %v4154 = vsel %vm4111, %v4089, %v1766
  %v4155 = vsel %vm4111, %v4090, %v1768
  %v4156 = vsel %vm4111, %v4091, %v1770
  %v4157 = vsel %vm4111, %v4092, %v1772
  %v4158 = vsel %vm4111, %v4093, %v1774
  %v4159 = vsel %vm4111, %v4094, %v1776
  %v4160 = vsel %vm4111, %v4095, %v1778
  %v4161 = vsel %vm4111, %v4096, %v1780
  %v4162 = vsel %vm4111, %v4097, %v1782
  %v4163 = vsel %vm4111, %v4098, %v1784
  %v4164 = vsel %vm4111, %v4099, %v1786
  %v4165 = vsel %vm4111, %v4100, %v1788
  %v4166 = vsel %vm4111, %v4101, %v1790
  %v4167 = vsel %vm4111, %v4102, %v1792
  %v4168 = vsel %vm4111, %v4103, %v1794
  %v4169 = vsel %vm4111, %v4104, %v1796
  %v4170 = vsel %vm4111, %v4105, %v1798
  %v4171 = vsel %vm4111, %v4106, %v1800
  %v4172 = vsel %vm4111, %v4107, %v1802
  %v4173 = vsel %vm4111, %v4108, %v1804
  %v4174 = vsel %vm4111, %v4109, %v1806
  %v4175 = vsel %vm4111, %v4110, %v1808
  %v4176 = vsel %vm156, %v4112, %v1882
  %v4177 = vsel %vm156, %v4113, %v1884
  %v4178 = vsel %vm156, %v4114, %v1886
  %v4179 = vsel %vm156, %v4115, %v1888
  %v4180 = vsel %vm156, %v4116, %v1890
  %v4181 = vsel %vm156, %v4117, %v1892
  %v4182 = vsel %vm156, %v4118, %v1894
  %v4183 = vsel %vm156, %v4119, %v1896
  %v4184 = vsel %vm156, %v4120, %v1898
  %v4185 = vsel %vm156, %v4121, %v1900
  %v4186 = vsel %vm156, %v4122, %v1902
  %v4187 = vsel %vm156, %v4123, %v1904
  %v4188 = vsel %vm156, %v4124, %v1906
  %v4189 = vsel %vm156, %v4125, %v1908
  %v4190 = vsel %vm156, %v4126, %v1910
  %v4191 = vsel %vm156, %v4127, %v1912
  %v4192 = vsel %vm156, %v4128, %v1914
  %v4193 = vsel %vm156, %v4129, %v1916
  %v4194 = vsel %vm156, %v4130, %v1918
  %v4195 = vsel %vm156, %v4131, %v1920
  %v4196 = vsel %vm156, %v4132, %v1922
  %v4197 = vsel %vm156, %v4133, %v1924
  %v4198 = vsel %vm156, %v4134, %v1926
  %v4199 = vsel %vm156, %v4135, %v1928
  %v4200 = vsel %vm156, %v4136, %v1930
  %v4201 = vsel %vm156, %v4137, %v1932
  %v4202 = vsel %vm156, %v4138, %v1934
  %v4203 = vsel %vm156, %v4139, %v1936
  %v4204 = vsel %vm156, %v4140, %v1938
  %v4205 = vsel %vm156, %v4141, %v1940
  %v4206 = vsel %vm156, %v4142, %v1942
  %v4207 = vsel %vm156, %v4143, %v1944
  %v4208 = vsel %vm156, %v4144, %v1946
  %v4209 = vsel %vm156, %v4145, %v1948
  %v4210 = vsel %vm156, %v4146, %v1950
  %v4211 = vsel %vm156, %v4147, %v1952
  %v4212 = vsel %vm156, %v4148, %v1954
  %v4213 = vsel %vm156, %v4149, %v1956
  %v4214 = vsel %vm156, %v4150, %v1958
  %v4215 = vsel %vm156, %v4151, %v1960
  %v4216 = vsel %vm156, %v4152, %v1962
  %v4217 = vsel %vm156, %v4153, %v1964
  %v4218 = vsel %vm156, %v4154, %v1966
  %v4219 = vsel %vm156, %v4155, %v1968
  %v4220 = vsel %vm156, %v4156, %v1970
  %v4221 = vsel %vm156, %v4157, %v1972
  %v4222 = vsel %vm156, %v4158, %v1974
  %v4223 = vsel %vm156, %v4159, %v1976
  %v4224 = vsel %vm156, %v4160, %v1978
  %v4225 = vsel %vm156, %v4161, %v1980
  %v4226 = vsel %vm156, %v4162, %v1982
  %v4227 = vsel %vm156, %v4163, %v1984
  %v4228 = vsel %vm156, %v4164, %v1986
  %v4229 = vsel %vm156, %v4165, %v1988
  %v4230 = vsel %vm156, %v4166, %v1990
  %v4231 = vsel %vm156, %v4167, %v1992
  %v4232 = vsel %vm156, %v4168, %v1994
  %v4233 = vsel %vm156, %v4169, %v1996
  %v4234 = vsel %vm156, %v4170, %v1998
  %v4235 = vsel %vm156, %v4171, %v2000
  %v4236 = vsel %vm156, %v4172, %v2002
  %v4237 = vsel %vm156, %v4173, %v2004
  %v4238 = vsel %vm156, %v4174, %v2006
  %v4239 = vsel %vm156, %v4175, %v2008
  %vm4240 = vcmask 457728
  %v4241 = vsel %vm4240, %v4176, %v2082
  %v4242 = vsel %vm4240, %v4177, %v2084
  %v4243 = vsel %vm4240, %v4178, %v2086
  %v4244 = vsel %vm4240, %v4179, %v2088
  %v4245 = vsel %vm4240, %v4180, %v2090
  %v4246 = vsel %vm4240, %v4181, %v2092
  %v4247 = vsel %vm4240, %v4182, %v2094
  %v4248 = vsel %vm4240, %v4183, %v2096
  %v4249 = vsel %vm4240, %v4184, %v2098
  %v4250 = vsel %vm4240, %v4185, %v2100
  %v4251 = vsel %vm4240, %v4186, %v2102
  %v4252 = vsel %vm4240, %v4187, %v2104
  %v4253 = vsel %vm4240, %v4188, %v2106
  %v4254 = vsel %vm4240, %v4189, %v2108
  %v4255 = vsel %vm4240, %v4190, %v2110
  %v4256 = vsel %vm4240, %v4191, %v2112
  %v4257 = vsel %vm4240, %v4192, %v2114
  %v4258 = vsel %vm4240, %v4193, %v2116
  %v4259 = vsel %vm4240, %v4194, %v2118
  %v4260 = vsel %vm4240, %v4195, %v2120
  %v4261 = vsel %vm4240, %v4196, %v2122
  %v4262 = vsel %vm4240, %v4197, %v2124
  %v4263 = vsel %vm4240, %v4198, %v2126
  %v4264 = vsel %vm4240, %v4199, %v2128
  %v4265 = vsel %vm4240, %v4200, %v2130
  %v4266 = vsel %vm4240, %v4201, %v2132
  %v4267 = vsel %vm4240, %v4202, %v2134
  %v4268 = vsel %vm4240, %v4203, %v2136
  %v4269 = vsel %vm4240, %v4204, %v2138
  %v4270 = vsel %vm4240, %v4205, %v2140
  %v4271 = vsel %vm4240, %v4206, %v2142
  %v4272 = vsel %vm4240, %v4207, %v2144
  %v4273 = vsel %vm4240, %v4208, %v2146
  %v4274 = vsel %vm4240, %v4209, %v2148
  %v4275 = vsel %vm4240, %v4210, %v2150
  %v4276 = vsel %vm4240, %v4211, %v2152
  %v4277 = vsel %vm4240, %v4212, %v2154
  %v4278 = vsel %vm4240, %v4213, %v2156
  %v4279 = vsel %vm4240, %v4214, %v2158
  %v4280 = vsel %vm4240, %v4215, %v2160
  %v4281 = vsel %vm4240, %v4216, %v2162
  %v4282 = vsel %vm4240, %v4217, %v2164
  %v4283 = vsel %vm4240, %v4218, %v2166
  %v4284 = vsel %vm4240, %v4219, %v2168
  %v4285 = vsel %vm4240, %v4220, %v2170
  %v4286 = vsel %vm4240, %v4221, %v2172
  %v4287 = vsel %vm4240, %v4222, %v2174
  %v4288 = vsel %vm4240, %v4223, %v2176
  %v4289 = vsel %vm4240, %v4224, %v2178
  %v4290 = vsel %vm4240, %v4225, %v2180
  %v4291 = vsel %vm4240, %v4226, %v2182
  %v4292 = vsel %vm4240, %v4227, %v2184
  %v4293 = vsel %vm4240, %v4228, %v2186
  %v4294 = vsel %vm4240, %v4229, %v2188
  %v4295 = vsel %vm4240, %v4230, %v2190
  %v4296 = vsel %vm4240, %v4231, %v2192
  %v4297 = vsel %vm4240, %v4232, %v2194
  %v4298 = vsel %vm4240, %v4233, %v2196
  %v4299 = vsel %vm4240, %v4234, %v2198
  %v4300 = vsel %vm4240, %v4235, %v2200
  %v4301 = vsel %vm4240, %v4236, %v2202
  %v4302 = vsel %vm4240, %v4237, %v2204
  %v4303 = vsel %vm4240, %v4238, %v2206
  %v4304 = vsel %vm4240, %v4239, %v2208
  %vm4305 = vcmask 523264
  %v4306 = vsel %vm4305, %v4241, %v2289
  %v4307 = vsel %vm4305, %v4242, %v2291
  %v4308 = vsel %vm4305, %v4243, %v2293
  %v4309 = vsel %vm4305, %v4244, %v2295
  %v4310 = vsel %vm4305, %v4245, %v2297
  %v4311 = vsel %vm4305, %v4246, %v2299
  %v4312 = vsel %vm4305, %v4247, %v2301
  %v4313 = vsel %vm4305, %v4248, %v2303
  %v4314 = vsel %vm4305, %v4249, %v2305
  %v4315 = vsel %vm4305, %v4250, %v2307
  %v4316 = vsel %vm4305, %v4251, %v2309
  %v4317 = vsel %vm4305, %v4252, %v2311
  %v4318 = vsel %vm4305, %v4253, %v2313
  %v4319 = vsel %vm4305, %v4254, %v2315
  %v4320 = vsel %vm4305, %v4255, %v2317
  %v4321 = vsel %vm4305, %v4256, %v2319
  %v4322 = vsel %vm4305, %v4257, %v2321
  %v4323 = vsel %vm4305, %v4258, %v2323
  %v4324 = vsel %vm4305, %v4259, %v2325
  %v4325 = vsel %vm4305, %v4260, %v2327
  %v4326 = vsel %vm4305, %v4261, %v2329
  %v4327 = vsel %vm4305, %v4262, %v2331
  %v4328 = vsel %vm4305, %v4263, %v2333
  %v4329 = vsel %vm4305, %v4264, %v2335
  %v4330 = vsel %vm4305, %v4265, %v2337
  %v4331 = vsel %vm4305, %v4266, %v2339
  %v4332 = vsel %vm4305, %v4267, %v2341
  %v4333 = vsel %vm4305, %v4268, %v2343
  %v4334 = vsel %vm4305, %v4269, %v2345
  %v4335 = vsel %vm4305, %v4270, %v2347
  %v4336 = vsel %vm4305, %v4271, %v2349
  %v4337 = vsel %vm4305, %v4272, %v2351
  %v4338 = vsel %vm4305, %v4273, %v2353
  %v4339 = vsel %vm4305, %v4274, %v2355
  %v4340 = vsel %vm4305, %v4275, %v2357
  %v4341 = vsel %vm4305, %v4276, %v2359
  %v4342 = vsel %vm4305, %v4277, %v2361
  %v4343 = vsel %vm4305, %v4278, %v2363
  %v4344 = vsel %vm4305, %v4279, %v2365
  %v4345 = vsel %vm4305, %v4280, %v2367
  %v4346 = vsel %vm4305, %v4281, %v2369
  %v4347 = vsel %vm4305, %v4282, %v2371
  %v4348 = vsel %vm4305, %v4283, %v2373
  %v4349 = vsel %vm4305, %v4284, %v2375
  %v4350 = vsel %vm4305, %v4285, %v2377
  %v4351 = vsel %vm4305, %v4286, %v2379
  %v4352 = vsel %vm4305, %v4287, %v2381
  %v4353 = vsel %vm4305, %v4288, %v2383
  %v4354 = vsel %vm4305, %v4289, %v2385
  %v4355 = vsel %vm4305, %v4290, %v2387
  %v4356 = vsel %vm4305, %v4291, %v2389
  %v4357 = vsel %vm4305, %v4292, %v2391
  %v4358 = vsel %vm4305, %v4293, %v2393
  %v4359 = vsel %vm4305, %v4294, %v2395
  %v4360 = vsel %vm4305, %v4295, %v2397
  %v4361 = vsel %vm4305, %v4296, %v2399
  %v4362 = vsel %vm4305, %v4297, %v2401
  %v4363 = vsel %vm4305, %v4298, %v2403
  %v4364 = vsel %vm4305, %v4299, %v2405
  %v4365 = vsel %vm4305, %v4300, %v2407
  %v4366 = vsel %vm4305, %v4301, %v2409
  %v4367 = vsel %vm4305, %v4302, %v2411
  %v4368 = vsel %vm4305, %v4303, %v2413
  %v4369 = vsel %vm4305, %v4304, %v2415
  %vm4370 = vcmask 588800
  %v4371 = vsel %vm4370, %v4306, %v2489
  %v4372 = vsel %vm4370, %v4307, %v2491
  %v4373 = vsel %vm4370, %v4308, %v2493
  %v4374 = vsel %vm4370, %v4309, %v2495
  %v4375 = vsel %vm4370, %v4310, %v2497
  %v4376 = vsel %vm4370, %v4311, %v2499
  %v4377 = vsel %vm4370, %v4312, %v2501
  %v4378 = vsel %vm4370, %v4313, %v2503
  %v4379 = vsel %vm4370, %v4314, %v2505
  %v4380 = vsel %vm4370, %v4315, %v2507
  %v4381 = vsel %vm4370, %v4316, %v2509
  %v4382 = vsel %vm4370, %v4317, %v2511
  %v4383 = vsel %vm4370, %v4318, %v2513
  %v4384 = vsel %vm4370, %v4319, %v2515
  %v4385 = vsel %vm4370, %v4320, %v2517
  %v4386 = vsel %vm4370, %v4321, %v2519
  %v4387 = vsel %vm4370, %v4322, %v2521
  %v4388 = vsel %vm4370, %v4323, %v2523
  %v4389 = vsel %vm4370, %v4324, %v2525
  %v4390 = vsel %vm4370, %v4325, %v2527
  %v4391 = vsel %vm4370, %v4326, %v2529
  %v4392 = vsel %vm4370, %v4327, %v2531
  %v4393 = vsel %vm4370, %v4328, %v2533
  %v4394 = vsel %vm4370, %v4329, %v2535
  %v4395 = vsel %vm4370, %v4330, %v2537
  %v4396 = vsel %vm4370, %v4331, %v2539
  %v4397 = vsel %vm4370, %v4332, %v2541
  %v4398 = vsel %vm4370, %v4333, %v2543
  %v4399 = vsel %vm4370, %v4334, %v2545
  %v4400 = vsel %vm4370, %v4335, %v2547
  %v4401 = vsel %vm4370, %v4336, %v2549
  %v4402 = vsel %vm4370, %v4337, %v2551
  %v4403 = vsel %vm4370, %v4338, %v2553
  %v4404 = vsel %vm4370, %v4339, %v2555
  %v4405 = vsel %vm4370, %v4340, %v2557
  %v4406 = vsel %vm4370, %v4341, %v2559
  %v4407 = vsel %vm4370, %v4342, %v2561
  %v4408 = vsel %vm4370, %v4343, %v2563
  %v4409 = vsel %vm4370, %v4344, %v2565
  %v4410 = vsel %vm4370, %v4345, %v2567
  %v4411 = vsel %vm4370, %v4346, %v2569
  %v4412 = vsel %vm4370, %v4347, %v2571
  %v4413 = vsel %vm4370, %v4348, %v2573
  %v4414 = vsel %vm4370, %v4349, %v2575
  %v4415 = vsel %vm4370, %v4350, %v2577
  %v4416 = vsel %vm4370, %v4351, %v2579
  %v4417 = vsel %vm4370, %v4352, %v2581
  %v4418 = vsel %vm4370, %v4353, %v2583
  %v4419 = vsel %vm4370, %v4354, %v2585
  %v4420 = vsel %vm4370, %v4355, %v2587
  %v4421 = vsel %vm4370, %v4356, %v2589
  %v4422 = vsel %vm4370, %v4357, %v2591
  %v4423 = vsel %vm4370, %v4358, %v2593
  %v4424 = vsel %vm4370, %v4359, %v2595
  %v4425 = vsel %vm4370, %v4360, %v2597
  %v4426 = vsel %vm4370, %v4361, %v2599
  %v4427 = vsel %vm4370, %v4362, %v2601
  %v4428 = vsel %vm4370, %v4363, %v2603
  %v4429 = vsel %vm4370, %v4364, %v2605
  %v4430 = vsel %vm4370, %v4365, %v2607
  %v4431 = vsel %vm4370, %v4366, %v2609
  %v4432 = vsel %vm4370, %v4367, %v2611
  %v4433 = vsel %vm4370, %v4368, %v2613
  %v4434 = vsel %vm4370, %v4369, %v2615
  %vm4435 = vcmask 654336
  %v4436 = vsel %vm4435, %v4371, %v2682
  %v4437 = vsel %vm4435, %v4372, %v2684
  %v4438 = vsel %vm4435, %v4373, %v2686
  %v4439 = vsel %vm4435, %v4374, %v2688
  %v4440 = vsel %vm4435, %v4375, %v2690
  %v4441 = vsel %vm4435, %v4376, %v2692
  %v4442 = vsel %vm4435, %v4377, %v2694
  %v4443 = vsel %vm4435, %v4378, %v2696
  %v4444 = vsel %vm4435, %v4379, %v2698
  %v4445 = vsel %vm4435, %v4380, %v2700
  %v4446 = vsel %vm4435, %v4381, %v2702
  %v4447 = vsel %vm4435, %v4382, %v2704
  %v4448 = vsel %vm4435, %v4383, %v2706
  %v4449 = vsel %vm4435, %v4384, %v2708
  %v4450 = vsel %vm4435, %v4385, %v2710
  %v4451 = vsel %vm4435, %v4386, %v2712
  %v4452 = vsel %vm4435, %v4387, %v2714
  %v4453 = vsel %vm4435, %v4388, %v2716
  %v4454 = vsel %vm4435, %v4389, %v2718
  %v4455 = vsel %vm4435, %v4390, %v2720
  %v4456 = vsel %vm4435, %v4391, %v2722
  %v4457 = vsel %vm4435, %v4392, %v2724
  %v4458 = vsel %vm4435, %v4393, %v2726
  %v4459 = vsel %vm4435, %v4394, %v2728
  %v4460 = vsel %vm4435, %v4395, %v2730
  %v4461 = vsel %vm4435, %v4396, %v2732
  %v4462 = vsel %vm4435, %v4397, %v2734
  %v4463 = vsel %vm4435, %v4398, %v2736
  %v4464 = vsel %vm4435, %v4399, %v2738
  %v4465 = vsel %vm4435, %v4400, %v2740
  %v4466 = vsel %vm4435, %v4401, %v2742
  %v4467 = vsel %vm4435, %v4402, %v2744
  %v4468 = vsel %vm4435, %v4403, %v2746
  %v4469 = vsel %vm4435, %v4404, %v2748
  %v4470 = vsel %vm4435, %v4405, %v2750
  %v4471 = vsel %vm4435, %v4406, %v2752
  %v4472 = vsel %vm4435, %v4407, %v2754
  %v4473 = vsel %vm4435, %v4408, %v2756
  %v4474 = vsel %vm4435, %v4409, %v2758
  %v4475 = vsel %vm4435, %v4410, %v2760
  %v4476 = vsel %vm4435, %v4411, %v2762
  %v4477 = vsel %vm4435, %v4412, %v2764
  %v4478 = vsel %vm4435, %v4413, %v2766
  %v4479 = vsel %vm4435, %v4414, %v2768
  %v4480 = vsel %vm4435, %v4415, %v2770
  %v4481 = vsel %vm4435, %v4416, %v2772
  %v4482 = vsel %vm4435, %v4417, %v2774
  %v4483 = vsel %vm4435, %v4418, %v2776
  %v4484 = vsel %vm4435, %v4419, %v2778
  %v4485 = vsel %vm4435, %v4420, %v2780
  %v4486 = vsel %vm4435, %v4421, %v2782
  %v4487 = vsel %vm4435, %v4422, %v2784
  %v4488 = vsel %vm4435, %v4423, %v2786
  %v4489 = vsel %vm4435, %v4424, %v2788
  %v4490 = vsel %vm4435, %v4425, %v2790
  %v4491 = vsel %vm4435, %v4426, %v2792
  %v4492 = vsel %vm4435, %v4427, %v2794
  %v4493 = vsel %vm4435, %v4428, %v2796
  %v4494 = vsel %vm4435, %v4429, %v2798
  %v4495 = vsel %vm4435, %v4430, %v2800
  %v4496 = vsel %vm4435, %v4431, %v2802
  %v4497 = vsel %vm4435, %v4432, %v2804
  %v4498 = vsel %vm4435, %v4433, %v2806
  %v4499 = vsel %vm4435, %v4434, %v2808
  %vm4500 = vcmask 719872
  %v4501 = vsel %vm4500, %v4436, %v2875
  %v4502 = vsel %vm4500, %v4437, %v2877
  %v4503 = vsel %vm4500, %v4438, %v2879
  %v4504 = vsel %vm4500, %v4439, %v2881
  %v4505 = vsel %vm4500, %v4440, %v2883
  %v4506 = vsel %vm4500, %v4441, %v2885
  %v4507 = vsel %vm4500, %v4442, %v2887
  %v4508 = vsel %vm4500, %v4443, %v2889
  %v4509 = vsel %vm4500, %v4444, %v2891
  %v4510 = vsel %vm4500, %v4445, %v2893
  %v4511 = vsel %vm4500, %v4446, %v2895
  %v4512 = vsel %vm4500, %v4447, %v2897
  %v4513 = vsel %vm4500, %v4448, %v2899
  %v4514 = vsel %vm4500, %v4449, %v2901
  %v4515 = vsel %vm4500, %v4450, %v2903
  %v4516 = vsel %vm4500, %v4451, %v2905
  %v4517 = vsel %vm4500, %v4452, %v2907
  %v4518 = vsel %vm4500, %v4453, %v2909
  %v4519 = vsel %vm4500, %v4454, %v2911
  %v4520 = vsel %vm4500, %v4455, %v2913
  %v4521 = vsel %vm4500, %v4456, %v2915
  %v4522 = vsel %vm4500, %v4457, %v2917
  %v4523 = vsel %vm4500, %v4458, %v2919
  %v4524 = vsel %vm4500, %v4459, %v2921
  %v4525 = vsel %vm4500, %v4460, %v2923
  %v4526 = vsel %vm4500, %v4461, %v2925
  %v4527 = vsel %vm4500, %v4462, %v2927
  %v4528 = vsel %vm4500, %v4463, %v2929
  %v4529 = vsel %vm4500, %v4464, %v2931
  %v4530 = vsel %vm4500, %v4465, %v2933
  %v4531 = vsel %vm4500, %v4466, %v2935
  %v4532 = vsel %vm4500, %v4467, %v2937
  %v4533 = vsel %vm4500, %v4468, %v2939
  %v4534 = vsel %vm4500, %v4469, %v2941
  %v4535 = vsel %vm4500, %v4470, %v2943
  %v4536 = vsel %vm4500, %v4471, %v2945
  %v4537 = vsel %vm4500, %v4472, %v2947
  %v4538 = vsel %vm4500, %v4473, %v2949
  %v4539 = vsel %vm4500, %v4474, %v2951
  %v4540 = vsel %vm4500, %v4475, %v2953
  %v4541 = vsel %vm4500, %v4476, %v2955
  %v4542 = vsel %vm4500, %v4477, %v2957
  %v4543 = vsel %vm4500, %v4478, %v2959
  %v4544 = vsel %vm4500, %v4479, %v2961
  %v4545 = vsel %vm4500, %v4480, %v2963
  %v4546 = vsel %vm4500, %v4481, %v2965
  %v4547 = vsel %vm4500, %v4482, %v2967
  %v4548 = vsel %vm4500, %v4483, %v2969
  %v4549 = vsel %vm4500, %v4484, %v2971
  %v4550 = vsel %vm4500, %v4485, %v2973
  %v4551 = vsel %vm4500, %v4486, %v2975
  %v4552 = vsel %vm4500, %v4487, %v2977
  %v4553 = vsel %vm4500, %v4488, %v2979
  %v4554 = vsel %vm4500, %v4489, %v2981
  %v4555 = vsel %vm4500, %v4490, %v2983
  %v4556 = vsel %vm4500, %v4491, %v2985
  %v4557 = vsel %vm4500, %v4492, %v2987
  %v4558 = vsel %vm4500, %v4493, %v2989
  %v4559 = vsel %vm4500, %v4494, %v2991
  %v4560 = vsel %vm4500, %v4495, %v2993
  %v4561 = vsel %vm4500, %v4496, %v2995
  %v4562 = vsel %vm4500, %v4497, %v2997
  %v4563 = vsel %vm4500, %v4498, %v2999
  %v4564 = vsel %vm4500, %v4499, %v3001
  %vm4565 = vcmask 785408
  %v4566 = vsel %vm4565, %v4501, %v3075
  %v4567 = vsel %vm4565, %v4502, %v3077
  %v4568 = vsel %vm4565, %v4503, %v3079
  %v4569 = vsel %vm4565, %v4504, %v3081
  %v4570 = vsel %vm4565, %v4505, %v3083
  %v4571 = vsel %vm4565, %v4506, %v3085
  %v4572 = vsel %vm4565, %v4507, %v3087
  %v4573 = vsel %vm4565, %v4508, %v3089
  %v4574 = vsel %vm4565, %v4509, %v3091
  %v4575 = vsel %vm4565, %v4510, %v3093
  %v4576 = vsel %vm4565, %v4511, %v3095
  %v4577 = vsel %vm4565, %v4512, %v3097
  %v4578 = vsel %vm4565, %v4513, %v3099
  %v4579 = vsel %vm4565, %v4514, %v3101
  %v4580 = vsel %vm4565, %v4515, %v3103
  %v4581 = vsel %vm4565, %v4516, %v3105
  %v4582 = vsel %vm4565, %v4517, %v3107
  %v4583 = vsel %vm4565, %v4518, %v3109
  %v4584 = vsel %vm4565, %v4519, %v3111
  %v4585 = vsel %vm4565, %v4520, %v3113
  %v4586 = vsel %vm4565, %v4521, %v3115
  %v4587 = vsel %vm4565, %v4522, %v3117
  %v4588 = vsel %vm4565, %v4523, %v3119
  %v4589 = vsel %vm4565, %v4524, %v3121
  %v4590 = vsel %vm4565, %v4525, %v3123
  %v4591 = vsel %vm4565, %v4526, %v3125
  %v4592 = vsel %vm4565, %v4527, %v3127
  %v4593 = vsel %vm4565, %v4528, %v3129
  %v4594 = vsel %vm4565, %v4529, %v3131
  %v4595 = vsel %vm4565, %v4530, %v3133
  %v4596 = vsel %vm4565, %v4531, %v3135
  %v4597 = vsel %vm4565, %v4532, %v3137
  %v4598 = vsel %vm4565, %v4533, %v3139
  %v4599 = vsel %vm4565, %v4534, %v3141
  %v4600 = vsel %vm4565, %v4535, %v3143
  %v4601 = vsel %vm4565, %v4536, %v3145
  %v4602 = vsel %vm4565, %v4537, %v3147
  %v4603 = vsel %vm4565, %v4538, %v3149
  %v4604 = vsel %vm4565, %v4539, %v3151
  %v4605 = vsel %vm4565, %v4540, %v3153
  %v4606 = vsel %vm4565, %v4541, %v3155
  %v4607 = vsel %vm4565, %v4542, %v3157
  %v4608 = vsel %vm4565, %v4543, %v3159
  %v4609 = vsel %vm4565, %v4544, %v3161
  %v4610 = vsel %vm4565, %v4545, %v3163
  %v4611 = vsel %vm4565, %v4546, %v3165
  %v4612 = vsel %vm4565, %v4547, %v3167
  %v4613 = vsel %vm4565, %v4548, %v3169
  %v4614 = vsel %vm4565, %v4549, %v3171
  %v4615 = vsel %vm4565, %v4550, %v3173
  %v4616 = vsel %vm4565, %v4551, %v3175
  %v4617 = vsel %vm4565, %v4552, %v3177
  %v4618 = vsel %vm4565, %v4553, %v3179
  %v4619 = vsel %vm4565, %v4554, %v3181
  %v4620 = vsel %vm4565, %v4555, %v3183
  %v4621 = vsel %vm4565, %v4556, %v3185
  %v4622 = vsel %vm4565, %v4557, %v3187
  %v4623 = vsel %vm4565, %v4558, %v3189
  %v4624 = vsel %vm4565, %v4559, %v3191
  %v4625 = vsel %vm4565, %v4560, %v3193
  %v4626 = vsel %vm4565, %v4561, %v3195
  %v4627 = vsel %vm4565, %v4562, %v3197
  %v4628 = vsel %vm4565, %v4563, %v3199
  %v4629 = vsel %vm4565, %v4564, %v3201
  %vm4630 = vcmask 850944
  %v4631 = vsel %vm4630, %v4566, %v3275
  %v4632 = vsel %vm4630, %v4567, %v3277
  %v4633 = vsel %vm4630, %v4568, %v3279
  %v4634 = vsel %vm4630, %v4569, %v3281
  %v4635 = vsel %vm4630, %v4570, %v3283
  %v4636 = vsel %vm4630, %v4571, %v3285
  %v4637 = vsel %vm4630, %v4572, %v3287
  %v4638 = vsel %vm4630, %v4573, %v3289
  %v4639 = vsel %vm4630, %v4574, %v3291
  %v4640 = vsel %vm4630, %v4575, %v3293
  %v4641 = vsel %vm4630, %v4576, %v3295
  %v4642 = vsel %vm4630, %v4577, %v3297
  %v4643 = vsel %vm4630, %v4578, %v3299
  %v4644 = vsel %vm4630, %v4579, %v3301
  %v4645 = vsel %vm4630, %v4580, %v3303
  %v4646 = vsel %vm4630, %v4581, %v3305
  %v4647 = vsel %vm4630, %v4582, %v3307
  %v4648 = vsel %vm4630, %v4583, %v3309
  %v4649 = vsel %vm4630, %v4584, %v3311
  %v4650 = vsel %vm4630, %v4585, %v3313
  %v4651 = vsel %vm4630, %v4586, %v3315
  %v4652 = vsel %vm4630, %v4587, %v3317
  %v4653 = vsel %vm4630, %v4588, %v3319
  %v4654 = vsel %vm4630, %v4589, %v3321
  %v4655 = vsel %vm4630, %v4590, %v3323
  %v4656 = vsel %vm4630, %v4591, %v3325
  %v4657 = vsel %vm4630, %v4592, %v3327
  %v4658 = vsel %vm4630, %v4593, %v3329
  %v4659 = vsel %vm4630, %v4594, %v3331
  %v4660 = vsel %vm4630, %v4595, %v3333
  %v4661 = vsel %vm4630, %v4596, %v3335
  %v4662 = vsel %vm4630, %v4597, %v3337
  %v4663 = vsel %vm4630, %v4598, %v3339
  %v4664 = vsel %vm4630, %v4599, %v3341
  %v4665 = vsel %vm4630, %v4600, %v3343
  %v4666 = vsel %vm4630, %v4601, %v3345
  %v4667 = vsel %vm4630, %v4602, %v3347
  %v4668 = vsel %vm4630, %v4603, %v3349
  %v4669 = vsel %vm4630, %v4604, %v3351
  %v4670 = vsel %vm4630, %v4605, %v3353
  %v4671 = vsel %vm4630, %v4606, %v3355
  %v4672 = vsel %vm4630, %v4607, %v3357
  %v4673 = vsel %vm4630, %v4608, %v3359
  %v4674 = vsel %vm4630, %v4609, %v3361
  %v4675 = vsel %vm4630, %v4610, %v3363
  %v4676 = vsel %vm4630, %v4611, %v3365
  %v4677 = vsel %vm4630, %v4612, %v3367
  %v4678 = vsel %vm4630, %v4613, %v3369
  %v4679 = vsel %vm4630, %v4614, %v3371
  %v4680 = vsel %vm4630, %v4615, %v3373
  %v4681 = vsel %vm4630, %v4616, %v3375
  %v4682 = vsel %vm4630, %v4617, %v3377
  %v4683 = vsel %vm4630, %v4618, %v3379
  %v4684 = vsel %vm4630, %v4619, %v3381
  %v4685 = vsel %vm4630, %v4620, %v3383
  %v4686 = vsel %vm4630, %v4621, %v3385
  %v4687 = vsel %vm4630, %v4622, %v3387
  %v4688 = vsel %vm4630, %v4623, %v3389
  %v4689 = vsel %vm4630, %v4624, %v3391
  %v4690 = vsel %vm4630, %v4625, %v3393
  %v4691 = vsel %vm4630, %v4626, %v3395
  %v4692 = vsel %vm4630, %v4627, %v3397
  %v4693 = vsel %vm4630, %v4628, %v3399
  %v4694 = vsel %vm4630, %v4629, %v3401
  %vm4695 = vcmask 916480
  %v4696 = vsel %vm4695, %v4631, %v3468
  %v4697 = vsel %vm4695, %v4632, %v3470
  %v4698 = vsel %vm4695, %v4633, %v3472
  %v4699 = vsel %vm4695, %v4634, %v3474
  %v4700 = vsel %vm4695, %v4635, %v3476
  %v4701 = vsel %vm4695, %v4636, %v3478
  %v4702 = vsel %vm4695, %v4637, %v3480
  %v4703 = vsel %vm4695, %v4638, %v3482
  %v4704 = vsel %vm4695, %v4639, %v3484
  %v4705 = vsel %vm4695, %v4640, %v3486
  %v4706 = vsel %vm4695, %v4641, %v3488
  %v4707 = vsel %vm4695, %v4642, %v3490
  %v4708 = vsel %vm4695, %v4643, %v3492
  %v4709 = vsel %vm4695, %v4644, %v3494
  %v4710 = vsel %vm4695, %v4645, %v3496
  %v4711 = vsel %vm4695, %v4646, %v3498
  %v4712 = vsel %vm4695, %v4647, %v3500
  %v4713 = vsel %vm4695, %v4648, %v3502
  %v4714 = vsel %vm4695, %v4649, %v3504
  %v4715 = vsel %vm4695, %v4650, %v3506
  %v4716 = vsel %vm4695, %v4651, %v3508
  %v4717 = vsel %vm4695, %v4652, %v3510
  %v4718 = vsel %vm4695, %v4653, %v3512
  %v4719 = vsel %vm4695, %v4654, %v3514
  %v4720 = vsel %vm4695, %v4655, %v3516
  %v4721 = vsel %vm4695, %v4656, %v3518
  %v4722 = vsel %vm4695, %v4657, %v3520
  %v4723 = vsel %vm4695, %v4658, %v3522
  %v4724 = vsel %vm4695, %v4659, %v3524
  %v4725 = vsel %vm4695, %v4660, %v3526
  %v4726 = vsel %vm4695, %v4661, %v3528
  %v4727 = vsel %vm4695, %v4662, %v3530
  %v4728 = vsel %vm4695, %v4663, %v3532
  %v4729 = vsel %vm4695, %v4664, %v3534
  %v4730 = vsel %vm4695, %v4665, %v3536
  %v4731 = vsel %vm4695, %v4666, %v3538
  %v4732 = vsel %vm4695, %v4667, %v3540
  %v4733 = vsel %vm4695, %v4668, %v3542
  %v4734 = vsel %vm4695, %v4669, %v3544
  %v4735 = vsel %vm4695, %v4670, %v3546
  %v4736 = vsel %vm4695, %v4671, %v3548
  %v4737 = vsel %vm4695, %v4672, %v3550
  %v4738 = vsel %vm4695, %v4673, %v3552
  %v4739 = vsel %vm4695, %v4674, %v3554
  %v4740 = vsel %vm4695, %v4675, %v3556
  %v4741 = vsel %vm4695, %v4676, %v3558
  %v4742 = vsel %vm4695, %v4677, %v3560
  %v4743 = vsel %vm4695, %v4678, %v3562
  %v4744 = vsel %vm4695, %v4679, %v3564
  %v4745 = vsel %vm4695, %v4680, %v3566
  %v4746 = vsel %vm4695, %v4681, %v3568
  %v4747 = vsel %vm4695, %v4682, %v3570
  %v4748 = vsel %vm4695, %v4683, %v3572
  %v4749 = vsel %vm4695, %v4684, %v3574
  %v4750 = vsel %vm4695, %v4685, %v3576
  %v4751 = vsel %vm4695, %v4686, %v3578
  %v4752 = vsel %vm4695, %v4687, %v3580
  %v4753 = vsel %vm4695, %v4688, %v3582
  %v4754 = vsel %vm4695, %v4689, %v3584
  %v4755 = vsel %vm4695, %v4690, %v3586
  %v4756 = vsel %vm4695, %v4691, %v3588
  %v4757 = vsel %vm4695, %v4692, %v3590
  %v4758 = vsel %vm4695, %v4693, %v3592
  %v4759 = vsel %vm4695, %v4694, %v3594
  %vm4760 = vcmask 982016
  %v4761 = vsel %vm4760, %v4696, %v3661
  %v4762 = vsel %vm4760, %v4697, %v3663
  %v4763 = vsel %vm4760, %v4698, %v3665
  %v4764 = vsel %vm4760, %v4699, %v3667
  %v4765 = vsel %vm4760, %v4700, %v3669
  %v4766 = vsel %vm4760, %v4701, %v3671
  %v4767 = vsel %vm4760, %v4702, %v3673
  %v4768 = vsel %vm4760, %v4703, %v3675
  %v4769 = vsel %vm4760, %v4704, %v3677
  %v4770 = vsel %vm4760, %v4705, %v3679
  %v4771 = vsel %vm4760, %v4706, %v3681
  %v4772 = vsel %vm4760, %v4707, %v3683
  %v4773 = vsel %vm4760, %v4708, %v3685
  %v4774 = vsel %vm4760, %v4709, %v3687
  %v4775 = vsel %vm4760, %v4710, %v3689
  %v4776 = vsel %vm4760, %v4711, %v3691
  %v4777 = vsel %vm4760, %v4712, %v3693
  %v4778 = vsel %vm4760, %v4713, %v3695
  %v4779 = vsel %vm4760, %v4714, %v3697
  %v4780 = vsel %vm4760, %v4715, %v3699
  %v4781 = vsel %vm4760, %v4716, %v3701
  %v4782 = vsel %vm4760, %v4717, %v3703
  %v4783 = vsel %vm4760, %v4718, %v3705
  %v4784 = vsel %vm4760, %v4719, %v3707
  %v4785 = vsel %vm4760, %v4720, %v3709
  %v4786 = vsel %vm4760, %v4721, %v3711
  %v4787 = vsel %vm4760, %v4722, %v3713
  %v4788 = vsel %vm4760, %v4723, %v3715
  %v4789 = vsel %vm4760, %v4724, %v3717
  %v4790 = vsel %vm4760, %v4725, %v3719
  %v4791 = vsel %vm4760, %v4726, %v3721
  %v4792 = vsel %vm4760, %v4727, %v3723
  %v4793 = vsel %vm4760, %v4728, %v3725
  %v4794 = vsel %vm4760, %v4729, %v3727
  %v4795 = vsel %vm4760, %v4730, %v3729
  %v4796 = vsel %vm4760, %v4731, %v3731
  %v4797 = vsel %vm4760, %v4732, %v3733
  %v4798 = vsel %vm4760, %v4733, %v3735
  %v4799 = vsel %vm4760, %v4734, %v3737
  %v4800 = vsel %vm4760, %v4735, %v3739
  %v4801 = vsel %vm4760, %v4736, %v3741
  %v4802 = vsel %vm4760, %v4737, %v3743
  %v4803 = vsel %vm4760, %v4738, %v3745
  %v4804 = vsel %vm4760, %v4739, %v3747
  %v4805 = vsel %vm4760, %v4740, %v3749
  %v4806 = vsel %vm4760, %v4741, %v3751
  %v4807 = vsel %vm4760, %v4742, %v3753
  %v4808 = vsel %vm4760, %v4743, %v3755
  %v4809 = vsel %vm4760, %v4744, %v3757
  %v4810 = vsel %vm4760, %v4745, %v3759
  %v4811 = vsel %vm4760, %v4746, %v3761
  %v4812 = vsel %vm4760, %v4747, %v3763
  %v4813 = vsel %vm4760, %v4748, %v3765
  %v4814 = vsel %vm4760, %v4749, %v3767
  %v4815 = vsel %vm4760, %v4750, %v3769
  %v4816 = vsel %vm4760, %v4751, %v3771
  %v4817 = vsel %vm4760, %v4752, %v3773
  %v4818 = vsel %vm4760, %v4753, %v3775
  %v4819 = vsel %vm4760, %v4754, %v3777
  %v4820 = vsel %vm4760, %v4755, %v3779
  %v4821 = vsel %vm4760, %v4756, %v3781
  %v4822 = vsel %vm4760, %v4757, %v3783
  %v4823 = vsel %vm4760, %v4758, %v3785
  %v4824 = vsel %vm4760, %v4759, %v3787
  %v4825 = vpack.c.bf16 %v4762, %v4761
  %v4826 = vpack.c.bf16 %v4764, %v4763
  %v4827 = vpack.c.bf16 %v4766, %v4765
  %v4828 = vpack.c.bf16 %v4768, %v4767
  %v4829 = vpack.c.bf16 %v4770, %v4769
  %v4830 = vpack.c.bf16 %v4772, %v4771
  %v4831 = vpack.c.bf16 %v4774, %v4773
  %v4832 = vpack.c.bf16 %v4776, %v4775
  %v4833 = vpack.c.bf16 %v4778, %v4777
  %v4834 = vpack.c.bf16 %v4780, %v4779
  %v4835 = vpack.c.bf16 %v4782, %v4781
  %v4836 = vpack.c.bf16 %v4784, %v4783
  %v4837 = vpack.c.bf16 %v4786, %v4785
  %v4838 = vpack.c.bf16 %v4788, %v4787
  %v4839 = vpack.c.bf16 %v4790, %v4789
  %v4840 = vpack.c.bf16 %v4792, %v4791
  %v4841 = vpack.c.bf16 %v4794, %v4793
  %v4842 = vpack.c.bf16 %v4796, %v4795
  %v4843 = vpack.c.bf16 %v4798, %v4797
  %v4844 = vpack.c.bf16 %v4800, %v4799
  %v4845 = vpack.c.bf16 %v4802, %v4801
  %v4846 = vpack.c.bf16 %v4804, %v4803
  %v4847 = vpack.c.bf16 %v4806, %v4805
  %v4848 = vpack.c.bf16 %v4808, %v4807
  %v4849 = vpack.c.bf16 %v4810, %v4809
  %v4850 = vpack.c.bf16 %v4812, %v4811
  %v4851 = vpack.c.bf16 %v4814, %v4813
  %v4852 = vpack.c.bf16 %v4816, %v4815
  %v4853 = vpack.c.bf16 %v4818, %v4817
  %v4854 = vpack.c.bf16 %v4820, %v4819
  %v4855 = vpack.c.bf16 %v4822, %v4821
  %v4856 = vpack.c.bf16 %v4824, %v4823
  %v4857 = vlaneseq
  %v4858 = vshrl.u32 %v4857, 7
  %v4859 = vsub.s32 0, %v4858
  %v4860 = vrot.slane %v17, %v4859
  %v4877 = vunpack.c.l.b16 %v633
  %v4878 = vunpack.c.l.b16 %v634
  %v4879 = vunpack.c.l.b16 %v635
  %v4880 = vunpack.c.l.b16 %v636
  %v4881 = vunpack.c.l.b16 %v637
  %v4882 = vunpack.c.l.b16 %v638
  %v4883 = vunpack.c.l.b16 %v639
  %v4884 = vunpack.c.l.b16 %v640
  %v4885 = vunpack.c.l.b16 %v641
  %v4886 = vunpack.c.l.b16 %v642
  %v4887 = vunpack.c.l.b16 %v643
  %v4888 = vunpack.c.l.b16 %v644
  %v4889 = vunpack.c.l.b16 %v645
  %v4890 = vunpack.c.l.b16 %v646
  %v4891 = vunpack.c.l.b16 %v647
  %v4892 = vunpack.c.l.b16 %v648
  %v4893 = vpack.c.b16 %v4878, %v4877
  %v4894 = vpack.c.b16 %v4880, %v4879
  %v4895 = vpack.c.b16 %v4882, %v4881
  %v4896 = vpack.c.b16 %v4884, %v4883
  %v4897 = vpack.c.b16 %v4886, %v4885
  %v4898 = vpack.c.b16 %v4888, %v4887
  %v4899 = vpack.c.b16 %v4890, %v4889
  %v4900 = vpack.c.b16 %v4892, %v4891
  %4909 = vmatprep.subr.bf16.mxu0 0
  %4910 = vmatpush1.bf16.msra.mxu0 %v4893
  %4911 = vmatprep.subr.bf16.mxu0 0
  %4912 = vmatpush1.bf16.msra.mxu0 %v4894
  %4913 = vmatprep.subr.bf16.mxu0 0
  %4914 = vmatpush1.bf16.msra.mxu0 %v4895
  %4915 = vmatprep.subr.bf16.mxu0 0
  %4916 = vmatpush1.bf16.msra.mxu0 %v4896
  %4917 = vmatprep.subr.bf16.mxu0 0
  %4918 = vmatpush1.bf16.msra.mxu0 %v4897
  %4919 = vmatprep.subr.bf16.mxu0 0
  %4920 = vmatpush1.bf16.msra.mxu0 %v4898
  %4921 = vmatprep.subr.bf16.mxu0 0
  %4922 = vmatpush1.bf16.msra.mxu0 %v4899
  %4923 = vmatprep.subr.bf16.mxu0 0
  %4924 = vmatpush1.bf16.msra.mxu0 %v4900
  %4925 = vmatprep.subr.bf16.mxu0 0
  %4926 = vmatpush1.bf16.msra.mxu0 0
  %4927 = vmatprep.subr.bf16.mxu0 0
  %4928 = vmatpush1.bf16.msra.mxu0 0
  %4929 = vmatprep.subr.bf16.mxu0 0
  %4930 = vmatpush1.bf16.msra.mxu0 0
  %4931 = vmatprep.subr.bf16.mxu0 0
  %4932 = vmatpush1.bf16.msra.mxu0 0
  %4933 = vmatprep.subr.bf16.mxu0 0
  %4934 = vmatpush1.bf16.msra.mxu0 0
  %4935 = vmatprep.subr.bf16.mxu0 0
  %4936 = vmatpush1.bf16.msra.mxu0 0
  %4937 = vmatprep.subr.bf16.mxu0 0
  %4938 = vmatpush1.bf16.msra.mxu0 0
  %4939 = vmatprep.subr.bf16.mxu0 0
  %4940 = vmatpush1.bf16.msra.mxu0 0
  %4941 = vmatprep.mubr.bf16.mxu0 0
  %4942 = vmatmul.mubr.bf16.gmra.mrb[0].mxu0 %v4825
  %v4943 = vpop.f32.mrb[0].mxu0
  %v4944 = vadd.f32 %v4860, %v4943
  %v4945 = vpop.f32.mrb[0].mxu0
  %v4946 = vpop.f32.mrb[0].mxu0
  %v4947 = vadd.f32 %v4860, %v4946
  %v4948 = vpop.f32.mrb[0].mxu0
  %4949 = vmatprep.mubr.bf16.mxu0 0
  %4950 = vmatmul.mubr.bf16.gmra.mrb[0].mxu0 %v4826
  %v4951 = vpop.f32.mrb[0].mxu0
  %v4952 = vadd.f32 %v4860, %v4951
  %v4953 = vpop.f32.mrb[0].mxu0
  %v4954 = vpop.f32.mrb[0].mxu0
  %v4955 = vadd.f32 %v4860, %v4954
  %v4956 = vpop.f32.mrb[0].mxu0
  %4957 = vmatprep.mubr.bf16.mxu0 0
  %4958 = vmatmul.mubr.bf16.gmra.mrb[0].mxu0 %v4827
  %v4959 = vpop.f32.mrb[0].mxu0
  %v4960 = vadd.f32 %v4860, %v4959
  %v4961 = vpop.f32.mrb[0].mxu0
  %v4962 = vpop.f32.mrb[0].mxu0
  %v4963 = vadd.f32 %v4860, %v4962
  %v4964 = vpop.f32.mrb[0].mxu0
  %4965 = vmatprep.mubr.bf16.mxu0 0
  %4966 = vmatmul.mubr.bf16.gmra.mrb[0].mxu0 %v4828
  %v4967 = vpop.f32.mrb[0].mxu0
  %v4968 = vadd.f32 %v4860, %v4967
  %v4969 = vpop.f32.mrb[0].mxu0
  %v4970 = vpop.f32.mrb[0].mxu0
  %v4971 = vadd.f32 %v4860, %v4970
  %v4972 = vpop.f32.mrb[0].mxu0
  %4973 = vmatprep.mubr.bf16.mxu0 0
  %4974 = vmatmul.mubr.bf16.gmra.mrb[0].mxu0 %v4829
  %v4975 = vpop.f32.mrb[0].mxu0
  %v4976 = vadd.f32 %v4860, %v4975
  %v4977 = vpop.f32.mrb[0].mxu0
  %v4978 = vpop.f32.mrb[0].mxu0
  %v4979 = vadd.f32 %v4860, %v4978
  %v4980 = vpop.f32.mrb[0].mxu0
  %4981 = vmatprep.mubr.bf16.mxu0 0
  %4982 = vmatmul.mubr.bf16.gmra.mrb[0].mxu0 %v4830
  %v4983 = vpop.f32.mrb[0].mxu0
  %v4984 = vadd.f32 %v4860, %v4983
  %v4985 = vpop.f32.mrb[0].mxu0
  %v4986 = vpop.f32.mrb[0].mxu0
  %v4987 = vadd.f32 %v4860, %v4986
  %v4988 = vpop.f32.mrb[0].mxu0
  %4989 = vmatprep.mubr.bf16.mxu0 0
  %4990 = vmatmul.mubr.bf16.gmra.mrb[0].mxu0 %v4831
  %v4991 = vpop.f32.mrb[0].mxu0
  %v4992 = vadd.f32 %v4860, %v4991
  %v4993 = vpop.f32.mrb[0].mxu0
  %v4994 = vpop.f32.mrb[0].mxu0
  %v4995 = vadd.f32 %v4860, %v4994
  %v4996 = vpop.f32.mrb[0].mxu0
  %4997 = vmatprep.mubr.bf16.mxu0 0
  %4998 = vmatmul.mubr.bf16.gmra.mrb[0].mxu0 %v4832
  %v4999 = vpop.f32.mrb[0].mxu0
  %v5000 = vadd.f32 %v4860, %v4999
  %v5001 = vpop.f32.mrb[0].mxu0
  %v5002 = vpop.f32.mrb[0].mxu0
  %v5003 = vadd.f32 %v4860, %v5002
  %v5004 = vpop.f32.mrb[0].mxu0
  %5005 = vmatprep.mubr.bf16.mxu0 0
  %5006 = vmatmul.mubr.bf16.gmra.mrb[0].mxu0 %v4833
  %v5007 = vpop.f32.mrb[0].mxu0
  %v5008 = vadd.f32 %v4860, %v5007
  %v5009 = vpop.f32.mrb[0].mxu0
  %v5010 = vpop.f32.mrb[0].mxu0
  %v5011 = vadd.f32 %v4860, %v5010
  %v5012 = vpop.f32.mrb[0].mxu0
  %5013 = vmatprep.mubr.bf16.mxu0 0
  %5014 = vmatmul.mubr.bf16.gmra.mrb[0].mxu0 %v4834
  %v5015 = vpop.f32.mrb[0].mxu0
  %v5016 = vadd.f32 %v4860, %v5015
  %v5017 = vpop.f32.mrb[0].mxu0
  %v5018 = vpop.f32.mrb[0].mxu0
  %v5019 = vadd.f32 %v4860, %v5018
  %v5020 = vpop.f32.mrb[0].mxu0
  %5021 = vmatprep.mubr.bf16.mxu0 0
  %5022 = vmatmul.mubr.bf16.gmra.mrb[0].mxu0 %v4835
  %v5023 = vpop.f32.mrb[0].mxu0
  %v5024 = vadd.f32 %v4860, %v5023
  %v5025 = vpop.f32.mrb[0].mxu0
  %v5026 = vpop.f32.mrb[0].mxu0
  %v5027 = vadd.f32 %v4860, %v5026
  %v5028 = vpop.f32.mrb[0].mxu0
  %5029 = vmatprep.mubr.bf16.mxu0 0
  %5030 = vmatmul.mubr.bf16.gmra.mrb[0].mxu0 %v4836
  %v5031 = vpop.f32.mrb[0].mxu0
  %v5032 = vadd.f32 %v4860, %v5031
  %v5033 = vpop.f32.mrb[0].mxu0
  %v5034 = vpop.f32.mrb[0].mxu0
  %v5035 = vadd.f32 %v4860, %v5034
  %v5036 = vpop.f32.mrb[0].mxu0
  %5037 = vmatprep.mubr.bf16.mxu0 0
  %5038 = vmatmul.mubr.bf16.gmra.mrb[0].mxu0 %v4837
  %v5039 = vpop.f32.mrb[0].mxu0
  %v5040 = vadd.f32 %v4860, %v5039
  %v5041 = vpop.f32.mrb[0].mxu0
  %v5042 = vpop.f32.mrb[0].mxu0
  %v5043 = vadd.f32 %v4860, %v5042
  %v5044 = vpop.f32.mrb[0].mxu0
  %5045 = vmatprep.mubr.bf16.mxu0 0
  %5046 = vmatmul.mubr.bf16.gmra.mrb[0].mxu0 %v4838
  %v5047 = vpop.f32.mrb[0].mxu0
  %v5048 = vadd.f32 %v4860, %v5047
  %v5049 = vpop.f32.mrb[0].mxu0
  %v5050 = vpop.f32.mrb[0].mxu0
  %v5051 = vadd.f32 %v4860, %v5050
  %v5052 = vpop.f32.mrb[0].mxu0
  %5053 = vmatprep.mubr.bf16.mxu0 0
  %5054 = vmatmul.mubr.bf16.gmra.mrb[0].mxu0 %v4839
  %v5055 = vpop.f32.mrb[0].mxu0
  %v5056 = vadd.f32 %v4860, %v5055
  %v5057 = vpop.f32.mrb[0].mxu0
  %v5058 = vpop.f32.mrb[0].mxu0
  %v5059 = vadd.f32 %v4860, %v5058
  %v5060 = vpop.f32.mrb[0].mxu0
  %5061 = vmatprep.mubr.bf16.mxu0 0
  %5062 = vmatmul.mubr.bf16.gmra.mrb[0].mxu0 %v4840
  %v5063 = vpop.f32.mrb[0].mxu0
  %v5064 = vadd.f32 %v4860, %v5063
  %v5065 = vpop.f32.mrb[0].mxu0
  %v5066 = vpop.f32.mrb[0].mxu0
  %v5067 = vadd.f32 %v4860, %v5066
  %v5068 = vpop.f32.mrb[0].mxu0
  %5069 = vmatprep.mubr.bf16.mxu0 0
  %5070 = vmatmul.mubr.bf16.gmra.mrb[0].mxu0 %v4841
  %v5071 = vpop.f32.mrb[0].mxu0
  %v5072 = vadd.f32 %v4860, %v5071
  %v5073 = vpop.f32.mrb[0].mxu0
  %v5074 = vpop.f32.mrb[0].mxu0
  %v5075 = vadd.f32 %v4860, %v5074
  %v5076 = vpop.f32.mrb[0].mxu0
  %5077 = vmatprep.mubr.bf16.mxu0 0
  %5078 = vmatmul.mubr.bf16.gmra.mrb[0].mxu0 %v4842
  %v5079 = vpop.f32.mrb[0].mxu0
  %v5080 = vadd.f32 %v4860, %v5079
  %v5081 = vpop.f32.mrb[0].mxu0
  %v5082 = vpop.f32.mrb[0].mxu0
  %v5083 = vadd.f32 %v4860, %v5082
  %v5084 = vpop.f32.mrb[0].mxu0
  %5085 = vmatprep.mubr.bf16.mxu0 0
  %5086 = vmatmul.mubr.bf16.gmra.mrb[0].mxu0 %v4843
  %v5087 = vpop.f32.mrb[0].mxu0
  %v5088 = vadd.f32 %v4860, %v5087
  %v5089 = vpop.f32.mrb[0].mxu0
  %v5090 = vpop.f32.mrb[0].mxu0
  %v5091 = vadd.f32 %v4860, %v5090
  %v5092 = vpop.f32.mrb[0].mxu0
  %5093 = vmatprep.mubr.bf16.mxu0 0
  %5094 = vmatmul.mubr.bf16.gmra.mrb[0].mxu0 %v4844
  %v5095 = vpop.f32.mrb[0].mxu0
  %v5096 = vadd.f32 %v4860, %v5095
  %v5097 = vpop.f32.mrb[0].mxu0
  %v5098 = vpop.f32.mrb[0].mxu0
  %v5099 = vadd.f32 %v4860, %v5098
  %v5100 = vpop.f32.mrb[0].mxu0
  %5101 = vmatprep.mubr.bf16.mxu0 0
  %5102 = vmatmul.mubr.bf16.gmra.mrb[0].mxu0 %v4845
  %v5103 = vpop.f32.mrb[0].mxu0
  %v5104 = vadd.f32 %v4860, %v5103
  %v5105 = vpop.f32.mrb[0].mxu0
  %v5106 = vpop.f32.mrb[0].mxu0
  %v5107 = vadd.f32 %v4860, %v5106
  %v5108 = vpop.f32.mrb[0].mxu0
  %5109 = vmatprep.mubr.bf16.mxu0 0
  %5110 = vmatmul.mubr.bf16.gmra.mrb[0].mxu0 %v4846
  %v5111 = vpop.f32.mrb[0].mxu0
  %v5112 = vadd.f32 %v4860, %v5111
  %v5113 = vpop.f32.mrb[0].mxu0
  %v5114 = vpop.f32.mrb[0].mxu0
  %v5115 = vadd.f32 %v4860, %v5114
  %v5116 = vpop.f32.mrb[0].mxu0
  %5117 = vmatprep.mubr.bf16.mxu0 0
  %5118 = vmatmul.mubr.bf16.gmra.mrb[0].mxu0 %v4847
  %v5119 = vpop.f32.mrb[0].mxu0
  %v5120 = vadd.f32 %v4860, %v5119
  %v5121 = vpop.f32.mrb[0].mxu0
  %v5122 = vpop.f32.mrb[0].mxu0
  %v5123 = vadd.f32 %v4860, %v5122
  %v5124 = vpop.f32.mrb[0].mxu0
  %5125 = vmatprep.mubr.bf16.mxu0 0
  %5126 = vmatmul.mubr.bf16.gmra.mrb[0].mxu0 %v4848
  %v5127 = vpop.f32.mrb[0].mxu0
  %v5128 = vadd.f32 %v4860, %v5127
  %v5129 = vpop.f32.mrb[0].mxu0
  %v5130 = vpop.f32.mrb[0].mxu0
  %v5131 = vadd.f32 %v4860, %v5130
  %v5132 = vpop.f32.mrb[0].mxu0
  %5133 = vmatprep.mubr.bf16.mxu0 0
  %5134 = vmatmul.mubr.bf16.gmra.mrb[0].mxu0 %v4849
  %v5135 = vpop.f32.mrb[0].mxu0
  %v5136 = vadd.f32 %v4860, %v5135
  %v5137 = vpop.f32.mrb[0].mxu0
  %v5138 = vpop.f32.mrb[0].mxu0
  %v5139 = vadd.f32 %v4860, %v5138
  %v5140 = vpop.f32.mrb[0].mxu0
  %5141 = vmatprep.mubr.bf16.mxu0 0
  %5142 = vmatmul.mubr.bf16.gmra.mrb[0].mxu0 %v4850
  %v5143 = vpop.f32.mrb[0].mxu0
  %v5144 = vadd.f32 %v4860, %v5143
  %v5145 = vpop.f32.mrb[0].mxu0
  %v5146 = vpop.f32.mrb[0].mxu0
  %v5147 = vadd.f32 %v4860, %v5146
  %v5148 = vpop.f32.mrb[0].mxu0
  %5149 = vmatprep.mubr.bf16.mxu0 0
  %5150 = vmatmul.mubr.bf16.gmra.mrb[0].mxu0 %v4851
  %v5151 = vpop.f32.mrb[0].mxu0
  %v5152 = vadd.f32 %v4860, %v5151
  %v5153 = vpop.f32.mrb[0].mxu0
  %v5154 = vpop.f32.mrb[0].mxu0
  %v5155 = vadd.f32 %v4860, %v5154
  %v5156 = vpop.f32.mrb[0].mxu0
  %5157 = vmatprep.mubr.bf16.mxu0 0
  %5158 = vmatmul.mubr.bf16.gmra.mrb[0].mxu0 %v4852
  %v5159 = vpop.f32.mrb[0].mxu0
  %v5160 = vadd.f32 %v4860, %v5159
  %v5161 = vpop.f32.mrb[0].mxu0
  %v5162 = vpop.f32.mrb[0].mxu0
  %v5163 = vadd.f32 %v4860, %v5162
  %v5164 = vpop.f32.mrb[0].mxu0
  %5165 = vmatprep.mubr.bf16.mxu0 0
  %5166 = vmatmul.mubr.bf16.gmra.mrb[0].mxu0 %v4853
  %v5167 = vpop.f32.mrb[0].mxu0
  %v5168 = vadd.f32 %v4860, %v5167
  %v5169 = vpop.f32.mrb[0].mxu0
  %v5170 = vpop.f32.mrb[0].mxu0
  %v5171 = vadd.f32 %v4860, %v5170
  %v5172 = vpop.f32.mrb[0].mxu0
  %5173 = vmatprep.mubr.bf16.mxu0 0
  %5174 = vmatmul.mubr.bf16.gmra.mrb[0].mxu0 %v4854
  %v5175 = vpop.f32.mrb[0].mxu0
  %v5176 = vadd.f32 %v4860, %v5175
  %v5177 = vpop.f32.mrb[0].mxu0
  %v5178 = vpop.f32.mrb[0].mxu0
  %v5179 = vadd.f32 %v4860, %v5178
  %v5180 = vpop.f32.mrb[0].mxu0
  %5181 = vmatprep.mubr.bf16.mxu0 0
  %5182 = vmatmul.mubr.bf16.gmra.mrb[0].mxu0 %v4855
  %v5183 = vpop.f32.mrb[0].mxu0
  %v5184 = vadd.f32 %v4860, %v5183
  %v5185 = vpop.f32.mrb[0].mxu0
  %v5186 = vpop.f32.mrb[0].mxu0
  %v5187 = vadd.f32 %v4860, %v5186
  %v5188 = vpop.f32.mrb[0].mxu0
  %5189 = vmatprep.mubr.bf16.mxu0 0
  %5190 = vmatmul.mubr.bf16.gmra.mrb[0].mxu0 %v4856
  %v5191 = vpop.f32.mrb[0].mxu0
  %v5192 = vadd.f32 %v4860, %v5191
  %v5193 = vpop.f32.mrb[0].mxu0
  %v5194 = vpop.f32.mrb[0].mxu0
  %v5195 = vadd.f32 %v4860, %v5194
  %v5196 = vpop.f32.mrb[0].mxu0
  %5197 = vdwg.mxu0
  %v5198 = vmax.f32 %v4944, 0.0
  %v5199 = vmax.f32 %v4947, 0.0
  %v5200 = vmax.f32 %v4952, 0.0
  %v5201 = vmax.f32 %v4955, 0.0
  %v5202 = vmax.f32 %v4960, 0.0
  %v5203 = vmax.f32 %v4963, 0.0
  %v5204 = vmax.f32 %v4968, 0.0
  %v5205 = vmax.f32 %v4971, 0.0
  %v5206 = vmax.f32 %v4976, 0.0
  %v5207 = vmax.f32 %v4979, 0.0
  %v5208 = vmax.f32 %v4984, 0.0
  %v5209 = vmax.f32 %v4987, 0.0
  %v5210 = vmax.f32 %v4992, 0.0
  %v5211 = vmax.f32 %v4995, 0.0
  %v5212 = vmax.f32 %v5000, 0.0
  %v5213 = vmax.f32 %v5003, 0.0
  %v5214 = vmax.f32 %v5008, 0.0
  %v5215 = vmax.f32 %v5011, 0.0
  %v5216 = vmax.f32 %v5016, 0.0
  %v5217 = vmax.f32 %v5019, 0.0
  %v5218 = vmax.f32 %v5024, 0.0
  %v5219 = vmax.f32 %v5027, 0.0
  %v5220 = vmax.f32 %v5032, 0.0
  %v5221 = vmax.f32 %v5035, 0.0
  %v5222 = vmax.f32 %v5040, 0.0
  %v5223 = vmax.f32 %v5043, 0.0
  %v5224 = vmax.f32 %v5048, 0.0
  %v5225 = vmax.f32 %v5051, 0.0
  %v5226 = vmax.f32 %v5056, 0.0
  %v5227 = vmax.f32 %v5059, 0.0
  %v5228 = vmax.f32 %v5064, 0.0
  %v5229 = vmax.f32 %v5067, 0.0
  %v5230 = vmax.f32 %v5072, 0.0
  %v5231 = vmax.f32 %v5075, 0.0
  %v5232 = vmax.f32 %v5080, 0.0
  %v5233 = vmax.f32 %v5083, 0.0
  %v5234 = vmax.f32 %v5088, 0.0
  %v5235 = vmax.f32 %v5091, 0.0
  %v5236 = vmax.f32 %v5096, 0.0
  %v5237 = vmax.f32 %v5099, 0.0
  %v5238 = vmax.f32 %v5104, 0.0
  %v5239 = vmax.f32 %v5107, 0.0
  %v5240 = vmax.f32 %v5112, 0.0
  %v5241 = vmax.f32 %v5115, 0.0
  %v5242 = vmax.f32 %v5120, 0.0
  %v5243 = vmax.f32 %v5123, 0.0
  %v5244 = vmax.f32 %v5128, 0.0
  %v5245 = vmax.f32 %v5131, 0.0
  %v5246 = vmax.f32 %v5136, 0.0
  %v5247 = vmax.f32 %v5139, 0.0
  %v5248 = vmax.f32 %v5144, 0.0
  %v5249 = vmax.f32 %v5147, 0.0
  %v5250 = vmax.f32 %v5152, 0.0
  %v5251 = vmax.f32 %v5155, 0.0
  %v5252 = vmax.f32 %v5160, 0.0
  %v5253 = vmax.f32 %v5163, 0.0
  %v5254 = vmax.f32 %v5168, 0.0
  %v5255 = vmax.f32 %v5171, 0.0
  %v5256 = vmax.f32 %v5176, 0.0
  %v5257 = vmax.f32 %v5179, 0.0
  %v5258 = vmax.f32 %v5184, 0.0
  %v5259 = vmax.f32 %v5187, 0.0
  %v5260 = vmax.f32 %v5192, 0.0
  %v5261 = vmax.f32 %v5195, 0.0
  %s5262 = scalar_lea.vmem [#allocation2], 88
  %5263 = vst.msk [vmem:[%s5262] sm:$0xff] %vm18, %v5198
  %5264 = vst.msk [vmem:[%s5262 + $0x8] sm:$0xff] %vm18, %v5199
  %5265 = vst.msk [vmem:[%s5262 + $0x10] sm:$0xff] %vm18, %v5200
  %5266 = vst.msk [vmem:[%s5262 + $0x18] sm:$0xff] %vm18, %v5201
  %5267 = vst.msk [vmem:[%s5262 + $0x20] sm:$0xff] %vm18, %v5202
  %5268 = vst.msk [vmem:[%s5262 + $0x28] sm:$0xff] %vm18, %v5203
  %5269 = vst.msk [vmem:[%s5262 + $0x30] sm:$0xff] %vm18, %v5204
  %5270 = vst.msk [vmem:[%s5262 + $0x38] sm:$0xff] %vm18, %v5205
  %5271 = vst.msk [vmem:[%s5262 + $0x50] sm:$0xff] %vm18, %v5206
  %5272 = vst.msk [vmem:[%s5262 + $0x58] sm:$0xff] %vm18, %v5207
  %5273 = vst.msk [vmem:[%s5262 + $0x60] sm:$0xff] %vm18, %v5208
  %5274 = vst.msk [vmem:[%s5262 + $0x68] sm:$0xff] %vm18, %v5209
  %5275 = vst.msk [vmem:[%s5262 + $0x70] sm:$0xff] %vm18, %v5210
  %5276 = vst.msk [vmem:[%s5262 + $0x78] sm:$0xff] %vm18, %v5211
  %5277 = vst.msk [vmem:[%s5262 + $0x80] sm:$0xff] %vm18, %v5212
  %5278 = vst.msk [vmem:[%s5262 + $0x88] sm:$0xff] %vm18, %v5213
  %5279 = vst.msk [vmem:[%s5262 + $0xa0] sm:$0xff] %vm18, %v5214
  %5280 = vst.msk [vmem:[%s5262 + $0xa8] sm:$0xff] %vm18, %v5215
  %5281 = vst.msk [vmem:[%s5262 + $0xb0] sm:$0xff] %vm18, %v5216
  %5282 = vst.msk [vmem:[%s5262 + $0xb8] sm:$0xff] %vm18, %v5217
  %5283 = vst.msk [vmem:[%s5262 + $0xc0] sm:$0xff] %vm18, %v5218
  %5284 = vst.msk [vmem:[%s5262 + $0xc8] sm:$0xff] %vm18, %v5219
  %5285 = vst.msk [vmem:[%s5262 + $0xd0] sm:$0xff] %vm18, %v5220
  %5286 = vst.msk [vmem:[%s5262 + $0xd8] sm:$0xff] %vm18, %v5221
  %5287 = vst.msk [vmem:[%s5262 + $0xf0] sm:$0xff] %vm18, %v5222
  %5288 = vst.msk [vmem:[%s5262 + $0xf8] sm:$0xff] %vm18, %v5223
  %5289 = vst.msk [vmem:[%s5262 + $0x100] sm:$0xff] %vm18, %v5224
  %5290 = vst.msk [vmem:[%s5262 + $0x108] sm:$0xff] %vm18, %v5225
  %5291 = vst.msk [vmem:[%s5262 + $0x110] sm:$0xff] %vm18, %v5226
  %5292 = vst.msk [vmem:[%s5262 + $0x118] sm:$0xff] %vm18, %v5227
  %5293 = vst.msk [vmem:[%s5262 + $0x120] sm:$0xff] %vm18, %v5228
  %5294 = vst.msk [vmem:[%s5262 + $0x128] sm:$0xff] %vm18, %v5229
  %5295 = vst.msk [vmem:[%s5262 + $0x140] sm:$0xff] %vm18, %v5230
  %5296 = vst.msk [vmem:[%s5262 + $0x148] sm:$0xff] %vm18, %v5231
  %5297 = vst.msk [vmem:[%s5262 + $0x150] sm:$0xff] %vm18, %v5232
  %5298 = vst.msk [vmem:[%s5262 + $0x158] sm:$0xff] %vm18, %v5233
  %5299 = vst.msk [vmem:[%s5262 + $0x160] sm:$0xff] %vm18, %v5234
  %5300 = vst.msk [vmem:[%s5262 + $0x168] sm:$0xff] %vm18, %v5235
  %5301 = vst.msk [vmem:[%s5262 + $0x170] sm:$0xff] %vm18, %v5236
  %5302 = vst.msk [vmem:[%s5262 + $0x178] sm:$0xff] %vm18, %v5237
  %5303 = vst.msk [vmem:[%s5262 + $0x190] sm:$0xff] %vm18, %v5238
  %5304 = vst.msk [vmem:[%s5262 + $0x198] sm:$0xff] %vm18, %v5239
  %5305 = vst.msk [vmem:[%s5262 + $0x1a0] sm:$0xff] %vm18, %v5240
  %5306 = vst.msk [vmem:[%s5262 + $0x1a8] sm:$0xff] %vm18, %v5241
  %5307 = vst.msk [vmem:[%s5262 + $0x1b0] sm:$0xff] %vm18, %v5242
  %5308 = vst.msk [vmem:[%s5262 + $0x1b8] sm:$0xff] %vm18, %v5243
  %5309 = vst.msk [vmem:[%s5262 + $0x1c0] sm:$0xff] %vm18, %v5244
  %5310 = vst.msk [vmem:[%s5262 + $0x1c8] sm:$0xff] %vm18, %v5245
  %5311 = vst.msk [vmem:[%s5262 + $0x1e0] sm:$0xff] %vm18, %v5246
  %5312 = vst.msk [vmem:[%s5262 + $0x1e8] sm:$0xff] %vm18, %v5247
  %5313 = vst.msk [vmem:[%s5262 + $0x1f0] sm:$0xff] %vm18, %v5248
  %5314 = vst.msk [vmem:[%s5262 + $0x1f8] sm:$0xff] %vm18, %v5249
  %5315 = vst.msk [vmem:[%s5262 + $0x200] sm:$0xff] %vm18, %v5250
  %5316 = vst.msk [vmem:[%s5262 + $0x208] sm:$0xff] %vm18, %v5251
  %5317 = vst.msk [vmem:[%s5262 + $0x210] sm:$0xff] %vm18, %v5252
  %5318 = vst.msk [vmem:[%s5262 + $0x218] sm:$0xff] %vm18, %v5253
  %5319 = vst.msk [vmem:[%s5262 + $0x230] sm:$0xff] %vm18, %v5254
  %5320 = vst.msk [vmem:[%s5262 + $0x238] sm:$0xff] %vm18, %v5255
  %5321 = vst.msk [vmem:[%s5262 + $0x240] sm:$0xff] %vm18, %v5256
  %5322 = vst.msk [vmem:[%s5262 + $0x248] sm:$0xff] %vm18, %v5257
  %5323 = vst.msk [vmem:[%s5262 + $0x250] sm:$0xff] %vm18, %v5258
  %5324 = vst.msk [vmem:[%s5262 + $0x258] sm:$0xff] %vm18, %v5259
  %5325 = vst.msk [vmem:[%s5262 + $0x260] sm:$0xff] %vm18, %v5260
  %5326 = vst.msk [vmem:[%s5262 + $0x268] sm:$0xff] %vm18, %v5261
  %v5327 = vld [vmem:[#allocation2] sm:$0xff]
  %v5328 = vld [vmem:[#allocation2 + $0x8] sm:$0xff]
  %v5329 = vld [vmem:[#allocation2 + $0x10] sm:$0xff]
  %v5330 = vld [vmem:[#allocation2 + $0x18] sm:$0xff]
  %v5331 = vld [vmem:[#allocation2 + $0x20] sm:$0xff]
  %v5332 = vld [vmem:[#allocation2 + $0x28] sm:$0xff]
  %v5333 = vld [vmem:[#allocation2 + $0x30] sm:$0xff]
  %v5334 = vld [vmem:[#allocation2 + $0x38] sm:$0xff]
  %v5335 = vld [vmem:[#allocation2 + $0x40] sm:$0xff]
  %v5336 = vld [vmem:[#allocation2 + $0x48] sm:$0xff]
  %v5337 = vld [vmem:[#allocation2 + $0x50] sm:$0xff]
  %v5338 = vld [vmem:[#allocation2 + $0x58] sm:$0xff]
  %v5339 = vld [vmem:[#allocation2 + $0x60] sm:$0xff]
  %v5340 = vld [vmem:[#allocation2 + $0x68] sm:$0xff]
  %v5341 = vld [vmem:[#allocation2 + $0x70] sm:$0xff]
  %v5342 = vld [vmem:[#allocation2 + $0x78] sm:$0xff]
  %v5343 = vld [vmem:[#allocation2 + $0x80] sm:$0xff]
  %v5344 = vld [vmem:[#allocation2 + $0x88] sm:$0xff]
  %v5345 = vld [vmem:[#allocation2 + $0x90] sm:$0xff]
  %v5346 = vld [vmem:[#allocation2 + $0x98] sm:$0xff]
  %v5347 = vld [vmem:[#allocation2 + $0xa0] sm:$0xff]
  %v5348 = vld [vmem:[#allocation2 + $0xa8] sm:$0xff]
  %v5349 = vld [vmem:[#allocation2 + $0xb0] sm:$0xff]
  %v5350 = vld [vmem:[#allocation2 + $0xb8] sm:$0xff]
  %v5351 = vld [vmem:[#allocation2 + $0xc0] sm:$0xff]
  %v5352 = vld [vmem:[#allocation2 + $0xc8] sm:$0xff]
  %v5353 = vld [vmem:[#allocation2 + $0xd0] sm:$0xff]
  %v5354 = vld [vmem:[#allocation2 + $0xd8] sm:$0xff]
  %v5355 = vld [vmem:[#allocation2 + $0xe0] sm:$0xff]
  %v5356 = vld [vmem:[#allocation2 + $0xe8] sm:$0xff]
  %v5357 = vld [vmem:[#allocation2 + $0xf0] sm:$0xff]
  %v5358 = vld [vmem:[#allocation2 + $0xf8] sm:$0xff]
  %v5359 = vld [vmem:[#allocation2 + $0x100] sm:$0xff]
  %v5360 = vld [vmem:[#allocation2 + $0x108] sm:$0xff]
  %v5361 = vld [vmem:[#allocation2 + $0x110] sm:$0xff]
  %v5362 = vld [vmem:[#allocation2 + $0x118] sm:$0xff]
  %v5363 = vld [vmem:[#allocation2 + $0x120] sm:$0xff]
  %v5364 = vld [vmem:[#allocation2 + $0x128] sm:$0xff]
  %v5365 = vld [vmem:[#allocation2 + $0x130] sm:$0xff]
  %v5366 = vld [vmem:[#allocation2 + $0x138] sm:$0xff]
  %v5367 = vld [vmem:[#allocation2 + $0x140] sm:$0xff]
  %v5368 = vld [vmem:[#allocation2 + $0x148] sm:$0xff]
  %v5369 = vld [vmem:[#allocation2 + $0x150] sm:$0xff]
  %v5370 = vld [vmem:[#allocation2 + $0x158] sm:$0xff]
  %v5371 = vld [vmem:[#allocation2 + $0x160] sm:$0xff]
  %v5372 = vld [vmem:[#allocation2 + $0x168] sm:$0xff]
  %v5373 = vld [vmem:[#allocation2 + $0x170] sm:$0xff]
  %v5374 = vld [vmem:[#allocation2 + $0x178] sm:$0xff]
  %v5375 = vld [vmem:[#allocation2 + $0x180] sm:$0xff]
  %v5376 = vld [vmem:[#allocation2 + $0x188] sm:$0xff]
  %v5377 = vld [vmem:[#allocation2 + $0x190] sm:$0xff]
  %v5378 = vld [vmem:[#allocation2 + $0x198] sm:$0xff]
  %v5379 = vld [vmem:[#allocation2 + $0x1a0] sm:$0xff]
  %v5380 = vld [vmem:[#allocation2 + $0x1a8] sm:$0xff]
  %v5381 = vld [vmem:[#allocation2 + $0x1b0] sm:$0xff]
  %v5382 = vld [vmem:[#allocation2 + $0x1b8] sm:$0xff]
  %v5383 = vld [vmem:[#allocation2 + $0x1c0] sm:$0xff]
  %v5384 = vld [vmem:[#allocation2 + $0x1c8] sm:$0xff]
  %v5385 = vld [vmem:[#allocation2 + $0x1d0] sm:$0xff]
  %v5386 = vld [vmem:[#allocation2 + $0x1d8] sm:$0xff]
  %v5387 = vld [vmem:[#allocation2 + $0x1e0] sm:$0xff]
  %v5388 = vld [vmem:[#allocation2 + $0x1e8] sm:$0xff]
  %v5389 = vld [vmem:[#allocation2 + $0x1f0] sm:$0xff]
  %v5390 = vld [vmem:[#allocation2 + $0x1f8] sm:$0xff]
  %v5391 = vld [vmem:[#allocation2 + $0x200] sm:$0xff]
  %v5392 = vld [vmem:[#allocation2 + $0x208] sm:$0xff]
  %v5393 = vld [vmem:[#allocation2 + $0x210] sm:$0xff]
  %v5394 = vld [vmem:[#allocation2 + $0x218] sm:$0xff]
  %v5395 = vld [vmem:[#allocation2 + $0x220] sm:$0xff]
  %v5396 = vld [vmem:[#allocation2 + $0x228] sm:$0xff]
  %v5397 = vld [vmem:[#allocation2 + $0x230] sm:$0xff]
  %v5398 = vld [vmem:[#allocation2 + $0x238] sm:$0xff]
  %v5399 = vld [vmem:[#allocation2 + $0x240] sm:$0xff]
  %v5400 = vld [vmem:[#allocation2 + $0x248] sm:$0xff]
  %v5401 = vld [vmem:[#allocation2 + $0x250] sm:$0xff]
  %v5402 = vld [vmem:[#allocation2 + $0x258] sm:$0xff]
  %v5403 = vld [vmem:[#allocation2 + $0x260] sm:$0xff]
  %v5404 = vld [vmem:[#allocation2 + $0x268] sm:$0xff]
  %v5405 = vld [vmem:[#allocation2 + $0x270] sm:$0xff]
  %v5406 = vld [vmem:[#allocation2 + $0x278] sm:$0xff]
  %v5407 = vld [vmem:[#allocation2 + $0x280] sm:$0xff]
  %v5408 = vld [vmem:[#allocation2 + $0x288] sm:$0xff]
  %v5409 = vld [vmem:[#allocation2 + $0x290] sm:$0xff]
  %v5410 = vld [vmem:[#allocation2 + $0x298] sm:$0xff]
  %v5411 = vld [vmem:[#allocation2 + $0x2a0] sm:$0xff]
  %v5412 = vld [vmem:[#allocation2 + $0x2a8] sm:$0xff]
  %v5413 = vld [vmem:[#allocation2 + $0x2b0] sm:$0xff]
  %v5414 = vld [vmem:[#allocation2 + $0x2b8] sm:$0xff]
  %v5415 = vld [vmem:[#allocation2 + $0x2c0] sm:$0xff]
  %v5416 = vld [vmem:[#allocation2 + $0x2c8] sm:$0xff]
  %v5417 = vld [vmem:[#allocation2 + $0x2d0] sm:$0xff]
  %v5418 = vld [vmem:[#allocation2 + $0x2d8] sm:$0xff]
  %v5419 = vld [vmem:[#allocation2 + $0x2e0] sm:$0xff]
  %v5420 = vld [vmem:[#allocation2 + $0x2e8] sm:$0xff]
  %v5421 = vld [vmem:[#allocation2 + $0x2f0] sm:$0xff]
  %v5422 = vld [vmem:[#allocation2 + $0x2f8] sm:$0xff]
  %v5423 = vld [vmem:[#allocation2 + $0x300] sm:$0xff]
  %v5424 = vld [vmem:[#allocation2 + $0x308] sm:$0xff]
  %v5425 = vld [vmem:[#allocation2 + $0x310] sm:$0xff]
  %v5426 = vld [vmem:[#allocation2 + $0x318] sm:$0xff]
  %v5427 = vld [vmem:[%s1 + $0x40] sm:$0xf]
  %v5428 = vld [vmem:[%s1 + $0x44] sm:$0xf]
  %v5429 = vld [vmem:[%s1 + $0x48] sm:$0xf]
  %v5430 = vld [vmem:[%s1 + $0x4c] sm:$0xf]
  %v5431 = vld [vmem:[%s1 + $0x50] sm:$0xf]
  %v5432 = vld [vmem:[%s1 + $0x54] sm:$0xf]
  %v5433 = vld [vmem:[%s1 + $0x58] sm:$0xf]
  %v5434 = vld [vmem:[%s1 + $0x5c] sm:$0xf]
  %v5435 = vld [vmem:[%s1 + $0x60] sm:$0xf]
  %v5436 = vld [vmem:[%s1 + $0x64] sm:$0xf]
  %v5437 = vld [vmem:[%s1 + $0x68] sm:$0xf]
  %v5438 = vld [vmem:[%s1 + $0x6c] sm:$0xf]
  %v5439 = vld [vmem:[%s1 + $0x70] sm:$0xf]
  %v5440 = vld [vmem:[%s1 + $0x74] sm:$0xf]
  %v5441 = vld [vmem:[%s1 + $0x78] sm:$0xf]
  %v5442 = vld [vmem:[%s1 + $0x7c] sm:$0xf]
  %v5443 = vld [vmem:[%s1 + $0x80] sm:$0xf]
  %v5444 = vld [vmem:[%s1 + $0x84] sm:$0xf]
  %v5445 = vld [vmem:[%s1 + $0x88] sm:$0xf]
  %v5446 = vld [vmem:[%s1 + $0x8c] sm:$0xf]
  %v5447 = vld [vmem:[%s1 + $0x90] sm:$0xf]
  %v5448 = vld [vmem:[%s1 + $0x94] sm:$0xf]
  %v5449 = vld [vmem:[%s1 + $0x98] sm:$0xf]
  %v5450 = vld [vmem:[%s1 + $0x9c] sm:$0xf]
  %5467 = vrot.lane.b32.xlu0 %v5328, 12
  %v5468 = vpop.permute.xlu0 %5467
  %5469 = vrot.lane.b32.xlu0 %v5330, 12
  %v5470 = vpop.permute.xlu0 %5469
  %5471 = vrot.lane.b32.xlu0 %v5332, 12
  %v5472 = vpop.permute.xlu0 %5471
  %5473 = vrot.lane.b32.xlu0 %v5334, 12
  %v5474 = vpop.permute.xlu0 %5473
  %5475 = vrot.lane.b32.xlu0 %v5348, 12
  %v5476 = vpop.permute.xlu0 %5475
  %5477 = vrot.lane.b32.xlu0 %v5350, 12
  %v5478 = vpop.permute.xlu0 %5477
  %5479 = vrot.lane.b32.xlu0 %v5352, 12
  %v5480 = vpop.permute.xlu0 %5479
  %5481 = vrot.lane.b32.xlu0 %v5354, 12
  %v5482 = vpop.permute.xlu0 %5481
  %5483 = vrot.lane.b32.xlu0 %v5368, 12
  %v5484 = vpop.permute.xlu0 %5483
  %5485 = vrot.lane.b32.xlu0 %v5370, 12
  %v5486 = vpop.permute.xlu0 %5485
  %5487 = vrot.lane.b32.xlu0 %v5372, 12
  %v5488 = vpop.permute.xlu0 %5487
  %5489 = vrot.lane.b32.xlu0 %v5374, 12
  %v5490 = vpop.permute.xlu0 %5489
  %5491 = vrot.lane.b32.xlu0 %v5388, 12
  %v5492 = vpop.permute.xlu0 %5491
  %5493 = vrot.lane.b32.xlu0 %v5390, 12
  %v5494 = vpop.permute.xlu0 %5493
  %5495 = vrot.lane.b32.xlu0 %v5392, 12
  %v5496 = vpop.permute.xlu0 %5495
  %5497 = vrot.lane.b32.xlu0 %v5394, 12
  %v5498 = vpop.permute.xlu0 %5497
  %5531 = vrot.lane.b32.xlu0 %v5329, 24
  %v5532 = vpop.permute.xlu0 %5531
  %5533 = vrot.lane.b32.xlu0 %v5331, 24
  %v5534 = vpop.permute.xlu0 %5533
  %5535 = vrot.lane.b32.xlu0 %v5333, 24
  %v5536 = vpop.permute.xlu0 %5535
  %5537 = vrot.lane.b32.xlu0 %v5335, 24
  %v5538 = vpop.permute.xlu0 %5537
  %5539 = vrot.lane.b32.xlu0 %v5349, 24
  %v5540 = vpop.permute.xlu0 %5539
  %5541 = vrot.lane.b32.xlu0 %v5351, 24
  %v5542 = vpop.permute.xlu0 %5541
  %5543 = vrot.lane.b32.xlu0 %v5353, 24
  %v5544 = vpop.permute.xlu0 %5543
  %5545 = vrot.lane.b32.xlu0 %v5355, 24
  %v5546 = vpop.permute.xlu0 %5545
  %5547 = vrot.lane.b32.xlu0 %v5369, 24
  %v5548 = vpop.permute.xlu0 %5547
  %5549 = vrot.lane.b32.xlu0 %v5371, 24
  %v5550 = vpop.permute.xlu0 %5549
  %5551 = vrot.lane.b32.xlu0 %v5373, 24
  %v5552 = vpop.permute.xlu0 %5551
  %5553 = vrot.lane.b32.xlu0 %v5375, 24
  %v5554 = vpop.permute.xlu0 %5553
  %5555 = vrot.lane.b32.xlu0 %v5389, 24
  %v5556 = vpop.permute.xlu0 %5555
  %5557 = vrot.lane.b32.xlu0 %v5391, 24
  %v5558 = vpop.permute.xlu0 %5557
  %5559 = vrot.lane.b32.xlu0 %v5393, 24
  %v5560 = vpop.permute.xlu0 %5559
  %5561 = vrot.lane.b32.xlu0 %v5395, 24
  %v5562 = vpop.permute.xlu0 %5561
  %5583 = vrot.lane.b32.xlu0 %v5330, 36
  %v5584 = vpop.permute.xlu0 %5583
  %5585 = vrot.lane.b32.xlu0 %v5332, 36
  %v5586 = vpop.permute.xlu0 %5585
  %5587 = vrot.lane.b32.xlu0 %v5334, 36
  %v5588 = vpop.permute.xlu0 %5587
  %5589 = vrot.lane.b32.xlu0 %v5336, 36
  %v5590 = vpop.permute.xlu0 %5589
  %5591 = vrot.lane.b32.xlu0 %v5350, 36
  %v5592 = vpop.permute.xlu0 %5591
  %5593 = vrot.lane.b32.xlu0 %v5352, 36
  %v5594 = vpop.permute.xlu0 %5593
  %5595 = vrot.lane.b32.xlu0 %v5354, 36
  %v5596 = vpop.permute.xlu0 %5595
  %5597 = vrot.lane.b32.xlu0 %v5356, 36
  %v5598 = vpop.permute.xlu0 %5597
  %5599 = vrot.lane.b32.xlu0 %v5370, 36
  %v5600 = vpop.permute.xlu0 %5599
  %5601 = vrot.lane.b32.xlu0 %v5372, 36
  %v5602 = vpop.permute.xlu0 %5601
  %5603 = vrot.lane.b32.xlu0 %v5374, 36
  %v5604 = vpop.permute.xlu0 %5603
  %5605 = vrot.lane.b32.xlu0 %v5376, 36
  %v5606 = vpop.permute.xlu0 %5605
  %5607 = vrot.lane.b32.xlu0 %v5390, 36
  %v5608 = vpop.permute.xlu0 %5607
  %5609 = vrot.lane.b32.xlu0 %v5392, 36
  %v5610 = vpop.permute.xlu0 %5609
  %5611 = vrot.lane.b32.xlu0 %v5394, 36
  %v5612 = vpop.permute.xlu0 %5611
  %5613 = vrot.lane.b32.xlu0 %v5396, 36
  %v5614 = vpop.permute.xlu0 %5613
  %5647 = vrot.lane.b32.xlu0 %v5337, 48
  %v5648 = vpop.permute.xlu0 %5647
  %5649 = vrot.lane.b32.xlu0 %v5339, 48
  %v5650 = vpop.permute.xlu0 %5649
  %5651 = vrot.lane.b32.xlu0 %v5341, 48
  %v5652 = vpop.permute.xlu0 %5651
  %5653 = vrot.lane.b32.xlu0 %v5343, 48
  %v5654 = vpop.permute.xlu0 %5653
  %5655 = vrot.lane.b32.xlu0 %v5357, 48
  %v5656 = vpop.permute.xlu0 %5655
  %5657 = vrot.lane.b32.xlu0 %v5359, 48
  %v5658 = vpop.permute.xlu0 %5657
  %5659 = vrot.lane.b32.xlu0 %v5361, 48
  %v5660 = vpop.permute.xlu0 %5659
  %5661 = vrot.lane.b32.xlu0 %v5363, 48
  %v5662 = vpop.permute.xlu0 %5661
  %5663 = vrot.lane.b32.xlu0 %v5377, 48
  %v5664 = vpop.permute.xlu0 %5663
  %5665 = vrot.lane.b32.xlu0 %v5379, 48
  %v5666 = vpop.permute.xlu0 %5665
  %5667 = vrot.lane.b32.xlu0 %v5381, 48
  %v5668 = vpop.permute.xlu0 %5667
  %5669 = vrot.lane.b32.xlu0 %v5383, 48
  %v5670 = vpop.permute.xlu0 %5669
  %5671 = vrot.lane.b32.xlu0 %v5397, 48
  %v5672 = vpop.permute.xlu0 %5671
  %5673 = vrot.lane.b32.xlu0 %v5399, 48
  %v5674 = vpop.permute.xlu0 %5673
  %5675 = vrot.lane.b32.xlu0 %v5401, 48
  %v5676 = vpop.permute.xlu0 %5675
  %5677 = vrot.lane.b32.xlu0 %v5403, 48
  %v5678 = vpop.permute.xlu0 %5677
  %5711 = vrot.lane.b32.xlu0 %v5338, 60
  %v5712 = vpop.permute.xlu0 %5711
  %5713 = vrot.lane.b32.xlu0 %v5340, 60
  %v5714 = vpop.permute.xlu0 %5713
  %5715 = vrot.lane.b32.xlu0 %v5342, 60
  %v5716 = vpop.permute.xlu0 %5715
  %5717 = vrot.lane.b32.xlu0 %v5344, 60
  %v5718 = vpop.permute.xlu0 %5717
  %5719 = vrot.lane.b32.xlu0 %v5358, 60
  %v5720 = vpop.permute.xlu0 %5719
  %5721 = vrot.lane.b32.xlu0 %v5360, 60
  %v5722 = vpop.permute.xlu0 %5721
  %5723 = vrot.lane.b32.xlu0 %v5362, 60
  %v5724 = vpop.permute.xlu0 %5723
  %5725 = vrot.lane.b32.xlu0 %v5364, 60
  %v5726 = vpop.permute.xlu0 %5725
  %5727 = vrot.lane.b32.xlu0 %v5378, 60
  %v5728 = vpop.permute.xlu0 %5727
  %5729 = vrot.lane.b32.xlu0 %v5380, 60
  %v5730 = vpop.permute.xlu0 %5729
  %5731 = vrot.lane.b32.xlu0 %v5382, 60
  %v5732 = vpop.permute.xlu0 %5731
  %5733 = vrot.lane.b32.xlu0 %v5384, 60
  %v5734 = vpop.permute.xlu0 %5733
  %5735 = vrot.lane.b32.xlu0 %v5398, 60
  %v5736 = vpop.permute.xlu0 %5735
  %5737 = vrot.lane.b32.xlu0 %v5400, 60
  %v5738 = vpop.permute.xlu0 %5737
  %5739 = vrot.lane.b32.xlu0 %v5402, 60
  %v5740 = vpop.permute.xlu0 %5739
  %5741 = vrot.lane.b32.xlu0 %v5404, 60
  %v5742 = vpop.permute.xlu0 %5741
  %5763 = vrot.lane.b32.xlu0 %v5339, 72
  %v5764 = vpop.permute.xlu0 %5763
  %5765 = vrot.lane.b32.xlu0 %v5341, 72
  %v5766 = vpop.permute.xlu0 %5765
  %5767 = vrot.lane.b32.xlu0 %v5343, 72
  %v5768 = vpop.permute.xlu0 %5767
  %5769 = vrot.lane.b32.xlu0 %v5345, 72
  %v5770 = vpop.permute.xlu0 %5769
  %5771 = vrot.lane.b32.xlu0 %v5359, 72
  %v5772 = vpop.permute.xlu0 %5771
  %5773 = vrot.lane.b32.xlu0 %v5361, 72
  %v5774 = vpop.permute.xlu0 %5773
  %5775 = vrot.lane.b32.xlu0 %v5363, 72
  %v5776 = vpop.permute.xlu0 %5775
  %5777 = vrot.lane.b32.xlu0 %v5365, 72
  %v5778 = vpop.permute.xlu0 %5777
  %5779 = vrot.lane.b32.xlu0 %v5379, 72
  %v5780 = vpop.permute.xlu0 %5779
  %5781 = vrot.lane.b32.xlu0 %v5381, 72
  %v5782 = vpop.permute.xlu0 %5781
  %5783 = vrot.lane.b32.xlu0 %v5383, 72
  %v5784 = vpop.permute.xlu0 %5783
  %5785 = vrot.lane.b32.xlu0 %v5385, 72
  %v5786 = vpop.permute.xlu0 %5785
  %5787 = vrot.lane.b32.xlu0 %v5399, 72
  %v5788 = vpop.permute.xlu0 %5787
  %5789 = vrot.lane.b32.xlu0 %v5401, 72
  %v5790 = vpop.permute.xlu0 %5789
  %5791 = vrot.lane.b32.xlu0 %v5403, 72
  %v5792 = vpop.permute.xlu0 %5791
  %5793 = vrot.lane.b32.xlu0 %v5405, 72
  %v5794 = vpop.permute.xlu0 %5793
  %5815 = vrot.lane.b32.xlu0 %v5340, 84
  %v5816 = vpop.permute.xlu0 %5815
  %5817 = vrot.lane.b32.xlu0 %v5342, 84
  %v5818 = vpop.permute.xlu0 %5817
  %5819 = vrot.lane.b32.xlu0 %v5344, 84
  %v5820 = vpop.permute.xlu0 %5819
  %5821 = vrot.lane.b32.xlu0 %v5346, 84
  %v5822 = vpop.permute.xlu0 %5821
  %5823 = vrot.lane.b32.xlu0 %v5360, 84
  %v5824 = vpop.permute.xlu0 %5823
  %5825 = vrot.lane.b32.xlu0 %v5362, 84
  %v5826 = vpop.permute.xlu0 %5825
  %5827 = vrot.lane.b32.xlu0 %v5364, 84
  %v5828 = vpop.permute.xlu0 %5827
  %5829 = vrot.lane.b32.xlu0 %v5366, 84
  %v5830 = vpop.permute.xlu0 %5829
  %5831 = vrot.lane.b32.xlu0 %v5380, 84
  %v5832 = vpop.permute.xlu0 %5831
  %5833 = vrot.lane.b32.xlu0 %v5382, 84
  %v5834 = vpop.permute.xlu0 %5833
  %5835 = vrot.lane.b32.xlu0 %v5384, 84
  %v5836 = vpop.permute.xlu0 %5835
  %5837 = vrot.lane.b32.xlu0 %v5386, 84
  %v5838 = vpop.permute.xlu0 %5837
  %5839 = vrot.lane.b32.xlu0 %v5400, 84
  %v5840 = vpop.permute.xlu0 %5839
  %5841 = vrot.lane.b32.xlu0 %v5402, 84
  %v5842 = vpop.permute.xlu0 %5841
  %5843 = vrot.lane.b32.xlu0 %v5404, 84
  %v5844 = vpop.permute.xlu0 %5843
  %5845 = vrot.lane.b32.xlu0 %v5406, 84
  %v5846 = vpop.permute.xlu0 %5845
  %5870 = vrot.lane.b32.xlu0 %v5347, 96
  %v5871 = vpop.permute.xlu0 %5870
  %5872 = vrot.lane.b32.xlu0 %v5349, 96
  %v5873 = vpop.permute.xlu0 %5872
  %5874 = vrot.lane.b32.xlu0 %v5351, 96
  %v5875 = vpop.permute.xlu0 %5874
  %5876 = vrot.lane.b32.xlu0 %v5353, 96
  %v5877 = vpop.permute.xlu0 %5876
  %5878 = vrot.lane.b32.xlu0 %v5367, 96
  %v5879 = vpop.permute.xlu0 %5878
  %5880 = vrot.lane.b32.xlu0 %v5369, 96
  %v5881 = vpop.permute.xlu0 %5880
  %5882 = vrot.lane.b32.xlu0 %v5371, 96
  %v5883 = vpop.permute.xlu0 %5882
  %5884 = vrot.lane.b32.xlu0 %v5373, 96
  %v5885 = vpop.permute.xlu0 %5884
  %5886 = vrot.lane.b32.xlu0 %v5387, 96
  %v5887 = vpop.permute.xlu0 %5886
  %5888 = vrot.lane.b32.xlu0 %v5389, 96
  %v5889 = vpop.permute.xlu0 %5888
  %5890 = vrot.lane.b32.xlu0 %v5391, 96
  %v5891 = vpop.permute.xlu0 %5890
  %5892 = vrot.lane.b32.xlu0 %v5393, 96
  %v5893 = vpop.permute.xlu0 %5892
  %5894 = vrot.lane.b32.xlu0 %v5407, 96
  %v5895 = vpop.permute.xlu0 %5894
  %5896 = vrot.lane.b32.xlu0 %v5409, 96
  %v5897 = vpop.permute.xlu0 %5896
  %5898 = vrot.lane.b32.xlu0 %v5411, 96
  %v5899 = vpop.permute.xlu0 %5898
  %5900 = vrot.lane.b32.xlu0 %v5413, 96
  %v5901 = vpop.permute.xlu0 %5900
  %5922 = vrot.lane.b32.xlu0 %v5348, 108
  %v5923 = vpop.permute.xlu0 %5922
  %5924 = vrot.lane.b32.xlu0 %v5350, 108
  %v5925 = vpop.permute.xlu0 %5924
  %5926 = vrot.lane.b32.xlu0 %v5352, 108
  %v5927 = vpop.permute.xlu0 %5926
  %5928 = vrot.lane.b32.xlu0 %v5354, 108
  %v5929 = vpop.permute.xlu0 %5928
  %5930 = vrot.lane.b32.xlu0 %v5368, 108
  %v5931 = vpop.permute.xlu0 %5930
  %5932 = vrot.lane.b32.xlu0 %v5370, 108
  %v5933 = vpop.permute.xlu0 %5932
  %5934 = vrot.lane.b32.xlu0 %v5372, 108
  %v5935 = vpop.permute.xlu0 %5934
  %5936 = vrot.lane.b32.xlu0 %v5374, 108
  %v5937 = vpop.permute.xlu0 %5936
  %5938 = vrot.lane.b32.xlu0 %v5388, 108
  %v5939 = vpop.permute.xlu0 %5938
  %5940 = vrot.lane.b32.xlu0 %v5390, 108
  %v5941 = vpop.permute.xlu0 %5940
  %5942 = vrot.lane.b32.xlu0 %v5392, 108
  %v5943 = vpop.permute.xlu0 %5942
  %5944 = vrot.lane.b32.xlu0 %v5394, 108
  %v5945 = vpop.permute.xlu0 %5944
  %5946 = vrot.lane.b32.xlu0 %v5408, 108
  %v5947 = vpop.permute.xlu0 %5946
  %5948 = vrot.lane.b32.xlu0 %v5410, 108
  %v5949 = vpop.permute.xlu0 %5948
  %5950 = vrot.lane.b32.xlu0 %v5412, 108
  %v5951 = vpop.permute.xlu0 %5950
  %5952 = vrot.lane.b32.xlu0 %v5414, 108
  %v5953 = vpop.permute.xlu0 %5952
  %5971 = vrot.lane.b32.xlu0 %v5349, 120
  %v5972 = vpop.permute.xlu0 %5971
  %5973 = vrot.lane.b32.xlu0 %v5351, 120
  %v5974 = vpop.permute.xlu0 %5973
  %5975 = vrot.lane.b32.xlu0 %v5353, 120
  %v5976 = vpop.permute.xlu0 %5975
  %5977 = vrot.lane.b32.xlu0 %v5355, 120
  %v5978 = vpop.permute.xlu0 %5977
  %5979 = vrot.lane.b32.xlu0 %v5369, 120
  %v5980 = vpop.permute.xlu0 %5979
  %5981 = vrot.lane.b32.xlu0 %v5371, 120
  %v5982 = vpop.permute.xlu0 %5981
  %5983 = vrot.lane.b32.xlu0 %v5373, 120
  %v5984 = vpop.permute.xlu0 %5983
  %5985 = vrot.lane.b32.xlu0 %v5375, 120
  %v5986 = vpop.permute.xlu0 %5985
  %5987 = vrot.lane.b32.xlu0 %v5389, 120
  %v5988 = vpop.permute.xlu0 %5987
  %5989 = vrot.lane.b32.xlu0 %v5391, 120
  %v5990 = vpop.permute.xlu0 %5989
  %5991 = vrot.lane.b32.xlu0 %v5393, 120
  %v5992 = vpop.permute.xlu0 %5991
  %5993 = vrot.lane.b32.xlu0 %v5395, 120
  %v5994 = vpop.permute.xlu0 %5993
  %5995 = vrot.lane.b32.xlu0 %v5409, 120
  %v5996 = vpop.permute.xlu0 %5995
  %5997 = vrot.lane.b32.xlu0 %v5411, 120
  %v5998 = vpop.permute.xlu0 %5997
  %5999 = vrot.lane.b32.xlu0 %v5413, 120
  %v6000 = vpop.permute.xlu0 %5999
  %6001 = vrot.lane.b32.xlu0 %v5415, 120
  %v6002 = vpop.permute.xlu0 %6001
  %6020 = vrot.lane.b32.xlu0 %v5350, 4
  %v6021 = vpop.permute.xlu0 %6020
  %6022 = vrot.lane.b32.xlu0 %v5352, 4
  %v6023 = vpop.permute.xlu0 %6022
  %6024 = vrot.lane.b32.xlu0 %v5354, 4
  %v6025 = vpop.permute.xlu0 %6024
  %6026 = vrot.lane.b32.xlu0 %v5356, 4
  %v6027 = vpop.permute.xlu0 %6026
  %6028 = vrot.lane.b32.xlu0 %v5370, 4
  %v6029 = vpop.permute.xlu0 %6028
  %6030 = vrot.lane.b32.xlu0 %v5372, 4
  %v6031 = vpop.permute.xlu0 %6030
  %6032 = vrot.lane.b32.xlu0 %v5374, 4
  %v6033 = vpop.permute.xlu0 %6032
  %6034 = vrot.lane.b32.xlu0 %v5376, 4
  %v6035 = vpop.permute.xlu0 %6034
  %6036 = vrot.lane.b32.xlu0 %v5390, 4
  %v6037 = vpop.permute.xlu0 %6036
  %6038 = vrot.lane.b32.xlu0 %v5392, 4
  %v6039 = vpop.permute.xlu0 %6038
  %6040 = vrot.lane.b32.xlu0 %v5394, 4
  %v6041 = vpop.permute.xlu0 %6040
  %6042 = vrot.lane.b32.xlu0 %v5396, 4
  %v6043 = vpop.permute.xlu0 %6042
  %6044 = vrot.lane.b32.xlu0 %v5410, 4
  %v6045 = vpop.permute.xlu0 %6044
  %6046 = vrot.lane.b32.xlu0 %v5412, 4
  %v6047 = vpop.permute.xlu0 %6046
  %6048 = vrot.lane.b32.xlu0 %v5414, 4
  %v6049 = vpop.permute.xlu0 %6048
  %6050 = vrot.lane.b32.xlu0 %v5416, 4
  %v6051 = vpop.permute.xlu0 %6050
  %6072 = vrot.lane.b32.xlu0 %v5357, 16
  %v6073 = vpop.permute.xlu0 %6072
  %6074 = vrot.lane.b32.xlu0 %v5359, 16
  %v6075 = vpop.permute.xlu0 %6074
  %6076 = vrot.lane.b32.xlu0 %v5361, 16
  %v6077 = vpop.permute.xlu0 %6076
  %6078 = vrot.lane.b32.xlu0 %v5363, 16
  %v6079 = vpop.permute.xlu0 %6078
  %6080 = vrot.lane.b32.xlu0 %v5377, 16
  %v6081 = vpop.permute.xlu0 %6080
  %6082 = vrot.lane.b32.xlu0 %v5379, 16
  %v6083 = vpop.permute.xlu0 %6082
  %6084 = vrot.lane.b32.xlu0 %v5381, 16
  %v6085 = vpop.permute.xlu0 %6084
  %6086 = vrot.lane.b32.xlu0 %v5383, 16
  %v6087 = vpop.permute.xlu0 %6086
  %6088 = vrot.lane.b32.xlu0 %v5397, 16
  %v6089 = vpop.permute.xlu0 %6088
  %6090 = vrot.lane.b32.xlu0 %v5399, 16
  %v6091 = vpop.permute.xlu0 %6090
  %6092 = vrot.lane.b32.xlu0 %v5401, 16
  %v6093 = vpop.permute.xlu0 %6092
  %6094 = vrot.lane.b32.xlu0 %v5403, 16
  %v6095 = vpop.permute.xlu0 %6094
  %6096 = vrot.lane.b32.xlu0 %v5417, 16
  %v6097 = vpop.permute.xlu0 %6096
  %6098 = vrot.lane.b32.xlu0 %v5419, 16
  %v6099 = vpop.permute.xlu0 %6098
  %6100 = vrot.lane.b32.xlu0 %v5421, 16
  %v6101 = vpop.permute.xlu0 %6100
  %6102 = vrot.lane.b32.xlu0 %v5423, 16
  %v6103 = vpop.permute.xlu0 %6102
  %6124 = vrot.lane.b32.xlu0 %v5358, 28
  %v6125 = vpop.permute.xlu0 %6124
  %6126 = vrot.lane.b32.xlu0 %v5360, 28
  %v6127 = vpop.permute.xlu0 %6126
  %6128 = vrot.lane.b32.xlu0 %v5362, 28
  %v6129 = vpop.permute.xlu0 %6128
  %6130 = vrot.lane.b32.xlu0 %v5364, 28
  %v6131 = vpop.permute.xlu0 %6130
  %6132 = vrot.lane.b32.xlu0 %v5378, 28
  %v6133 = vpop.permute.xlu0 %6132
  %6134 = vrot.lane.b32.xlu0 %v5380, 28
  %v6135 = vpop.permute.xlu0 %6134
  %6136 = vrot.lane.b32.xlu0 %v5382, 28
  %v6137 = vpop.permute.xlu0 %6136
  %6138 = vrot.lane.b32.xlu0 %v5384, 28
  %v6139 = vpop.permute.xlu0 %6138
  %6140 = vrot.lane.b32.xlu0 %v5398, 28
  %v6141 = vpop.permute.xlu0 %6140
  %6142 = vrot.lane.b32.xlu0 %v5400, 28
  %v6143 = vpop.permute.xlu0 %6142
  %6144 = vrot.lane.b32.xlu0 %v5402, 28
  %v6145 = vpop.permute.xlu0 %6144
  %6146 = vrot.lane.b32.xlu0 %v5404, 28
  %v6147 = vpop.permute.xlu0 %6146
  %6148 = vrot.lane.b32.xlu0 %v5418, 28
  %v6149 = vpop.permute.xlu0 %6148
  %6150 = vrot.lane.b32.xlu0 %v5420, 28
  %v6151 = vpop.permute.xlu0 %6150
  %6152 = vrot.lane.b32.xlu0 %v5422, 28
  %v6153 = vpop.permute.xlu0 %6152
  %6154 = vrot.lane.b32.xlu0 %v5424, 28
  %v6155 = vpop.permute.xlu0 %6154
  %6173 = vrot.lane.b32.xlu0 %v5359, 40
  %v6174 = vpop.permute.xlu0 %6173
  %6175 = vrot.lane.b32.xlu0 %v5361, 40
  %v6176 = vpop.permute.xlu0 %6175
  %6177 = vrot.lane.b32.xlu0 %v5363, 40
  %v6178 = vpop.permute.xlu0 %6177
  %6179 = vrot.lane.b32.xlu0 %v5365, 40
  %v6180 = vpop.permute.xlu0 %6179
  %6181 = vrot.lane.b32.xlu0 %v5379, 40
  %v6182 = vpop.permute.xlu0 %6181
  %6183 = vrot.lane.b32.xlu0 %v5381, 40
  %v6184 = vpop.permute.xlu0 %6183
  %6185 = vrot.lane.b32.xlu0 %v5383, 40
  %v6186 = vpop.permute.xlu0 %6185
  %6187 = vrot.lane.b32.xlu0 %v5385, 40
  %v6188 = vpop.permute.xlu0 %6187
  %6189 = vrot.lane.b32.xlu0 %v5399, 40
  %v6190 = vpop.permute.xlu0 %6189
  %6191 = vrot.lane.b32.xlu0 %v5401, 40
  %v6192 = vpop.permute.xlu0 %6191
  %6193 = vrot.lane.b32.xlu0 %v5403, 40
  %v6194 = vpop.permute.xlu0 %6193
  %6195 = vrot.lane.b32.xlu0 %v5405, 40
  %v6196 = vpop.permute.xlu0 %6195
  %6197 = vrot.lane.b32.xlu0 %v5419, 40
  %v6198 = vpop.permute.xlu0 %6197
  %6199 = vrot.lane.b32.xlu0 %v5421, 40
  %v6200 = vpop.permute.xlu0 %6199
  %6201 = vrot.lane.b32.xlu0 %v5423, 40
  %v6202 = vpop.permute.xlu0 %6201
  %6203 = vrot.lane.b32.xlu0 %v5425, 40
  %v6204 = vpop.permute.xlu0 %6203
  %6222 = vrot.lane.b32.xlu0 %v5360, 52
  %v6223 = vpop.permute.xlu0 %6222
  %6224 = vrot.lane.b32.xlu0 %v5362, 52
  %v6225 = vpop.permute.xlu0 %6224
  %6226 = vrot.lane.b32.xlu0 %v5364, 52
  %v6227 = vpop.permute.xlu0 %6226
  %6228 = vrot.lane.b32.xlu0 %v5366, 52
  %v6229 = vpop.permute.xlu0 %6228
  %6230 = vrot.lane.b32.xlu0 %v5380, 52
  %v6231 = vpop.permute.xlu0 %6230
  %6232 = vrot.lane.b32.xlu0 %v5382, 52
  %v6233 = vpop.permute.xlu0 %6232
  %6234 = vrot.lane.b32.xlu0 %v5384, 52
  %v6235 = vpop.permute.xlu0 %6234
  %6236 = vrot.lane.b32.xlu0 %v5386, 52
  %v6237 = vpop.permute.xlu0 %6236
  %6238 = vrot.lane.b32.xlu0 %v5400, 52
  %v6239 = vpop.permute.xlu0 %6238
  %6240 = vrot.lane.b32.xlu0 %v5402, 52
  %v6241 = vpop.permute.xlu0 %6240
  %6242 = vrot.lane.b32.xlu0 %v5404, 52
  %v6243 = vpop.permute.xlu0 %6242
  %6244 = vrot.lane.b32.xlu0 %v5406, 52
  %v6245 = vpop.permute.xlu0 %6244
  %6246 = vrot.lane.b32.xlu0 %v5420, 52
  %v6247 = vpop.permute.xlu0 %6246
  %6248 = vrot.lane.b32.xlu0 %v5422, 52
  %v6249 = vpop.permute.xlu0 %6248
  %6250 = vrot.lane.b32.xlu0 %v5424, 52
  %v6251 = vpop.permute.xlu0 %6250
  %6252 = vrot.lane.b32.xlu0 %v5426, 52
  %v6253 = vpop.permute.xlu0 %6252
  %v6270 = vsel %vm18, %v5327, %v5468
  %v6271 = vsel %vm18, %v5329, %v5470
  %v6272 = vsel %vm18, %v5331, %v5472
  %v6273 = vsel %vm18, %v5333, %v5474
  %v6274 = vsel %vm18, %v5347, %v5476
  %v6275 = vsel %vm18, %v5349, %v5478
  %v6276 = vsel %vm18, %v5351, %v5480
  %v6277 = vsel %vm18, %v5353, %v5482
  %v6278 = vsel %vm18, %v5367, %v5484
  %v6279 = vsel %vm18, %v5369, %v5486
  %v6280 = vsel %vm18, %v5371, %v5488
  %v6281 = vsel %vm18, %v5373, %v5490
  %v6282 = vsel %vm18, %v5387, %v5492
  %v6283 = vsel %vm18, %v5389, %v5494
  %v6284 = vsel %vm18, %v5391, %v5496
  %v6285 = vsel %vm18, %v5393, %v5498
  %v6286 = vsel %vm119, %v6270, %v5532
  %v6287 = vsel %vm119, %v6271, %v5534
  %v6288 = vsel %vm119, %v6272, %v5536
  %v6289 = vsel %vm119, %v6273, %v5538
  %v6290 = vsel %vm119, %v6274, %v5540
  %v6291 = vsel %vm119, %v6275, %v5542
  %v6292 = vsel %vm119, %v6276, %v5544
  %v6293 = vsel %vm119, %v6277, %v5546
  %v6294 = vsel %vm119, %v6278, %v5548
  %v6295 = vsel %vm119, %v6279, %v5550
  %v6296 = vsel %vm119, %v6280, %v5552
  %v6297 = vsel %vm119, %v6281, %v5554
  %v6298 = vsel %vm119, %v6282, %v5556
  %v6299 = vsel %vm119, %v6283, %v5558
  %v6300 = vsel %vm119, %v6284, %v5560
  %v6301 = vsel %vm119, %v6285, %v5562
  %vm6302 = vcmask 293888
  %v6303 = vsel %vm6302, %v6286, %v5584
  %v6304 = vsel %vm6302, %v6287, %v5586
  %v6305 = vsel %vm6302, %v6288, %v5588
  %v6306 = vsel %vm6302, %v6289, %v5590
  %v6307 = vsel %vm6302, %v6290, %v5592
  %v6308 = vsel %vm6302, %v6291, %v5594
  %v6309 = vsel %vm6302, %v6292, %v5596
  %v6310 = vsel %vm6302, %v6293, %v5598
  %v6311 = vsel %vm6302, %v6294, %v5600
  %v6312 = vsel %vm6302, %v6295, %v5602
  %v6313 = vsel %vm6302, %v6296, %v5604
  %v6314 = vsel %vm6302, %v6297, %v5606
  %v6315 = vsel %vm6302, %v6298, %v5608
  %v6316 = vsel %vm6302, %v6299, %v5610
  %v6317 = vsel %vm6302, %v6300, %v5612
  %v6318 = vsel %vm6302, %v6301, %v5614
  %v6319 = vsel %vm156, %v6303, %v5648
  %v6320 = vsel %vm156, %v6304, %v5650
  %v6321 = vsel %vm156, %v6305, %v5652
  %v6322 = vsel %vm156, %v6306, %v5654
  %v6323 = vsel %vm156, %v6307, %v5656
  %v6324 = vsel %vm156, %v6308, %v5658
  %v6325 = vsel %vm156, %v6309, %v5660
  %v6326 = vsel %vm156, %v6310, %v5662
  %v6327 = vsel %vm156, %v6311, %v5664
  %v6328 = vsel %vm156, %v6312, %v5666
  %v6329 = vsel %vm156, %v6313, %v5668
  %v6330 = vsel %vm156, %v6314, %v5670
  %v6331 = vsel %vm156, %v6315, %v5672
  %v6332 = vsel %vm156, %v6316, %v5674
  %v6333 = vsel %vm156, %v6317, %v5676
  %v6334 = vsel %vm156, %v6318, %v5678
  %vm6335 = vcmask 490496
  %v6336 = vsel %vm6335, %v6319, %v5712
  %v6337 = vsel %vm6335, %v6320, %v5714
  %v6338 = vsel %vm6335, %v6321, %v5716
  %v6339 = vsel %vm6335, %v6322, %v5718
  %v6340 = vsel %vm6335, %v6323, %v5720
  %v6341 = vsel %vm6335, %v6324, %v5722
  %v6342 = vsel %vm6335, %v6325, %v5724
  %v6343 = vsel %vm6335, %v6326, %v5726
  %v6344 = vsel %vm6335, %v6327, %v5728
  %v6345 = vsel %vm6335, %v6328, %v5730
  %v6346 = vsel %vm6335, %v6329, %v5732
  %v6347 = vsel %vm6335, %v6330, %v5734
  %v6348 = vsel %vm6335, %v6331, %v5736
  %v6349 = vsel %vm6335, %v6332, %v5738
  %v6350 = vsel %vm6335, %v6333, %v5740
  %v6351 = vsel %vm6335, %v6334, %v5742
  %v6352 = vsel %vm4370, %v6336, %v5764
  %v6353 = vsel %vm4370, %v6337, %v5766
  %v6354 = vsel %vm4370, %v6338, %v5768
  %v6355 = vsel %vm4370, %v6339, %v5770
  %v6356 = vsel %vm4370, %v6340, %v5772
  %v6357 = vsel %vm4370, %v6341, %v5774
  %v6358 = vsel %vm4370, %v6342, %v5776
  %v6359 = vsel %vm4370, %v6343, %v5778
  %v6360 = vsel %vm4370, %v6344, %v5780
  %v6361 = vsel %vm4370, %v6345, %v5782
  %v6362 = vsel %vm4370, %v6346, %v5784
  %v6363 = vsel %vm4370, %v6347, %v5786
  %v6364 = vsel %vm4370, %v6348, %v5788
  %v6365 = vsel %vm4370, %v6349, %v5790
  %v6366 = vsel %vm4370, %v6350, %v5792
  %v6367 = vsel %vm4370, %v6351, %v5794
  %vm6368 = vcmask 687104
  %v6369 = vsel %vm6368, %v6352, %v5816
  %v6370 = vsel %vm6368, %v6353, %v5818
  %v6371 = vsel %vm6368, %v6354, %v5820
  %v6372 = vsel %vm6368, %v6355, %v5822
  %v6373 = vsel %vm6368, %v6356, %v5824
  %v6374 = vsel %vm6368, %v6357, %v5826
  %v6375 = vsel %vm6368, %v6358, %v5828
  %v6376 = vsel %vm6368, %v6359, %v5830
  %v6377 = vsel %vm6368, %v6360, %v5832
  %v6378 = vsel %vm6368, %v6361, %v5834
  %v6379 = vsel %vm6368, %v6362, %v5836
  %v6380 = vsel %vm6368, %v6363, %v5838
  %v6381 = vsel %vm6368, %v6364, %v5840
  %v6382 = vsel %vm6368, %v6365, %v5842
  %v6383 = vsel %vm6368, %v6366, %v5844
  %v6384 = vsel %vm6368, %v6367, %v5846
  %v6385 = vsel %vm4565, %v6369, %v5871
  %v6386 = vsel %vm4565, %v6370, %v5873
  %v6387 = vsel %vm4565, %v6371, %v5875
  %v6388 = vsel %vm4565, %v6372, %v5877
  %v6389 = vsel %vm4565, %v6373, %v5879
  %v6390 = vsel %vm4565, %v6374, %v5881
  %v6391 = vsel %vm4565, %v6375, %v5883
  %v6392 = vsel %vm4565, %v6376, %v5885
  %v6393 = vsel %vm4565, %v6377, %v5887
  %v6394 = vsel %vm4565, %v6378, %v5889
  %v6395 = vsel %vm4565, %v6379, %v5891
  %v6396 = vsel %vm4565, %v6380, %v5893
  %v6397 = vsel %vm4565, %v6381, %v5895
  %v6398 = vsel %vm4565, %v6382, %v5897
  %v6399 = vsel %vm4565, %v6383, %v5899
  %v6400 = vsel %vm4565, %v6384, %v5901
  %vm6401 = vcmask 883712
  %v6402 = vsel %vm6401, %v6385, %v5923
  %v6403 = vsel %vm6401, %v6386, %v5925
  %v6404 = vsel %vm6401, %v6387, %v5927
  %v6405 = vsel %vm6401, %v6388, %v5929
  %v6406 = vsel %vm6401, %v6389, %v5931
  %v6407 = vsel %vm6401, %v6390, %v5933
  %v6408 = vsel %vm6401, %v6391, %v5935
  %v6409 = vsel %vm6401, %v6392, %v5937
  %v6410 = vsel %vm6401, %v6393, %v5939
  %v6411 = vsel %vm6401, %v6394, %v5941
  %v6412 = vsel %vm6401, %v6395, %v5943
  %v6413 = vsel %vm6401, %v6396, %v5945
  %v6414 = vsel %vm6401, %v6397, %v5947
  %v6415 = vsel %vm6401, %v6398, %v5949
  %v6416 = vsel %vm6401, %v6399, %v5951
  %v6417 = vsel %vm6401, %v6400, %v5953
  %v6418 = vsel %vm4760, %v6402, %v5972
  %v6419 = vsel %vm4760, %v6403, %v5974
  %v6420 = vsel %vm4760, %v6404, %v5976
  %v6421 = vsel %vm4760, %v6405, %v5978
  %v6422 = vsel %vm4760, %v6406, %v5980
  %v6423 = vsel %vm4760, %v6407, %v5982
  %v6424 = vsel %vm4760, %v6408, %v5984
  %v6425 = vsel %vm4760, %v6409, %v5986
  %v6426 = vsel %vm4760, %v6410, %v5988
  %v6427 = vsel %vm4760, %v6411, %v5990
  %v6428 = vsel %vm4760, %v6412, %v5992
  %v6429 = vsel %vm4760, %v6413, %v5994
  %v6430 = vsel %vm4760, %v6414, %v5996
  %v6431 = vsel %vm4760, %v6415, %v5998
  %v6432 = vsel %vm4760, %v6416, %v6000
  %v6433 = vsel %vm4760, %v6417, %v6002
  %vm6434 = vcmask 31744
  %v6435 = vsel %vm6434, %v5972, %v6021
  %v6436 = vsel %vm6434, %v5974, %v6023
  %v6437 = vsel %vm6434, %v5976, %v6025
  %v6438 = vsel %vm6434, %v5978, %v6027
  %v6439 = vsel %vm6434, %v5980, %v6029
  %v6440 = vsel %vm6434, %v5982, %v6031
  %v6441 = vsel %vm6434, %v5984, %v6033
  %v6442 = vsel %vm6434, %v5986, %v6035
  %v6443 = vsel %vm6434, %v5988, %v6037
  %v6444 = vsel %vm6434, %v5990, %v6039
  %v6445 = vsel %vm6434, %v5992, %v6041
  %v6446 = vsel %vm6434, %v5994, %v6043
  %v6447 = vsel %vm6434, %v5996, %v6045
  %v6448 = vsel %vm6434, %v5998, %v6047
  %v6449 = vsel %vm6434, %v6000, %v6049
  %v6450 = vsel %vm6434, %v6002, %v6051
  %v6451 = vsel %vm3917, %v6435, %v6073
  %v6452 = vsel %vm3917, %v6436, %v6075
  %v6453 = vsel %vm3917, %v6437, %v6077
  %v6454 = vsel %vm3917, %v6438, %v6079
  %v6455 = vsel %vm3917, %v6439, %v6081
  %v6456 = vsel %vm3917, %v6440, %v6083
  %v6457 = vsel %vm3917, %v6441, %v6085
  %v6458 = vsel %vm3917, %v6442, %v6087
  %v6459 = vsel %vm3917, %v6443, %v6089
  %v6460 = vsel %vm3917, %v6444, %v6091
  %v6461 = vsel %vm3917, %v6445, %v6093
  %v6462 = vsel %vm3917, %v6446, %v6095
  %v6463 = vsel %vm3917, %v6447, %v6097
  %v6464 = vsel %vm3917, %v6448, %v6099
  %v6465 = vsel %vm3917, %v6449, %v6101
  %v6466 = vsel %vm3917, %v6450, %v6103
  %vm6467 = vcmask 228352
  %v6468 = vsel %vm6467, %v6451, %v6125
  %v6469 = vsel %vm6467, %v6452, %v6127
  %v6470 = vsel %vm6467, %v6453, %v6129
  %v6471 = vsel %vm6467, %v6454, %v6131
  %v6472 = vsel %vm6467, %v6455, %v6133
  %v6473 = vsel %vm6467, %v6456, %v6135
  %v6474 = vsel %vm6467, %v6457, %v6137
  %v6475 = vsel %vm6467, %v6458, %v6139
  %v6476 = vsel %vm6467, %v6459, %v6141
  %v6477 = vsel %vm6467, %v6460, %v6143
  %v6478 = vsel %vm6467, %v6461, %v6145
  %v6479 = vsel %vm6467, %v6462, %v6147
  %v6480 = vsel %vm6467, %v6463, %v6149
  %v6481 = vsel %vm6467, %v6464, %v6151
  %v6482 = vsel %vm6467, %v6465, %v6153
  %v6483 = vsel %vm6467, %v6466, %v6155
  %v6484 = vsel %vm4111, %v6468, %v6174
  %v6485 = vsel %vm4111, %v6469, %v6176
  %v6486 = vsel %vm4111, %v6470, %v6178
  %v6487 = vsel %vm4111, %v6471, %v6180
  %v6488 = vsel %vm4111, %v6472, %v6182
  %v6489 = vsel %vm4111, %v6473, %v6184
  %v6490 = vsel %vm4111, %v6474, %v6186
  %v6491 = vsel %vm4111, %v6475, %v6188
  %v6492 = vsel %vm4111, %v6476, %v6190
  %v6493 = vsel %vm4111, %v6477, %v6192
  %v6494 = vsel %vm4111, %v6478, %v6194
  %v6495 = vsel %vm4111, %v6479, %v6196
  %v6496 = vsel %vm4111, %v6480, %v6198
  %v6497 = vsel %vm4111, %v6481, %v6200
  %v6498 = vsel %vm4111, %v6482, %v6202
  %v6499 = vsel %vm4111, %v6483, %v6204
  %vm6500 = vcmask 424960
  %v6501 = vsel %vm6500, %v6484, %v6223
  %v6502 = vsel %vm6500, %v6485, %v6225
  %v6503 = vsel %vm6500, %v6486, %v6227
  %v6504 = vsel %vm6500, %v6487, %v6229
  %v6505 = vsel %vm6500, %v6488, %v6231
  %v6506 = vsel %vm6500, %v6489, %v6233
  %v6507 = vsel %vm6500, %v6490, %v6235
  %v6508 = vsel %vm6500, %v6491, %v6237
  %v6509 = vsel %vm6500, %v6492, %v6239
  %v6510 = vsel %vm6500, %v6493, %v6241
  %v6511 = vsel %vm6500, %v6494, %v6243
  %v6512 = vsel %vm6500, %v6495, %v6245
  %v6513 = vsel %vm6500, %v6496, %v6247
  %v6514 = vsel %vm6500, %v6497, %v6249
  %v6515 = vsel %vm6500, %v6498, %v6251
  %v6516 = vsel %vm6500, %v6499, %v6253
  %v6517 = vpack.c.bf16 %v6419, %v6418
  %v6518 = vpack.c.bf16 %v6502, %v6501
  %v6519 = vpack.c.bf16 %v6421, %v6420
  %v6520 = vpack.c.bf16 %v6504, %v6503
  %v6521 = vpack.c.bf16 %v6423, %v6422
  %v6522 = vpack.c.bf16 %v6506, %v6505
  %v6523 = vpack.c.bf16 %v6425, %v6424
  %v6524 = vpack.c.bf16 %v6508, %v6507
  %v6525 = vpack.c.bf16 %v6427, %v6426
  %v6526 = vpack.c.bf16 %v6510, %v6509
  %v6527 = vpack.c.bf16 %v6429, %v6428
  %v6528 = vpack.c.bf16 %v6512, %v6511
  %v6529 = vpack.c.bf16 %v6431, %v6430
  %v6530 = vpack.c.bf16 %v6514, %v6513
  %v6531 = vpack.c.bf16 %v6433, %v6432
  %v6532 = vpack.c.bf16 %v6516, %v6515
  %v6533 = vlaneseq
  %v6534 = vshrl.u32 %v6533, 7
  %v6535 = vsub.s32 1, %v6534
  %v6536 = vrot.slane %v17, %v6535
  %v6561 = vunpack.c.l.b16 %v5427
  %v6562 = vunpack.c.l.b16 %v5428
  %v6563 = vunpack.c.l.b16 %v5429
  %v6564 = vunpack.c.l.b16 %v5430
  %v6565 = vunpack.c.l.b16 %v5431
  %v6566 = vunpack.c.l.b16 %v5432
  %v6567 = vunpack.c.l.b16 %v5433
  %v6568 = vunpack.c.l.b16 %v5434
  %v6569 = vunpack.c.l.b16 %v5435
  %v6570 = vunpack.c.l.b16 %v5436
  %v6571 = vunpack.c.l.b16 %v5437
  %v6572 = vunpack.c.l.b16 %v5438
  %v6573 = vunpack.c.l.b16 %v5439
  %v6574 = vunpack.c.l.b16 %v5440
  %v6575 = vunpack.c.l.b16 %v5441
  %v6576 = vunpack.c.l.b16 %v5442
  %v6577 = vunpack.c.l.b16 %v5443
  %v6578 = vunpack.c.l.b16 %v5444
  %v6579 = vunpack.c.l.b16 %v5445
  %v6580 = vunpack.c.l.b16 %v5446
  %v6581 = vunpack.c.l.b16 %v5447
  %v6582 = vunpack.c.l.b16 %v5448
  %v6583 = vunpack.c.l.b16 %v5449
  %v6584 = vunpack.c.l.b16 %v5450
  %v6585 = vpack.c.b16 %v6562, %v6561
  %v6586 = vpack.c.b16 %v6564, %v6563
  %v6587 = vpack.c.b16 %v6566, %v6565
  %v6588 = vpack.c.b16 %v6568, %v6567
  %v6589 = vpack.c.b16 %v6570, %v6569
  %v6590 = vpack.c.b16 %v6572, %v6571
  %v6591 = vpack.c.b16 %v6574, %v6573
  %v6592 = vpack.c.b16 %v6576, %v6575
  %v6593 = vpack.c.b16 %v6578, %v6577
  %v6594 = vpack.c.b16 %v6580, %v6579
  %v6595 = vpack.c.b16 %v6582, %v6581
  %v6596 = vpack.c.b16 %v6584, %v6583
  %v6610 = vsel %vm4305, %v6518, 0
  %v6613 = vsel %vm4305, %v6520, 0
  %v6616 = vsel %vm4305, %v6522, 0
  %v6619 = vsel %vm4305, %v6524, 0
  %v6622 = vsel %vm4305, %v6526, 0
  %v6625 = vsel %vm4305, %v6528, 0
  %v6628 = vsel %vm4305, %v6530, 0
  %v6631 = vsel %vm4305, %v6532, 0
  %6633 = vmatprep.subr.bf16.mxu0 0
  %6634 = vmatpush1.bf16.msra.mxu0 %v6585
  %6635 = vmatprep.subr.bf16.mxu0 0
  %6636 = vmatpush1.bf16.msra.mxu0 %v6586
  %6637 = vmatprep.subr.bf16.mxu0 0
  %6638 = vmatpush1.bf16.msra.mxu0 %v6587
  %6639 = vmatprep.subr.bf16.mxu0 0
  %6640 = vmatpush1.bf16.msra.mxu0 %v6588
  %6641 = vmatprep.subr.bf16.mxu0 0
  %6642 = vmatpush1.bf16.msra.mxu0 %v6589
  %6643 = vmatprep.subr.bf16.mxu0 0
  %6644 = vmatpush1.bf16.msra.mxu0 %v6590
  %6645 = vmatprep.subr.bf16.mxu0 0
  %6646 = vmatpush1.bf16.msra.mxu0 %v6591
  %6647 = vmatprep.subr.bf16.mxu0 0
  %6648 = vmatpush1.bf16.msra.mxu0 %v6592
  %6649 = vmatprep.subr.bf16.mxu0 0
  %6650 = vmatpush1.bf16.msra.mxu0 %v6593
  %6651 = vmatprep.subr.bf16.mxu0 0
  %6652 = vmatpush1.bf16.msra.mxu0 %v6594
  %6653 = vmatprep.subr.bf16.mxu0 0
  %6654 = vmatpush1.bf16.msra.mxu0 %v6595
  %6655 = vmatprep.subr.bf16.mxu0 0
  %6656 = vmatpush1.bf16.msra.mxu0 %v6596
  %6657 = vmatprep.subr.bf16.mxu0 0
  %6658 = vmatpush1.bf16.msra.mxu0 0
  %6659 = vmatprep.subr.bf16.mxu0 0
  %6660 = vmatpush1.bf16.msra.mxu0 0
  %6661 = vmatprep.subr.bf16.mxu0 0
  %6662 = vmatpush1.bf16.msra.mxu0 0
  %6663 = vmatprep.subr.bf16.mxu0 0
  %6664 = vmatpush1.bf16.msra.mxu0 0
  %6665 = vmatprep.mubr.bf16.mxu0 %v6610
  %6666 = vmatmul.mubr.bf16.gmra.mrb[0].mxu0 %v6517
  %v6667 = vpop.f32.mrb[0].mxu0
  %v6668 = vadd.f32 %v6536, %v6667
  %v6669 = vpop.f32.mrb[0].mxu0
  %v6670 = vpop.f32.mrb[0].mxu0
  %v6671 = vadd.f32 %v6536, %v6670
  %v6672 = vpop.f32.mrb[0].mxu0
  %6673 = vmatprep.mubr.bf16.mxu0 %v6613
  %6674 = vmatmul.mubr.bf16.gmra.mrb[0].mxu0 %v6519
  %v6675 = vpop.f32.mrb[0].mxu0
  %v6676 = vadd.f32 %v6536, %v6675
  %v6677 = vpop.f32.mrb[0].mxu0
  %v6678 = vpop.f32.mrb[0].mxu0
  %v6679 = vadd.f32 %v6536, %v6678
  %v6680 = vpop.f32.mrb[0].mxu0
  %6681 = vmatprep.mubr.bf16.mxu0 %v6616
  %6682 = vmatmul.mubr.bf16.gmra.mrb[0].mxu0 %v6521
  %v6683 = vpop.f32.mrb[0].mxu0
  %v6684 = vadd.f32 %v6536, %v6683
  %v6685 = vpop.f32.mrb[0].mxu0
  %v6686 = vpop.f32.mrb[0].mxu0
  %v6687 = vadd.f32 %v6536, %v6686
  %v6688 = vpop.f32.mrb[0].mxu0
  %6689 = vmatprep.mubr.bf16.mxu0 %v6619
  %6690 = vmatmul.mubr.bf16.gmra.mrb[0].mxu0 %v6523
  %v6691 = vpop.f32.mrb[0].mxu0
  %v6692 = vadd.f32 %v6536, %v6691
  %v6693 = vpop.f32.mrb[0].mxu0
  %v6694 = vpop.f32.mrb[0].mxu0
  %v6695 = vadd.f32 %v6536, %v6694
  %v6696 = vpop.f32.mrb[0].mxu0
  %6697 = vmatprep.mubr.bf16.mxu0 %v6622
  %6698 = vmatmul.mubr.bf16.gmra.mrb[0].mxu0 %v6525
  %v6699 = vpop.f32.mrb[0].mxu0
  %v6700 = vadd.f32 %v6536, %v6699
  %v6701 = vpop.f32.mrb[0].mxu0
  %v6702 = vpop.f32.mrb[0].mxu0
  %v6703 = vadd.f32 %v6536, %v6702
  %v6704 = vpop.f32.mrb[0].mxu0
  %6705 = vmatprep.mubr.bf16.mxu0 %v6625
  %6706 = vmatmul.mubr.bf16.gmra.mrb[0].mxu0 %v6527
  %v6707 = vpop.f32.mrb[0].mxu0
  %v6708 = vadd.f32 %v6536, %v6707
  %v6709 = vpop.f32.mrb[0].mxu0
  %v6710 = vpop.f32.mrb[0].mxu0
  %v6711 = vadd.f32 %v6536, %v6710
  %v6712 = vpop.f32.mrb[0].mxu0
  %6713 = vmatprep.mubr.bf16.mxu0 %v6628
  %6714 = vmatmul.mubr.bf16.gmra.mrb[0].mxu0 %v6529
  %v6715 = vpop.f32.mrb[0].mxu0
  %v6716 = vadd.f32 %v6536, %v6715
  %v6717 = vpop.f32.mrb[0].mxu0
  %v6718 = vpop.f32.mrb[0].mxu0
  %v6719 = vadd.f32 %v6536, %v6718
  %v6720 = vpop.f32.mrb[0].mxu0
  %6721 = vmatprep.mubr.bf16.mxu0 %v6631
  %6722 = vmatmul.mubr.bf16.gmra.mrb[0].mxu0 %v6531
  %v6723 = vpop.f32.mrb[0].mxu0
  %v6724 = vadd.f32 %v6536, %v6723
  %v6725 = vpop.f32.mrb[0].mxu0
  %v6726 = vpop.f32.mrb[0].mxu0
  %v6727 = vadd.f32 %v6536, %v6726
  %v6728 = vpop.f32.mrb[0].mxu0
  %6729 = vdwg.mxu0
  %v6730 = vmax.f32 %v6668, 0.0
  %v6731 = vmax.f32 %v6671, 0.0
  %v6732 = vmax.f32 %v6676, 0.0
  %v6733 = vmax.f32 %v6679, 0.0
  %v6734 = vmax.f32 %v6684, 0.0
  %v6735 = vmax.f32 %v6687, 0.0
  %v6736 = vmax.f32 %v6692, 0.0
  %v6737 = vmax.f32 %v6695, 0.0
  %v6738 = vmax.f32 %v6700, 0.0
  %v6739 = vmax.f32 %v6703, 0.0
  %v6740 = vmax.f32 %v6708, 0.0
  %v6741 = vmax.f32 %v6711, 0.0
  %v6742 = vmax.f32 %v6716, 0.0
  %v6743 = vmax.f32 %v6719, 0.0
  %v6744 = vmax.f32 %v6724, 0.0
  %v6745 = vmax.f32 %v6727, 0.0
  %s6746 = scalar_lea.vmem [#allocation3], 56
  %6747 = vst.msk [vmem:[%s6746] sm:$0xff] %vm119, %v6730
  %6748 = vst.msk [vmem:[%s6746 + $0x8] sm:$0xff] %vm119, %v6731
  %6749 = vst.msk [vmem:[%s6746 + $0x10] sm:$0xff] %vm119, %v6732
  %6750 = vst.msk [vmem:[%s6746 + $0x18] sm:$0xff] %vm119, %v6733
  %6751 = vst.msk [vmem:[%s6746 + $0x30] sm:$0xff] %vm119, %v6734
  %6752 = vst.msk [vmem:[%s6746 + $0x38] sm:$0xff] %vm119, %v6735
  %6753 = vst.msk [vmem:[%s6746 + $0x40] sm:$0xff] %vm119, %v6736
  %6754 = vst.msk [vmem:[%s6746 + $0x48] sm:$0xff] %vm119, %v6737
  %6755 = vst.msk [vmem:[%s6746 + $0x60] sm:$0xff] %vm119, %v6738
  %6756 = vst.msk [vmem:[%s6746 + $0x68] sm:$0xff] %vm119, %v6739
  %6757 = vst.msk [vmem:[%s6746 + $0x70] sm:$0xff] %vm119, %v6740
  %6758 = vst.msk [vmem:[%s6746 + $0x78] sm:$0xff] %vm119, %v6741
  %6759 = vst.msk [vmem:[%s6746 + $0x90] sm:$0xff] %vm119, %v6742
  %6760 = vst.msk [vmem:[%s6746 + $0x98] sm:$0xff] %vm119, %v6743
  %6761 = vst.msk [vmem:[%s6746 + $0xa0] sm:$0xff] %vm119, %v6744
  %6762 = vst.msk [vmem:[%s6746 + $0xa8] sm:$0xff] %vm119, %v6745
  %v6763 = vld [vmem:[#allocation3] sm:$0xff]
  %v6764 = vld [vmem:[#allocation3 + $0x8] sm:$0xff]
  %v6765 = vld [vmem:[#allocation3 + $0x10] sm:$0xff]
  %v6766 = vld [vmem:[#allocation3 + $0x18] sm:$0xff]
  %v6767 = vld [vmem:[#allocation3 + $0x20] sm:$0xff]
  %v6768 = vld [vmem:[#allocation3 + $0x28] sm:$0xff]
  %v6769 = vld [vmem:[#allocation3 + $0x30] sm:$0xff]
  %v6770 = vld [vmem:[#allocation3 + $0x38] sm:$0xff]
  %v6771 = vld [vmem:[#allocation3 + $0x40] sm:$0xff]
  %v6772 = vld [vmem:[#allocation3 + $0x48] sm:$0xff]
  %v6773 = vld [vmem:[#allocation3 + $0x50] sm:$0xff]
  %v6774 = vld [vmem:[#allocation3 + $0x58] sm:$0xff]
  %v6775 = vld [vmem:[#allocation3 + $0x60] sm:$0xff]
  %v6776 = vld [vmem:[#allocation3 + $0x68] sm:$0xff]
  %v6777 = vld [vmem:[#allocation3 + $0x70] sm:$0xff]
  %v6778 = vld [vmem:[#allocation3 + $0x78] sm:$0xff]
  %v6779 = vld [vmem:[#allocation3 + $0x80] sm:$0xff]
  %v6780 = vld [vmem:[#allocation3 + $0x88] sm:$0xff]
  %v6781 = vld [vmem:[#allocation3 + $0x90] sm:$0xff]
  %v6782 = vld [vmem:[#allocation3 + $0x98] sm:$0xff]
  %v6783 = vld [vmem:[#allocation3 + $0xa0] sm:$0xff]
  %v6784 = vld [vmem:[#allocation3 + $0xa8] sm:$0xff]
  %v6785 = vld [vmem:[#allocation3 + $0xb0] sm:$0xff]
  %v6786 = vld [vmem:[#allocation3 + $0xb8] sm:$0xff]
  %v6787 = vld [vmem:[#allocation3 + $0xc0] sm:$0xff]
  %v6788 = vld [vmem:[#allocation3 + $0xc8] sm:$0xff]
  %v6789 = vld [vmem:[#allocation3 + $0xd0] sm:$0xff]
  %v6790 = vld [vmem:[#allocation3 + $0xd8] sm:$0xff]
  %v6791 = vld [vmem:[#allocation3 + $0xe0] sm:$0xff]
  %v6792 = vld [vmem:[#allocation3 + $0xe8] sm:$0xff]
  %v6793 = vld [vmem:[#allocation3 + $0xf0] sm:$0xff]
  %v6794 = vld [vmem:[#allocation3 + $0xf8] sm:$0xff]
  %v6795 = vld [vmem:[#allocation3 + $0x100] sm:$0xff]
  %v6796 = vld [vmem:[#allocation3 + $0x108] sm:$0xff]
  %v6797 = vld [vmem:[#allocation3 + $0x110] sm:$0xff]
  %v6798 = vld [vmem:[#allocation3 + $0x118] sm:$0xff]
  %v6799 = vld [vmem:[%s1 + $0xa0] sm:$0xf]
  %v6800 = vld [vmem:[%s1 + $0xa4] sm:$0xf]
  %v6801 = vld [vmem:[%s1 + $0xa8] sm:$0xf]
  %v6802 = vld [vmem:[%s1 + $0xac] sm:$0xf]
  %v6803 = vld [vmem:[%s1 + $0xb0] sm:$0xf]
  %v6804 = vld [vmem:[%s1 + $0xb4] sm:$0xf]
  %v6805 = vld [vmem:[%s1 + $0xb8] sm:$0xf]
  %v6806 = vld [vmem:[%s1 + $0xbc] sm:$0xf]
  %v6807 = vld [vmem:[%s1 + $0xc0] sm:$0xf]
  %v6808 = vld [vmem:[%s1 + $0xc4] sm:$0xf]
  %v6809 = vld [vmem:[%s1 + $0xc8] sm:$0xf]
  %v6810 = vld [vmem:[%s1 + $0xcc] sm:$0xf]
  %v6811 = vld [vmem:[%s1 + $0xd0] sm:$0xf]
  %v6812 = vld [vmem:[%s1 + $0xd4] sm:$0xf]
  %v6813 = vld [vmem:[%s1 + $0xd8] sm:$0xf]
  %v6814 = vld [vmem:[%s1 + $0xdc] sm:$0xf]
  %v6815 = vld [vmem:[%s1 + $0xe0] sm:$0xf]
  %v6816 = vld [vmem:[%s1 + $0xe4] sm:$0xf]
  %v6817 = vld [vmem:[%s1 + $0xe8] sm:$0xf]
  %v6818 = vld [vmem:[%s1 + $0xec] sm:$0xf]
  %v6819 = vld [vmem:[%s1 + $0xf0] sm:$0xf]
  %v6820 = vld [vmem:[%s1 + $0xf4] sm:$0xf]
  %v6821 = vld [vmem:[%s1 + $0xf8] sm:$0xf]
  %v6822 = vld [vmem:[%s1 + $0xfc] sm:$0xf]
  %v6823 = vld [vmem:[%s1 + $0x100] sm:$0xf]
  %v6824 = vld [vmem:[%s1 + $0x104] sm:$0xf]
  %v6825 = vld [vmem:[%s1 + $0x108] sm:$0xf]
  %v6826 = vld [vmem:[%s1 + $0x10c] sm:$0xf]
  %v6827 = vld [vmem:[%s1 + $0x110] sm:$0xf]
  %v6828 = vld [vmem:[%s1 + $0x114] sm:$0xf]
  %v6829 = vld [vmem:[%s1 + $0x118] sm:$0xf]
  %v6830 = vld [vmem:[%s1 + $0x11c] sm:$0xf]
  %v6831 = vld [vmem:[%s1 + $0x120] sm:$0xf]
  %v6832 = vld [vmem:[%s1 + $0x124] sm:$0xf]
  %v6833 = vld [vmem:[%s1 + $0x128] sm:$0xf]
  %v6834 = vld [vmem:[%s1 + $0x12c] sm:$0xf]
  %v6835 = vld [vmem:[%s1 + $0x130] sm:$0xf]
  %v6836 = vld [vmem:[%s1 + $0x134] sm:$0xf]
  %v6837 = vld [vmem:[%s1 + $0x138] sm:$0xf]
  %v6838 = vld [vmem:[%s1 + $0x13c] sm:$0xf]
  %v6839 = vld [vmem:[%s1 + $0x140] sm:$0xf]
  %v6840 = vld [vmem:[%s1 + $0x144] sm:$0xf]
  %v6841 = vld [vmem:[%s1 + $0x148] sm:$0xf]
  %v6842 = vld [vmem:[%s1 + $0x14c] sm:$0xf]
  %v6843 = vld [vmem:[%s1 + $0x150] sm:$0xf]
  %v6844 = vld [vmem:[%s1 + $0x154] sm:$0xf]
  %v6845 = vld [vmem:[%s1 + $0x158] sm:$0xf]
  %v6846 = vld [vmem:[%s1 + $0x15c] sm:$0xf]
  %6851 = vrot.lane.b32.xlu0 %v6764, 24
  %v6852 = vpop.permute.xlu0 %6851
  %6853 = vrot.lane.b32.xlu0 %v6766, 24
  %v6854 = vpop.permute.xlu0 %6853
  %6855 = vrot.lane.b32.xlu0 %v6776, 24
  %v6856 = vpop.permute.xlu0 %6855
  %6857 = vrot.lane.b32.xlu0 %v6778, 24
  %v6858 = vpop.permute.xlu0 %6857
  %6867 = vrot.lane.b32.xlu0 %v6765, 48
  %v6868 = vpop.permute.xlu0 %6867
  %6869 = vrot.lane.b32.xlu0 %v6767, 48
  %v6870 = vpop.permute.xlu0 %6869
  %6871 = vrot.lane.b32.xlu0 %v6777, 48
  %v6872 = vpop.permute.xlu0 %6871
  %6873 = vrot.lane.b32.xlu0 %v6779, 48
  %v6874 = vpop.permute.xlu0 %6873
  %6881 = vrot.lane.b32.xlu0 %v6766, 72
  %v6882 = vpop.permute.xlu0 %6881
  %6883 = vrot.lane.b32.xlu0 %v6768, 72
  %v6884 = vpop.permute.xlu0 %6883
  %6885 = vrot.lane.b32.xlu0 %v6778, 72
  %v6886 = vpop.permute.xlu0 %6885
  %6887 = vrot.lane.b32.xlu0 %v6780, 72
  %v6888 = vpop.permute.xlu0 %6887
  %6897 = vrot.lane.b32.xlu0 %v6769, 96
  %v6898 = vpop.permute.xlu0 %6897
  %6899 = vrot.lane.b32.xlu0 %v6771, 96
  %v6900 = vpop.permute.xlu0 %6899
  %6901 = vrot.lane.b32.xlu0 %v6781, 96
  %v6902 = vpop.permute.xlu0 %6901
  %6903 = vrot.lane.b32.xlu0 %v6783, 96
  %v6904 = vpop.permute.xlu0 %6903
  %6913 = vrot.lane.b32.xlu0 %v6770, 120
  %v6914 = vpop.permute.xlu0 %6913
  %6915 = vrot.lane.b32.xlu0 %v6772, 120
  %v6916 = vpop.permute.xlu0 %6915
  %6917 = vrot.lane.b32.xlu0 %v6782, 120
  %v6918 = vpop.permute.xlu0 %6917
  %6919 = vrot.lane.b32.xlu0 %v6784, 120
  %v6920 = vpop.permute.xlu0 %6919
  %6927 = vrot.lane.b32.xlu0 %v6771, 16
  %v6928 = vpop.permute.xlu0 %6927
  %6929 = vrot.lane.b32.xlu0 %v6773, 16
  %v6930 = vpop.permute.xlu0 %6929
  %6931 = vrot.lane.b32.xlu0 %v6783, 16
  %v6932 = vpop.permute.xlu0 %6931
  %6933 = vrot.lane.b32.xlu0 %v6785, 16
  %v6934 = vpop.permute.xlu0 %6933
  %6941 = vrot.lane.b32.xlu0 %v6772, 40
  %v6942 = vpop.permute.xlu0 %6941
  %6943 = vrot.lane.b32.xlu0 %v6774, 40
  %v6944 = vpop.permute.xlu0 %6943
  %6945 = vrot.lane.b32.xlu0 %v6784, 40
  %v6946 = vpop.permute.xlu0 %6945
  %6947 = vrot.lane.b32.xlu0 %v6786, 40
  %v6948 = vpop.permute.xlu0 %6947
  %6956 = vrot.lane.b32.xlu0 %v6775, 64
  %v6957 = vpop.permute.xlu0 %6956
  %6958 = vrot.lane.b32.xlu0 %v6777, 64
  %v6959 = vpop.permute.xlu0 %6958
  %6960 = vrot.lane.b32.xlu0 %v6787, 64
  %v6961 = vpop.permute.xlu0 %6960
  %6962 = vrot.lane.b32.xlu0 %v6789, 64
  %v6963 = vpop.permute.xlu0 %6962
  %6970 = vrot.lane.b32.xlu0 %v6776, 88
  %v6971 = vpop.permute.xlu0 %6970
  %6972 = vrot.lane.b32.xlu0 %v6778, 88
  %v6973 = vpop.permute.xlu0 %6972
  %6974 = vrot.lane.b32.xlu0 %v6788, 88
  %v6975 = vpop.permute.xlu0 %6974
  %6976 = vrot.lane.b32.xlu0 %v6790, 88
  %v6977 = vpop.permute.xlu0 %6976
  %6983 = vrot.lane.b32.xlu0 %v6777, 112
  %v6984 = vpop.permute.xlu0 %6983
  %6985 = vrot.lane.b32.xlu0 %v6779, 112
  %v6986 = vpop.permute.xlu0 %6985
  %6987 = vrot.lane.b32.xlu0 %v6789, 112
  %v6988 = vpop.permute.xlu0 %6987
  %6989 = vrot.lane.b32.xlu0 %v6791, 112
  %v6990 = vpop.permute.xlu0 %6989
  %6996 = vrot.lane.b32.xlu0 %v6778, 8
  %v6997 = vpop.permute.xlu0 %6996
  %6998 = vrot.lane.b32.xlu0 %v6780, 8
  %v6999 = vpop.permute.xlu0 %6998
  %7000 = vrot.lane.b32.xlu0 %v6790, 8
  %v7001 = vpop.permute.xlu0 %7000
  %7002 = vrot.lane.b32.xlu0 %v6792, 8
  %v7003 = vpop.permute.xlu0 %7002
  %7010 = vrot.lane.b32.xlu0 %v6781, 32
  %v7011 = vpop.permute.xlu0 %7010
  %7012 = vrot.lane.b32.xlu0 %v6783, 32
  %v7013 = vpop.permute.xlu0 %7012
  %7014 = vrot.lane.b32.xlu0 %v6793, 32
  %v7015 = vpop.permute.xlu0 %7014
  %7016 = vrot.lane.b32.xlu0 %v6795, 32
  %v7017 = vpop.permute.xlu0 %7016
  %7024 = vrot.lane.b32.xlu0 %v6782, 56
  %v7025 = vpop.permute.xlu0 %7024
  %7026 = vrot.lane.b32.xlu0 %v6784, 56
  %v7027 = vpop.permute.xlu0 %7026
  %7028 = vrot.lane.b32.xlu0 %v6794, 56
  %v7029 = vpop.permute.xlu0 %7028
  %7030 = vrot.lane.b32.xlu0 %v6796, 56
  %v7031 = vpop.permute.xlu0 %7030
  %7037 = vrot.lane.b32.xlu0 %v6783, 80
  %v7038 = vpop.permute.xlu0 %7037
  %7039 = vrot.lane.b32.xlu0 %v6785, 80
  %v7040 = vpop.permute.xlu0 %7039
  %7041 = vrot.lane.b32.xlu0 %v6795, 80
  %v7042 = vpop.permute.xlu0 %7041
  %7043 = vrot.lane.b32.xlu0 %v6797, 80
  %v7044 = vpop.permute.xlu0 %7043
  %7050 = vrot.lane.b32.xlu0 %v6784, 104
  %v7051 = vpop.permute.xlu0 %7050
  %7052 = vrot.lane.b32.xlu0 %v6786, 104
  %v7053 = vpop.permute.xlu0 %7052
  %7054 = vrot.lane.b32.xlu0 %v6796, 104
  %v7055 = vpop.permute.xlu0 %7054
  %7056 = vrot.lane.b32.xlu0 %v6798, 104
  %v7057 = vpop.permute.xlu0 %7056
  %v7062 = vsel %vm119, %v6763, %v6852
  %v7063 = vsel %vm119, %v6765, %v6854
  %v7064 = vsel %vm119, %v6775, %v6856
  %v7065 = vsel %vm119, %v6777, %v6858
  %v7066 = vsel %vm156, %v7062, %v6868
  %v7067 = vsel %vm156, %v7063, %v6870
  %v7068 = vsel %vm156, %v7064, %v6872
  %v7069 = vsel %vm156, %v7065, %v6874
  %v7070 = vsel %vm4370, %v7066, %v6882
  %v7071 = vsel %vm4370, %v7067, %v6884
  %v7072 = vsel %vm4370, %v7068, %v6886
  %v7073 = vsel %vm4370, %v7069, %v6888
  %v7074 = vsel %vm4565, %v7070, %v6898
  %v7075 = vsel %vm4565, %v7071, %v6900
  %v7076 = vsel %vm4565, %v7072, %v6902
  %v7077 = vsel %vm4565, %v7073, %v6904
  %v7078 = vsel %vm4760, %v7074, %v6914
  %v7079 = vsel %vm4760, %v7075, %v6916
  %v7080 = vsel %vm4760, %v7076, %v6918
  %v7081 = vsel %vm4760, %v7077, %v6920
  %v7082 = vsel %vm3917, %v6914, %v6928
  %v7083 = vsel %vm3917, %v6916, %v6930
  %v7084 = vsel %vm3917, %v6918, %v6932
  %v7085 = vsel %vm3917, %v6920, %v6934
  %v7086 = vsel %vm4111, %v7082, %v6942
  %v7087 = vsel %vm4111, %v7083, %v6944
  %v7088 = vsel %vm4111, %v7084, %v6946
  %v7089 = vsel %vm4111, %v7085, %v6948
  %v7090 = vsel %vm4305, %v7086, %v6957
  %v7091 = vsel %vm4305, %v7087, %v6959
  %v7092 = vsel %vm4305, %v7088, %v6961
  %v7093 = vsel %vm4305, %v7089, %v6963
  %v7094 = vsel %vm4500, %v7090, %v6971
  %v7095 = vsel %vm4500, %v7091, %v6973
  %v7096 = vsel %vm4500, %v7092, %v6975
  %v7097 = vsel %vm4500, %v7093, %v6977
  %v7098 = vsel %vm4695, %v7094, %v6984
  %v7099 = vsel %vm4695, %v7095, %v6986
  %v7100 = vsel %vm4695, %v7096, %v6988
  %v7101 = vsel %vm4695, %v7097, %v6990
  %v7102 = vsel %vm3852, %v6984, %v6997
  %v7103 = vsel %vm3852, %v6986, %v6999
  %v7104 = vsel %vm3852, %v6988, %v7001
  %v7105 = vsel %vm3852, %v6990, %v7003
  %v7106 = vsel %vm4046, %v7102, %v7011
  %v7107 = vsel %vm4046, %v7103, %v7013
  %v7108 = vsel %vm4046, %v7104, %v7015
  %v7109 = vsel %vm4046, %v7105, %v7017
  %v7110 = vsel %vm4240, %v7106, %v7025
  %v7111 = vsel %vm4240, %v7107, %v7027
  %v7112 = vsel %vm4240, %v7108, %v7029
  %v7113 = vsel %vm4240, %v7109, %v7031
  %v7114 = vsel %vm4435, %v7110, %v7038
  %v7115 = vsel %vm4435, %v7111, %v7040
  %v7116 = vsel %vm4435, %v7112, %v7042
  %v7117 = vsel %vm4435, %v7113, %v7044
  %v7118 = vsel %vm4630, %v7114, %v7051
  %v7119 = vsel %vm4630, %v7115, %v7053
  %v7120 = vsel %vm4630, %v7116, %v7055
  %v7121 = vsel %vm4630, %v7117, %v7057
  %v7122 = vpack.c.bf16 %v7079, %v7078
  %v7123 = vpack.c.bf16 %v7099, %v7098
  %v7124 = vpack.c.bf16 %v7119, %v7118
  %v7125 = vpack.c.bf16 %v7081, %v7080
  %v7126 = vpack.c.bf16 %v7101, %v7100
  %v7127 = vpack.c.bf16 %v7121, %v7120
  %v7128 = vlaneseq
  %v7129 = vshrl.u32 %v7128, 7
  %v7130 = vsub.s32 2, %v7129
  %v7131 = vrot.slane %v17, %v7130
  %v7180 = vunpack.c.l.b16 %v6799
  %v7181 = vunpack.c.l.b16 %v6800
  %v7182 = vunpack.c.l.b16 %v6801
  %v7183 = vunpack.c.l.b16 %v6802
  %v7184 = vunpack.c.l.b16 %v6803
  %v7185 = vunpack.c.l.b16 %v6804
  %v7186 = vunpack.c.l.b16 %v6805
  %v7187 = vunpack.c.l.b16 %v6806
  %v7188 = vunpack.c.l.b16 %v6807
  %v7189 = vunpack.c.l.b16 %v6808
  %v7190 = vunpack.c.l.b16 %v6809
  %v7191 = vunpack.c.l.b16 %v6810
  %v7192 = vunpack.c.l.b16 %v6811
  %v7193 = vunpack.c.l.b16 %v6812
  %v7194 = vunpack.c.l.b16 %v6813
  %v7195 = vunpack.c.l.b16 %v6814
  %v7196 = vunpack.c.l.b16 %v6815
  %v7197 = vunpack.c.l.b16 %v6816
  %v7198 = vunpack.c.l.b16 %v6817
  %v7199 = vunpack.c.l.b16 %v6818
  %v7200 = vunpack.c.l.b16 %v6819
  %v7201 = vunpack.c.l.b16 %v6820
  %v7202 = vunpack.c.l.b16 %v6821
  %v7203 = vunpack.c.l.b16 %v6822
  %v7204 = vunpack.c.l.b16 %v6823
  %v7205 = vunpack.c.l.b16 %v6824
  %v7206 = vunpack.c.l.b16 %v6825
  %v7207 = vunpack.c.l.b16 %v6826
  %v7208 = vunpack.c.l.b16 %v6827
  %v7209 = vunpack.c.l.b16 %v6828
  %v7210 = vunpack.c.l.b16 %v6829
  %v7211 = vunpack.c.l.b16 %v6830
  %v7212 = vunpack.c.l.b16 %v6831
  %v7213 = vunpack.c.l.b16 %v6832
  %v7214 = vunpack.c.l.b16 %v6833
  %v7215 = vunpack.c.l.b16 %v6834
  %v7216 = vunpack.c.l.b16 %v6835
  %v7217 = vunpack.c.l.b16 %v6836
  %v7218 = vunpack.c.l.b16 %v6837
  %v7219 = vunpack.c.l.b16 %v6838
  %v7220 = vunpack.c.l.b16 %v6839
  %v7221 = vunpack.c.l.b16 %v6840
  %v7222 = vunpack.c.l.b16 %v6841
  %v7223 = vunpack.c.l.b16 %v6842
  %v7224 = vunpack.c.l.b16 %v6843
  %v7225 = vunpack.c.l.b16 %v6844
  %v7226 = vunpack.c.l.b16 %v6845
  %v7227 = vunpack.c.l.b16 %v6846
  %v7228 = vpack.c.b16 %v7181, %v7180
  %v7229 = vpack.c.b16 %v7183, %v7182
  %v7230 = vpack.c.b16 %v7185, %v7184
  %v7231 = vpack.c.b16 %v7187, %v7186
  %v7232 = vpack.c.b16 %v7189, %v7188
  %v7233 = vpack.c.b16 %v7191, %v7190
  %v7234 = vpack.c.b16 %v7193, %v7192
  %v7235 = vpack.c.b16 %v7195, %v7194
  %v7236 = vpack.c.b16 %v7197, %v7196
  %v7237 = vpack.c.b16 %v7199, %v7198
  %v7238 = vpack.c.b16 %v7201, %v7200
  %v7239 = vpack.c.b16 %v7203, %v7202
  %v7240 = vpack.c.b16 %v7205, %v7204
  %v7241 = vpack.c.b16 %v7207, %v7206
  %v7242 = vpack.c.b16 %v7209, %v7208
  %v7243 = vpack.c.b16 %v7211, %v7210
  %v7244 = vpack.c.b16 %v7213, %v7212
  %v7245 = vpack.c.b16 %v7215, %v7214
  %v7246 = vpack.c.b16 %v7217, %v7216
  %v7247 = vpack.c.b16 %v7219, %v7218
  %v7248 = vpack.c.b16 %v7221, %v7220
  %v7249 = vpack.c.b16 %v7223, %v7222
  %v7250 = vpack.c.b16 %v7225, %v7224
  %v7251 = vpack.c.b16 %v7227, %v7226
  %7276 = vmatprep.subr.bf16.mxu0 0
  %7277 = vmatpush1.bf16.msra.mxu0 %v7228
  %7278 = vmatprep.subr.bf16.mxu0 0
  %7279 = vmatpush1.bf16.msra.mxu0 %v7229
  %7280 = vmatprep.subr.bf16.mxu0 0
  %7281 = vmatpush1.bf16.msra.mxu0 %v7230
  %7282 = vmatprep.subr.bf16.mxu0 0
  %7283 = vmatpush1.bf16.msra.mxu0 %v7231
  %7284 = vmatprep.subr.bf16.mxu0 0
  %7285 = vmatpush1.bf16.msra.mxu0 %v7232
  %7286 = vmatprep.subr.bf16.mxu0 0
  %7287 = vmatpush1.bf16.msra.mxu0 %v7233
  %7288 = vmatprep.subr.bf16.mxu0 0
  %7289 = vmatpush1.bf16.msra.mxu0 %v7234
  %7290 = vmatprep.subr.bf16.mxu0 0
  %7291 = vmatpush1.bf16.msra.mxu0 %v7235
  %7292 = vmatprep.subr.bf16.mxu0 0
  %7293 = vmatpush1.bf16.msra.mxu0 %v7236
  %7294 = vmatprep.subr.bf16.mxu0 0
  %7295 = vmatpush1.bf16.msra.mxu0 %v7237
  %7296 = vmatprep.subr.bf16.mxu0 0
  %7297 = vmatpush1.bf16.msra.mxu0 %v7238
  %7298 = vmatprep.subr.bf16.mxu0 0
  %7299 = vmatpush1.bf16.msra.mxu0 %v7239
  %7300 = vmatprep.subr.bf16.mxu0 0
  %7301 = vmatpush1.bf16.msra.mxu0 %v7240
  %7302 = vmatprep.subr.bf16.mxu0 0
  %7303 = vmatpush1.bf16.msra.mxu0 %v7241
  %7304 = vmatprep.subr.bf16.mxu0 0
  %7305 = vmatpush1.bf16.msra.mxu0 %v7242
  %7306 = vmatprep.subr.bf16.mxu0 0
  %7307 = vmatpush1.bf16.msra.mxu0 %v7243
  %7308 = vmatprep.mubr.bf16.mxu0 %v7123
  %7309 = vmatmul.mubr.bf16.gmra.mrb[0].mxu0 %v7122
  %v7310 = vpop.f32.mrb[0].mxu0
  %v7311 = vadd.f32 %v7131, %v7310
  %v7312 = vpop.f32.mrb[0].mxu0
  %v7313 = vpop.f32.mrb[0].mxu0
  %v7314 = vadd.f32 %v7131, %v7313
  %v7315 = vpop.f32.mrb[0].mxu0
  %7316 = vmatprep.mubr.bf16.mxu0 %v7126
  %7317 = vmatmul.mubr.bf16.gmra.mrb[0].mxu0 %v7125
  %v7318 = vpop.f32.mrb[0].mxu0
  %v7319 = vadd.f32 %v7131, %v7318
  %v7320 = vpop.f32.mrb[0].mxu0
  %v7321 = vpop.f32.mrb[0].mxu0
  %v7322 = vadd.f32 %v7131, %v7321
  %v7323 = vpop.f32.mrb[0].mxu0
  %7324 = vdwg.mxu0
  %7325 = vmatprep.subr.bf16.mxu0 0
  %7326 = vmatpush1.bf16.msra.mxu0 %v7244
  %7327 = vmatprep.subr.bf16.mxu0 0
  %7328 = vmatpush1.bf16.msra.mxu0 %v7245
  %7329 = vmatprep.subr.bf16.mxu0 0
  %7330 = vmatpush1.bf16.msra.mxu0 %v7246
  %7331 = vmatprep.subr.bf16.mxu0 0
  %7332 = vmatpush1.bf16.msra.mxu0 %v7247
  %7333 = vmatprep.subr.bf16.mxu0 0
  %7334 = vmatpush1.bf16.msra.mxu0 %v7248
  %7335 = vmatprep.subr.bf16.mxu0 0
  %7336 = vmatpush1.bf16.msra.mxu0 %v7249
  %7337 = vmatprep.subr.bf16.mxu0 0
  %7338 = vmatpush1.bf16.msra.mxu0 %v7250
  %7339 = vmatprep.subr.bf16.mxu0 0
  %7340 = vmatpush1.bf16.msra.mxu0 %v7251
  %7341 = vmatprep.subr.bf16.mxu0 0
  %7342 = vmatpush1.bf16.msra.mxu0 0
  %7343 = vmatprep.subr.bf16.mxu0 0
  %7344 = vmatpush1.bf16.msra.mxu0 0
  %7345 = vmatprep.subr.bf16.mxu0 0
  %7346 = vmatpush1.bf16.msra.mxu0 0
  %7347 = vmatprep.subr.bf16.mxu0 0
  %7348 = vmatpush1.bf16.msra.mxu0 0
  %7349 = vmatprep.subr.bf16.mxu0 0
  %7350 = vmatpush1.bf16.msra.mxu0 0
  %7351 = vmatprep.subr.bf16.mxu0 0
  %7352 = vmatpush1.bf16.msra.mxu0 0
  %7353 = vmatprep.subr.bf16.mxu0 0
  %7354 = vmatpush1.bf16.msra.mxu0 0
  %7355 = vmatprep.subr.bf16.mxu0 0
  %7356 = vmatpush1.bf16.msra.mxu0 0
  %7357 = vmatprep.mubr.bf16.mxu0 0
  %7358 = vmatmul.mubr.bf16.gmra.mrb[0].mxu0 %v7124
  %v7359 = vpop.f32.mrb[0].mxu0
  %v7360 = vadd.f32 %v7311, %v7359
  %v7361 = vpop.f32.mrb[0].mxu0
  %v7362 = vpop.f32.mrb[0].mxu0
  %v7363 = vadd.f32 %v7314, %v7362
  %v7364 = vpop.f32.mrb[0].mxu0
  %7365 = vmatprep.mubr.bf16.mxu0 0
  %7366 = vmatmul.mubr.bf16.gmra.mrb[0].mxu0 %v7127
  %v7367 = vpop.f32.mrb[0].mxu0
  %v7368 = vadd.f32 %v7319, %v7367
  %v7369 = vpop.f32.mrb[0].mxu0
  %v7370 = vpop.f32.mrb[0].mxu0
  %v7371 = vadd.f32 %v7322, %v7370
  %v7372 = vpop.f32.mrb[0].mxu0
  %7373 = vdwg.mxu0
  %v7374 = vmax.f32 %v7360, 0.0
  %v7375 = vmax.f32 %v7363, 0.0
  %v7376 = vmax.f32 %v7368, 0.0
  %v7377 = vmax.f32 %v7371, 0.0
  %7378 = vst.msk [vmem:[%s4] sm:$0xff] %vm156, %v7374
  %7379 = vst.msk [vmem:[%s4 + $0x8] sm:$0xff] %vm156, %v7375
  %7380 = vst.msk [vmem:[%s4 + $0x10] sm:$0xff] %vm156, %v7376
  %7381 = vst.msk [vmem:[%s4 + $0x18] sm:$0xff] %vm156, %v7377
  %s7382 = scalar_lea.vmem [#allocation4], 40
  %7383 = vst.msk [vmem:[%s7382] sm:$0xff] %vm156, %v7374
  %7384 = vst.msk [vmem:[%s7382 + $0x8] sm:$0xff] %vm156, %v7375
  %7385 = vst.msk [vmem:[%s7382 + $0x20] sm:$0xff] %vm156, %v7376
  %7386 = vst.msk [vmem:[%s7382 + $0x28] sm:$0xff] %vm156, %v7377
  %v7387 = vld [vmem:[#allocation4] sm:$0xff]
  %v7388 = vld [vmem:[#allocation4 + $0x8] sm:$0xff]
  %v7389 = vld [vmem:[#allocation4 + $0x10] sm:$0xff]
  %v7390 = vld [vmem:[#allocation4 + $0x18] sm:$0xff]
  %v7391 = vld [vmem:[#allocation4 + $0x20] sm:$0xff]
  %v7392 = vld [vmem:[#allocation4 + $0x28] sm:$0xff]
  %v7393 = vld [vmem:[#allocation4 + $0x30] sm:$0xff]
  %v7394 = vld [vmem:[#allocation4 + $0x38] sm:$0xff]
  %v7395 = vld [vmem:[#allocation4 + $0x40] sm:$0xff]
  %v7396 = vld [vmem:[#allocation4 + $0x48] sm:$0xff]
  %v7397 = vld [vmem:[#allocation4 + $0x50] sm:$0xff]
  %v7398 = vld [vmem:[#allocation4 + $0x58] sm:$0xff]
  %v7399 = vld [vmem:[#allocation4 + $0x60] sm:$0xff]
  %v7400 = vld [vmem:[#allocation4 + $0x68] sm:$0xff]
  %v7401 = vld [vmem:[#allocation4 + $0x70] sm:$0xff]
  %v7402 = vld [vmem:[#allocation4 + $0x78] sm:$0xff]
  %v7403 = vld [vmem:[%s1 + $0x160] sm:$0xf]
  %v7404 = vld [vmem:[%s1 + $0x164] sm:$0xf]
  %v7405 = vld [vmem:[%s1 + $0x168] sm:$0xf]
  %v7406 = vld [vmem:[%s1 + $0x16c] sm:$0xf]
  %v7407 = vld [vmem:[%s1 + $0x170] sm:$0xf]
  %v7408 = vld [vmem:[%s1 + $0x174] sm:$0xf]
  %v7409 = vld [vmem:[%s1 + $0x178] sm:$0xf]
  %v7410 = vld [vmem:[%s1 + $0x17c] sm:$0xf]
  %v7411 = vld [vmem:[%s1 + $0x180] sm:$0xf]
  %v7412 = vld [vmem:[%s1 + $0x184] sm:$0xf]
  %v7413 = vld [vmem:[%s1 + $0x188] sm:$0xf]
  %v7414 = vld [vmem:[%s1 + $0x18c] sm:$0xf]
  %v7415 = vld [vmem:[%s1 + $0x190] sm:$0xf]
  %v7416 = vld [vmem:[%s1 + $0x194] sm:$0xf]
  %v7417 = vld [vmem:[%s1 + $0x198] sm:$0xf]
  %v7418 = vld [vmem:[%s1 + $0x19c] sm:$0xf]
  %v7419 = vld [vmem:[%s1 + $0x1a0] sm:$0xf]
  %v7420 = vld [vmem:[%s1 + $0x1a4] sm:$0xf]
  %v7421 = vld [vmem:[%s1 + $0x1a8] sm:$0xf]
  %v7422 = vld [vmem:[%s1 + $0x1ac] sm:$0xf]
  %v7423 = vld [vmem:[%s1 + $0x1b0] sm:$0xf]
  %v7424 = vld [vmem:[%s1 + $0x1b4] sm:$0xf]
  %v7425 = vld [vmem:[%s1 + $0x1b8] sm:$0xf]
  %v7426 = vld [vmem:[%s1 + $0x1bc] sm:$0xf]
  %v7427 = vld [vmem:[%s1 + $0x1c0] sm:$0xf]
  %v7428 = vld [vmem:[%s1 + $0x1c4] sm:$0xf]
  %v7429 = vld [vmem:[%s1 + $0x1c8] sm:$0xf]
  %v7430 = vld [vmem:[%s1 + $0x1cc] sm:$0xf]
  %v7431 = vld [vmem:[%s1 + $0x1d0] sm:$0xf]
  %v7432 = vld [vmem:[%s1 + $0x1d4] sm:$0xf]
  %v7433 = vld [vmem:[%s1 + $0x1d8] sm:$0xf]
  %v7434 = vld [vmem:[%s1 + $0x1dc] sm:$0xf]
  %v7435 = vld [vmem:[%s1 + $0x1e0] sm:$0xf]
  %v7436 = vld [vmem:[%s1 + $0x1e4] sm:$0xf]
  %v7437 = vld [vmem:[%s1 + $0x1e8] sm:$0xf]
  %v7438 = vld [vmem:[%s1 + $0x1ec] sm:$0xf]
  %v7439 = vld [vmem:[%s1 + $0x1f0] sm:$0xf]
  %v7440 = vld [vmem:[%s1 + $0x1f4] sm:$0xf]
  %v7441 = vld [vmem:[%s1 + $0x1f8] sm:$0xf]
  %v7442 = vld [vmem:[%s1 + $0x1fc] sm:$0xf]
  %v7443 = vld [vmem:[%s1 + $0x200] sm:$0xf]
  %v7444 = vld [vmem:[%s1 + $0x204] sm:$0xf]
  %v7445 = vld [vmem:[%s1 + $0x208] sm:$0xf]
  %v7446 = vld [vmem:[%s1 + $0x20c] sm:$0xf]
  %v7447 = vld [vmem:[%s1 + $0x210] sm:$0xf]
  %v7448 = vld [vmem:[%s1 + $0x214] sm:$0xf]
  %v7449 = vld [vmem:[%s1 + $0x218] sm:$0xf]
  %v7450 = vld [vmem:[%s1 + $0x21c] sm:$0xf]
  %v7451 = vld [vmem:[%s1 + $0x220] sm:$0xf]
  %v7452 = vld [vmem:[%s1 + $0x224] sm:$0xf]
  %v7453 = vld [vmem:[%s1 + $0x228] sm:$0xf]
  %v7454 = vld [vmem:[%s1 + $0x22c] sm:$0xf]
  %v7455 = vld [vmem:[%s1 + $0x230] sm:$0xf]
  %v7456 = vld [vmem:[%s1 + $0x234] sm:$0xf]
  %7461 = vrot.lane.b32.xlu0 %v7388, 48
  %v7462 = vpop.permute.xlu0 %7461
  %7463 = vrot.lane.b32.xlu0 %v7389, 48
  %v7464 = vpop.permute.xlu0 %7463
  %7465 = vrot.lane.b32.xlu0 %v7392, 48
  %v7466 = vpop.permute.xlu0 %7465
  %7467 = vrot.lane.b32.xlu0 %v7393, 48
  %v7468 = vpop.permute.xlu0 %7467
  %7475 = vrot.lane.b32.xlu0 %v7389, 96
  %v7476 = vpop.permute.xlu0 %7475
  %7477 = vrot.lane.b32.xlu0 %v7390, 96
  %v7478 = vpop.permute.xlu0 %7477
  %7479 = vrot.lane.b32.xlu0 %v7393, 96
  %v7480 = vpop.permute.xlu0 %7479
  %7481 = vrot.lane.b32.xlu0 %v7394, 96
  %v7482 = vpop.permute.xlu0 %7481
  %7490 = vrot.lane.b32.xlu0 %v7391, 16
  %v7491 = vpop.permute.xlu0 %7490
  %7492 = vrot.lane.b32.xlu0 %v7392, 16
  %v7493 = vpop.permute.xlu0 %7492
  %7494 = vrot.lane.b32.xlu0 %v7395, 16
  %v7495 = vpop.permute.xlu0 %7494
  %7496 = vrot.lane.b32.xlu0 %v7396, 16
  %v7497 = vpop.permute.xlu0 %7496
  %7503 = vrot.lane.b32.xlu0 %v7392, 64
  %v7504 = vpop.permute.xlu0 %7503
  %7505 = vrot.lane.b32.xlu0 %v7393, 64
  %v7506 = vpop.permute.xlu0 %7505
  %7507 = vrot.lane.b32.xlu0 %v7396, 64
  %v7508 = vpop.permute.xlu0 %7507
  %7509 = vrot.lane.b32.xlu0 %v7397, 64
  %v7510 = vpop.permute.xlu0 %7509
  %7516 = vrot.lane.b32.xlu0 %v7393, 112
  %v7517 = vpop.permute.xlu0 %7516
  %7518 = vrot.lane.b32.xlu0 %v7394, 112
  %v7519 = vpop.permute.xlu0 %7518
  %7520 = vrot.lane.b32.xlu0 %v7397, 112
  %v7521 = vpop.permute.xlu0 %7520
  %7522 = vrot.lane.b32.xlu0 %v7398, 112
  %v7523 = vpop.permute.xlu0 %7522
  %7530 = vrot.lane.b32.xlu0 %v7395, 32
  %v7531 = vpop.permute.xlu0 %7530
  %7532 = vrot.lane.b32.xlu0 %v7396, 32
  %v7533 = vpop.permute.xlu0 %7532
  %7534 = vrot.lane.b32.xlu0 %v7399, 32
  %v7535 = vpop.permute.xlu0 %7534
  %7536 = vrot.lane.b32.xlu0 %v7400, 32
  %v7537 = vpop.permute.xlu0 %7536
  %7543 = vrot.lane.b32.xlu0 %v7396, 80
  %v7544 = vpop.permute.xlu0 %7543
  %7545 = vrot.lane.b32.xlu0 %v7397, 80
  %v7546 = vpop.permute.xlu0 %7545
  %7547 = vrot.lane.b32.xlu0 %v7400, 80
  %v7548 = vpop.permute.xlu0 %7547
  %7549 = vrot.lane.b32.xlu0 %v7401, 80
  %v7550 = vpop.permute.xlu0 %7549
  %v7555 = vsel %vm156, %v7387, %v7462
  %v7556 = vsel %vm156, %v7388, %v7464
  %v7557 = vsel %vm156, %v7391, %v7466
  %v7558 = vsel %vm156, %v7392, %v7468
  %v7559 = vsel %vm4565, %v7555, %v7476
  %v7560 = vsel %vm4565, %v7556, %v7478
  %v7561 = vsel %vm4565, %v7557, %v7480
  %v7562 = vsel %vm4565, %v7558, %v7482
  %v7563 = vsel %vm3917, %v7476, %v7491
  %v7564 = vsel %vm3917, %v7478, %v7493
  %v7565 = vsel %vm3917, %v7480, %v7495
  %v7566 = vsel %vm3917, %v7482, %v7497
  %v7567 = vsel %vm4305, %v7563, %v7504
  %v7568 = vsel %vm4305, %v7564, %v7506
  %v7569 = vsel %vm4305, %v7565, %v7508
  %v7570 = vsel %vm4305, %v7566, %v7510
  %v7571 = vsel %vm4695, %v7567, %v7517
  %v7572 = vsel %vm4695, %v7568, %v7519
  %v7573 = vsel %vm4695, %v7569, %v7521
  %v7574 = vsel %vm4695, %v7570, %v7523
  %v7575 = vsel %vm4046, %v7517, %v7531
  %v7576 = vsel %vm4046, %v7519, %v7533
  %v7577 = vsel %vm4046, %v7521, %v7535
  %v7578 = vsel %vm4046, %v7523, %v7537
  %v7579 = vsel %vm4435, %v7575, %v7544
  %v7580 = vsel %vm4435, %v7576, %v7546
  %v7581 = vsel %vm4435, %v7577, %v7548
  %v7582 = vsel %vm4435, %v7578, %v7550
  %v7583 = vpack.c.bf16 %v7560, %v7559
  %v7584 = vpack.c.bf16 %v7572, %v7571
  %v7585 = vpack.c.bf16 %v7580, %v7579
  %v7586 = vpack.c.bf16 %v7398, %v7397
  %v7587 = vpack.c.bf16 %v7562, %v7561
  %v7588 = vpack.c.bf16 %v7574, %v7573
  %v7589 = vpack.c.bf16 %v7582, %v7581
  %v7590 = vpack.c.bf16 %v7402, %v7401
  %v7591 = vlaneseq
  %v7592 = vshrl.u32 %v7591, 7
  %v7593 = vsub.s32 3, %v7592
  %v7594 = vrot.slane %v17, %v7593
  %v7649 = vunpack.c.l.b16 %v7403
  %v7650 = vunpack.c.l.b16 %v7404
  %v7651 = vunpack.c.l.b16 %v7405
  %v7652 = vunpack.c.l.b16 %v7406
  %v7653 = vunpack.c.l.b16 %v7407
  %v7654 = vunpack.c.l.b16 %v7408
  %v7655 = vunpack.c.l.b16 %v7409
  %v7656 = vunpack.c.l.b16 %v7410
  %v7657 = vunpack.c.l.b16 %v7411
  %v7658 = vunpack.c.l.b16 %v7412
  %v7659 = vunpack.c.l.b16 %v7413
  %v7660 = vunpack.c.l.b16 %v7414
  %v7661 = vunpack.c.l.b16 %v7415
  %v7662 = vunpack.c.l.b16 %v7416
  %v7663 = vunpack.c.l.b16 %v7417
  %v7664 = vunpack.c.l.b16 %v7418
  %v7665 = vunpack.c.l.b16 %v7419
  %v7666 = vunpack.c.l.b16 %v7420
  %v7667 = vunpack.c.l.b16 %v7421
  %v7668 = vunpack.c.l.b16 %v7422
  %v7669 = vunpack.c.l.b16 %v7423
  %v7670 = vunpack.c.l.b16 %v7424
  %v7671 = vunpack.c.l.b16 %v7425
  %v7672 = vunpack.c.l.b16 %v7426
  %v7673 = vunpack.c.l.b16 %v7427
  %v7674 = vunpack.c.l.b16 %v7428
  %v7675 = vunpack.c.l.b16 %v7429
  %v7676 = vunpack.c.l.b16 %v7430
  %v7677 = vunpack.c.l.b16 %v7431
  %v7678 = vunpack.c.l.b16 %v7432
  %v7679 = vunpack.c.l.b16 %v7433
  %v7680 = vunpack.c.l.b16 %v7434
  %v7681 = vunpack.c.l.b16 %v7435
  %v7682 = vunpack.c.l.b16 %v7436
  %v7683 = vunpack.c.l.b16 %v7437
  %v7684 = vunpack.c.l.b16 %v7438
  %v7685 = vunpack.c.l.b16 %v7439
  %v7686 = vunpack.c.l.b16 %v7440
  %v7687 = vunpack.c.l.b16 %v7441
  %v7688 = vunpack.c.l.b16 %v7442
  %v7689 = vunpack.c.l.b16 %v7443
  %v7690 = vunpack.c.l.b16 %v7444
  %v7691 = vunpack.c.l.b16 %v7445
  %v7692 = vunpack.c.l.b16 %v7446
  %v7693 = vunpack.c.l.b16 %v7447
  %v7694 = vunpack.c.l.b16 %v7448
  %v7695 = vunpack.c.l.b16 %v7449
  %v7696 = vunpack.c.l.b16 %v7450
  %v7697 = vunpack.c.l.b16 %v7451
  %v7698 = vunpack.c.l.b16 %v7452
  %v7699 = vunpack.c.l.b16 %v7453
  %v7700 = vunpack.c.l.b16 %v7454
  %v7701 = vunpack.c.l.b16 %v7455
  %v7702 = vunpack.c.l.b16 %v7456
  %v7703 = vpack.c.b16 %v7650, %v7649
  %v7704 = vpack.c.b16 %v7652, %v7651
  %v7705 = vpack.c.b16 %v7654, %v7653
  %v7706 = vpack.c.b16 %v7656, %v7655
  %v7707 = vpack.c.b16 %v7658, %v7657
  %v7708 = vpack.c.b16 %v7660, %v7659
  %v7709 = vpack.c.b16 %v7662, %v7661
  %v7710 = vpack.c.b16 %v7664, %v7663
  %v7711 = vpack.c.b16 %v7666, %v7665
  %v7712 = vpack.c.b16 %v7668, %v7667
  %v7713 = vpack.c.b16 %v7670, %v7669
  %v7714 = vpack.c.b16 %v7672, %v7671
  %v7715 = vpack.c.b16 %v7674, %v7673
  %v7716 = vpack.c.b16 %v7676, %v7675
  %v7717 = vpack.c.b16 %v7678, %v7677
  %v7718 = vpack.c.b16 %v7680, %v7679
  %v7719 = vpack.c.b16 %v7682, %v7681
  %v7720 = vpack.c.b16 %v7684, %v7683
  %v7721 = vpack.c.b16 %v7686, %v7685
  %v7722 = vpack.c.b16 %v7688, %v7687
  %v7723 = vpack.c.b16 %v7690, %v7689
  %v7724 = vpack.c.b16 %v7692, %v7691
  %v7725 = vpack.c.b16 %v7694, %v7693
  %v7726 = vpack.c.b16 %v7696, %v7695
  %v7727 = vpack.c.b16 %v7698, %v7697
  %v7728 = vpack.c.b16 %v7700, %v7699
  %v7729 = vpack.c.b16 %v7702, %v7701
  %v7758 = vsel %vm156, %v7586, 0
  %v7761 = vsel %vm156, %v7590, 0
  %7763 = vmatprep.subr.bf16.mxu0 0
  %7764 = vmatpush1.bf16.msra.mxu0 %v7703
  %7765 = vmatprep.subr.bf16.mxu0 0
  %7766 = vmatpush1.bf16.msra.mxu0 %v7704
  %7767 = vmatprep.subr.bf16.mxu0 0
  %7768 = vmatpush1.bf16.msra.mxu0 %v7705
  %7769 = vmatprep.subr.bf16.mxu0 0
  %7770 = vmatpush1.bf16.msra.mxu0 %v7706
  %7771 = vmatprep.subr.bf16.mxu0 0
  %7772 = vmatpush1.bf16.msra.mxu0 %v7707
  %7773 = vmatprep.subr.bf16.mxu0 0
  %7774 = vmatpush1.bf16.msra.mxu0 %v7708
  %7775 = vmatprep.subr.bf16.mxu0 0
  %7776 = vmatpush1.bf16.msra.mxu0 %v7709
  %7777 = vmatprep.subr.bf16.mxu0 0
  %7778 = vmatpush1.bf16.msra.mxu0 %v7710
  %7779 = vmatprep.subr.bf16.mxu0 0
  %7780 = vmatpush1.bf16.msra.mxu0 %v7711
  %7781 = vmatprep.subr.bf16.mxu0 0
  %7782 = vmatpush1.bf16.msra.mxu0 %v7712
  %7783 = vmatprep.subr.bf16.mxu0 0
  %7784 = vmatpush1.bf16.msra.mxu0 %v7713
  %7785 = vmatprep.subr.bf16.mxu0 0
  %7786 = vmatpush1.bf16.msra.mxu0 %v7714
  %7787 = vmatprep.subr.bf16.mxu0 0
  %7788 = vmatpush1.bf16.msra.mxu0 %v7715
  %7789 = vmatprep.subr.bf16.mxu0 0
  %7790 = vmatpush1.bf16.msra.mxu0 %v7716
  %7791 = vmatprep.subr.bf16.mxu0 0
  %7792 = vmatpush1.bf16.msra.mxu0 %v7717
  %7793 = vmatprep.subr.bf16.mxu0 0
  %7794 = vmatpush1.bf16.msra.mxu0 %v7718
  %7795 = vmatprep.mubr.bf16.mxu0 %v7584
  %7796 = vmatmul.mubr.bf16.gmra.mrb[0].mxu0 %v7583
  %v7797 = vpop.f32.mrb[0].mxu0
  %v7798 = vadd.f32 %v7594, %v7797
  %v7799 = vpop.f32.mrb[0].mxu0
  %v7800 = vpop.f32.mrb[0].mxu0
  %v7801 = vadd.f32 %v7594, %v7800
  %v7802 = vpop.f32.mrb[0].mxu0
  %7803 = vmatprep.mubr.bf16.mxu0 %v7588
  %7804 = vmatmul.mubr.bf16.gmra.mrb[0].mxu0 %v7587
  %v7805 = vpop.f32.mrb[0].mxu0
  %v7806 = vadd.f32 %v7594, %v7805
  %v7807 = vpop.f32.mrb[0].mxu0
  %v7808 = vpop.f32.mrb[0].mxu0
  %v7809 = vadd.f32 %v7594, %v7808
  %v7810 = vpop.f32.mrb[0].mxu0
  %7811 = vdwg.mxu0
  %7812 = vmatprep.subr.bf16.mxu0 0
  %7813 = vmatpush1.bf16.msra.mxu0 %v7719
  %7814 = vmatprep.subr.bf16.mxu0 0
  %7815 = vmatpush1.bf16.msra.mxu0 %v7720
  %7816 = vmatprep.subr.bf16.mxu0 0
  %7817 = vmatpush1.bf16.msra.mxu0 %v7721
  %7818 = vmatprep.subr.bf16.mxu0 0
  %7819 = vmatpush1.bf16.msra.mxu0 %v7722
  %7820 = vmatprep.subr.bf16.mxu0 0
  %7821 = vmatpush1.bf16.msra.mxu0 %v7723
  %7822 = vmatprep.subr.bf16.mxu0 0
  %7823 = vmatpush1.bf16.msra.mxu0 %v7724
  %7824 = vmatprep.subr.bf16.mxu0 0
  %7825 = vmatpush1.bf16.msra.mxu0 %v7725
  %7826 = vmatprep.subr.bf16.mxu0 0
  %7827 = vmatpush1.bf16.msra.mxu0 %v7726
  %7828 = vmatprep.subr.bf16.mxu0 0
  %7829 = vmatpush1.bf16.msra.mxu0 %v7727
  %7830 = vmatprep.subr.bf16.mxu0 0
  %7831 = vmatpush1.bf16.msra.mxu0 %v7728
  %7832 = vmatprep.subr.bf16.mxu0 0
  %7833 = vmatpush1.bf16.msra.mxu0 %v7729
  %7834 = vmatprep.subr.bf16.mxu0 0
  %7835 = vmatpush1.bf16.msra.mxu0 0
  %7836 = vmatprep.subr.bf16.mxu0 0
  %7837 = vmatpush1.bf16.msra.mxu0 0
  %7838 = vmatprep.subr.bf16.mxu0 0
  %7839 = vmatpush1.bf16.msra.mxu0 0
  %7840 = vmatprep.subr.bf16.mxu0 0
  %7841 = vmatpush1.bf16.msra.mxu0 0
  %7842 = vmatprep.subr.bf16.mxu0 0
  %7843 = vmatpush1.bf16.msra.mxu0 0
  %7844 = vmatprep.mubr.bf16.mxu0 %v7758
  %7845 = vmatmul.mubr.bf16.gmra.mrb[0].mxu0 %v7585
  %v7846 = vpop.f32.mrb[0].mxu0
  %v7847 = vadd.f32 %v7798, %v7846
  %v7848 = vpop.f32.mrb[0].mxu0
  %v7849 = vpop.f32.mrb[0].mxu0
  %v7850 = vadd.f32 %v7801, %v7849
  %v7851 = vpop.f32.mrb[0].mxu0
  %7852 = vmatprep.mubr.bf16.mxu0 %v7761
  %7853 = vmatmul.mubr.bf16.gmra.mrb[0].mxu0 %v7589
  %v7854 = vpop.f32.mrb[0].mxu0
  %v7855 = vadd.f32 %v7806, %v7854
  %v7856 = vpop.f32.mrb[0].mxu0
  %v7857 = vpop.f32.mrb[0].mxu0
  %v7858 = vadd.f32 %v7809, %v7857
  %v7859 = vpop.f32.mrb[0].mxu0
  %7860 = vdwg.mxu0
  %v7861 = vmax.f32 %v7847, 0.0
  %v7862 = vmax.f32 %v7850, 0.0
  %v7863 = vmax.f32 %v7855, 0.0
  %v7864 = vmax.f32 %v7858, 0.0
  %7869 = vrot.lane.b32.xlu0 %v7861, 104
  %v7870 = vpop.permute.xlu0 %7869
  %7871 = vrot.lane.b32.xlu0 %v7862, 104
  %v7872 = vpop.permute.xlu0 %7871
  %7873 = vrot.lane.b32.xlu0 %v7863, 104
  %v7874 = vpop.permute.xlu0 %7873
  %7875 = vrot.lane.b32.xlu0 %v7864, 104
  %v7876 = vpop.permute.xlu0 %7875
  %7881 = vrot.lane.b32.xlu0 %v7861, 80
  %v7882 = vpop.permute.xlu0 %7881
  %7883 = vrot.lane.b32.xlu0 %v7870, 80
  %v7884 = vpop.permute.xlu0 %7883
  %7885 = vrot.lane.b32.xlu0 %v7862, 80
  %v7886 = vpop.permute.xlu0 %7885
  %7887 = vrot.lane.b32.xlu0 %v7872, 80
  %v7888 = vpop.permute.xlu0 %7887
  %7889 = vrot.lane.b32.xlu0 %v7863, 80
  %v7890 = vpop.permute.xlu0 %7889
  %7891 = vrot.lane.b32.xlu0 %v7874, 80
  %v7892 = vpop.permute.xlu0 %7891
  %7893 = vrot.lane.b32.xlu0 %v7864, 80
  %v7894 = vpop.permute.xlu0 %7893
  %7895 = vrot.lane.b32.xlu0 %v7876, 80
  %v7896 = vpop.permute.xlu0 %7895
  %s7905 = scalar_lea.vmem [#allocation5], 56
  %7906 = vst.msk [vmem:[%s7905] sm:$0xff] %vm119, %v7861
  %7907 = vst.msk [vmem:[%s7905 + $0x8] sm:$0xff] %vm119, %v7870
  %7908 = vst.msk [vmem:[%s7905 + $0x10] sm:$0xff] %vm119, %v7862
  %7909 = vst.msk [vmem:[%s7905 + $0x18] sm:$0xff] %vm119, %v7872
  %7910 = vst.msk [vmem:[%s7905 + $0x30] sm:$0xff] %vm119, %v7882
  %7911 = vst.msk [vmem:[%s7905 + $0x38] sm:$0xff] %vm119, %v7884
  %7912 = vst.msk [vmem:[%s7905 + $0x40] sm:$0xff] %vm119, %v7886
  %7913 = vst.msk [vmem:[%s7905 + $0x48] sm:$0xff] %vm119, %v7888
  %7914 = vst.msk [vmem:[%s7905 + $0x60] sm:$0xff] %vm119, %v7863
  %7915 = vst.msk [vmem:[%s7905 + $0x68] sm:$0xff] %vm119, %v7874
  %7916 = vst.msk [vmem:[%s7905 + $0x70] sm:$0xff] %vm119, %v7864
  %7917 = vst.msk [vmem:[%s7905 + $0x78] sm:$0xff] %vm119, %v7876
  %7918 = vst.msk [vmem:[%s7905 + $0x90] sm:$0xff] %vm119, %v7890
  %7919 = vst.msk [vmem:[%s7905 + $0x98] sm:$0xff] %vm119, %v7892
  %7920 = vst.msk [vmem:[%s7905 + $0xa0] sm:$0xff] %vm119, %v7894
  %7921 = vst.msk [vmem:[%s7905 + $0xa8] sm:$0xff] %vm119, %v7896
  %v7922 = vld [vmem:[#allocation5] sm:$0xff]
  %v7923 = vld [vmem:[#allocation5 + $0x8] sm:$0xff]
  %v7924 = vld [vmem:[#allocation5 + $0x10] sm:$0xff]
  %v7925 = vld [vmem:[#allocation5 + $0x18] sm:$0xff]
  %v7926 = vld [vmem:[#allocation5 + $0x20] sm:$0xff]
  %v7927 = vld [vmem:[#allocation5 + $0x28] sm:$0xff]
  %v7928 = vld [vmem:[#allocation5 + $0x30] sm:$0xff]
  %v7929 = vld [vmem:[#allocation5 + $0x38] sm:$0xff]
  %v7930 = vld [vmem:[#allocation5 + $0x40] sm:$0xff]
  %v7931 = vld [vmem:[#allocation5 + $0x48] sm:$0xff]
  %v7932 = vld [vmem:[#allocation5 + $0x50] sm:$0xff]
  %v7933 = vld [vmem:[#allocation5 + $0x58] sm:$0xff]
  %v7934 = vld [vmem:[#allocation5 + $0x60] sm:$0xff]
  %v7935 = vld [vmem:[#allocation5 + $0x68] sm:$0xff]
  %v7936 = vld [vmem:[#allocation5 + $0x70] sm:$0xff]
  %v7937 = vld [vmem:[#allocation5 + $0x78] sm:$0xff]
  %v7938 = vld [vmem:[#allocation5 + $0x80] sm:$0xff]
  %v7939 = vld [vmem:[#allocation5 + $0x88] sm:$0xff]
  %v7940 = vld [vmem:[#allocation5 + $0x90] sm:$0xff]
  %v7941 = vld [vmem:[#allocation5 + $0x98] sm:$0xff]
  %v7942 = vld [vmem:[#allocation5 + $0xa0] sm:$0xff]
  %v7943 = vld [vmem:[#allocation5 + $0xa8] sm:$0xff]
  %v7944 = vld [vmem:[#allocation5 + $0xb0] sm:$0xff]
  %v7945 = vld [vmem:[#allocation5 + $0xb8] sm:$0xff]
  %v7946 = vld [vmem:[#allocation5 + $0xc0] sm:$0xff]
  %v7947 = vld [vmem:[#allocation5 + $0xc8] sm:$0xff]
  %v7948 = vld [vmem:[#allocation5 + $0xd0] sm:$0xff]
  %v7949 = vld [vmem:[#allocation5 + $0xd8] sm:$0xff]
  %v7950 = vld [vmem:[#allocation5 + $0xe0] sm:$0xff]
  %v7951 = vld [vmem:[#allocation5 + $0xe8] sm:$0xff]
  %v7952 = vld [vmem:[#allocation5 + $0xf0] sm:$0xff]
  %v7953 = vld [vmem:[#allocation5 + $0xf8] sm:$0xff]
  %v7954 = vld [vmem:[#allocation5 + $0x100] sm:$0xff]
  %v7955 = vld [vmem:[#allocation5 + $0x108] sm:$0xff]
  %v7956 = vld [vmem:[#allocation5 + $0x110] sm:$0xff]
  %v7957 = vld [vmem:[#allocation5 + $0x118] sm:$0xff]
  %v7958 = vld [vmem:[%s1 + $0x238] sm:$0xf]
  %v7959 = vld [vmem:[%s1 + $0x23c] sm:$0xf]
  %v7960 = vld [vmem:[%s1 + $0x240] sm:$0xf]
  %v7961 = vld [vmem:[%s1 + $0x244] sm:$0xf]
  %v7962 = vld [vmem:[%s1 + $0x248] sm:$0xf]
  %v7963 = vld [vmem:[%s1 + $0x24c] sm:$0xf]
  %v7964 = vld [vmem:[%s1 + $0x250] sm:$0xf]
  %v7965 = vld [vmem:[%s1 + $0x254] sm:$0xf]
  %v7966 = vld [vmem:[%s1 + $0x258] sm:$0xf]
  %v7967 = vld [vmem:[%s1 + $0x25c] sm:$0xf]
  %v7968 = vld [vmem:[%s1 + $0x260] sm:$0xf]
  %v7969 = vld [vmem:[%s1 + $0x264] sm:$0xf]
  %v7970 = vld [vmem:[%s1 + $0x268] sm:$0xf]
  %v7971 = vld [vmem:[%s1 + $0x26c] sm:$0xf]
  %v7972 = vld [vmem:[%s1 + $0x270] sm:$0xf]
  %v7973 = vld [vmem:[%s1 + $0x274] sm:$0xf]
  %v7974 = vld [vmem:[%s1 + $0x278] sm:$0xf]
  %v7975 = vld [vmem:[%s1 + $0x27c] sm:$0xf]
  %v7976 = vld [vmem:[%s1 + $0x280] sm:$0xf]
  %v7977 = vld [vmem:[%s1 + $0x284] sm:$0xf]
  %v7978 = vld [vmem:[%s1 + $0x288] sm:$0xf]
  %v7979 = vld [vmem:[%s1 + $0x28c] sm:$0xf]
  %v7980 = vld [vmem:[%s1 + $0x290] sm:$0xf]
  %v7981 = vld [vmem:[%s1 + $0x294] sm:$0xf]
  %v7982 = vld [vmem:[%s1 + $0x298] sm:$0xf]
  %v7983 = vld [vmem:[%s1 + $0x29c] sm:$0xf]
  %v7984 = vld [vmem:[%s1 + $0x2a0] sm:$0xf]
  %8001 = vrot.lane.b32.xlu0 %v7923, 24
  %v8002 = vpop.permute.xlu0 %8001
  %8003 = vrot.lane.b32.xlu0 %v7924, 24
  %v8004 = vpop.permute.xlu0 %8003
  %8005 = vrot.lane.b32.xlu0 %v7925, 24
  %v8006 = vpop.permute.xlu0 %8005
  %8007 = vrot.lane.b32.xlu0 %v7926, 24
  %v8008 = vpop.permute.xlu0 %8007
  %8009 = vrot.lane.b32.xlu0 %v7929, 24
  %v8010 = vpop.permute.xlu0 %8009
  %8011 = vrot.lane.b32.xlu0 %v7930, 24
  %v8012 = vpop.permute.xlu0 %8011
  %8013 = vrot.lane.b32.xlu0 %v7931, 24
  %v8014 = vpop.permute.xlu0 %8013
  %8015 = vrot.lane.b32.xlu0 %v7932, 24
  %v8016 = vpop.permute.xlu0 %8015
  %8017 = vrot.lane.b32.xlu0 %v7935, 24
  %v8018 = vpop.permute.xlu0 %8017
  %8019 = vrot.lane.b32.xlu0 %v7936, 24
  %v8020 = vpop.permute.xlu0 %8019
  %8021 = vrot.lane.b32.xlu0 %v7937, 24
  %v8022 = vpop.permute.xlu0 %8021
  %8023 = vrot.lane.b32.xlu0 %v7938, 24
  %v8024 = vpop.permute.xlu0 %8023
  %8025 = vrot.lane.b32.xlu0 %v7941, 24
  %v8026 = vpop.permute.xlu0 %8025
  %8027 = vrot.lane.b32.xlu0 %v7942, 24
  %v8028 = vpop.permute.xlu0 %8027
  %8029 = vrot.lane.b32.xlu0 %v7943, 24
  %v8030 = vpop.permute.xlu0 %8029
  %8031 = vrot.lane.b32.xlu0 %v7944, 24
  %v8032 = vpop.permute.xlu0 %8031
  %8053 = vrot.lane.b32.xlu0 %v7924, 48
  %v8054 = vpop.permute.xlu0 %8053
  %8055 = vrot.lane.b32.xlu0 %v7925, 48
  %v8056 = vpop.permute.xlu0 %8055
  %8057 = vrot.lane.b32.xlu0 %v7926, 48
  %v8058 = vpop.permute.xlu0 %8057
  %8059 = vrot.lane.b32.xlu0 %v7927, 48
  %v8060 = vpop.permute.xlu0 %8059
  %8061 = vrot.lane.b32.xlu0 %v7930, 48
  %v8062 = vpop.permute.xlu0 %8061
  %8063 = vrot.lane.b32.xlu0 %v7931, 48
  %v8064 = vpop.permute.xlu0 %8063
  %8065 = vrot.lane.b32.xlu0 %v7932, 48
  %v8066 = vpop.permute.xlu0 %8065
  %8067 = vrot.lane.b32.xlu0 %v7933, 48
  %v8068 = vpop.permute.xlu0 %8067
  %8069 = vrot.lane.b32.xlu0 %v7936, 48
  %v8070 = vpop.permute.xlu0 %8069
  %8071 = vrot.lane.b32.xlu0 %v7937, 48
  %v8072 = vpop.permute.xlu0 %8071
  %8073 = vrot.lane.b32.xlu0 %v7938, 48
  %v8074 = vpop.permute.xlu0 %8073
  %8075 = vrot.lane.b32.xlu0 %v7939, 48
  %v8076 = vpop.permute.xlu0 %8075
  %8077 = vrot.lane.b32.xlu0 %v7942, 48
  %v8078 = vpop.permute.xlu0 %8077
  %8079 = vrot.lane.b32.xlu0 %v7943, 48
  %v8080 = vpop.permute.xlu0 %8079
  %8081 = vrot.lane.b32.xlu0 %v7944, 48
  %v8082 = vpop.permute.xlu0 %8081
  %8083 = vrot.lane.b32.xlu0 %v7945, 48
  %v8084 = vpop.permute.xlu0 %8083
  %8108 = vrot.lane.b32.xlu0 %v7928, 72
  %v8109 = vpop.permute.xlu0 %8108
  %8110 = vrot.lane.b32.xlu0 %v7929, 72
  %v8111 = vpop.permute.xlu0 %8110
  %8112 = vrot.lane.b32.xlu0 %v7930, 72
  %v8113 = vpop.permute.xlu0 %8112
  %8114 = vrot.lane.b32.xlu0 %v7931, 72
  %v8115 = vpop.permute.xlu0 %8114
  %8116 = vrot.lane.b32.xlu0 %v7934, 72
  %v8117 = vpop.permute.xlu0 %8116
  %8118 = vrot.lane.b32.xlu0 %v7935, 72
  %v8119 = vpop.permute.xlu0 %8118
  %8120 = vrot.lane.b32.xlu0 %v7936, 72
  %v8121 = vpop.permute.xlu0 %8120
  %8122 = vrot.lane.b32.xlu0 %v7937, 72
  %v8123 = vpop.permute.xlu0 %8122
  %8124 = vrot.lane.b32.xlu0 %v7940, 72
  %v8125 = vpop.permute.xlu0 %8124
  %8126 = vrot.lane.b32.xlu0 %v7941, 72
  %v8127 = vpop.permute.xlu0 %8126
  %8128 = vrot.lane.b32.xlu0 %v7942, 72
  %v8129 = vpop.permute.xlu0 %8128
  %8130 = vrot.lane.b32.xlu0 %v7943, 72
  %v8131 = vpop.permute.xlu0 %8130
  %8132 = vrot.lane.b32.xlu0 %v7946, 72
  %v8133 = vpop.permute.xlu0 %8132
  %8134 = vrot.lane.b32.xlu0 %v7947, 72
  %v8135 = vpop.permute.xlu0 %8134
  %8136 = vrot.lane.b32.xlu0 %v7948, 72
  %v8137 = vpop.permute.xlu0 %8136
  %8138 = vrot.lane.b32.xlu0 %v7949, 72
  %v8139 = vpop.permute.xlu0 %8138
  %8157 = vrot.lane.b32.xlu0 %v7929, 96
  %v8158 = vpop.permute.xlu0 %8157
  %8159 = vrot.lane.b32.xlu0 %v7930, 96
  %v8160 = vpop.permute.xlu0 %8159
  %8161 = vrot.lane.b32.xlu0 %v7931, 96
  %v8162 = vpop.permute.xlu0 %8161
  %8163 = vrot.lane.b32.xlu0 %v7932, 96
  %v8164 = vpop.permute.xlu0 %8163
  %8165 = vrot.lane.b32.xlu0 %v7935, 96
  %v8166 = vpop.permute.xlu0 %8165
  %8167 = vrot.lane.b32.xlu0 %v7936, 96
  %v8168 = vpop.permute.xlu0 %8167
  %8169 = vrot.lane.b32.xlu0 %v7937, 96
  %v8170 = vpop.permute.xlu0 %8169
  %8171 = vrot.lane.b32.xlu0 %v7938, 96
  %v8172 = vpop.permute.xlu0 %8171
  %8173 = vrot.lane.b32.xlu0 %v7941, 96
  %v8174 = vpop.permute.xlu0 %8173
  %8175 = vrot.lane.b32.xlu0 %v7942, 96
  %v8176 = vpop.permute.xlu0 %8175
  %8177 = vrot.lane.b32.xlu0 %v7943, 96
  %v8178 = vpop.permute.xlu0 %8177
  %8179 = vrot.lane.b32.xlu0 %v7944, 96
  %v8180 = vpop.permute.xlu0 %8179
  %8181 = vrot.lane.b32.xlu0 %v7947, 96
  %v8182 = vpop.permute.xlu0 %8181
  %8183 = vrot.lane.b32.xlu0 %v7948, 96
  %v8184 = vpop.permute.xlu0 %8183
  %8185 = vrot.lane.b32.xlu0 %v7949, 96
  %v8186 = vpop.permute.xlu0 %8185
  %8187 = vrot.lane.b32.xlu0 %v7950, 96
  %v8188 = vpop.permute.xlu0 %8187
  %8206 = vrot.lane.b32.xlu0 %v7930, 120
  %v8207 = vpop.permute.xlu0 %8206
  %8208 = vrot.lane.b32.xlu0 %v7931, 120
  %v8209 = vpop.permute.xlu0 %8208
  %8210 = vrot.lane.b32.xlu0 %v7932, 120
  %v8211 = vpop.permute.xlu0 %8210
  %8212 = vrot.lane.b32.xlu0 %v7933, 120
  %v8213 = vpop.permute.xlu0 %8212
  %8214 = vrot.lane.b32.xlu0 %v7936, 120
  %v8215 = vpop.permute.xlu0 %8214
  %8216 = vrot.lane.b32.xlu0 %v7937, 120
  %v8217 = vpop.permute.xlu0 %8216
  %8218 = vrot.lane.b32.xlu0 %v7938, 120
  %v8219 = vpop.permute.xlu0 %8218
  %8220 = vrot.lane.b32.xlu0 %v7939, 120
  %v8221 = vpop.permute.xlu0 %8220
  %8222 = vrot.lane.b32.xlu0 %v7942, 120
  %v8223 = vpop.permute.xlu0 %8222
  %8224 = vrot.lane.b32.xlu0 %v7943, 120
  %v8225 = vpop.permute.xlu0 %8224
  %8226 = vrot.lane.b32.xlu0 %v7944, 120
  %v8227 = vpop.permute.xlu0 %8226
  %8228 = vrot.lane.b32.xlu0 %v7945, 120
  %v8229 = vpop.permute.xlu0 %8228
  %8230 = vrot.lane.b32.xlu0 %v7948, 120
  %v8231 = vpop.permute.xlu0 %8230
  %8232 = vrot.lane.b32.xlu0 %v7949, 120
  %v8233 = vpop.permute.xlu0 %8232
  %8234 = vrot.lane.b32.xlu0 %v7950, 120
  %v8235 = vpop.permute.xlu0 %8234
  %8236 = vrot.lane.b32.xlu0 %v7951, 120
  %v8237 = vpop.permute.xlu0 %8236
  %8258 = vrot.lane.b32.xlu0 %v7934, 16
  %v8259 = vpop.permute.xlu0 %8258
  %8260 = vrot.lane.b32.xlu0 %v7935, 16
  %v8261 = vpop.permute.xlu0 %8260
  %8262 = vrot.lane.b32.xlu0 %v7936, 16
  %v8263 = vpop.permute.xlu0 %8262
  %8264 = vrot.lane.b32.xlu0 %v7937, 16
  %v8265 = vpop.permute.xlu0 %8264
  %8266 = vrot.lane.b32.xlu0 %v7940, 16
  %v8267 = vpop.permute.xlu0 %8266
  %8268 = vrot.lane.b32.xlu0 %v7941, 16
  %v8269 = vpop.permute.xlu0 %8268
  %8270 = vrot.lane.b32.xlu0 %v7942, 16
  %v8271 = vpop.permute.xlu0 %8270
  %8272 = vrot.lane.b32.xlu0 %v7943, 16
  %v8273 = vpop.permute.xlu0 %8272
  %8274 = vrot.lane.b32.xlu0 %v7946, 16
  %v8275 = vpop.permute.xlu0 %8274
  %8276 = vrot.lane.b32.xlu0 %v7947, 16
  %v8277 = vpop.permute.xlu0 %8276
  %8278 = vrot.lane.b32.xlu0 %v7948, 16
  %v8279 = vpop.permute.xlu0 %8278
  %8280 = vrot.lane.b32.xlu0 %v7949, 16
  %v8281 = vpop.permute.xlu0 %8280
  %8282 = vrot.lane.b32.xlu0 %v7952, 16
  %v8283 = vpop.permute.xlu0 %8282
  %8284 = vrot.lane.b32.xlu0 %v7953, 16
  %v8285 = vpop.permute.xlu0 %8284
  %8286 = vrot.lane.b32.xlu0 %v7954, 16
  %v8287 = vpop.permute.xlu0 %8286
  %8288 = vrot.lane.b32.xlu0 %v7955, 16
  %v8289 = vpop.permute.xlu0 %8288
  %8307 = vrot.lane.b32.xlu0 %v7935, 40
  %v8308 = vpop.permute.xlu0 %8307
  %8309 = vrot.lane.b32.xlu0 %v7936, 40
  %v8310 = vpop.permute.xlu0 %8309
  %8311 = vrot.lane.b32.xlu0 %v7937, 40
  %v8312 = vpop.permute.xlu0 %8311
  %8313 = vrot.lane.b32.xlu0 %v7938, 40
  %v8314 = vpop.permute.xlu0 %8313
  %8315 = vrot.lane.b32.xlu0 %v7941, 40
  %v8316 = vpop.permute.xlu0 %8315
  %8317 = vrot.lane.b32.xlu0 %v7942, 40
  %v8318 = vpop.permute.xlu0 %8317
  %8319 = vrot.lane.b32.xlu0 %v7943, 40
  %v8320 = vpop.permute.xlu0 %8319
  %8321 = vrot.lane.b32.xlu0 %v7944, 40
  %v8322 = vpop.permute.xlu0 %8321
  %8323 = vrot.lane.b32.xlu0 %v7947, 40
  %v8324 = vpop.permute.xlu0 %8323
  %8325 = vrot.lane.b32.xlu0 %v7948, 40
  %v8326 = vpop.permute.xlu0 %8325
  %8327 = vrot.lane.b32.xlu0 %v7949, 40
  %v8328 = vpop.permute.xlu0 %8327
  %8329 = vrot.lane.b32.xlu0 %v7950, 40
  %v8330 = vpop.permute.xlu0 %8329
  %8331 = vrot.lane.b32.xlu0 %v7953, 40
  %v8332 = vpop.permute.xlu0 %8331
  %8333 = vrot.lane.b32.xlu0 %v7954, 40
  %v8334 = vpop.permute.xlu0 %8333
  %8335 = vrot.lane.b32.xlu0 %v7955, 40
  %v8336 = vpop.permute.xlu0 %8335
  %8337 = vrot.lane.b32.xlu0 %v7956, 40
  %v8338 = vpop.permute.xlu0 %8337
  %8356 = vrot.lane.b32.xlu0 %v7936, 64
  %v8357 = vpop.permute.xlu0 %8356
  %8358 = vrot.lane.b32.xlu0 %v7937, 64
  %v8359 = vpop.permute.xlu0 %8358
  %8360 = vrot.lane.b32.xlu0 %v7938, 64
  %v8361 = vpop.permute.xlu0 %8360
  %8362 = vrot.lane.b32.xlu0 %v7939, 64
  %v8363 = vpop.permute.xlu0 %8362
  %8364 = vrot.lane.b32.xlu0 %v7942, 64
  %v8365 = vpop.permute.xlu0 %8364
  %8366 = vrot.lane.b32.xlu0 %v7943, 64
  %v8367 = vpop.permute.xlu0 %8366
  %8368 = vrot.lane.b32.xlu0 %v7944, 64
  %v8369 = vpop.permute.xlu0 %8368
  %8370 = vrot.lane.b32.xlu0 %v7945, 64
  %v8371 = vpop.permute.xlu0 %8370
  %8372 = vrot.lane.b32.xlu0 %v7948, 64
  %v8373 = vpop.permute.xlu0 %8372
  %8374 = vrot.lane.b32.xlu0 %v7949, 64
  %v8375 = vpop.permute.xlu0 %8374
  %8376 = vrot.lane.b32.xlu0 %v7950, 64
  %v8377 = vpop.permute.xlu0 %8376
  %8378 = vrot.lane.b32.xlu0 %v7951, 64
  %v8379 = vpop.permute.xlu0 %8378
  %8380 = vrot.lane.b32.xlu0 %v7954, 64
  %v8381 = vpop.permute.xlu0 %8380
  %8382 = vrot.lane.b32.xlu0 %v7955, 64
  %v8383 = vpop.permute.xlu0 %8382
  %8384 = vrot.lane.b32.xlu0 %v7956, 64
  %v8385 = vpop.permute.xlu0 %8384
  %8386 = vrot.lane.b32.xlu0 %v7957, 64
  %v8387 = vpop.permute.xlu0 %8386
  %v8404 = vsel %vm119, %v7922, %v8002
  %v8405 = vsel %vm119, %v7923, %v8004
  %v8406 = vsel %vm119, %v7924, %v8006
  %v8407 = vsel %vm119, %v7925, %v8008
  %v8408 = vsel %vm119, %v7928, %v8010
  %v8409 = vsel %vm119, %v7929, %v8012
  %v8410 = vsel %vm119, %v7930, %v8014
  %v8411 = vsel %vm119, %v7931, %v8016
  %v8412 = vsel %vm119, %v7934, %v8018
  %v8413 = vsel %vm119, %v7935, %v8020
  %v8414 = vsel %vm119, %v7936, %v8022
  %v8415 = vsel %vm119, %v7937, %v8024
  %v8416 = vsel %vm119, %v7940, %v8026
  %v8417 = vsel %vm119, %v7941, %v8028
  %v8418 = vsel %vm119, %v7942, %v8030
  %v8419 = vsel %vm119, %v7943, %v8032
  %v8420 = vsel %vm156, %v8404, %v8054
  %v8421 = vsel %vm156, %v8405, %v8056
  %v8422 = vsel %vm156, %v8406, %v8058
  %v8423 = vsel %vm156, %v8407, %v8060
  %v8424 = vsel %vm156, %v8408, %v8062
  %v8425 = vsel %vm156, %v8409, %v8064
  %v8426 = vsel %vm156, %v8410, %v8066
  %v8427 = vsel %vm156, %v8411, %v8068
  %v8428 = vsel %vm156, %v8412, %v8070
  %v8429 = vsel %vm156, %v8413, %v8072
  %v8430 = vsel %vm156, %v8414, %v8074
  %v8431 = vsel %vm156, %v8415, %v8076
  %v8432 = vsel %vm156, %v8416, %v8078
  %v8433 = vsel %vm156, %v8417, %v8080
  %v8434 = vsel %vm156, %v8418, %v8082
  %v8435 = vsel %vm156, %v8419, %v8084
  %v8436 = vsel %vm4370, %v8420, %v8109
  %v8437 = vsel %vm4370, %v8421, %v8111
  %v8438 = vsel %vm4370, %v8422, %v8113
  %v8439 = vsel %vm4370, %v8423, %v8115
  %v8440 = vsel %vm4370, %v8424, %v8117
  %v8441 = vsel %vm4370, %v8425, %v8119
  %v8442 = vsel %vm4370, %v8426, %v8121
  %v8443 = vsel %vm4370, %v8427, %v8123
  %v8444 = vsel %vm4370, %v8428, %v8125
  %v8445 = vsel %vm4370, %v8429, %v8127
  %v8446 = vsel %vm4370, %v8430, %v8129
  %v8447 = vsel %vm4370, %v8431, %v8131
  %v8448 = vsel %vm4370, %v8432, %v8133
  %v8449 = vsel %vm4370, %v8433, %v8135
  %v8450 = vsel %vm4370, %v8434, %v8137
  %v8451 = vsel %vm4370, %v8435, %v8139
  %v8452 = vsel %vm4565, %v8436, %v8158
  %v8453 = vsel %vm4565, %v8437, %v8160
  %v8454 = vsel %vm4565, %v8438, %v8162
  %v8455 = vsel %vm4565, %v8439, %v8164
  %v8456 = vsel %vm4565, %v8440, %v8166
  %v8457 = vsel %vm4565, %v8441, %v8168
  %v8458 = vsel %vm4565, %v8442, %v8170
  %v8459 = vsel %vm4565, %v8443, %v8172
  %v8460 = vsel %vm4565, %v8444, %v8174
  %v8461 = vsel %vm4565, %v8445, %v8176
  %v8462 = vsel %vm4565, %v8446, %v8178
  %v8463 = vsel %vm4565, %v8447, %v8180
  %v8464 = vsel %vm4565, %v8448, %v8182
  %v8465 = vsel %vm4565, %v8449, %v8184
  %v8466 = vsel %vm4565, %v8450, %v8186
  %v8467 = vsel %vm4565, %v8451, %v8188
  %v8468 = vsel %vm4760, %v8452, %v8207
  %v8469 = vsel %vm4760, %v8453, %v8209
  %v8470 = vsel %vm4760, %v8454, %v8211
  %v8471 = vsel %vm4760, %v8455, %v8213
  %v8472 = vsel %vm4760, %v8456, %v8215
  %v8473 = vsel %vm4760, %v8457, %v8217
  %v8474 = vsel %vm4760, %v8458, %v8219
  %v8475 = vsel %vm4760, %v8459, %v8221
  %v8476 = vsel %vm4760, %v8460, %v8223
  %v8477 = vsel %vm4760, %v8461, %v8225
  %v8478 = vsel %vm4760, %v8462, %v8227
  %v8479 = vsel %vm4760, %v8463, %v8229
  %v8480 = vsel %vm4760, %v8464, %v8231
  %v8481 = vsel %vm4760, %v8465, %v8233
  %v8482 = vsel %vm4760, %v8466, %v8235
  %v8483 = vsel %vm4760, %v8467, %v8237
  %v8484 = vsel %vm3917, %v8207, %v8259
  %v8485 = vsel %vm3917, %v8209, %v8261
  %v8486 = vsel %vm3917, %v8211, %v8263
  %v8487 = vsel %vm3917, %v8213, %v8265
  %v8488 = vsel %vm3917, %v8215, %v8267
  %v8489 = vsel %vm3917, %v8217, %v8269
  %v8490 = vsel %vm3917, %v8219, %v8271
  %v8491 = vsel %vm3917, %v8221, %v8273
  %v8492 = vsel %vm3917, %v8223, %v8275
  %v8493 = vsel %vm3917, %v8225, %v8277
  %v8494 = vsel %vm3917, %v8227, %v8279
  %v8495 = vsel %vm3917, %v8229, %v8281
  %v8496 = vsel %vm3917, %v8231, %v8283
  %v8497 = vsel %vm3917, %v8233, %v8285
  %v8498 = vsel %vm3917, %v8235, %v8287
  %v8499 = vsel %vm3917, %v8237, %v8289
  %v8500 = vsel %vm4111, %v8484, %v8308
  %v8501 = vsel %vm4111, %v8485, %v8310
  %v8502 = vsel %vm4111, %v8486, %v8312
  %v8503 = vsel %vm4111, %v8487, %v8314
  %v8504 = vsel %vm4111, %v8488, %v8316
  %v8505 = vsel %vm4111, %v8489, %v8318
  %v8506 = vsel %vm4111, %v8490, %v8320
  %v8507 = vsel %vm4111, %v8491, %v8322
  %v8508 = vsel %vm4111, %v8492, %v8324
  %v8509 = vsel %vm4111, %v8493, %v8326
  %v8510 = vsel %vm4111, %v8494, %v8328
  %v8511 = vsel %vm4111, %v8495, %v8330
  %v8512 = vsel %vm4111, %v8496, %v8332
  %v8513 = vsel %vm4111, %v8497, %v8334
  %v8514 = vsel %vm4111, %v8498, %v8336
  %v8515 = vsel %vm4111, %v8499, %v8338
  %v8516 = vsel %vm4305, %v8500, %v8357
  %v8517 = vsel %vm4305, %v8501, %v8359
  %v8518 = vsel %vm4305, %v8502, %v8361
  %v8519 = vsel %vm4305, %v8503, %v8363
  %v8520 = vsel %vm4305, %v8504, %v8365
  %v8521 = vsel %vm4305, %v8505, %v8367
  %v8522 = vsel %vm4305, %v8506, %v8369
  %v8523 = vsel %vm4305, %v8507, %v8371
  %v8524 = vsel %vm4305, %v8508, %v8373
  %v8525 = vsel %vm4305, %v8509, %v8375
  %v8526 = vsel %vm4305, %v8510, %v8377
  %v8527 = vsel %vm4305, %v8511, %v8379
  %v8528 = vsel %vm4305, %v8512, %v8381
  %v8529 = vsel %vm4305, %v8513, %v8383
  %v8530 = vsel %vm4305, %v8514, %v8385
  %v8531 = vsel %vm4305, %v8515, %v8387
  %v8532 = vpack.c.bf16 %v8469, %v8468
  %v8533 = vpack.c.bf16 %v8517, %v8516
  %v8534 = vpack.c.bf16 %v8471, %v8470
  %v8535 = vpack.c.bf16 %v8519, %v8518
  %v8536 = vpack.c.bf16 %v8473, %v8472
  %v8537 = vpack.c.bf16 %v8521, %v8520
  %v8538 = vpack.c.bf16 %v8475, %v8474
  %v8539 = vpack.c.bf16 %v8523, %v8522
  %v8540 = vpack.c.bf16 %v8477, %v8476
  %v8541 = vpack.c.bf16 %v8525, %v8524
  %v8542 = vpack.c.bf16 %v8479, %v8478
  %v8543 = vpack.c.bf16 %v8527, %v8526
  %v8544 = vpack.c.bf16 %v8481, %v8480
  %v8545 = vpack.c.bf16 %v8529, %v8528
  %v8546 = vpack.c.bf16 %v8483, %v8482
  %v8547 = vpack.c.bf16 %v8531, %v8530
  %v8548 = vlaneseq
  %v8549 = vshrl.u32 %v8548, 7
  %v8550 = vsub.s32 4, %v8549
  %v8551 = vrot.slane %v17, %v8550
  %v8579 = vunpack.c.l.b16 %v7958
  %v8580 = vunpack.c.l.b16 %v7959
  %v8581 = vunpack.c.l.b16 %v7960
  %v8582 = vunpack.c.l.b16 %v7961
  %v8583 = vunpack.c.l.b16 %v7962
  %v8584 = vunpack.c.l.b16 %v7963
  %v8585 = vunpack.c.l.b16 %v7964
  %v8586 = vunpack.c.l.b16 %v7965
  %v8587 = vunpack.c.l.b16 %v7966
  %v8588 = vunpack.c.l.b16 %v7967
  %v8589 = vunpack.c.l.b16 %v7968
  %v8590 = vunpack.c.l.b16 %v7969
  %v8591 = vunpack.c.l.b16 %v7970
  %v8592 = vunpack.c.l.b16 %v7971
  %v8593 = vunpack.c.l.b16 %v7972
  %v8594 = vunpack.c.l.b16 %v7973
  %v8595 = vunpack.c.l.b16 %v7974
  %v8596 = vunpack.c.l.b16 %v7975
  %v8597 = vunpack.c.l.b16 %v7976
  %v8598 = vunpack.c.l.b16 %v7977
  %v8599 = vunpack.c.l.b16 %v7978
  %v8600 = vunpack.c.l.b16 %v7979
  %v8601 = vunpack.c.l.b16 %v7980
  %v8602 = vunpack.c.l.b16 %v7981
  %v8603 = vunpack.c.l.b16 %v7982
  %v8604 = vunpack.c.l.b16 %v7983
  %v8605 = vunpack.c.l.b16 %v7984
  %v8606 = vpack.c.b16 %v8580, %v8579
  %v8607 = vpack.c.b16 %v8582, %v8581
  %v8608 = vpack.c.b16 %v8584, %v8583
  %v8609 = vpack.c.b16 %v8586, %v8585
  %v8610 = vpack.c.b16 %v8588, %v8587
  %v8611 = vpack.c.b16 %v8590, %v8589
  %v8612 = vpack.c.b16 %v8592, %v8591
  %v8613 = vpack.c.b16 %v8594, %v8593
  %v8614 = vpack.c.b16 %v8596, %v8595
  %v8615 = vpack.c.b16 %v8598, %v8597
  %v8616 = vpack.c.b16 %v8600, %v8599
  %v8617 = vpack.c.b16 %v8602, %v8601
  %v8618 = vpack.c.b16 %v8604, %v8603
  %v8619 = vpack.c.b16 %v8605, %v8605
  %v8634 = vsel %vm4500, %v8533, 0
  %v8637 = vsel %vm4500, %v8535, 0
  %v8640 = vsel %vm4500, %v8537, 0
  %v8643 = vsel %vm4500, %v8539, 0
  %v8646 = vsel %vm4500, %v8541, 0
  %v8649 = vsel %vm4500, %v8543, 0
  %v8652 = vsel %vm4500, %v8545, 0
  %v8655 = vsel %vm4500, %v8547, 0
  %vm8657 = vcmask 1043456
  %v8659 = vsel %vm8657, %v8619, 0
  %8661 = vmatprep.subr.bf16.mxu0 0
  %8662 = vmatpush1.bf16.msra.mxu0 %v8606
  %8663 = vmatprep.subr.bf16.mxu0 0
  %8664 = vmatpush1.bf16.msra.mxu0 %v8607
  %8665 = vmatprep.subr.bf16.mxu0 0
  %8666 = vmatpush1.bf16.msra.mxu0 %v8608
  %8667 = vmatprep.subr.bf16.mxu0 0
  %8668 = vmatpush1.bf16.msra.mxu0 %v8609
  %8669 = vmatprep.subr.bf16.mxu0 0
  %8670 = vmatpush1.bf16.msra.mxu0 %v8610
  %8671 = vmatprep.subr.bf16.mxu0 0
  %8672 = vmatpush1.bf16.msra.mxu0 %v8611
  %8673 = vmatprep.subr.bf16.mxu0 0
  %8674 = vmatpush1.bf16.msra.mxu0 %v8612
  %8675 = vmatprep.subr.bf16.mxu0 0
  %8676 = vmatpush1.bf16.msra.mxu0 %v8613
  %8677 = vmatprep.subr.bf16.mxu0 0
  %8678 = vmatpush1.bf16.msra.mxu0 %v8614
  %8679 = vmatprep.subr.bf16.mxu0 0
  %8680 = vmatpush1.bf16.msra.mxu0 %v8615
  %8681 = vmatprep.subr.bf16.mxu0 0
  %8682 = vmatpush1.bf16.msra.mxu0 %v8616
  %8683 = vmatprep.subr.bf16.mxu0 0
  %8684 = vmatpush1.bf16.msra.mxu0 %v8617
  %8685 = vmatprep.subr.bf16.mxu0 0
  %8686 = vmatpush1.bf16.msra.mxu0 %v8618
  %8687 = vmatprep.subr.bf16.mxu0 0
  %8688 = vmatpush1.bf16.msra.mxu0 %v8659
  %8689 = vmatprep.subr.bf16.mxu0 0
  %8690 = vmatpush1.bf16.msra.mxu0 0
  %8691 = vmatprep.subr.bf16.mxu0 0
  %8692 = vmatpush1.bf16.msra.mxu0 0
  %8693 = vmatprep.mubr.bf16.mxu0 %v8634
  %8694 = vmatmul.mubr.bf16.gmra.mrb[0].mxu0 %v8532
  %v8695 = vpop.f32.mrb[0].mxu0
  %v8696 = vadd.f32 %v8551, %v8695
  %v8697 = vpop.f32.mrb[0].mxu0
  %v8698 = vpop.f32.mrb[0].mxu0
  %v8699 = vadd.f32 %v8551, %v8698
  %v8700 = vpop.f32.mrb[0].mxu0
  %8701 = vmatprep.mubr.bf16.mxu0 %v8637
  %8702 = vmatmul.mubr.bf16.gmra.mrb[0].mxu0 %v8534
  %v8703 = vpop.f32.mrb[0].mxu0
  %v8704 = vadd.f32 %v8551, %v8703
  %v8705 = vpop.f32.mrb[0].mxu0
  %v8706 = vpop.f32.mrb[0].mxu0
  %v8707 = vadd.f32 %v8551, %v8706
  %v8708 = vpop.f32.mrb[0].mxu0
  %8709 = vmatprep.mubr.bf16.mxu0 %v8640
  %8710 = vmatmul.mubr.bf16.gmra.mrb[0].mxu0 %v8536
  %v8711 = vpop.f32.mrb[0].mxu0
  %v8712 = vadd.f32 %v8551, %v8711
  %v8713 = vpop.f32.mrb[0].mxu0
  %v8714 = vpop.f32.mrb[0].mxu0
  %v8715 = vadd.f32 %v8551, %v8714
  %v8716 = vpop.f32.mrb[0].mxu0
  %8717 = vmatprep.mubr.bf16.mxu0 %v8643
  %8718 = vmatmul.mubr.bf16.gmra.mrb[0].mxu0 %v8538
  %v8719 = vpop.f32.mrb[0].mxu0
  %v8720 = vadd.f32 %v8551, %v8719
  %v8721 = vpop.f32.mrb[0].mxu0
  %v8722 = vpop.f32.mrb[0].mxu0
  %v8723 = vadd.f32 %v8551, %v8722
  %v8724 = vpop.f32.mrb[0].mxu0
  %8725 = vmatprep.mubr.bf16.mxu0 %v8646
  %8726 = vmatmul.mubr.bf16.gmra.mrb[0].mxu0 %v8540
  %v8727 = vpop.f32.mrb[0].mxu0
  %v8728 = vadd.f32 %v8551, %v8727
  %v8729 = vpop.f32.mrb[0].mxu0
  %v8730 = vpop.f32.mrb[0].mxu0
  %v8731 = vadd.f32 %v8551, %v8730
  %v8732 = vpop.f32.mrb[0].mxu0
  %8733 = vmatprep.mubr.bf16.mxu0 %v8649
  %8734 = vmatmul.mubr.bf16.gmra.mrb[0].mxu0 %v8542
  %v8735 = vpop.f32.mrb[0].mxu0
  %v8736 = vadd.f32 %v8551, %v8735
  %v8737 = vpop.f32.mrb[0].mxu0
  %v8738 = vpop.f32.mrb[0].mxu0
  %v8739 = vadd.f32 %v8551, %v8738
  %v8740 = vpop.f32.mrb[0].mxu0
  %8741 = vmatprep.mubr.bf16.mxu0 %v8652
  %8742 = vmatmul.mubr.bf16.gmra.mrb[0].mxu0 %v8544
  %v8743 = vpop.f32.mrb[0].mxu0
  %v8744 = vadd.f32 %v8551, %v8743
  %v8745 = vpop.f32.mrb[0].mxu0
  %v8746 = vpop.f32.mrb[0].mxu0
  %v8747 = vadd.f32 %v8551, %v8746
  %v8748 = vpop.f32.mrb[0].mxu0
  %8749 = vmatprep.mubr.bf16.mxu0 %v8655
  %8750 = vmatmul.mubr.bf16.gmra.mrb[0].mxu0 %v8546
  %v8751 = vpop.f32.mrb[0].mxu0
  %v8752 = vadd.f32 %v8551, %v8751
  %v8753 = vpop.f32.mrb[0].mxu0
  %v8754 = vpop.f32.mrb[0].mxu0
  %v8755 = vadd.f32 %v8551, %v8754
  %v8756 = vpop.f32.mrb[0].mxu0
  %8757 = vdwg.mxu0
  %v8758 = vmax.f32 %v8696, 0.0
  %v8759 = vmax.f32 %v8699, 0.0
  %v8760 = vmax.f32 %v8704, 0.0
  %v8761 = vmax.f32 %v8707, 0.0
  %v8762 = vmax.f32 %v8712, 0.0
  %v8763 = vmax.f32 %v8715, 0.0
  %v8764 = vmax.f32 %v8720, 0.0
  %v8765 = vmax.f32 %v8723, 0.0
  %v8766 = vmax.f32 %v8728, 0.0
  %v8767 = vmax.f32 %v8731, 0.0
  %v8768 = vmax.f32 %v8736, 0.0
  %v8769 = vmax.f32 %v8739, 0.0
  %v8770 = vmax.f32 %v8744, 0.0
  %v8771 = vmax.f32 %v8747, 0.0
  %v8772 = vmax.f32 %v8752, 0.0
  %v8773 = vmax.f32 %v8755, 0.0
  %8790 = vrot.lane.b32.xlu0 %v8758, 116
  %v8791 = vpop.permute.xlu0 %8790
  %8792 = vrot.lane.b32.xlu0 %v8759, 116
  %v8793 = vpop.permute.xlu0 %8792
  %8794 = vrot.lane.b32.xlu0 %v8760, 116
  %v8795 = vpop.permute.xlu0 %8794
  %8796 = vrot.lane.b32.xlu0 %v8761, 116
  %v8797 = vpop.permute.xlu0 %8796
  %8798 = vrot.lane.b32.xlu0 %v8762, 116
  %v8799 = vpop.permute.xlu0 %8798
  %8800 = vrot.lane.b32.xlu0 %v8763, 116
  %v8801 = vpop.permute.xlu0 %8800
  %8802 = vrot.lane.b32.xlu0 %v8764, 116
  %v8803 = vpop.permute.xlu0 %8802
  %8804 = vrot.lane.b32.xlu0 %v8765, 116
  %v8805 = vpop.permute.xlu0 %8804
  %8806 = vrot.lane.b32.xlu0 %v8766, 116
  %v8807 = vpop.permute.xlu0 %8806
  %8808 = vrot.lane.b32.xlu0 %v8767, 116
  %v8809 = vpop.permute.xlu0 %8808
  %8810 = vrot.lane.b32.xlu0 %v8768, 116
  %v8811 = vpop.permute.xlu0 %8810
  %8812 = vrot.lane.b32.xlu0 %v8769, 116
  %v8813 = vpop.permute.xlu0 %8812
  %8814 = vrot.lane.b32.xlu0 %v8770, 116
  %v8815 = vpop.permute.xlu0 %8814
  %8816 = vrot.lane.b32.xlu0 %v8771, 116
  %v8817 = vpop.permute.xlu0 %8816
  %8818 = vrot.lane.b32.xlu0 %v8772, 116
  %v8819 = vpop.permute.xlu0 %8818
  %8820 = vrot.lane.b32.xlu0 %v8773, 116
  %v8821 = vpop.permute.xlu0 %8820
  %8838 = vrot.lane.b32.xlu0 %v8758, 104
  %v8839 = vpop.permute.xlu0 %8838
  %8840 = vrot.lane.b32.xlu0 %v8791, 104
  %v8841 = vpop.permute.xlu0 %8840
  %8842 = vrot.lane.b32.xlu0 %v8759, 104
  %v8843 = vpop.permute.xlu0 %8842
  %8844 = vrot.lane.b32.xlu0 %v8793, 104
  %v8845 = vpop.permute.xlu0 %8844
  %8846 = vrot.lane.b32.xlu0 %v8760, 104
  %v8847 = vpop.permute.xlu0 %8846
  %8848 = vrot.lane.b32.xlu0 %v8795, 104
  %v8849 = vpop.permute.xlu0 %8848
  %8850 = vrot.lane.b32.xlu0 %v8761, 104
  %v8851 = vpop.permute.xlu0 %8850
  %8852 = vrot.lane.b32.xlu0 %v8797, 104
  %v8853 = vpop.permute.xlu0 %8852
  %8854 = vrot.lane.b32.xlu0 %v8762, 104
  %v8855 = vpop.permute.xlu0 %8854
  %8856 = vrot.lane.b32.xlu0 %v8799, 104
  %v8857 = vpop.permute.xlu0 %8856
  %8858 = vrot.lane.b32.xlu0 %v8763, 104
  %v8859 = vpop.permute.xlu0 %8858
  %8860 = vrot.lane.b32.xlu0 %v8801, 104
  %v8861 = vpop.permute.xlu0 %8860
  %8862 = vrot.lane.b32.xlu0 %v8764, 104
  %v8863 = vpop.permute.xlu0 %8862
  %8864 = vrot.lane.b32.xlu0 %v8803, 104
  %v8865 = vpop.permute.xlu0 %8864
  %8866 = vrot.lane.b32.xlu0 %v8765, 104
  %v8867 = vpop.permute.xlu0 %8866
  %8868 = vrot.lane.b32.xlu0 %v8805, 104
  %v8869 = vpop.permute.xlu0 %8868
  %8870 = vrot.lane.b32.xlu0 %v8766, 104
  %v8871 = vpop.permute.xlu0 %8870
  %8872 = vrot.lane.b32.xlu0 %v8807, 104
  %v8873 = vpop.permute.xlu0 %8872
  %8874 = vrot.lane.b32.xlu0 %v8767, 104
  %v8875 = vpop.permute.xlu0 %8874
  %8876 = vrot.lane.b32.xlu0 %v8809, 104
  %v8877 = vpop.permute.xlu0 %8876
  %8878 = vrot.lane.b32.xlu0 %v8768, 104
  %v8879 = vpop.permute.xlu0 %8878
  %8880 = vrot.lane.b32.xlu0 %v8811, 104
  %v8881 = vpop.permute.xlu0 %8880
  %8882 = vrot.lane.b32.xlu0 %v8769, 104
  %v8883 = vpop.permute.xlu0 %8882
  %8884 = vrot.lane.b32.xlu0 %v8813, 104
  %v8885 = vpop.permute.xlu0 %8884
  %8886 = vrot.lane.b32.xlu0 %v8770, 104
  %v8887 = vpop.permute.xlu0 %8886
  %8888 = vrot.lane.b32.xlu0 %v8815, 104
  %v8889 = vpop.permute.xlu0 %8888
  %8890 = vrot.lane.b32.xlu0 %v8771, 104
  %v8891 = vpop.permute.xlu0 %8890
  %8892 = vrot.lane.b32.xlu0 %v8817, 104
  %v8893 = vpop.permute.xlu0 %8892
  %8894 = vrot.lane.b32.xlu0 %v8772, 104
  %v8895 = vpop.permute.xlu0 %8894
  %8896 = vrot.lane.b32.xlu0 %v8819, 104
  %v8897 = vpop.permute.xlu0 %8896
  %8898 = vrot.lane.b32.xlu0 %v8773, 104
  %v8899 = vpop.permute.xlu0 %8898
  %8900 = vrot.lane.b32.xlu0 %v8821, 104
  %v8901 = vpop.permute.xlu0 %8900
  %s8934 = scalar_lea.vmem [#allocation6], 88
  %8935 = vst.msk [vmem:[%s8934] sm:$0xff] %vm18, %v8758
  %8936 = vst.msk [vmem:[%s8934 + $0x8] sm:$0xff] %vm18, %v8791
  %8937 = vst.msk [vmem:[%s8934 + $0x10] sm:$0xff] %vm18, %v8759
  %8938 = vst.msk [vmem:[%s8934 + $0x18] sm:$0xff] %vm18, %v8793
  %8939 = vst.msk [vmem:[%s8934 + $0x20] sm:$0xff] %vm18, %v8760
  %8940 = vst.msk [vmem:[%s8934 + $0x28] sm:$0xff] %vm18, %v8795
  %8941 = vst.msk [vmem:[%s8934 + $0x30] sm:$0xff] %vm18, %v8761
  %8942 = vst.msk [vmem:[%s8934 + $0x38] sm:$0xff] %vm18, %v8797
  %8943 = vst.msk [vmem:[%s8934 + $0x50] sm:$0xff] %vm18, %v8839
  %8944 = vst.msk [vmem:[%s8934 + $0x58] sm:$0xff] %vm18, %v8841
  %8945 = vst.msk [vmem:[%s8934 + $0x60] sm:$0xff] %vm18, %v8843
  %8946 = vst.msk [vmem:[%s8934 + $0x68] sm:$0xff] %vm18, %v8845
  %8947 = vst.msk [vmem:[%s8934 + $0x70] sm:$0xff] %vm18, %v8847
  %8948 = vst.msk [vmem:[%s8934 + $0x78] sm:$0xff] %vm18, %v8849
  %8949 = vst.msk [vmem:[%s8934 + $0x80] sm:$0xff] %vm18, %v8851
  %8950 = vst.msk [vmem:[%s8934 + $0x88] sm:$0xff] %vm18, %v8853
  %8951 = vst.msk [vmem:[%s8934 + $0xa0] sm:$0xff] %vm18, %v8762
  %8952 = vst.msk [vmem:[%s8934 + $0xa8] sm:$0xff] %vm18, %v8799
  %8953 = vst.msk [vmem:[%s8934 + $0xb0] sm:$0xff] %vm18, %v8763
  %8954 = vst.msk [vmem:[%s8934 + $0xb8] sm:$0xff] %vm18, %v8801
  %8955 = vst.msk [vmem:[%s8934 + $0xc0] sm:$0xff] %vm18, %v8764
  %8956 = vst.msk [vmem:[%s8934 + $0xc8] sm:$0xff] %vm18, %v8803
  %8957 = vst.msk [vmem:[%s8934 + $0xd0] sm:$0xff] %vm18, %v8765
  %8958 = vst.msk [vmem:[%s8934 + $0xd8] sm:$0xff] %vm18, %v8805
  %8959 = vst.msk [vmem:[%s8934 + $0xf0] sm:$0xff] %vm18, %v8855
  %8960 = vst.msk [vmem:[%s8934 + $0xf8] sm:$0xff] %vm18, %v8857
  %8961 = vst.msk [vmem:[%s8934 + $0x100] sm:$0xff] %vm18, %v8859
  %8962 = vst.msk [vmem:[%s8934 + $0x108] sm:$0xff] %vm18, %v8861
  %8963 = vst.msk [vmem:[%s8934 + $0x110] sm:$0xff] %vm18, %v8863
  %8964 = vst.msk [vmem:[%s8934 + $0x118] sm:$0xff] %vm18, %v8865
  %8965 = vst.msk [vmem:[%s8934 + $0x120] sm:$0xff] %vm18, %v8867
  %8966 = vst.msk [vmem:[%s8934 + $0x128] sm:$0xff] %vm18, %v8869
  %8967 = vst.msk [vmem:[%s8934 + $0x140] sm:$0xff] %vm18, %v8766
  %8968 = vst.msk [vmem:[%s8934 + $0x148] sm:$0xff] %vm18, %v8807
  %8969 = vst.msk [vmem:[%s8934 + $0x150] sm:$0xff] %vm18, %v8767
  %8970 = vst.msk [vmem:[%s8934 + $0x158] sm:$0xff] %vm18, %v8809
  %8971 = vst.msk [vmem:[%s8934 + $0x160] sm:$0xff] %vm18, %v8768
  %8972 = vst.msk [vmem:[%s8934 + $0x168] sm:$0xff] %vm18, %v8811
  %8973 = vst.msk [vmem:[%s8934 + $0x170] sm:$0xff] %vm18, %v8769
  %8974 = vst.msk [vmem:[%s8934 + $0x178] sm:$0xff] %vm18, %v8813
  %8975 = vst.msk [vmem:[%s8934 + $0x190] sm:$0xff] %vm18, %v8871
  %8976 = vst.msk [vmem:[%s8934 + $0x198] sm:$0xff] %vm18, %v8873
  %8977 = vst.msk [vmem:[%s8934 + $0x1a0] sm:$0xff] %vm18, %v8875
  %8978 = vst.msk [vmem:[%s8934 + $0x1a8] sm:$0xff] %vm18, %v8877
  %8979 = vst.msk [vmem:[%s8934 + $0x1b0] sm:$0xff] %vm18, %v8879
  %8980 = vst.msk [vmem:[%s8934 + $0x1b8] sm:$0xff] %vm18, %v8881
  %8981 = vst.msk [vmem:[%s8934 + $0x1c0] sm:$0xff] %vm18, %v8883
  %8982 = vst.msk [vmem:[%s8934 + $0x1c8] sm:$0xff] %vm18, %v8885
  %8983 = vst.msk [vmem:[%s8934 + $0x1e0] sm:$0xff] %vm18, %v8770
  %8984 = vst.msk [vmem:[%s8934 + $0x1e8] sm:$0xff] %vm18, %v8815
  %8985 = vst.msk [vmem:[%s8934 + $0x1f0] sm:$0xff] %vm18, %v8771
  %8986 = vst.msk [vmem:[%s8934 + $0x1f8] sm:$0xff] %vm18, %v8817
  %8987 = vst.msk [vmem:[%s8934 + $0x200] sm:$0xff] %vm18, %v8772
  %8988 = vst.msk [vmem:[%s8934 + $0x208] sm:$0xff] %vm18, %v8819
  %8989 = vst.msk [vmem:[%s8934 + $0x210] sm:$0xff] %vm18, %v8773
  %8990 = vst.msk [vmem:[%s8934 + $0x218] sm:$0xff] %vm18, %v8821
  %8991 = vst.msk [vmem:[%s8934 + $0x230] sm:$0xff] %vm18, %v8887
  %8992 = vst.msk [vmem:[%s8934 + $0x238] sm:$0xff] %vm18, %v8889
  %8993 = vst.msk [vmem:[%s8934 + $0x240] sm:$0xff] %vm18, %v8891
  %8994 = vst.msk [vmem:[%s8934 + $0x248] sm:$0xff] %vm18, %v8893
  %8995 = vst.msk [vmem:[%s8934 + $0x250] sm:$0xff] %vm18, %v8895
  %8996 = vst.msk [vmem:[%s8934 + $0x258] sm:$0xff] %vm18, %v8897
  %8997 = vst.msk [vmem:[%s8934 + $0x260] sm:$0xff] %vm18, %v8899
  %8998 = vst.msk [vmem:[%s8934 + $0x268] sm:$0xff] %vm18, %v8901
  %v8999 = vld [vmem:[#allocation6] sm:$0xff]
  %v9000 = vld [vmem:[#allocation6 + $0x8] sm:$0xff]
  %v9001 = vld [vmem:[#allocation6 + $0x10] sm:$0xff]
  %v9002 = vld [vmem:[#allocation6 + $0x18] sm:$0xff]
  %v9003 = vld [vmem:[#allocation6 + $0x20] sm:$0xff]
  %v9004 = vld [vmem:[#allocation6 + $0x28] sm:$0xff]
  %v9005 = vld [vmem:[#allocation6 + $0x30] sm:$0xff]
  %v9006 = vld [vmem:[#allocation6 + $0x38] sm:$0xff]
  %v9007 = vld [vmem:[#allocation6 + $0x40] sm:$0xff]
  %v9008 = vld [vmem:[#allocation6 + $0x48] sm:$0xff]
  %v9009 = vld [vmem:[#allocation6 + $0x50] sm:$0xff]
  %v9010 = vld [vmem:[#allocation6 + $0x58] sm:$0xff]
  %v9011 = vld [vmem:[#allocation6 + $0x60] sm:$0xff]
  %v9012 = vld [vmem:[#allocation6 + $0x68] sm:$0xff]
  %v9013 = vld [vmem:[#allocation6 + $0x70] sm:$0xff]
  %v9014 = vld [vmem:[#allocation6 + $0x78] sm:$0xff]
  %v9015 = vld [vmem:[#allocation6 + $0x80] sm:$0xff]
  %v9016 = vld [vmem:[#allocation6 + $0x88] sm:$0xff]
  %v9017 = vld [vmem:[#allocation6 + $0x90] sm:$0xff]
  %v9018 = vld [vmem:[#allocation6 + $0x98] sm:$0xff]
  %v9019 = vld [vmem:[#allocation6 + $0xa0] sm:$0xff]
  %v9020 = vld [vmem:[#allocation6 + $0xa8] sm:$0xff]
  %v9021 = vld [vmem:[#allocation6 + $0xb0] sm:$0xff]
  %v9022 = vld [vmem:[#allocation6 + $0xb8] sm:$0xff]
  %v9023 = vld [vmem:[#allocation6 + $0xc0] sm:$0xff]
  %v9024 = vld [vmem:[#allocation6 + $0xc8] sm:$0xff]
  %v9025 = vld [vmem:[#allocation6 + $0xd0] sm:$0xff]
  %v9026 = vld [vmem:[#allocation6 + $0xd8] sm:$0xff]
  %v9027 = vld [vmem:[#allocation6 + $0xe0] sm:$0xff]
  %v9028 = vld [vmem:[#allocation6 + $0xe8] sm:$0xff]
  %v9029 = vld [vmem:[#allocation6 + $0xf0] sm:$0xff]
  %v9030 = vld [vmem:[#allocation6 + $0xf8] sm:$0xff]
  %v9031 = vld [vmem:[#allocation6 + $0x100] sm:$0xff]
  %v9032 = vld [vmem:[#allocation6 + $0x108] sm:$0xff]
  %v9033 = vld [vmem:[#allocation6 + $0x110] sm:$0xff]
  %v9034 = vld [vmem:[#allocation6 + $0x118] sm:$0xff]
  %v9035 = vld [vmem:[#allocation6 + $0x120] sm:$0xff]
  %v9036 = vld [vmem:[#allocation6 + $0x128] sm:$0xff]
  %v9037 = vld [vmem:[#allocation6 + $0x130] sm:$0xff]
  %v9038 = vld [vmem:[#allocation6 + $0x138] sm:$0xff]
  %v9039 = vld [vmem:[#allocation6 + $0x140] sm:$0xff]
  %v9040 = vld [vmem:[#allocation6 + $0x148] sm:$0xff]
  %v9041 = vld [vmem:[#allocation6 + $0x150] sm:$0xff]
  %v9042 = vld [vmem:[#allocation6 + $0x158] sm:$0xff]
  %v9043 = vld [vmem:[#allocation6 + $0x160] sm:$0xff]
  %v9044 = vld [vmem:[#allocation6 + $0x168] sm:$0xff]
  %v9045 = vld [vmem:[#allocation6 + $0x170] sm:$0xff]
  %v9046 = vld [vmem:[#allocation6 + $0x178] sm:$0xff]
  %v9047 = vld [vmem:[#allocation6 + $0x180] sm:$0xff]
  %v9048 = vld [vmem:[#allocation6 + $0x188] sm:$0xff]
  %v9049 = vld [vmem:[#allocation6 + $0x190] sm:$0xff]
  %v9050 = vld [vmem:[#allocation6 + $0x198] sm:$0xff]
  %v9051 = vld [vmem:[#allocation6 + $0x1a0] sm:$0xff]
  %v9052 = vld [vmem:[#allocation6 + $0x1a8] sm:$0xff]
  %v9053 = vld [vmem:[#allocation6 + $0x1b0] sm:$0xff]
  %v9054 = vld [vmem:[#allocation6 + $0x1b8] sm:$0xff]
  %v9055 = vld [vmem:[#allocation6 + $0x1c0] sm:$0xff]
  %v9056 = vld [vmem:[#allocation6 + $0x1c8] sm:$0xff]
  %v9057 = vld [vmem:[#allocation6 + $0x1d0] sm:$0xff]
  %v9058 = vld [vmem:[#allocation6 + $0x1d8] sm:$0xff]
  %v9059 = vld [vmem:[#allocation6 + $0x1e0] sm:$0xff]
  %v9060 = vld [vmem:[#allocation6 + $0x1e8] sm:$0xff]
  %v9061 = vld [vmem:[#allocation6 + $0x1f0] sm:$0xff]
  %v9062 = vld [vmem:[#allocation6 + $0x1f8] sm:$0xff]
  %v9063 = vld [vmem:[#allocation6 + $0x200] sm:$0xff]
  %v9064 = vld [vmem:[#allocation6 + $0x208] sm:$0xff]
  %v9065 = vld [vmem:[#allocation6 + $0x210] sm:$0xff]
  %v9066 = vld [vmem:[#allocation6 + $0x218] sm:$0xff]
  %v9067 = vld [vmem:[#allocation6 + $0x220] sm:$0xff]
  %v9068 = vld [vmem:[#allocation6 + $0x228] sm:$0xff]
  %v9069 = vld [vmem:[#allocation6 + $0x230] sm:$0xff]
  %v9070 = vld [vmem:[#allocation6 + $0x238] sm:$0xff]
  %v9071 = vld [vmem:[#allocation6 + $0x240] sm:$0xff]
  %v9072 = vld [vmem:[#allocation6 + $0x248] sm:$0xff]
  %v9073 = vld [vmem:[#allocation6 + $0x250] sm:$0xff]
  %v9074 = vld [vmem:[#allocation6 + $0x258] sm:$0xff]
  %v9075 = vld [vmem:[#allocation6 + $0x260] sm:$0xff]
  %v9076 = vld [vmem:[#allocation6 + $0x268] sm:$0xff]
  %v9077 = vld [vmem:[#allocation6 + $0x270] sm:$0xff]
  %v9078 = vld [vmem:[#allocation6 + $0x278] sm:$0xff]
  %v9079 = vld [vmem:[#allocation6 + $0x280] sm:$0xff]
  %v9080 = vld [vmem:[#allocation6 + $0x288] sm:$0xff]
  %v9081 = vld [vmem:[#allocation6 + $0x290] sm:$0xff]
  %v9082 = vld [vmem:[#allocation6 + $0x298] sm:$0xff]
  %v9083 = vld [vmem:[#allocation6 + $0x2a0] sm:$0xff]
  %v9084 = vld [vmem:[#allocation6 + $0x2a8] sm:$0xff]
  %v9085 = vld [vmem:[#allocation6 + $0x2b0] sm:$0xff]
  %v9086 = vld [vmem:[#allocation6 + $0x2b8] sm:$0xff]
  %v9087 = vld [vmem:[#allocation6 + $0x2c0] sm:$0xff]
  %v9088 = vld [vmem:[#allocation6 + $0x2c8] sm:$0xff]
  %v9089 = vld [vmem:[#allocation6 + $0x2d0] sm:$0xff]
  %v9090 = vld [vmem:[#allocation6 + $0x2d8] sm:$0xff]
  %v9091 = vld [vmem:[#allocation6 + $0x2e0] sm:$0xff]
  %v9092 = vld [vmem:[#allocation6 + $0x2e8] sm:$0xff]
  %v9093 = vld [vmem:[#allocation6 + $0x2f0] sm:$0xff]
  %v9094 = vld [vmem:[#allocation6 + $0x2f8] sm:$0xff]
  %v9095 = vld [vmem:[#allocation6 + $0x300] sm:$0xff]
  %v9096 = vld [vmem:[#allocation6 + $0x308] sm:$0xff]
  %v9097 = vld [vmem:[#allocation6 + $0x310] sm:$0xff]
  %v9098 = vld [vmem:[#allocation6 + $0x318] sm:$0xff]
  %v9099 = vld [vmem:[%s1 + $0x2a4] sm:$0xf]
  %v9100 = vld [vmem:[%s1 + $0x2a8] sm:$0xf]
  %v9101 = vld [vmem:[%s1 + $0x2ac] sm:$0xf]
  %v9102 = vld [vmem:[%s1 + $0x2b0] sm:$0xf]
  %v9103 = vld [vmem:[%s1 + $0x2b4] sm:$0xf]
  %v9104 = vld [vmem:[%s1 + $0x2b8] sm:$0xf]
  %v9105 = vld [vmem:[%s1 + $0x2bc] sm:$0xf]
  %v9106 = vld [vmem:[%s1 + $0x2c0] sm:$0xf]
  %v9107 = vld [vmem:[%s1 + $0x2c4] sm:$0xf]
  %v9108 = vld [vmem:[%s1 + $0x2c8] sm:$0xf]
  %v9109 = vld [vmem:[%s1 + $0x2cc] sm:$0xf]
  %v9110 = vld [vmem:[%s1 + $0x2d0] sm:$0xf]
  %v9111 = vld [vmem:[%s1 + $0x2d4] sm:$0xf]
  %v9112 = vld [vmem:[%s1 + $0x2d8] sm:$0x3]
  %9177 = vrot.lane.b32.xlu0 %v9000, 12
  %v9178 = vpop.permute.xlu0 %9177
  %9179 = vrot.lane.b32.xlu0 %v9001, 12
  %v9180 = vpop.permute.xlu0 %9179
  %9181 = vrot.lane.b32.xlu0 %v9002, 12
  %v9182 = vpop.permute.xlu0 %9181
  %9183 = vrot.lane.b32.xlu0 %v9003, 12
  %v9184 = vpop.permute.xlu0 %9183
  %9185 = vrot.lane.b32.xlu0 %v9004, 12
  %v9186 = vpop.permute.xlu0 %9185
  %9187 = vrot.lane.b32.xlu0 %v9005, 12
  %v9188 = vpop.permute.xlu0 %9187
  %9189 = vrot.lane.b32.xlu0 %v9006, 12
  %v9190 = vpop.permute.xlu0 %9189
  %9191 = vrot.lane.b32.xlu0 %v9007, 12
  %v9192 = vpop.permute.xlu0 %9191
  %9193 = vrot.lane.b32.xlu0 %v9010, 12
  %v9194 = vpop.permute.xlu0 %9193
  %9195 = vrot.lane.b32.xlu0 %v9011, 12
  %v9196 = vpop.permute.xlu0 %9195
  %9197 = vrot.lane.b32.xlu0 %v9012, 12
  %v9198 = vpop.permute.xlu0 %9197
  %9199 = vrot.lane.b32.xlu0 %v9013, 12
  %v9200 = vpop.permute.xlu0 %9199
  %9201 = vrot.lane.b32.xlu0 %v9014, 12
  %v9202 = vpop.permute.xlu0 %9201
  %9203 = vrot.lane.b32.xlu0 %v9015, 12
  %v9204 = vpop.permute.xlu0 %9203
  %9205 = vrot.lane.b32.xlu0 %v9016, 12
  %v9206 = vpop.permute.xlu0 %9205
  %9207 = vrot.lane.b32.xlu0 %v9017, 12
  %v9208 = vpop.permute.xlu0 %9207
  %9209 = vrot.lane.b32.xlu0 %v9020, 12
  %v9210 = vpop.permute.xlu0 %9209
  %9211 = vrot.lane.b32.xlu0 %v9021, 12
  %v9212 = vpop.permute.xlu0 %9211
  %9213 = vrot.lane.b32.xlu0 %v9022, 12
  %v9214 = vpop.permute.xlu0 %9213
  %9215 = vrot.lane.b32.xlu0 %v9023, 12
  %v9216 = vpop.permute.xlu0 %9215
  %9217 = vrot.lane.b32.xlu0 %v9024, 12
  %v9218 = vpop.permute.xlu0 %9217
  %9219 = vrot.lane.b32.xlu0 %v9025, 12
  %v9220 = vpop.permute.xlu0 %9219
  %9221 = vrot.lane.b32.xlu0 %v9026, 12
  %v9222 = vpop.permute.xlu0 %9221
  %9223 = vrot.lane.b32.xlu0 %v9027, 12
  %v9224 = vpop.permute.xlu0 %9223
  %9225 = vrot.lane.b32.xlu0 %v9030, 12
  %v9226 = vpop.permute.xlu0 %9225
  %9227 = vrot.lane.b32.xlu0 %v9031, 12
  %v9228 = vpop.permute.xlu0 %9227
  %9229 = vrot.lane.b32.xlu0 %v9032, 12
  %v9230 = vpop.permute.xlu0 %9229
  %9231 = vrot.lane.b32.xlu0 %v9033, 12
  %v9232 = vpop.permute.xlu0 %9231
  %9233 = vrot.lane.b32.xlu0 %v9034, 12
  %v9234 = vpop.permute.xlu0 %9233
  %9235 = vrot.lane.b32.xlu0 %v9035, 12
  %v9236 = vpop.permute.xlu0 %9235
  %9237 = vrot.lane.b32.xlu0 %v9036, 12
  %v9238 = vpop.permute.xlu0 %9237
  %9239 = vrot.lane.b32.xlu0 %v9037, 12
  %v9240 = vpop.permute.xlu0 %9239
  %9241 = vrot.lane.b32.xlu0 %v9040, 12
  %v9242 = vpop.permute.xlu0 %9241
  %9243 = vrot.lane.b32.xlu0 %v9041, 12
  %v9244 = vpop.permute.xlu0 %9243
  %9245 = vrot.lane.b32.xlu0 %v9042, 12
  %v9246 = vpop.permute.xlu0 %9245
  %9247 = vrot.lane.b32.xlu0 %v9043, 12
  %v9248 = vpop.permute.xlu0 %9247
  %9249 = vrot.lane.b32.xlu0 %v9044, 12
  %v9250 = vpop.permute.xlu0 %9249
  %9251 = vrot.lane.b32.xlu0 %v9045, 12
  %v9252 = vpop.permute.xlu0 %9251
  %9253 = vrot.lane.b32.xlu0 %v9046, 12
  %v9254 = vpop.permute.xlu0 %9253
  %9255 = vrot.lane.b32.xlu0 %v9047, 12
  %v9256 = vpop.permute.xlu0 %9255
  %9257 = vrot.lane.b32.xlu0 %v9050, 12
  %v9258 = vpop.permute.xlu0 %9257
  %9259 = vrot.lane.b32.xlu0 %v9051, 12
  %v9260 = vpop.permute.xlu0 %9259
  %9261 = vrot.lane.b32.xlu0 %v9052, 12
  %v9262 = vpop.permute.xlu0 %9261
  %9263 = vrot.lane.b32.xlu0 %v9053, 12
  %v9264 = vpop.permute.xlu0 %9263
  %9265 = vrot.lane.b32.xlu0 %v9054, 12
  %v9266 = vpop.permute.xlu0 %9265
  %9267 = vrot.lane.b32.xlu0 %v9055, 12
  %v9268 = vpop.permute.xlu0 %9267
  %9269 = vrot.lane.b32.xlu0 %v9056, 12
  %v9270 = vpop.permute.xlu0 %9269
  %9271 = vrot.lane.b32.xlu0 %v9057, 12
  %v9272 = vpop.permute.xlu0 %9271
  %9273 = vrot.lane.b32.xlu0 %v9060, 12
  %v9274 = vpop.permute.xlu0 %9273
  %9275 = vrot.lane.b32.xlu0 %v9061, 12
  %v9276 = vpop.permute.xlu0 %9275
  %9277 = vrot.lane.b32.xlu0 %v9062, 12
  %v9278 = vpop.permute.xlu0 %9277
  %9279 = vrot.lane.b32.xlu0 %v9063, 12
  %v9280 = vpop.permute.xlu0 %9279
  %9281 = vrot.lane.b32.xlu0 %v9064, 12
  %v9282 = vpop.permute.xlu0 %9281
  %9283 = vrot.lane.b32.xlu0 %v9065, 12
  %v9284 = vpop.permute.xlu0 %9283
  %9285 = vrot.lane.b32.xlu0 %v9066, 12
  %v9286 = vpop.permute.xlu0 %9285
  %9287 = vrot.lane.b32.xlu0 %v9067, 12
  %v9288 = vpop.permute.xlu0 %9287
  %9289 = vrot.lane.b32.xlu0 %v9070, 12
  %v9290 = vpop.permute.xlu0 %9289
  %9291 = vrot.lane.b32.xlu0 %v9071, 12
  %v9292 = vpop.permute.xlu0 %9291
  %9293 = vrot.lane.b32.xlu0 %v9072, 12
  %v9294 = vpop.permute.xlu0 %9293
  %9295 = vrot.lane.b32.xlu0 %v9073, 12
  %v9296 = vpop.permute.xlu0 %9295
  %9297 = vrot.lane.b32.xlu0 %v9074, 12
  %v9298 = vpop.permute.xlu0 %9297
  %9299 = vrot.lane.b32.xlu0 %v9075, 12
  %v9300 = vpop.permute.xlu0 %9299
  %9301 = vrot.lane.b32.xlu0 %v9076, 12
  %v9302 = vpop.permute.xlu0 %9301
  %9303 = vrot.lane.b32.xlu0 %v9077, 12
  %v9304 = vpop.permute.xlu0 %9303
  %9377 = vrot.lane.b32.xlu0 %v9001, 24
  %v9378 = vpop.permute.xlu0 %9377
  %9379 = vrot.lane.b32.xlu0 %v9002, 24
  %v9380 = vpop.permute.xlu0 %9379
  %9381 = vrot.lane.b32.xlu0 %v9003, 24
  %v9382 = vpop.permute.xlu0 %9381
  %9383 = vrot.lane.b32.xlu0 %v9004, 24
  %v9384 = vpop.permute.xlu0 %9383
  %9385 = vrot.lane.b32.xlu0 %v9005, 24
  %v9386 = vpop.permute.xlu0 %9385
  %9387 = vrot.lane.b32.xlu0 %v9006, 24
  %v9388 = vpop.permute.xlu0 %9387
  %9389 = vrot.lane.b32.xlu0 %v9007, 24
  %v9390 = vpop.permute.xlu0 %9389
  %9391 = vrot.lane.b32.xlu0 %v9008, 24
  %v9392 = vpop.permute.xlu0 %9391
  %9393 = vrot.lane.b32.xlu0 %v9011, 24
  %v9394 = vpop.permute.xlu0 %9393
  %9395 = vrot.lane.b32.xlu0 %v9012, 24
  %v9396 = vpop.permute.xlu0 %9395
  %9397 = vrot.lane.b32.xlu0 %v9013, 24
  %v9398 = vpop.permute.xlu0 %9397
  %9399 = vrot.lane.b32.xlu0 %v9014, 24
  %v9400 = vpop.permute.xlu0 %9399
  %9401 = vrot.lane.b32.xlu0 %v9015, 24
  %v9402 = vpop.permute.xlu0 %9401
  %9403 = vrot.lane.b32.xlu0 %v9016, 24
  %v9404 = vpop.permute.xlu0 %9403
  %9405 = vrot.lane.b32.xlu0 %v9017, 24
  %v9406 = vpop.permute.xlu0 %9405
  %9407 = vrot.lane.b32.xlu0 %v9018, 24
  %v9408 = vpop.permute.xlu0 %9407
  %9409 = vrot.lane.b32.xlu0 %v9021, 24
  %v9410 = vpop.permute.xlu0 %9409
  %9411 = vrot.lane.b32.xlu0 %v9022, 24
  %v9412 = vpop.permute.xlu0 %9411
  %9413 = vrot.lane.b32.xlu0 %v9023, 24
  %v9414 = vpop.permute.xlu0 %9413
  %9415 = vrot.lane.b32.xlu0 %v9024, 24
  %v9416 = vpop.permute.xlu0 %9415
  %9417 = vrot.lane.b32.xlu0 %v9025, 24
  %v9418 = vpop.permute.xlu0 %9417
  %9419 = vrot.lane.b32.xlu0 %v9026, 24
  %v9420 = vpop.permute.xlu0 %9419
  %9421 = vrot.lane.b32.xlu0 %v9027, 24
  %v9422 = vpop.permute.xlu0 %9421
  %9423 = vrot.lane.b32.xlu0 %v9028, 24
  %v9424 = vpop.permute.xlu0 %9423
  %9425 = vrot.lane.b32.xlu0 %v9031, 24
  %v9426 = vpop.permute.xlu0 %9425
  %9427 = vrot.lane.b32.xlu0 %v9032, 24
  %v9428 = vpop.permute.xlu0 %9427
  %9429 = vrot.lane.b32.xlu0 %v9033, 24
  %v9430 = vpop.permute.xlu0 %9429
  %9431 = vrot.lane.b32.xlu0 %v9034, 24
  %v9432 = vpop.permute.xlu0 %9431
  %9433 = vrot.lane.b32.xlu0 %v9035, 24
  %v9434 = vpop.permute.xlu0 %9433
  %9435 = vrot.lane.b32.xlu0 %v9036, 24
  %v9436 = vpop.permute.xlu0 %9435
  %9437 = vrot.lane.b32.xlu0 %v9037, 24
  %v9438 = vpop.permute.xlu0 %9437
  %9439 = vrot.lane.b32.xlu0 %v9038, 24
  %v9440 = vpop.permute.xlu0 %9439
  %9441 = vrot.lane.b32.xlu0 %v9041, 24
  %v9442 = vpop.permute.xlu0 %9441
  %9443 = vrot.lane.b32.xlu0 %v9042, 24
  %v9444 = vpop.permute.xlu0 %9443
  %9445 = vrot.lane.b32.xlu0 %v9043, 24
  %v9446 = vpop.permute.xlu0 %9445
  %9447 = vrot.lane.b32.xlu0 %v9044, 24
  %v9448 = vpop.permute.xlu0 %9447
  %9449 = vrot.lane.b32.xlu0 %v9045, 24
  %v9450 = vpop.permute.xlu0 %9449
  %9451 = vrot.lane.b32.xlu0 %v9046, 24
  %v9452 = vpop.permute.xlu0 %9451
  %9453 = vrot.lane.b32.xlu0 %v9047, 24
  %v9454 = vpop.permute.xlu0 %9453
  %9455 = vrot.lane.b32.xlu0 %v9048, 24
  %v9456 = vpop.permute.xlu0 %9455
  %9457 = vrot.lane.b32.xlu0 %v9051, 24
  %v9458 = vpop.permute.xlu0 %9457
  %9459 = vrot.lane.b32.xlu0 %v9052, 24
  %v9460 = vpop.permute.xlu0 %9459
  %9461 = vrot.lane.b32.xlu0 %v9053, 24
  %v9462 = vpop.permute.xlu0 %9461
  %9463 = vrot.lane.b32.xlu0 %v9054, 24
  %v9464 = vpop.permute.xlu0 %9463
  %9465 = vrot.lane.b32.xlu0 %v9055, 24
  %v9466 = vpop.permute.xlu0 %9465
  %9467 = vrot.lane.b32.xlu0 %v9056, 24
  %v9468 = vpop.permute.xlu0 %9467
  %9469 = vrot.lane.b32.xlu0 %v9057, 24
  %v9470 = vpop.permute.xlu0 %9469
  %9471 = vrot.lane.b32.xlu0 %v9058, 24
  %v9472 = vpop.permute.xlu0 %9471
  %9473 = vrot.lane.b32.xlu0 %v9061, 24
  %v9474 = vpop.permute.xlu0 %9473
  %9475 = vrot.lane.b32.xlu0 %v9062, 24
  %v9476 = vpop.permute.xlu0 %9475
  %9477 = vrot.lane.b32.xlu0 %v9063, 24
  %v9478 = vpop.permute.xlu0 %9477
  %9479 = vrot.lane.b32.xlu0 %v9064, 24
  %v9480 = vpop.permute.xlu0 %9479
  %9481 = vrot.lane.b32.xlu0 %v9065, 24
  %v9482 = vpop.permute.xlu0 %9481
  %9483 = vrot.lane.b32.xlu0 %v9066, 24
  %v9484 = vpop.permute.xlu0 %9483
  %9485 = vrot.lane.b32.xlu0 %v9067, 24
  %v9486 = vpop.permute.xlu0 %9485
  %9487 = vrot.lane.b32.xlu0 %v9068, 24
  %v9488 = vpop.permute.xlu0 %9487
  %9489 = vrot.lane.b32.xlu0 %v9071, 24
  %v9490 = vpop.permute.xlu0 %9489
  %9491 = vrot.lane.b32.xlu0 %v9072, 24
  %v9492 = vpop.permute.xlu0 %9491
  %9493 = vrot.lane.b32.xlu0 %v9073, 24
  %v9494 = vpop.permute.xlu0 %9493
  %9495 = vrot.lane.b32.xlu0 %v9074, 24
  %v9496 = vpop.permute.xlu0 %9495
  %9497 = vrot.lane.b32.xlu0 %v9075, 24
  %v9498 = vpop.permute.xlu0 %9497
  %9499 = vrot.lane.b32.xlu0 %v9076, 24
  %v9500 = vpop.permute.xlu0 %9499
  %9501 = vrot.lane.b32.xlu0 %v9077, 24
  %v9502 = vpop.permute.xlu0 %9501
  %9503 = vrot.lane.b32.xlu0 %v9078, 24
  %v9504 = vpop.permute.xlu0 %9503
  %9584 = vrot.lane.b32.xlu0 %v9009, 36
  %v9585 = vpop.permute.xlu0 %9584
  %9586 = vrot.lane.b32.xlu0 %v9010, 36
  %v9587 = vpop.permute.xlu0 %9586
  %9588 = vrot.lane.b32.xlu0 %v9011, 36
  %v9589 = vpop.permute.xlu0 %9588
  %9590 = vrot.lane.b32.xlu0 %v9012, 36
  %v9591 = vpop.permute.xlu0 %9590
  %9592 = vrot.lane.b32.xlu0 %v9013, 36
  %v9593 = vpop.permute.xlu0 %9592
  %9594 = vrot.lane.b32.xlu0 %v9014, 36
  %v9595 = vpop.permute.xlu0 %9594
  %9596 = vrot.lane.b32.xlu0 %v9015, 36
  %v9597 = vpop.permute.xlu0 %9596
  %9598 = vrot.lane.b32.xlu0 %v9016, 36
  %v9599 = vpop.permute.xlu0 %9598
  %9600 = vrot.lane.b32.xlu0 %v9019, 36
  %v9601 = vpop.permute.xlu0 %9600
  %9602 = vrot.lane.b32.xlu0 %v9020, 36
  %v9603 = vpop.permute.xlu0 %9602
  %9604 = vrot.lane.b32.xlu0 %v9021, 36
  %v9605 = vpop.permute.xlu0 %9604
  %9606 = vrot.lane.b32.xlu0 %v9022, 36
  %v9607 = vpop.permute.xlu0 %9606
  %9608 = vrot.lane.b32.xlu0 %v9023, 36
  %v9609 = vpop.permute.xlu0 %9608
  %9610 = vrot.lane.b32.xlu0 %v9024, 36
  %v9611 = vpop.permute.xlu0 %9610
  %9612 = vrot.lane.b32.xlu0 %v9025, 36
  %v9613 = vpop.permute.xlu0 %9612
  %9614 = vrot.lane.b32.xlu0 %v9026, 36
  %v9615 = vpop.permute.xlu0 %9614
  %9616 = vrot.lane.b32.xlu0 %v9029, 36
  %v9617 = vpop.permute.xlu0 %9616
  %9618 = vrot.lane.b32.xlu0 %v9030, 36
  %v9619 = vpop.permute.xlu0 %9618
  %9620 = vrot.lane.b32.xlu0 %v9031, 36
  %v9621 = vpop.permute.xlu0 %9620
  %9622 = vrot.lane.b32.xlu0 %v9032, 36
  %v9623 = vpop.permute.xlu0 %9622
  %9624 = vrot.lane.b32.xlu0 %v9033, 36
  %v9625 = vpop.permute.xlu0 %9624
  %9626 = vrot.lane.b32.xlu0 %v9034, 36
  %v9627 = vpop.permute.xlu0 %9626
  %9628 = vrot.lane.b32.xlu0 %v9035, 36
  %v9629 = vpop.permute.xlu0 %9628
  %9630 = vrot.lane.b32.xlu0 %v9036, 36
  %v9631 = vpop.permute.xlu0 %9630
  %9632 = vrot.lane.b32.xlu0 %v9039, 36
  %v9633 = vpop.permute.xlu0 %9632
  %9634 = vrot.lane.b32.xlu0 %v9040, 36
  %v9635 = vpop.permute.xlu0 %9634
  %9636 = vrot.lane.b32.xlu0 %v9041, 36
  %v9637 = vpop.permute.xlu0 %9636
  %9638 = vrot.lane.b32.xlu0 %v9042, 36
  %v9639 = vpop.permute.xlu0 %9638
  %9640 = vrot.lane.b32.xlu0 %v9043, 36
  %v9641 = vpop.permute.xlu0 %9640
  %9642 = vrot.lane.b32.xlu0 %v9044, 36
  %v9643 = vpop.permute.xlu0 %9642
  %9644 = vrot.lane.b32.xlu0 %v9045, 36
  %v9645 = vpop.permute.xlu0 %9644
  %9646 = vrot.lane.b32.xlu0 %v9046, 36
  %v9647 = vpop.permute.xlu0 %9646
  %9648 = vrot.lane.b32.xlu0 %v9049, 36
  %v9649 = vpop.permute.xlu0 %9648
  %9650 = vrot.lane.b32.xlu0 %v9050, 36
  %v9651 = vpop.permute.xlu0 %9650
  %9652 = vrot.lane.b32.xlu0 %v9051, 36
  %v9653 = vpop.permute.xlu0 %9652
  %9654 = vrot.lane.b32.xlu0 %v9052, 36
  %v9655 = vpop.permute.xlu0 %9654
  %9656 = vrot.lane.b32.xlu0 %v9053, 36
  %v9657 = vpop.permute.xlu0 %9656
  %9658 = vrot.lane.b32.xlu0 %v9054, 36
  %v9659 = vpop.permute.xlu0 %9658
  %9660 = vrot.lane.b32.xlu0 %v9055, 36
  %v9661 = vpop.permute.xlu0 %9660
  %9662 = vrot.lane.b32.xlu0 %v9056, 36
  %v9663 = vpop.permute.xlu0 %9662
  %9664 = vrot.lane.b32.xlu0 %v9059, 36
  %v9665 = vpop.permute.xlu0 %9664
  %9666 = vrot.lane.b32.xlu0 %v9060, 36
  %v9667 = vpop.permute.xlu0 %9666
  %9668 = vrot.lane.b32.xlu0 %v9061, 36
  %v9669 = vpop.permute.xlu0 %9668
  %9670 = vrot.lane.b32.xlu0 %v9062, 36
  %v9671 = vpop.permute.xlu0 %9670
  %9672 = vrot.lane.b32.xlu0 %v9063, 36
  %v9673 = vpop.permute.xlu0 %9672
  %9674 = vrot.lane.b32.xlu0 %v9064, 36
  %v9675 = vpop.permute.xlu0 %9674
  %9676 = vrot.lane.b32.xlu0 %v9065, 36
  %v9677 = vpop.permute.xlu0 %9676
  %9678 = vrot.lane.b32.xlu0 %v9066, 36
  %v9679 = vpop.permute.xlu0 %9678
  %9680 = vrot.lane.b32.xlu0 %v9069, 36
  %v9681 = vpop.permute.xlu0 %9680
  %9682 = vrot.lane.b32.xlu0 %v9070, 36
  %v9683 = vpop.permute.xlu0 %9682
  %9684 = vrot.lane.b32.xlu0 %v9071, 36
  %v9685 = vpop.permute.xlu0 %9684
  %9686 = vrot.lane.b32.xlu0 %v9072, 36
  %v9687 = vpop.permute.xlu0 %9686
  %9688 = vrot.lane.b32.xlu0 %v9073, 36
  %v9689 = vpop.permute.xlu0 %9688
  %9690 = vrot.lane.b32.xlu0 %v9074, 36
  %v9691 = vpop.permute.xlu0 %9690
  %9692 = vrot.lane.b32.xlu0 %v9075, 36
  %v9693 = vpop.permute.xlu0 %9692
  %9694 = vrot.lane.b32.xlu0 %v9076, 36
  %v9695 = vpop.permute.xlu0 %9694
  %9696 = vrot.lane.b32.xlu0 %v9079, 36
  %v9697 = vpop.permute.xlu0 %9696
  %9698 = vrot.lane.b32.xlu0 %v9080, 36
  %v9699 = vpop.permute.xlu0 %9698
  %9700 = vrot.lane.b32.xlu0 %v9081, 36
  %v9701 = vpop.permute.xlu0 %9700
  %9702 = vrot.lane.b32.xlu0 %v9082, 36
  %v9703 = vpop.permute.xlu0 %9702
  %9704 = vrot.lane.b32.xlu0 %v9083, 36
  %v9705 = vpop.permute.xlu0 %9704
  %9706 = vrot.lane.b32.xlu0 %v9084, 36
  %v9707 = vpop.permute.xlu0 %9706
  %9708 = vrot.lane.b32.xlu0 %v9085, 36
  %v9709 = vpop.permute.xlu0 %9708
  %9710 = vrot.lane.b32.xlu0 %v9086, 36
  %v9711 = vpop.permute.xlu0 %9710
  %9777 = vrot.lane.b32.xlu0 %v9010, 48
  %v9778 = vpop.permute.xlu0 %9777
  %9779 = vrot.lane.b32.xlu0 %v9011, 48
  %v9780 = vpop.permute.xlu0 %9779
  %9781 = vrot.lane.b32.xlu0 %v9012, 48
  %v9782 = vpop.permute.xlu0 %9781
  %9783 = vrot.lane.b32.xlu0 %v9013, 48
  %v9784 = vpop.permute.xlu0 %9783
  %9785 = vrot.lane.b32.xlu0 %v9014, 48
  %v9786 = vpop.permute.xlu0 %9785
  %9787 = vrot.lane.b32.xlu0 %v9015, 48
  %v9788 = vpop.permute.xlu0 %9787
  %9789 = vrot.lane.b32.xlu0 %v9016, 48
  %v9790 = vpop.permute.xlu0 %9789
  %9791 = vrot.lane.b32.xlu0 %v9017, 48
  %v9792 = vpop.permute.xlu0 %9791
  %9793 = vrot.lane.b32.xlu0 %v9020, 48
  %v9794 = vpop.permute.xlu0 %9793
  %9795 = vrot.lane.b32.xlu0 %v9021, 48
  %v9796 = vpop.permute.xlu0 %9795
  %9797 = vrot.lane.b32.xlu0 %v9022, 48
  %v9798 = vpop.permute.xlu0 %9797
  %9799 = vrot.lane.b32.xlu0 %v9023, 48
  %v9800 = vpop.permute.xlu0 %9799
  %9801 = vrot.lane.b32.xlu0 %v9024, 48
  %v9802 = vpop.permute.xlu0 %9801
  %9803 = vrot.lane.b32.xlu0 %v9025, 48
  %v9804 = vpop.permute.xlu0 %9803
  %9805 = vrot.lane.b32.xlu0 %v9026, 48
  %v9806 = vpop.permute.xlu0 %9805
  %9807 = vrot.lane.b32.xlu0 %v9027, 48
  %v9808 = vpop.permute.xlu0 %9807
  %9809 = vrot.lane.b32.xlu0 %v9030, 48
  %v9810 = vpop.permute.xlu0 %9809
  %9811 = vrot.lane.b32.xlu0 %v9031, 48
  %v9812 = vpop.permute.xlu0 %9811
  %9813 = vrot.lane.b32.xlu0 %v9032, 48
  %v9814 = vpop.permute.xlu0 %9813
  %9815 = vrot.lane.b32.xlu0 %v9033, 48
  %v9816 = vpop.permute.xlu0 %9815
  %9817 = vrot.lane.b32.xlu0 %v9034, 48
  %v9818 = vpop.permute.xlu0 %9817
  %9819 = vrot.lane.b32.xlu0 %v9035, 48
  %v9820 = vpop.permute.xlu0 %9819
  %9821 = vrot.lane.b32.xlu0 %v9036, 48
  %v9822 = vpop.permute.xlu0 %9821
  %9823 = vrot.lane.b32.xlu0 %v9037, 48
  %v9824 = vpop.permute.xlu0 %9823
  %9825 = vrot.lane.b32.xlu0 %v9040, 48
  %v9826 = vpop.permute.xlu0 %9825
  %9827 = vrot.lane.b32.xlu0 %v9041, 48
  %v9828 = vpop.permute.xlu0 %9827
  %9829 = vrot.lane.b32.xlu0 %v9042, 48
  %v9830 = vpop.permute.xlu0 %9829
  %9831 = vrot.lane.b32.xlu0 %v9043, 48
  %v9832 = vpop.permute.xlu0 %9831
  %9833 = vrot.lane.b32.xlu0 %v9044, 48
  %v9834 = vpop.permute.xlu0 %9833
  %9835 = vrot.lane.b32.xlu0 %v9045, 48
  %v9836 = vpop.permute.xlu0 %9835
  %9837 = vrot.lane.b32.xlu0 %v9046, 48
  %v9838 = vpop.permute.xlu0 %9837
  %9839 = vrot.lane.b32.xlu0 %v9047, 48
  %v9840 = vpop.permute.xlu0 %9839
  %9841 = vrot.lane.b32.xlu0 %v9050, 48
  %v9842 = vpop.permute.xlu0 %9841
  %9843 = vrot.lane.b32.xlu0 %v9051, 48
  %v9844 = vpop.permute.xlu0 %9843
  %9845 = vrot.lane.b32.xlu0 %v9052, 48
  %v9846 = vpop.permute.xlu0 %9845
  %9847 = vrot.lane.b32.xlu0 %v9053, 48
  %v9848 = vpop.permute.xlu0 %9847
  %9849 = vrot.lane.b32.xlu0 %v9054, 48
  %v9850 = vpop.permute.xlu0 %9849
  %9851 = vrot.lane.b32.xlu0 %v9055, 48
  %v9852 = vpop.permute.xlu0 %9851
  %9853 = vrot.lane.b32.xlu0 %v9056, 48
  %v9854 = vpop.permute.xlu0 %9853
  %9855 = vrot.lane.b32.xlu0 %v9057, 48
  %v9856 = vpop.permute.xlu0 %9855
  %9857 = vrot.lane.b32.xlu0 %v9060, 48
  %v9858 = vpop.permute.xlu0 %9857
  %9859 = vrot.lane.b32.xlu0 %v9061, 48
  %v9860 = vpop.permute.xlu0 %9859
  %9861 = vrot.lane.b32.xlu0 %v9062, 48
  %v9862 = vpop.permute.xlu0 %9861
  %9863 = vrot.lane.b32.xlu0 %v9063, 48
  %v9864 = vpop.permute.xlu0 %9863
  %9865 = vrot.lane.b32.xlu0 %v9064, 48
  %v9866 = vpop.permute.xlu0 %9865
  %9867 = vrot.lane.b32.xlu0 %v9065, 48
  %v9868 = vpop.permute.xlu0 %9867
  %9869 = vrot.lane.b32.xlu0 %v9066, 48
  %v9870 = vpop.permute.xlu0 %9869
  %9871 = vrot.lane.b32.xlu0 %v9067, 48
  %v9872 = vpop.permute.xlu0 %9871
  %9873 = vrot.lane.b32.xlu0 %v9070, 48
  %v9874 = vpop.permute.xlu0 %9873
  %9875 = vrot.lane.b32.xlu0 %v9071, 48
  %v9876 = vpop.permute.xlu0 %9875
  %9877 = vrot.lane.b32.xlu0 %v9072, 48
  %v9878 = vpop.permute.xlu0 %9877
  %9879 = vrot.lane.b32.xlu0 %v9073, 48
  %v9880 = vpop.permute.xlu0 %9879
  %9881 = vrot.lane.b32.xlu0 %v9074, 48
  %v9882 = vpop.permute.xlu0 %9881
  %9883 = vrot.lane.b32.xlu0 %v9075, 48
  %v9884 = vpop.permute.xlu0 %9883
  %9885 = vrot.lane.b32.xlu0 %v9076, 48
  %v9886 = vpop.permute.xlu0 %9885
  %9887 = vrot.lane.b32.xlu0 %v9077, 48
  %v9888 = vpop.permute.xlu0 %9887
  %9889 = vrot.lane.b32.xlu0 %v9080, 48
  %v9890 = vpop.permute.xlu0 %9889
  %9891 = vrot.lane.b32.xlu0 %v9081, 48
  %v9892 = vpop.permute.xlu0 %9891
  %9893 = vrot.lane.b32.xlu0 %v9082, 48
  %v9894 = vpop.permute.xlu0 %9893
  %9895 = vrot.lane.b32.xlu0 %v9083, 48
  %v9896 = vpop.permute.xlu0 %9895
  %9897 = vrot.lane.b32.xlu0 %v9084, 48
  %v9898 = vpop.permute.xlu0 %9897
  %9899 = vrot.lane.b32.xlu0 %v9085, 48
  %v9900 = vpop.permute.xlu0 %9899
  %9901 = vrot.lane.b32.xlu0 %v9086, 48
  %v9902 = vpop.permute.xlu0 %9901
  %9903 = vrot.lane.b32.xlu0 %v9087, 48
  %v9904 = vpop.permute.xlu0 %9903
  %9970 = vrot.lane.b32.xlu0 %v9011, 60
  %v9971 = vpop.permute.xlu0 %9970
  %9972 = vrot.lane.b32.xlu0 %v9012, 60
  %v9973 = vpop.permute.xlu0 %9972
  %9974 = vrot.lane.b32.xlu0 %v9013, 60
  %v9975 = vpop.permute.xlu0 %9974
  %9976 = vrot.lane.b32.xlu0 %v9014, 60
  %v9977 = vpop.permute.xlu0 %9976
  %9978 = vrot.lane.b32.xlu0 %v9015, 60
  %v9979 = vpop.permute.xlu0 %9978
  %9980 = vrot.lane.b32.xlu0 %v9016, 60
  %v9981 = vpop.permute.xlu0 %9980
  %9982 = vrot.lane.b32.xlu0 %v9017, 60
  %v9983 = vpop.permute.xlu0 %9982
  %9984 = vrot.lane.b32.xlu0 %v9018, 60
  %v9985 = vpop.permute.xlu0 %9984
  %9986 = vrot.lane.b32.xlu0 %v9021, 60
  %v9987 = vpop.permute.xlu0 %9986
  %9988 = vrot.lane.b32.xlu0 %v9022, 60
  %v9989 = vpop.permute.xlu0 %9988
  %9990 = vrot.lane.b32.xlu0 %v9023, 60
  %v9991 = vpop.permute.xlu0 %9990
  %9992 = vrot.lane.b32.xlu0 %v9024, 60
  %v9993 = vpop.permute.xlu0 %9992
  %9994 = vrot.lane.b32.xlu0 %v9025, 60
  %v9995 = vpop.permute.xlu0 %9994
  %9996 = vrot.lane.b32.xlu0 %v9026, 60
  %v9997 = vpop.permute.xlu0 %9996
  %9998 = vrot.lane.b32.xlu0 %v9027, 60
  %v9999 = vpop.permute.xlu0 %9998
  %10000 = vrot.lane.b32.xlu0 %v9028, 60
  %v10001 = vpop.permute.xlu0 %10000
  %10002 = vrot.lane.b32.xlu0 %v9031, 60
  %v10003 = vpop.permute.xlu0 %10002
  %10004 = vrot.lane.b32.xlu0 %v9032, 60
  %v10005 = vpop.permute.xlu0 %10004
  %10006 = vrot.lane.b32.xlu0 %v9033, 60
  %v10007 = vpop.permute.xlu0 %10006
  %10008 = vrot.lane.b32.xlu0 %v9034, 60
  %v10009 = vpop.permute.xlu0 %10008
  %10010 = vrot.lane.b32.xlu0 %v9035, 60
  %v10011 = vpop.permute.xlu0 %10010
  %10012 = vrot.lane.b32.xlu0 %v9036, 60
  %v10013 = vpop.permute.xlu0 %10012
  %10014 = vrot.lane.b32.xlu0 %v9037, 60
  %v10015 = vpop.permute.xlu0 %10014
  %10016 = vrot.lane.b32.xlu0 %v9038, 60
  %v10017 = vpop.permute.xlu0 %10016
  %10018 = vrot.lane.b32.xlu0 %v9041, 60
  %v10019 = vpop.permute.xlu0 %10018
  %10020 = vrot.lane.b32.xlu0 %v9042, 60
  %v10021 = vpop.permute.xlu0 %10020
  %10022 = vrot.lane.b32.xlu0 %v9043, 60
  %v10023 = vpop.permute.xlu0 %10022
  %10024 = vrot.lane.b32.xlu0 %v9044, 60
  %v10025 = vpop.permute.xlu0 %10024
  %10026 = vrot.lane.b32.xlu0 %v9045, 60
  %v10027 = vpop.permute.xlu0 %10026
  %10028 = vrot.lane.b32.xlu0 %v9046, 60
  %v10029 = vpop.permute.xlu0 %10028
  %10030 = vrot.lane.b32.xlu0 %v9047, 60
  %v10031 = vpop.permute.xlu0 %10030
  %10032 = vrot.lane.b32.xlu0 %v9048, 60
  %v10033 = vpop.permute.xlu0 %10032
  %10034 = vrot.lane.b32.xlu0 %v9051, 60
  %v10035 = vpop.permute.xlu0 %10034
  %10036 = vrot.lane.b32.xlu0 %v9052, 60
  %v10037 = vpop.permute.xlu0 %10036
  %10038 = vrot.lane.b32.xlu0 %v9053, 60
  %v10039 = vpop.permute.xlu0 %10038
  %10040 = vrot.lane.b32.xlu0 %v9054, 60
  %v10041 = vpop.permute.xlu0 %10040
  %10042 = vrot.lane.b32.xlu0 %v9055, 60
  %v10043 = vpop.permute.xlu0 %10042
  %10044 = vrot.lane.b32.xlu0 %v9056, 60
  %v10045 = vpop.permute.xlu0 %10044
  %10046 = vrot.lane.b32.xlu0 %v9057, 60
  %v10047 = vpop.permute.xlu0 %10046
  %10048 = vrot.lane.b32.xlu0 %v9058, 60
  %v10049 = vpop.permute.xlu0 %10048
  %10050 = vrot.lane.b32.xlu0 %v9061, 60
  %v10051 = vpop.permute.xlu0 %10050
  %10052 = vrot.lane.b32.xlu0 %v9062, 60
  %v10053 = vpop.permute.xlu0 %10052
  %10054 = vrot.lane.b32.xlu0 %v9063, 60
  %v10055 = vpop.permute.xlu0 %10054
  %10056 = vrot.lane.b32.xlu0 %v9064, 60
  %v10057 = vpop.permute.xlu0 %10056
  %10058 = vrot.lane.b32.xlu0 %v9065, 60
  %v10059 = vpop.permute.xlu0 %10058
  %10060 = vrot.lane.b32.xlu0 %v9066, 60
  %v10061 = vpop.permute.xlu0 %10060
  %10062 = vrot.lane.b32.xlu0 %v9067, 60
  %v10063 = vpop.permute.xlu0 %10062
  %10064 = vrot.lane.b32.xlu0 %v9068, 60
  %v10065 = vpop.permute.xlu0 %10064
  %10066 = vrot.lane.b32.xlu0 %v9071, 60
  %v10067 = vpop.permute.xlu0 %10066
  %10068 = vrot.lane.b32.xlu0 %v9072, 60
  %v10069 = vpop.permute.xlu0 %10068
  %10070 = vrot.lane.b32.xlu0 %v9073, 60
  %v10071 = vpop.permute.xlu0 %10070
  %10072 = vrot.lane.b32.xlu0 %v9074, 60
  %v10073 = vpop.permute.xlu0 %10072
  %10074 = vrot.lane.b32.xlu0 %v9075, 60
  %v10075 = vpop.permute.xlu0 %10074
  %10076 = vrot.lane.b32.xlu0 %v9076, 60
  %v10077 = vpop.permute.xlu0 %10076
  %10078 = vrot.lane.b32.xlu0 %v9077, 60
  %v10079 = vpop.permute.xlu0 %10078
  %10080 = vrot.lane.b32.xlu0 %v9078, 60
  %v10081 = vpop.permute.xlu0 %10080
  %10082 = vrot.lane.b32.xlu0 %v9081, 60
  %v10083 = vpop.permute.xlu0 %10082
  %10084 = vrot.lane.b32.xlu0 %v9082, 60
  %v10085 = vpop.permute.xlu0 %10084
  %10086 = vrot.lane.b32.xlu0 %v9083, 60
  %v10087 = vpop.permute.xlu0 %10086
  %10088 = vrot.lane.b32.xlu0 %v9084, 60
  %v10089 = vpop.permute.xlu0 %10088
  %10090 = vrot.lane.b32.xlu0 %v9085, 60
  %v10091 = vpop.permute.xlu0 %10090
  %10092 = vrot.lane.b32.xlu0 %v9086, 60
  %v10093 = vpop.permute.xlu0 %10092
  %10094 = vrot.lane.b32.xlu0 %v9087, 60
  %v10095 = vpop.permute.xlu0 %10094
  %10096 = vrot.lane.b32.xlu0 %v9088, 60
  %v10097 = vpop.permute.xlu0 %10096
  %10170 = vrot.lane.b32.xlu0 %v9019, 72
  %v10171 = vpop.permute.xlu0 %10170
  %10172 = vrot.lane.b32.xlu0 %v9020, 72
  %v10173 = vpop.permute.xlu0 %10172
  %10174 = vrot.lane.b32.xlu0 %v9021, 72
  %v10175 = vpop.permute.xlu0 %10174
  %10176 = vrot.lane.b32.xlu0 %v9022, 72
  %v10177 = vpop.permute.xlu0 %10176
  %10178 = vrot.lane.b32.xlu0 %v9023, 72
  %v10179 = vpop.permute.xlu0 %10178
  %10180 = vrot.lane.b32.xlu0 %v9024, 72
  %v10181 = vpop.permute.xlu0 %10180
  %10182 = vrot.lane.b32.xlu0 %v9025, 72
  %v10183 = vpop.permute.xlu0 %10182
  %10184 = vrot.lane.b32.xlu0 %v9026, 72
  %v10185 = vpop.permute.xlu0 %10184
  %10186 = vrot.lane.b32.xlu0 %v9029, 72
  %v10187 = vpop.permute.xlu0 %10186
  %10188 = vrot.lane.b32.xlu0 %v9030, 72
  %v10189 = vpop.permute.xlu0 %10188
  %10190 = vrot.lane.b32.xlu0 %v9031, 72
  %v10191 = vpop.permute.xlu0 %10190
  %10192 = vrot.lane.b32.xlu0 %v9032, 72
  %v10193 = vpop.permute.xlu0 %10192
  %10194 = vrot.lane.b32.xlu0 %v9033, 72
  %v10195 = vpop.permute.xlu0 %10194
  %10196 = vrot.lane.b32.xlu0 %v9034, 72
  %v10197 = vpop.permute.xlu0 %10196
  %10198 = vrot.lane.b32.xlu0 %v9035, 72
  %v10199 = vpop.permute.xlu0 %10198
  %10200 = vrot.lane.b32.xlu0 %v9036, 72
  %v10201 = vpop.permute.xlu0 %10200
  %10202 = vrot.lane.b32.xlu0 %v9039, 72
  %v10203 = vpop.permute.xlu0 %10202
  %10204 = vrot.lane.b32.xlu0 %v9040, 72
  %v10205 = vpop.permute.xlu0 %10204
  %10206 = vrot.lane.b32.xlu0 %v9041, 72
  %v10207 = vpop.permute.xlu0 %10206
  %10208 = vrot.lane.b32.xlu0 %v9042, 72
  %v10209 = vpop.permute.xlu0 %10208
  %10210 = vrot.lane.b32.xlu0 %v9043, 72
  %v10211 = vpop.permute.xlu0 %10210
  %10212 = vrot.lane.b32.xlu0 %v9044, 72
  %v10213 = vpop.permute.xlu0 %10212
  %10214 = vrot.lane.b32.xlu0 %v9045, 72
  %v10215 = vpop.permute.xlu0 %10214
  %10216 = vrot.lane.b32.xlu0 %v9046, 72
  %v10217 = vpop.permute.xlu0 %10216
  %10218 = vrot.lane.b32.xlu0 %v9049, 72
  %v10219 = vpop.permute.xlu0 %10218
  %10220 = vrot.lane.b32.xlu0 %v9050, 72
  %v10221 = vpop.permute.xlu0 %10220
  %10222 = vrot.lane.b32.xlu0 %v9051, 72
  %v10223 = vpop.permute.xlu0 %10222
  %10224 = vrot.lane.b32.xlu0 %v9052, 72
  %v10225 = vpop.permute.xlu0 %10224
  %10226 = vrot.lane.b32.xlu0 %v9053, 72
  %v10227 = vpop.permute.xlu0 %10226
  %10228 = vrot.lane.b32.xlu0 %v9054, 72
  %v10229 = vpop.permute.xlu0 %10228
  %10230 = vrot.lane.b32.xlu0 %v9055, 72
  %v10231 = vpop.permute.xlu0 %10230
  %10232 = vrot.lane.b32.xlu0 %v9056, 72
  %v10233 = vpop.permute.xlu0 %10232
  %10234 = vrot.lane.b32.xlu0 %v9059, 72
  %v10235 = vpop.permute.xlu0 %10234
  %10236 = vrot.lane.b32.xlu0 %v9060, 72
  %v10237 = vpop.permute.xlu0 %10236
  %10238 = vrot.lane.b32.xlu0 %v9061, 72
  %v10239 = vpop.permute.xlu0 %10238
  %10240 = vrot.lane.b32.xlu0 %v9062, 72
  %v10241 = vpop.permute.xlu0 %10240
  %10242 = vrot.lane.b32.xlu0 %v9063, 72
  %v10243 = vpop.permute.xlu0 %10242
  %10244 = vrot.lane.b32.xlu0 %v9064, 72
  %v10245 = vpop.permute.xlu0 %10244
  %10246 = vrot.lane.b32.xlu0 %v9065, 72
  %v10247 = vpop.permute.xlu0 %10246
  %10248 = vrot.lane.b32.xlu0 %v9066, 72
  %v10249 = vpop.permute.xlu0 %10248
  %10250 = vrot.lane.b32.xlu0 %v9069, 72
  %v10251 = vpop.permute.xlu0 %10250
  %10252 = vrot.lane.b32.xlu0 %v9070, 72
  %v10253 = vpop.permute.xlu0 %10252
  %10254 = vrot.lane.b32.xlu0 %v9071, 72
  %v10255 = vpop.permute.xlu0 %10254
  %10256 = vrot.lane.b32.xlu0 %v9072, 72
  %v10257 = vpop.permute.xlu0 %10256
  %10258 = vrot.lane.b32.xlu0 %v9073, 72
  %v10259 = vpop.permute.xlu0 %10258
  %10260 = vrot.lane.b32.xlu0 %v9074, 72
  %v10261 = vpop.permute.xlu0 %10260
  %10262 = vrot.lane.b32.xlu0 %v9075, 72
  %v10263 = vpop.permute.xlu0 %10262
  %10264 = vrot.lane.b32.xlu0 %v9076, 72
  %v10265 = vpop.permute.xlu0 %10264
  %10266 = vrot.lane.b32.xlu0 %v9079, 72
  %v10267 = vpop.permute.xlu0 %10266
  %10268 = vrot.lane.b32.xlu0 %v9080, 72
  %v10269 = vpop.permute.xlu0 %10268
  %10270 = vrot.lane.b32.xlu0 %v9081, 72
  %v10271 = vpop.permute.xlu0 %10270
  %10272 = vrot.lane.b32.xlu0 %v9082, 72
  %v10273 = vpop.permute.xlu0 %10272
  %10274 = vrot.lane.b32.xlu0 %v9083, 72
  %v10275 = vpop.permute.xlu0 %10274
  %10276 = vrot.lane.b32.xlu0 %v9084, 72
  %v10277 = vpop.permute.xlu0 %10276
  %10278 = vrot.lane.b32.xlu0 %v9085, 72
  %v10279 = vpop.permute.xlu0 %10278
  %10280 = vrot.lane.b32.xlu0 %v9086, 72
  %v10281 = vpop.permute.xlu0 %10280
  %10282 = vrot.lane.b32.xlu0 %v9089, 72
  %v10283 = vpop.permute.xlu0 %10282
  %10284 = vrot.lane.b32.xlu0 %v9090, 72
  %v10285 = vpop.permute.xlu0 %10284
  %10286 = vrot.lane.b32.xlu0 %v9091, 72
  %v10287 = vpop.permute.xlu0 %10286
  %10288 = vrot.lane.b32.xlu0 %v9092, 72
  %v10289 = vpop.permute.xlu0 %10288
  %10290 = vrot.lane.b32.xlu0 %v9093, 72
  %v10291 = vpop.permute.xlu0 %10290
  %10292 = vrot.lane.b32.xlu0 %v9094, 72
  %v10293 = vpop.permute.xlu0 %10292
  %10294 = vrot.lane.b32.xlu0 %v9095, 72
  %v10295 = vpop.permute.xlu0 %10294
  %10296 = vrot.lane.b32.xlu0 %v9096, 72
  %v10297 = vpop.permute.xlu0 %10296
  %10363 = vrot.lane.b32.xlu0 %v9020, 84
  %v10364 = vpop.permute.xlu0 %10363
  %10365 = vrot.lane.b32.xlu0 %v9021, 84
  %v10366 = vpop.permute.xlu0 %10365
  %10367 = vrot.lane.b32.xlu0 %v9022, 84
  %v10368 = vpop.permute.xlu0 %10367
  %10369 = vrot.lane.b32.xlu0 %v9023, 84
  %v10370 = vpop.permute.xlu0 %10369
  %10371 = vrot.lane.b32.xlu0 %v9024, 84
  %v10372 = vpop.permute.xlu0 %10371
  %10373 = vrot.lane.b32.xlu0 %v9025, 84
  %v10374 = vpop.permute.xlu0 %10373
  %10375 = vrot.lane.b32.xlu0 %v9026, 84
  %v10376 = vpop.permute.xlu0 %10375
  %10377 = vrot.lane.b32.xlu0 %v9027, 84
  %v10378 = vpop.permute.xlu0 %10377
  %10379 = vrot.lane.b32.xlu0 %v9030, 84
  %v10380 = vpop.permute.xlu0 %10379
  %10381 = vrot.lane.b32.xlu0 %v9031, 84
  %v10382 = vpop.permute.xlu0 %10381
  %10383 = vrot.lane.b32.xlu0 %v9032, 84
  %v10384 = vpop.permute.xlu0 %10383
  %10385 = vrot.lane.b32.xlu0 %v9033, 84
  %v10386 = vpop.permute.xlu0 %10385
  %10387 = vrot.lane.b32.xlu0 %v9034, 84
  %v10388 = vpop.permute.xlu0 %10387
  %10389 = vrot.lane.b32.xlu0 %v9035, 84
  %v10390 = vpop.permute.xlu0 %10389
  %10391 = vrot.lane.b32.xlu0 %v9036, 84
  %v10392 = vpop.permute.xlu0 %10391
  %10393 = vrot.lane.b32.xlu0 %v9037, 84
  %v10394 = vpop.permute.xlu0 %10393
  %10395 = vrot.lane.b32.xlu0 %v9040, 84
  %v10396 = vpop.permute.xlu0 %10395
  %10397 = vrot.lane.b32.xlu0 %v9041, 84
  %v10398 = vpop.permute.xlu0 %10397
  %10399 = vrot.lane.b32.xlu0 %v9042, 84
  %v10400 = vpop.permute.xlu0 %10399
  %10401 = vrot.lane.b32.xlu0 %v9043, 84
  %v10402 = vpop.permute.xlu0 %10401
  %10403 = vrot.lane.b32.xlu0 %v9044, 84
  %v10404 = vpop.permute.xlu0 %10403
  %10405 = vrot.lane.b32.xlu0 %v9045, 84
  %v10406 = vpop.permute.xlu0 %10405
  %10407 = vrot.lane.b32.xlu0 %v9046, 84
  %v10408 = vpop.permute.xlu0 %10407
  %10409 = vrot.lane.b32.xlu0 %v9047, 84
  %v10410 = vpop.permute.xlu0 %10409
  %10411 = vrot.lane.b32.xlu0 %v9050, 84
  %v10412 = vpop.permute.xlu0 %10411
  %10413 = vrot.lane.b32.xlu0 %v9051, 84
  %v10414 = vpop.permute.xlu0 %10413
  %10415 = vrot.lane.b32.xlu0 %v9052, 84
  %v10416 = vpop.permute.xlu0 %10415
  %10417 = vrot.lane.b32.xlu0 %v9053, 84
  %v10418 = vpop.permute.xlu0 %10417
  %10419 = vrot.lane.b32.xlu0 %v9054, 84
  %v10420 = vpop.permute.xlu0 %10419
  %10421 = vrot.lane.b32.xlu0 %v9055, 84
  %v10422 = vpop.permute.xlu0 %10421
  %10423 = vrot.lane.b32.xlu0 %v9056, 84
  %v10424 = vpop.permute.xlu0 %10423
  %10425 = vrot.lane.b32.xlu0 %v9057, 84
  %v10426 = vpop.permute.xlu0 %10425
  %10427 = vrot.lane.b32.xlu0 %v9060, 84
  %v10428 = vpop.permute.xlu0 %10427
  %10429 = vrot.lane.b32.xlu0 %v9061, 84
  %v10430 = vpop.permute.xlu0 %10429
  %10431 = vrot.lane.b32.xlu0 %v9062, 84
  %v10432 = vpop.permute.xlu0 %10431
  %10433 = vrot.lane.b32.xlu0 %v9063, 84
  %v10434 = vpop.permute.xlu0 %10433
  %10435 = vrot.lane.b32.xlu0 %v9064, 84
  %v10436 = vpop.permute.xlu0 %10435
  %10437 = vrot.lane.b32.xlu0 %v9065, 84
  %v10438 = vpop.permute.xlu0 %10437
  %10439 = vrot.lane.b32.xlu0 %v9066, 84
  %v10440 = vpop.permute.xlu0 %10439
  %10441 = vrot.lane.b32.xlu0 %v9067, 84
  %v10442 = vpop.permute.xlu0 %10441
  %10443 = vrot.lane.b32.xlu0 %v9070, 84
  %v10444 = vpop.permute.xlu0 %10443
  %10445 = vrot.lane.b32.xlu0 %v9071, 84
  %v10446 = vpop.permute.xlu0 %10445
  %10447 = vrot.lane.b32.xlu0 %v9072, 84
  %v10448 = vpop.permute.xlu0 %10447
  %10449 = vrot.lane.b32.xlu0 %v9073, 84
  %v10450 = vpop.permute.xlu0 %10449
  %10451 = vrot.lane.b32.xlu0 %v9074, 84
  %v10452 = vpop.permute.xlu0 %10451
  %10453 = vrot.lane.b32.xlu0 %v9075, 84
  %v10454 = vpop.permute.xlu0 %10453
  %10455 = vrot.lane.b32.xlu0 %v9076, 84
  %v10456 = vpop.permute.xlu0 %10455
  %10457 = vrot.lane.b32.xlu0 %v9077, 84
  %v10458 = vpop.permute.xlu0 %10457
  %10459 = vrot.lane.b32.xlu0 %v9080, 84
  %v10460 = vpop.permute.xlu0 %10459
  %10461 = vrot.lane.b32.xlu0 %v9081, 84
  %v10462 = vpop.permute.xlu0 %10461
  %10463 = vrot.lane.b32.xlu0 %v9082, 84
  %v10464 = vpop.permute.xlu0 %10463
  %10465 = vrot.lane.b32.xlu0 %v9083, 84
  %v10466 = vpop.permute.xlu0 %10465
  %10467 = vrot.lane.b32.xlu0 %v9084, 84
  %v10468 = vpop.permute.xlu0 %10467
  %10469 = vrot.lane.b32.xlu0 %v9085, 84
  %v10470 = vpop.permute.xlu0 %10469
  %10471 = vrot.lane.b32.xlu0 %v9086, 84
  %v10472 = vpop.permute.xlu0 %10471
  %10473 = vrot.lane.b32.xlu0 %v9087, 84
  %v10474 = vpop.permute.xlu0 %10473
  %10475 = vrot.lane.b32.xlu0 %v9090, 84
  %v10476 = vpop.permute.xlu0 %10475
  %10477 = vrot.lane.b32.xlu0 %v9091, 84
  %v10478 = vpop.permute.xlu0 %10477
  %10479 = vrot.lane.b32.xlu0 %v9092, 84
  %v10480 = vpop.permute.xlu0 %10479
  %10481 = vrot.lane.b32.xlu0 %v9093, 84
  %v10482 = vpop.permute.xlu0 %10481
  %10483 = vrot.lane.b32.xlu0 %v9094, 84
  %v10484 = vpop.permute.xlu0 %10483
  %10485 = vrot.lane.b32.xlu0 %v9095, 84
  %v10486 = vpop.permute.xlu0 %10485
  %10487 = vrot.lane.b32.xlu0 %v9096, 84
  %v10488 = vpop.permute.xlu0 %10487
  %10489 = vrot.lane.b32.xlu0 %v9097, 84
  %v10490 = vpop.permute.xlu0 %10489
  %10556 = vrot.lane.b32.xlu0 %v9021, 96
  %v10557 = vpop.permute.xlu0 %10556
  %10558 = vrot.lane.b32.xlu0 %v9022, 96
  %v10559 = vpop.permute.xlu0 %10558
  %10560 = vrot.lane.b32.xlu0 %v9023, 96
  %v10561 = vpop.permute.xlu0 %10560
  %10562 = vrot.lane.b32.xlu0 %v9024, 96
  %v10563 = vpop.permute.xlu0 %10562
  %10564 = vrot.lane.b32.xlu0 %v9025, 96
  %v10565 = vpop.permute.xlu0 %10564
  %10566 = vrot.lane.b32.xlu0 %v9026, 96
  %v10567 = vpop.permute.xlu0 %10566
  %10568 = vrot.lane.b32.xlu0 %v9027, 96
  %v10569 = vpop.permute.xlu0 %10568
  %10570 = vrot.lane.b32.xlu0 %v9028, 96
  %v10571 = vpop.permute.xlu0 %10570
  %10572 = vrot.lane.b32.xlu0 %v9031, 96
  %v10573 = vpop.permute.xlu0 %10572
  %10574 = vrot.lane.b32.xlu0 %v9032, 96
  %v10575 = vpop.permute.xlu0 %10574
  %10576 = vrot.lane.b32.xlu0 %v9033, 96
  %v10577 = vpop.permute.xlu0 %10576
  %10578 = vrot.lane.b32.xlu0 %v9034, 96
  %v10579 = vpop.permute.xlu0 %10578
  %10580 = vrot.lane.b32.xlu0 %v9035, 96
  %v10581 = vpop.permute.xlu0 %10580
  %10582 = vrot.lane.b32.xlu0 %v9036, 96
  %v10583 = vpop.permute.xlu0 %10582
  %10584 = vrot.lane.b32.xlu0 %v9037, 96
  %v10585 = vpop.permute.xlu0 %10584
  %10586 = vrot.lane.b32.xlu0 %v9038, 96
  %v10587 = vpop.permute.xlu0 %10586
  %10588 = vrot.lane.b32.xlu0 %v9041, 96
  %v10589 = vpop.permute.xlu0 %10588
  %10590 = vrot.lane.b32.xlu0 %v9042, 96
  %v10591 = vpop.permute.xlu0 %10590
  %10592 = vrot.lane.b32.xlu0 %v9043, 96
  %v10593 = vpop.permute.xlu0 %10592
  %10594 = vrot.lane.b32.xlu0 %v9044, 96
  %v10595 = vpop.permute.xlu0 %10594
  %10596 = vrot.lane.b32.xlu0 %v9045, 96
  %v10597 = vpop.permute.xlu0 %10596
  %10598 = vrot.lane.b32.xlu0 %v9046, 96
  %v10599 = vpop.permute.xlu0 %10598
  %10600 = vrot.lane.b32.xlu0 %v9047, 96
  %v10601 = vpop.permute.xlu0 %10600
  %10602 = vrot.lane.b32.xlu0 %v9048, 96
  %v10603 = vpop.permute.xlu0 %10602
  %10604 = vrot.lane.b32.xlu0 %v9051, 96
  %v10605 = vpop.permute.xlu0 %10604
  %10606 = vrot.lane.b32.xlu0 %v9052, 96
  %v10607 = vpop.permute.xlu0 %10606
  %10608 = vrot.lane.b32.xlu0 %v9053, 96
  %v10609 = vpop.permute.xlu0 %10608
  %10610 = vrot.lane.b32.xlu0 %v9054, 96
  %v10611 = vpop.permute.xlu0 %10610
  %10612 = vrot.lane.b32.xlu0 %v9055, 96
  %v10613 = vpop.permute.xlu0 %10612
  %10614 = vrot.lane.b32.xlu0 %v9056, 96
  %v10615 = vpop.permute.xlu0 %10614
  %10616 = vrot.lane.b32.xlu0 %v9057, 96
  %v10617 = vpop.permute.xlu0 %10616
  %10618 = vrot.lane.b32.xlu0 %v9058, 96
  %v10619 = vpop.permute.xlu0 %10618
  %10620 = vrot.lane.b32.xlu0 %v9061, 96
  %v10621 = vpop.permute.xlu0 %10620
  %10622 = vrot.lane.b32.xlu0 %v9062, 96
  %v10623 = vpop.permute.xlu0 %10622
  %10624 = vrot.lane.b32.xlu0 %v9063, 96
  %v10625 = vpop.permute.xlu0 %10624
  %10626 = vrot.lane.b32.xlu0 %v9064, 96
  %v10627 = vpop.permute.xlu0 %10626
  %10628 = vrot.lane.b32.xlu0 %v9065, 96
  %v10629 = vpop.permute.xlu0 %10628
  %10630 = vrot.lane.b32.xlu0 %v9066, 96
  %v10631 = vpop.permute.xlu0 %10630
  %10632 = vrot.lane.b32.xlu0 %v9067, 96
  %v10633 = vpop.permute.xlu0 %10632
  %10634 = vrot.lane.b32.xlu0 %v9068, 96
  %v10635 = vpop.permute.xlu0 %10634
  %10636 = vrot.lane.b32.xlu0 %v9071, 96
  %v10637 = vpop.permute.xlu0 %10636
  %10638 = vrot.lane.b32.xlu0 %v9072, 96
  %v10639 = vpop.permute.xlu0 %10638
  %10640 = vrot.lane.b32.xlu0 %v9073, 96
  %v10641 = vpop.permute.xlu0 %10640
  %10642 = vrot.lane.b32.xlu0 %v9074, 96
  %v10643 = vpop.permute.xlu0 %10642
  %10644 = vrot.lane.b32.xlu0 %v9075, 96
  %v10645 = vpop.permute.xlu0 %10644
  %10646 = vrot.lane.b32.xlu0 %v9076, 96
  %v10647 = vpop.permute.xlu0 %10646
  %10648 = vrot.lane.b32.xlu0 %v9077, 96
  %v10649 = vpop.permute.xlu0 %10648
  %10650 = vrot.lane.b32.xlu0 %v9078, 96
  %v10651 = vpop.permute.xlu0 %10650
  %10652 = vrot.lane.b32.xlu0 %v9081, 96
  %v10653 = vpop.permute.xlu0 %10652
  %10654 = vrot.lane.b32.xlu0 %v9082, 96
  %v10655 = vpop.permute.xlu0 %10654
  %10656 = vrot.lane.b32.xlu0 %v9083, 96
  %v10657 = vpop.permute.xlu0 %10656
  %10658 = vrot.lane.b32.xlu0 %v9084, 96
  %v10659 = vpop.permute.xlu0 %10658
  %10660 = vrot.lane.b32.xlu0 %v9085, 96
  %v10661 = vpop.permute.xlu0 %10660
  %10662 = vrot.lane.b32.xlu0 %v9086, 96
  %v10663 = vpop.permute.xlu0 %10662
  %10664 = vrot.lane.b32.xlu0 %v9087, 96
  %v10665 = vpop.permute.xlu0 %10664
  %10666 = vrot.lane.b32.xlu0 %v9088, 96
  %v10667 = vpop.permute.xlu0 %10666
  %10668 = vrot.lane.b32.xlu0 %v9091, 96
  %v10669 = vpop.permute.xlu0 %10668
  %10670 = vrot.lane.b32.xlu0 %v9092, 96
  %v10671 = vpop.permute.xlu0 %10670
  %10672 = vrot.lane.b32.xlu0 %v9093, 96
  %v10673 = vpop.permute.xlu0 %10672
  %10674 = vrot.lane.b32.xlu0 %v9094, 96
  %v10675 = vpop.permute.xlu0 %10674
  %10676 = vrot.lane.b32.xlu0 %v9095, 96
  %v10677 = vpop.permute.xlu0 %10676
  %10678 = vrot.lane.b32.xlu0 %v9096, 96
  %v10679 = vpop.permute.xlu0 %10678
  %10680 = vrot.lane.b32.xlu0 %v9097, 96
  %v10681 = vpop.permute.xlu0 %10680
  %10682 = vrot.lane.b32.xlu0 %v9098, 96
  %v10683 = vpop.permute.xlu0 %10682
  %v10748 = vsel %vm18, %v8999, %v9178
  %v10749 = vsel %vm18, %v9000, %v9180
  %v10750 = vsel %vm18, %v9001, %v9182
  %v10751 = vsel %vm18, %v9002, %v9184
  %v10752 = vsel %vm18, %v9003, %v9186
  %v10753 = vsel %vm18, %v9004, %v9188
  %v10754 = vsel %vm18, %v9005, %v9190
  %v10755 = vsel %vm18, %v9006, %v9192
  %v10756 = vsel %vm18, %v9009, %v9194
  %v10757 = vsel %vm18, %v9010, %v9196
  %v10758 = vsel %vm18, %v9011, %v9198
  %v10759 = vsel %vm18, %v9012, %v9200
  %v10760 = vsel %vm18, %v9013, %v9202
  %v10761 = vsel %vm18, %v9014, %v9204
  %v10762 = vsel %vm18, %v9015, %v9206
  %v10763 = vsel %vm18, %v9016, %v9208
  %v10764 = vsel %vm18, %v9019, %v9210
  %v10765 = vsel %vm18, %v9020, %v9212
  %v10766 = vsel %vm18, %v9021, %v9214
  %v10767 = vsel %vm18, %v9022, %v9216
  %v10768 = vsel %vm18, %v9023, %v9218
  %v10769 = vsel %vm18, %v9024, %v9220
  %v10770 = vsel %vm18, %v9025, %v9222
  %v10771 = vsel %vm18, %v9026, %v9224
  %v10772 = vsel %vm18, %v9029, %v9226
  %v10773 = vsel %vm18, %v9030, %v9228
  %v10774 = vsel %vm18, %v9031, %v9230
  %v10775 = vsel %vm18, %v9032, %v9232
  %v10776 = vsel %vm18, %v9033, %v9234
  %v10777 = vsel %vm18, %v9034, %v9236
  %v10778 = vsel %vm18, %v9035, %v9238
  %v10779 = vsel %vm18, %v9036, %v9240
  %v10780 = vsel %vm18, %v9039, %v9242
  %v10781 = vsel %vm18, %v9040, %v9244
  %v10782 = vsel %vm18, %v9041, %v9246
  %v10783 = vsel %vm18, %v9042, %v9248
  %v10784 = vsel %vm18, %v9043, %v9250
  %v10785 = vsel %vm18, %v9044, %v9252
  %v10786 = vsel %vm18, %v9045, %v9254
  %v10787 = vsel %vm18, %v9046, %v9256
  %v10788 = vsel %vm18, %v9049, %v9258
  %v10789 = vsel %vm18, %v9050, %v9260
  %v10790 = vsel %vm18, %v9051, %v9262
  %v10791 = vsel %vm18, %v9052, %v9264
  %v10792 = vsel %vm18, %v9053, %v9266
  %v10793 = vsel %vm18, %v9054, %v9268
  %v10794 = vsel %vm18, %v9055, %v9270
  %v10795 = vsel %vm18, %v9056, %v9272
  %v10796 = vsel %vm18, %v9059, %v9274
  %v10797 = vsel %vm18, %v9060, %v9276
  %v10798 = vsel %vm18, %v9061, %v9278
  %v10799 = vsel %vm18, %v9062, %v9280
  %v10800 = vsel %vm18, %v9063, %v9282
  %v10801 = vsel %vm18, %v9064, %v9284
  %v10802 = vsel %vm18, %v9065, %v9286
  %v10803 = vsel %vm18, %v9066, %v9288
  %v10804 = vsel %vm18, %v9069, %v9290
  %v10805 = vsel %vm18, %v9070, %v9292
  %v10806 = vsel %vm18, %v9071, %v9294
  %v10807 = vsel %vm18, %v9072, %v9296
  %v10808 = vsel %vm18, %v9073, %v9298
  %v10809 = vsel %vm18, %v9074, %v9300
  %v10810 = vsel %vm18, %v9075, %v9302
  %v10811 = vsel %vm18, %v9076, %v9304
  %v10812 = vsel %vm119, %v10748, %v9378
  %v10813 = vsel %vm119, %v10749, %v9380
  %v10814 = vsel %vm119, %v10750, %v9382
  %v10815 = vsel %vm119, %v10751, %v9384
  %v10816 = vsel %vm119, %v10752, %v9386
  %v10817 = vsel %vm119, %v10753, %v9388
  %v10818 = vsel %vm119, %v10754, %v9390
  %v10819 = vsel %vm119, %v10755, %v9392
  %v10820 = vsel %vm119, %v10756, %v9394
  %v10821 = vsel %vm119, %v10757, %v9396
  %v10822 = vsel %vm119, %v10758, %v9398
  %v10823 = vsel %vm119, %v10759, %v9400
  %v10824 = vsel %vm119, %v10760, %v9402
  %v10825 = vsel %vm119, %v10761, %v9404
  %v10826 = vsel %vm119, %v10762, %v9406
  %v10827 = vsel %vm119, %v10763, %v9408
  %v10828 = vsel %vm119, %v10764, %v9410
  %v10829 = vsel %vm119, %v10765, %v9412
  %v10830 = vsel %vm119, %v10766, %v9414
  %v10831 = vsel %vm119, %v10767, %v9416
  %v10832 = vsel %vm119, %v10768, %v9418
  %v10833 = vsel %vm119, %v10769, %v9420
  %v10834 = vsel %vm119, %v10770, %v9422
  %v10835 = vsel %vm119, %v10771, %v9424
  %v10836 = vsel %vm119, %v10772, %v9426
  %v10837 = vsel %vm119, %v10773, %v9428
  %v10838 = vsel %vm119, %v10774, %v9430
  %v10839 = vsel %vm119, %v10775, %v9432
  %v10840 = vsel %vm119, %v10776, %v9434
  %v10841 = vsel %vm119, %v10777, %v9436
  %v10842 = vsel %vm119, %v10778, %v9438
  %v10843 = vsel %vm119, %v10779, %v9440
  %v10844 = vsel %vm119, %v10780, %v9442
  %v10845 = vsel %vm119, %v10781, %v9444
  %v10846 = vsel %vm119, %v10782, %v9446
  %v10847 = vsel %vm119, %v10783, %v9448
  %v10848 = vsel %vm119, %v10784, %v9450
  %v10849 = vsel %vm119, %v10785, %v9452
  %v10850 = vsel %vm119, %v10786, %v9454
  %v10851 = vsel %vm119, %v10787, %v9456
  %v10852 = vsel %vm119, %v10788, %v9458
  %v10853 = vsel %vm119, %v10789, %v9460
  %v10854 = vsel %vm119, %v10790, %v9462
  %v10855 = vsel %vm119, %v10791, %v9464
  %v10856 = vsel %vm119, %v10792, %v9466
  %v10857 = vsel %vm119, %v10793, %v9468
  %v10858 = vsel %vm119, %v10794, %v9470
  %v10859 = vsel %vm119, %v10795, %v9472
  %v10860 = vsel %vm119, %v10796, %v9474
  %v10861 = vsel %vm119, %v10797, %v9476
  %v10862 = vsel %vm119, %v10798, %v9478
  %v10863 = vsel %vm119, %v10799, %v9480
  %v10864 = vsel %vm119, %v10800, %v9482
  %v10865 = vsel %vm119, %v10801, %v9484
  %v10866 = vsel %vm119, %v10802, %v9486
  %v10867 = vsel %vm119, %v10803, %v9488
  %v10868 = vsel %vm119, %v10804, %v9490
  %v10869 = vsel %vm119, %v10805, %v9492
  %v10870 = vsel %vm119, %v10806, %v9494
  %v10871 = vsel %vm119, %v10807, %v9496
  %v10872 = vsel %vm119, %v10808, %v9498
  %v10873 = vsel %vm119, %v10809, %v9500
  %v10874 = vsel %vm119, %v10810, %v9502
  %v10875 = vsel %vm119, %v10811, %v9504
  %v10876 = vsel %vm6302, %v10812, %v9585
  %v10877 = vsel %vm6302, %v10813, %v9587
  %v10878 = vsel %vm6302, %v10814, %v9589
  %v10879 = vsel %vm6302, %v10815, %v9591
  %v10880 = vsel %vm6302, %v10816, %v9593
  %v10881 = vsel %vm6302, %v10817, %v9595
  %v10882 = vsel %vm6302, %v10818, %v9597
  %v10883 = vsel %vm6302, %v10819, %v9599
  %v10884 = vsel %vm6302, %v10820, %v9601
  %v10885 = vsel %vm6302, %v10821, %v9603
  %v10886 = vsel %vm6302, %v10822, %v9605
  %v10887 = vsel %vm6302, %v10823, %v9607
  %v10888 = vsel %vm6302, %v10824, %v9609
  %v10889 = vsel %vm6302, %v10825, %v9611
  %v10890 = vsel %vm6302, %v10826, %v9613
  %v10891 = vsel %vm6302, %v10827, %v9615
  %v10892 = vsel %vm6302, %v10828, %v9617
  %v10893 = vsel %vm6302, %v10829, %v9619
  %v10894 = vsel %vm6302, %v10830, %v9621
  %v10895 = vsel %vm6302, %v10831, %v9623
  %v10896 = vsel %vm6302, %v10832, %v9625
  %v10897 = vsel %vm6302, %v10833, %v9627
  %v10898 = vsel %vm6302, %v10834, %v9629
  %v10899 = vsel %vm6302, %v10835, %v9631
  %v10900 = vsel %vm6302, %v10836, %v9633
  %v10901 = vsel %vm6302, %v10837, %v9635
  %v10902 = vsel %vm6302, %v10838, %v9637
  %v10903 = vsel %vm6302, %v10839, %v9639
  %v10904 = vsel %vm6302, %v10840, %v9641
  %v10905 = vsel %vm6302, %v10841, %v9643
  %v10906 = vsel %vm6302, %v10842, %v9645
  %v10907 = vsel %vm6302, %v10843, %v9647
  %v10908 = vsel %vm6302, %v10844, %v9649
  %v10909 = vsel %vm6302, %v10845, %v9651
  %v10910 = vsel %vm6302, %v10846, %v9653
  %v10911 = vsel %vm6302, %v10847, %v9655
  %v10912 = vsel %vm6302, %v10848, %v9657
  %v10913 = vsel %vm6302, %v10849, %v9659
  %v10914 = vsel %vm6302, %v10850, %v9661
  %v10915 = vsel %vm6302, %v10851, %v9663
  %v10916 = vsel %vm6302, %v10852, %v9665
  %v10917 = vsel %vm6302, %v10853, %v9667
  %v10918 = vsel %vm6302, %v10854, %v9669
  %v10919 = vsel %vm6302, %v10855, %v9671
  %v10920 = vsel %vm6302, %v10856, %v9673
  %v10921 = vsel %vm6302, %v10857, %v9675
  %v10922 = vsel %vm6302, %v10858, %v9677
  %v10923 = vsel %vm6302, %v10859, %v9679
  %v10924 = vsel %vm6302, %v10860, %v9681
  %v10925 = vsel %vm6302, %v10861, %v9683
  %v10926 = vsel %vm6302, %v10862, %v9685
  %v10927 = vsel %vm6302, %v10863, %v9687
  %v10928 = vsel %vm6302, %v10864, %v9689
  %v10929 = vsel %vm6302, %v10865, %v9691
  %v10930 = vsel %vm6302, %v10866, %v9693
  %v10931 = vsel %vm6302, %v10867, %v9695
  %v10932 = vsel %vm6302, %v10868, %v9697
  %v10933 = vsel %vm6302, %v10869, %v9699
  %v10934 = vsel %vm6302, %v10870, %v9701
  %v10935 = vsel %vm6302, %v10871, %v9703
  %v10936 = vsel %vm6302, %v10872, %v9705
  %v10937 = vsel %vm6302, %v10873, %v9707
  %v10938 = vsel %vm6302, %v10874, %v9709
  %v10939 = vsel %vm6302, %v10875, %v9711
  %v10940 = vsel %vm156, %v10876, %v9778
  %v10941 = vsel %vm156, %v10877, %v9780
  %v10942 = vsel %vm156, %v10878, %v9782
  %v10943 = vsel %vm156, %v10879, %v9784
  %v10944 = vsel %vm156, %v10880, %v9786
  %v10945 = vsel %vm156, %v10881, %v9788
  %v10946 = vsel %vm156, %v10882, %v9790
  %v10947 = vsel %vm156, %v10883, %v9792
  %v10948 = vsel %vm156, %v10884, %v9794
  %v10949 = vsel %vm156, %v10885, %v9796
  %v10950 = vsel %vm156, %v10886, %v9798
  %v10951 = vsel %vm156, %v10887, %v9800
  %v10952 = vsel %vm156, %v10888, %v9802
  %v10953 = vsel %vm156, %v10889, %v9804
  %v10954 = vsel %vm156, %v10890, %v9806
  %v10955 = vsel %vm156, %v10891, %v9808
  %v10956 = vsel %vm156, %v10892, %v9810
  %v10957 = vsel %vm156, %v10893, %v9812
  %v10958 = vsel %vm156, %v10894, %v9814
  %v10959 = vsel %vm156, %v10895, %v9816
  %v10960 = vsel %vm156, %v10896, %v9818
  %v10961 = vsel %vm156, %v10897, %v9820
  %v10962 = vsel %vm156, %v10898, %v9822
  %v10963 = vsel %vm156, %v10899, %v9824
  %v10964 = vsel %vm156, %v10900, %v9826
  %v10965 = vsel %vm156, %v10901, %v9828
  %v10966 = vsel %vm156, %v10902, %v9830
  %v10967 = vsel %vm156, %v10903, %v9832
  %v10968 = vsel %vm156, %v10904, %v9834
  %v10969 = vsel %vm156, %v10905, %v9836
  %v10970 = vsel %vm156, %v10906, %v9838
  %v10971 = vsel %vm156, %v10907, %v9840
  %v10972 = vsel %vm156, %v10908, %v9842
  %v10973 = vsel %vm156, %v10909, %v9844
  %v10974 = vsel %vm156, %v10910, %v9846
  %v10975 = vsel %vm156, %v10911, %v9848
  %v10976 = vsel %vm156, %v10912, %v9850
  %v10977 = vsel %vm156, %v10913, %v9852
  %v10978 = vsel %vm156, %v10914, %v9854
  %v10979 = vsel %vm156, %v10915, %v9856
  %v10980 = vsel %vm156, %v10916, %v9858
  %v10981 = vsel %vm156, %v10917, %v9860
  %v10982 = vsel %vm156, %v10918, %v9862
  %v10983 = vsel %vm156, %v10919, %v9864
  %v10984 = vsel %vm156, %v10920, %v9866
  %v10985 = vsel %vm156, %v10921, %v9868
  %v10986 = vsel %vm156, %v10922, %v9870
  %v10987 = vsel %vm156, %v10923, %v9872
  %v10988 = vsel %vm156, %v10924, %v9874
  %v10989 = vsel %vm156, %v10925, %v9876
  %v10990 = vsel %vm156, %v10926, %v9878
  %v10991 = vsel %vm156, %v10927, %v9880
  %v10992 = vsel %vm156, %v10928, %v9882
  %v10993 = vsel %vm156, %v10929, %v9884
  %v10994 = vsel %vm156, %v10930, %v9886
  %v10995 = vsel %vm156, %v10931, %v9888
  %v10996 = vsel %vm156, %v10932, %v9890
  %v10997 = vsel %vm156, %v10933, %v9892
  %v10998 = vsel %vm156, %v10934, %v9894
  %v10999 = vsel %vm156, %v10935, %v9896
  %v11000 = vsel %vm156, %v10936, %v9898
  %v11001 = vsel %vm156, %v10937, %v9900
  %v11002 = vsel %vm156, %v10938, %v9902
  %v11003 = vsel %vm156, %v10939, %v9904
  %v11004 = vsel %vm6335, %v10940, %v9971
  %v11005 = vsel %vm6335, %v10941, %v9973
  %v11006 = vsel %vm6335, %v10942, %v9975
  %v11007 = vsel %vm6335, %v10943, %v9977
  %v11008 = vsel %vm6335, %v10944, %v9979
  %v11009 = vsel %vm6335, %v10945, %v9981
  %v11010 = vsel %vm6335, %v10946, %v9983
  %v11011 = vsel %vm6335, %v10947, %v9985
  %v11012 = vsel %vm6335, %v10948, %v9987
  %v11013 = vsel %vm6335, %v10949, %v9989
  %v11014 = vsel %vm6335, %v10950, %v9991
  %v11015 = vsel %vm6335, %v10951, %v9993
  %v11016 = vsel %vm6335, %v10952, %v9995
  %v11017 = vsel %vm6335, %v10953, %v9997
  %v11018 = vsel %vm6335, %v10954, %v9999
  %v11019 = vsel %vm6335, %v10955, %v10001
  %v11020 = vsel %vm6335, %v10956, %v10003
  %v11021 = vsel %vm6335, %v10957, %v10005
  %v11022 = vsel %vm6335, %v10958, %v10007
  %v11023 = vsel %vm6335, %v10959, %v10009
  %v11024 = vsel %vm6335, %v10960, %v10011
  %v11025 = vsel %vm6335, %v10961, %v10013
  %v11026 = vsel %vm6335, %v10962, %v10015
  %v11027 = vsel %vm6335, %v10963, %v10017
  %v11028 = vsel %vm6335, %v10964, %v10019
  %v11029 = vsel %vm6335, %v10965, %v10021
  %v11030 = vsel %vm6335, %v10966, %v10023
  %v11031 = vsel %vm6335, %v10967, %v10025
  %v11032 = vsel %vm6335, %v10968, %v10027
  %v11033 = vsel %vm6335, %v10969, %v10029
  %v11034 = vsel %vm6335, %v10970, %v10031
  %v11035 = vsel %vm6335, %v10971, %v10033
  %v11036 = vsel %vm6335, %v10972, %v10035
  %v11037 = vsel %vm6335, %v10973, %v10037
  %v11038 = vsel %vm6335, %v10974, %v10039
  %v11039 = vsel %vm6335, %v10975, %v10041
  %v11040 = vsel %vm6335, %v10976, %v10043
  %v11041 = vsel %vm6335, %v10977, %v10045
  %v11042 = vsel %vm6335, %v10978, %v10047
  %v11043 = vsel %vm6335, %v10979, %v10049
  %v11044 = vsel %vm6335, %v10980, %v10051
  %v11045 = vsel %vm6335, %v10981, %v10053
  %v11046 = vsel %vm6335, %v10982, %v10055
  %v11047 = vsel %vm6335, %v10983, %v10057
  %v11048 = vsel %vm6335, %v10984, %v10059
  %v11049 = vsel %vm6335, %v10985, %v10061
  %v11050 = vsel %vm6335, %v10986, %v10063
  %v11051 = vsel %vm6335, %v10987, %v10065
  %v11052 = vsel %vm6335, %v10988, %v10067
  %v11053 = vsel %vm6335, %v10989, %v10069
  %v11054 = vsel %vm6335, %v10990, %v10071
  %v11055 = vsel %vm6335, %v10991, %v10073
  %v11056 = vsel %vm6335, %v10992, %v10075
  %v11057 = vsel %vm6335, %v10993, %v10077
  %v11058 = vsel %vm6335, %v10994, %v10079
  %v11059 = vsel %vm6335, %v10995, %v10081
  %v11060 = vsel %vm6335, %v10996, %v10083
  %v11061 = vsel %vm6335, %v10997, %v10085
  %v11062 = vsel %vm6335, %v10998, %v10087
  %v11063 = vsel %vm6335, %v10999, %v10089
  %v11064 = vsel %vm6335, %v11000, %v10091
  %v11065 = vsel %vm6335, %v11001, %v10093
  %v11066 = vsel %vm6335, %v11002, %v10095
  %v11067 = vsel %vm6335, %v11003, %v10097
  %v11068 = vsel %vm4370, %v11004, %v10171
  %v11069 = vsel %vm4370, %v11005, %v10173
  %v11070 = vsel %vm4370, %v11006, %v10175
  %v11071 = vsel %vm4370, %v11007, %v10177
  %v11072 = vsel %vm4370, %v11008, %v10179
  %v11073 = vsel %vm4370, %v11009, %v10181
  %v11074 = vsel %vm4370, %v11010, %v10183
  %v11075 = vsel %vm4370, %v11011, %v10185
  %v11076 = vsel %vm4370, %v11012, %v10187
  %v11077 = vsel %vm4370, %v11013, %v10189
  %v11078 = vsel %vm4370, %v11014, %v10191
  %v11079 = vsel %vm4370, %v11015, %v10193
  %v11080 = vsel %vm4370, %v11016, %v10195
  %v11081 = vsel %vm4370, %v11017, %v10197
  %v11082 = vsel %vm4370, %v11018, %v10199
  %v11083 = vsel %vm4370, %v11019, %v10201
  %v11084 = vsel %vm4370, %v11020, %v10203
  %v11085 = vsel %vm4370, %v11021, %v10205
  %v11086 = vsel %vm4370, %v11022, %v10207
  %v11087 = vsel %vm4370, %v11023, %v10209
  %v11088 = vsel %vm4370, %v11024, %v10211
  %v11089 = vsel %vm4370, %v11025, %v10213
  %v11090 = vsel %vm4370, %v11026, %v10215
  %v11091 = vsel %vm4370, %v11027, %v10217
  %v11092 = vsel %vm4370, %v11028, %v10219
  %v11093 = vsel %vm4370, %v11029, %v10221
  %v11094 = vsel %vm4370, %v11030, %v10223
  %v11095 = vsel %vm4370, %v11031, %v10225
  %v11096 = vsel %vm4370, %v11032, %v10227
  %v11097 = vsel %vm4370, %v11033, %v10229
  %v11098 = vsel %vm4370, %v11034, %v10231
  %v11099 = vsel %vm4370, %v11035, %v10233
  %v11100 = vsel %vm4370, %v11036, %v10235
  %v11101 = vsel %vm4370, %v11037, %v10237
  %v11102 = vsel %vm4370, %v11038, %v10239
  %v11103 = vsel %vm4370, %v11039, %v10241
  %v11104 = vsel %vm4370, %v11040, %v10243
  %v11105 = vsel %vm4370, %v11041, %v10245
  %v11106 = vsel %vm4370, %v11042, %v10247
  %v11107 = vsel %vm4370, %v11043, %v10249
  %v11108 = vsel %vm4370, %v11044, %v10251
  %v11109 = vsel %vm4370, %v11045, %v10253
  %v11110 = vsel %vm4370, %v11046, %v10255
  %v11111 = vsel %vm4370, %v11047, %v10257
  %v11112 = vsel %vm4370, %v11048, %v10259
  %v11113 = vsel %vm4370, %v11049, %v10261
  %v11114 = vsel %vm4370, %v11050, %v10263
  %v11115 = vsel %vm4370, %v11051, %v10265
  %v11116 = vsel %vm4370, %v11052, %v10267
  %v11117 = vsel %vm4370, %v11053, %v10269
  %v11118 = vsel %vm4370, %v11054, %v10271
  %v11119 = vsel %vm4370, %v11055, %v10273
  %v11120 = vsel %vm4370, %v11056, %v10275
  %v11121 = vsel %vm4370, %v11057, %v10277
  %v11122 = vsel %vm4370, %v11058, %v10279
  %v11123 = vsel %vm4370, %v11059, %v10281
  %v11124 = vsel %vm4370, %v11060, %v10283
  %v11125 = vsel %vm4370, %v11061, %v10285
  %v11126 = vsel %vm4370, %v11062, %v10287
  %v11127 = vsel %vm4370, %v11063, %v10289
  %v11128 = vsel %vm4370, %v11064, %v10291
  %v11129 = vsel %vm4370, %v11065, %v10293
  %v11130 = vsel %vm4370, %v11066, %v10295
  %v11131 = vsel %vm4370, %v11067, %v10297
  %v11132 = vsel %vm6368, %v11068, %v10364
  %v11133 = vsel %vm6368, %v11069, %v10366
  %v11134 = vsel %vm6368, %v11070, %v10368
  %v11135 = vsel %vm6368, %v11071, %v10370
  %v11136 = vsel %vm6368, %v11072, %v10372
  %v11137 = vsel %vm6368, %v11073, %v10374
  %v11138 = vsel %vm6368, %v11074, %v10376
  %v11139 = vsel %vm6368, %v11075, %v10378
  %v11140 = vsel %vm6368, %v11076, %v10380
  %v11141 = vsel %vm6368, %v11077, %v10382
  %v11142 = vsel %vm6368, %v11078, %v10384
  %v11143 = vsel %vm6368, %v11079, %v10386
  %v11144 = vsel %vm6368, %v11080, %v10388
  %v11145 = vsel %vm6368, %v11081, %v10390
  %v11146 = vsel %vm6368, %v11082, %v10392
  %v11147 = vsel %vm6368, %v11083, %v10394
  %v11148 = vsel %vm6368, %v11084, %v10396
  %v11149 = vsel %vm6368, %v11085, %v10398
  %v11150 = vsel %vm6368, %v11086, %v10400
  %v11151 = vsel %vm6368, %v11087, %v10402
  %v11152 = vsel %vm6368, %v11088, %v10404
  %v11153 = vsel %vm6368, %v11089, %v10406
  %v11154 = vsel %vm6368, %v11090, %v10408
  %v11155 = vsel %vm6368, %v11091, %v10410
  %v11156 = vsel %vm6368, %v11092, %v10412
  %v11157 = vsel %vm6368, %v11093, %v10414
  %v11158 = vsel %vm6368, %v11094, %v10416
  %v11159 = vsel %vm6368, %v11095, %v10418
  %v11160 = vsel %vm6368, %v11096, %v10420
  %v11161 = vsel %vm6368, %v11097, %v10422
  %v11162 = vsel %vm6368, %v11098, %v10424
  %v11163 = vsel %vm6368, %v11099, %v10426
  %v11164 = vsel %vm6368, %v11100, %v10428
  %v11165 = vsel %vm6368, %v11101, %v10430
  %v11166 = vsel %vm6368, %v11102, %v10432
  %v11167 = vsel %vm6368, %v11103, %v10434
  %v11168 = vsel %vm6368, %v11104, %v10436
  %v11169 = vsel %vm6368, %v11105, %v10438
  %v11170 = vsel %vm6368, %v11106, %v10440
  %v11171 = vsel %vm6368, %v11107, %v10442
  %v11172 = vsel %vm6368, %v11108, %v10444
  %v11173 = vsel %vm6368, %v11109, %v10446
  %v11174 = vsel %vm6368, %v11110, %v10448
  %v11175 = vsel %vm6368, %v11111, %v10450
  %v11176 = vsel %vm6368, %v11112, %v10452
  %v11177 = vsel %vm6368, %v11113, %v10454
  %v11178 = vsel %vm6368, %v11114, %v10456
  %v11179 = vsel %vm6368, %v11115, %v10458
  %v11180 = vsel %vm6368, %v11116, %v10460
  %v11181 = vsel %vm6368, %v11117, %v10462
  %v11182 = vsel %vm6368, %v11118, %v10464
  %v11183 = vsel %vm6368, %v11119, %v10466
  %v11184 = vsel %vm6368, %v11120, %v10468
  %v11185 = vsel %vm6368, %v11121, %v10470
  %v11186 = vsel %vm6368, %v11122, %v10472
  %v11187 = vsel %vm6368, %v11123, %v10474
  %v11188 = vsel %vm6368, %v11124, %v10476
  %v11189 = vsel %vm6368, %v11125, %v10478
  %v11190 = vsel %vm6368, %v11126, %v10480
  %v11191 = vsel %vm6368, %v11127, %v10482
  %v11192 = vsel %vm6368, %v11128, %v10484
  %v11193 = vsel %vm6368, %v11129, %v10486
  %v11194 = vsel %vm6368, %v11130, %v10488
  %v11195 = vsel %vm6368, %v11131, %v10490
  %v11196 = vsel %vm4565, %v11132, %v10557
  %v11197 = vsel %vm4565, %v11133, %v10559
  %v11198 = vsel %vm4565, %v11134, %v10561
  %v11199 = vsel %vm4565, %v11135, %v10563
  %v11200 = vsel %vm4565, %v11136, %v10565
  %v11201 = vsel %vm4565, %v11137, %v10567
  %v11202 = vsel %vm4565, %v11138, %v10569
  %v11203 = vsel %vm4565, %v11139, %v10571
  %v11204 = vsel %vm4565, %v11140, %v10573
  %v11205 = vsel %vm4565, %v11141, %v10575
  %v11206 = vsel %vm4565, %v11142, %v10577
  %v11207 = vsel %vm4565, %v11143, %v10579
  %v11208 = vsel %vm4565, %v11144, %v10581
  %v11209 = vsel %vm4565, %v11145, %v10583
  %v11210 = vsel %vm4565, %v11146, %v10585
  %v11211 = vsel %vm4565, %v11147, %v10587
  %v11212 = vsel %vm4565, %v11148, %v10589
  %v11213 = vsel %vm4565, %v11149, %v10591
  %v11214 = vsel %vm4565, %v11150, %v10593
  %v11215 = vsel %vm4565, %v11151, %v10595
  %v11216 = vsel %vm4565, %v11152, %v10597
  %v11217 = vsel %vm4565, %v11153, %v10599
  %v11218 = vsel %vm4565, %v11154, %v10601
  %v11219 = vsel %vm4565, %v11155, %v10603
  %v11220 = vsel %vm4565, %v11156, %v10605
  %v11221 = vsel %vm4565, %v11157, %v10607
  %v11222 = vsel %vm4565, %v11158, %v10609
  %v11223 = vsel %vm4565, %v11159, %v10611
  %v11224 = vsel %vm4565, %v11160, %v10613
  %v11225 = vsel %vm4565, %v11161, %v10615
  %v11226 = vsel %vm4565, %v11162, %v10617
  %v11227 = vsel %vm4565, %v11163, %v10619
  %v11228 = vsel %vm4565, %v11164, %v10621
  %v11229 = vsel %vm4565, %v11165, %v10623
  %v11230 = vsel %vm4565, %v11166, %v10625
  %v11231 = vsel %vm4565, %v11167, %v10627
  %v11232 = vsel %vm4565, %v11168, %v10629
  %v11233 = vsel %vm4565, %v11169, %v10631
  %v11234 = vsel %vm4565, %v11170, %v10633
  %v11235 = vsel %vm4565, %v11171, %v10635
  %v11236 = vsel %vm4565, %v11172, %v10637
  %v11237 = vsel %vm4565, %v11173, %v10639
  %v11238 = vsel %vm4565, %v11174, %v10641
  %v11239 = vsel %vm4565, %v11175, %v10643
  %v11240 = vsel %vm4565, %v11176, %v10645
  %v11241 = vsel %vm4565, %v11177, %v10647
  %v11242 = vsel %vm4565, %v11178, %v10649
  %v11243 = vsel %vm4565, %v11179, %v10651
  %v11244 = vsel %vm4565, %v11180, %v10653
  %v11245 = vsel %vm4565, %v11181, %v10655
  %v11246 = vsel %vm4565, %v11182, %v10657
  %v11247 = vsel %vm4565, %v11183, %v10659
  %v11248 = vsel %vm4565, %v11184, %v10661
  %v11249 = vsel %vm4565, %v11185, %v10663
  %v11250 = vsel %vm4565, %v11186, %v10665
  %v11251 = vsel %vm4565, %v11187, %v10667
  %v11252 = vsel %vm4565, %v11188, %v10669
  %v11253 = vsel %vm4565, %v11189, %v10671
  %v11254 = vsel %vm4565, %v11190, %v10673
  %v11255 = vsel %vm4565, %v11191, %v10675
  %v11256 = vsel %vm4565, %v11192, %v10677
  %v11257 = vsel %vm4565, %v11193, %v10679
  %v11258 = vsel %vm4565, %v11194, %v10681
  %v11259 = vsel %vm4565, %v11195, %v10683
  %v11260 = vpack.c.bf16 %v11197, %v11196
  %v11261 = vpack.c.bf16 %v11199, %v11198
  %v11262 = vpack.c.bf16 %v11201, %v11200
  %v11263 = vpack.c.bf16 %v11203, %v11202
  %v11264 = vpack.c.bf16 %v11205, %v11204
  %v11265 = vpack.c.bf16 %v11207, %v11206
  %v11266 = vpack.c.bf16 %v11209, %v11208
  %v11267 = vpack.c.bf16 %v11211, %v11210
  %v11268 = vpack.c.bf16 %v11213, %v11212
  %v11269 = vpack.c.bf16 %v11215, %v11214
  %v11270 = vpack.c.bf16 %v11217, %v11216
  %v11271 = vpack.c.bf16 %v11219, %v11218
  %v11272 = vpack.c.bf16 %v11221, %v11220
  %v11273 = vpack.c.bf16 %v11223, %v11222
  %v11274 = vpack.c.bf16 %v11225, %v11224
  %v11275 = vpack.c.bf16 %v11227, %v11226
  %v11276 = vpack.c.bf16 %v11229, %v11228
  %v11277 = vpack.c.bf16 %v11231, %v11230
  %v11278 = vpack.c.bf16 %v11233, %v11232
  %v11279 = vpack.c.bf16 %v11235, %v11234
  %v11280 = vpack.c.bf16 %v11237, %v11236
  %v11281 = vpack.c.bf16 %v11239, %v11238
  %v11282 = vpack.c.bf16 %v11241, %v11240
  %v11283 = vpack.c.bf16 %v11243, %v11242
  %v11284 = vpack.c.bf16 %v11245, %v11244
  %v11285 = vpack.c.bf16 %v11247, %v11246
  %v11286 = vpack.c.bf16 %v11249, %v11248
  %v11287 = vpack.c.bf16 %v11251, %v11250
  %v11288 = vpack.c.bf16 %v11253, %v11252
  %v11289 = vpack.c.bf16 %v11255, %v11254
  %v11290 = vpack.c.bf16 %v11257, %v11256
  %v11291 = vpack.c.bf16 %v11259, %v11258
  %v11292 = vlaneseq
  %v11293 = vshrl.u32 %v11292, 7
  %v11294 = vsub.s32 5, %v11293
  %v11295 = vrot.slane %v17, %v11294
  %v11310 = vunpack.c.l.b16 %v9099
  %v11311 = vunpack.c.l.b16 %v9100
  %v11312 = vunpack.c.l.b16 %v9101
  %v11313 = vunpack.c.l.b16 %v9102
  %v11314 = vunpack.c.l.b16 %v9103
  %v11315 = vunpack.c.l.b16 %v9104
  %v11316 = vunpack.c.l.b16 %v9105
  %v11317 = vunpack.c.l.b16 %v9106
  %v11318 = vunpack.c.l.b16 %v9107
  %v11319 = vunpack.c.l.b16 %v9108
  %v11320 = vunpack.c.l.b16 %v9109
  %v11321 = vunpack.c.l.b16 %v9110
  %v11322 = vunpack.c.l.b16 %v9111
  %v11323 = vunpack.c.l.b16 %v9112
  %v11324 = vpack.c.b16 %v11311, %v11310
  %v11325 = vpack.c.b16 %v11313, %v11312
  %v11326 = vpack.c.b16 %v11315, %v11314
  %v11327 = vpack.c.b16 %v11317, %v11316
  %v11328 = vpack.c.b16 %v11319, %v11318
  %v11329 = vpack.c.b16 %v11321, %v11320
  %v11330 = vpack.c.b16 %v11323, %v11322
  %v11338 = vsel %vm6401, %v11260, 0
  %v11341 = vsel %vm6401, %v11261, 0
  %v11344 = vsel %vm6401, %v11262, 0
  %v11347 = vsel %vm6401, %v11263, 0
  %v11350 = vsel %vm6401, %v11264, 0
  %v11353 = vsel %vm6401, %v11265, 0
  %v11356 = vsel %vm6401, %v11266, 0
  %v11359 = vsel %vm6401, %v11267, 0
  %v11362 = vsel %vm6401, %v11268, 0
  %v11365 = vsel %vm6401, %v11269, 0
  %v11368 = vsel %vm6401, %v11270, 0
  %v11371 = vsel %vm6401, %v11271, 0
  %v11374 = vsel %vm6401, %v11272, 0
  %v11377 = vsel %vm6401, %v11273, 0
  %v11380 = vsel %vm6401, %v11274, 0
  %v11383 = vsel %vm6401, %v11275, 0
  %v11386 = vsel %vm6401, %v11276, 0
  %v11389 = vsel %vm6401, %v11277, 0
  %v11392 = vsel %vm6401, %v11278, 0
  %v11395 = vsel %vm6401, %v11279, 0
  %v11398 = vsel %vm6401, %v11280, 0
  %v11401 = vsel %vm6401, %v11281, 0
  %v11404 = vsel %vm6401, %v11282, 0
  %v11407 = vsel %vm6401, %v11283, 0
  %v11410 = vsel %vm6401, %v11284, 0
  %v11413 = vsel %vm6401, %v11285, 0
  %v11416 = vsel %vm6401, %v11286, 0
  %v11419 = vsel %vm6401, %v11287, 0
  %v11422 = vsel %vm6401, %v11288, 0
  %v11425 = vsel %vm6401, %v11289, 0
  %v11428 = vsel %vm6401, %v11290, 0
  %v11431 = vsel %vm6401, %v11291, 0
  %vm11433 = vcmask 1045504
  %v11435 = vsel %vm11433, %v11330, 0
  %11437 = vmatprep.subr.bf16.mxu0 0
  %11438 = vmatpush1.bf16.msra.mxu0 %v11324
  %11439 = vmatprep.subr.bf16.mxu0 0
  %11440 = vmatpush1.bf16.msra.mxu0 %v11325
  %11441 = vmatprep.subr.bf16.mxu0 0
  %11442 = vmatpush1.bf16.msra.mxu0 %v11326
  %11443 = vmatprep.subr.bf16.mxu0 0
  %11444 = vmatpush1.bf16.msra.mxu0 %v11327
  %11445 = vmatprep.subr.bf16.mxu0 0
  %11446 = vmatpush1.bf16.msra.mxu0 %v11328
  %11447 = vmatprep.subr.bf16.mxu0 0
  %11448 = vmatpush1.bf16.msra.mxu0 %v11329
  %11449 = vmatprep.subr.bf16.mxu0 0
  %11450 = vmatpush1.bf16.msra.mxu0 %v11435
  %11451 = vmatprep.subr.bf16.mxu0 0
  %11452 = vmatpush1.bf16.msra.mxu0 0
  %11453 = vmatprep.subr.bf16.mxu0 0
  %11454 = vmatpush1.bf16.msra.mxu0 0
  %11455 = vmatprep.subr.bf16.mxu0 0
  %11456 = vmatpush1.bf16.msra.mxu0 0
  %11457 = vmatprep.subr.bf16.mxu0 0
  %11458 = vmatpush1.bf16.msra.mxu0 0
  %11459 = vmatprep.subr.bf16.mxu0 0
  %11460 = vmatpush1.bf16.msra.mxu0 0
  %11461 = vmatprep.subr.bf16.mxu0 0
  %11462 = vmatpush1.bf16.msra.mxu0 0
  %11463 = vmatprep.subr.bf16.mxu0 0
  %11464 = vmatpush1.bf16.msra.mxu0 0
  %11465 = vmatprep.subr.bf16.mxu0 0
  %11466 = vmatpush1.bf16.msra.mxu0 0
  %11467 = vmatprep.subr.bf16.mxu0 0
  %11468 = vmatpush1.bf16.msra.mxu0 0
  %11469 = vmatprep.mubr.bf16.mxu0 0
  %11470 = vmatmul.mubr.bf16.gmra.mrb[0].mxu0 %v11338
  %v11471 = vpop.f32.mrb[0].mxu0
  %v11472 = vadd.f32 %v11295, %v11471
  %v11473 = vpop.f32.mrb[0].mxu0
  %v11474 = vpop.f32.mrb[0].mxu0
  %v11475 = vadd.f32 %v11295, %v11474
  %v11476 = vpop.f32.mrb[0].mxu0
  %11477 = vmatprep.mubr.bf16.mxu0 0
  %11478 = vmatmul.mubr.bf16.gmra.mrb[0].mxu0 %v11341
  %v11479 = vpop.f32.mrb[0].mxu0
  %v11480 = vadd.f32 %v11295, %v11479
  %v11481 = vpop.f32.mrb[0].mxu0
  %v11482 = vpop.f32.mrb[0].mxu0
  %v11483 = vadd.f32 %v11295, %v11482
  %v11484 = vpop.f32.mrb[0].mxu0
  %11485 = vmatprep.mubr.bf16.mxu0 0
  %11486 = vmatmul.mubr.bf16.gmra.mrb[0].mxu0 %v11344
  %v11487 = vpop.f32.mrb[0].mxu0
  %v11488 = vadd.f32 %v11295, %v11487
  %v11489 = vpop.f32.mrb[0].mxu0
  %v11490 = vpop.f32.mrb[0].mxu0
  %v11491 = vadd.f32 %v11295, %v11490
  %v11492 = vpop.f32.mrb[0].mxu0
  %11493 = vmatprep.mubr.bf16.mxu0 0
  %11494 = vmatmul.mubr.bf16.gmra.mrb[0].mxu0 %v11347
  %v11495 = vpop.f32.mrb[0].mxu0
  %v11496 = vadd.f32 %v11295, %v11495
  %v11497 = vpop.f32.mrb[0].mxu0
  %v11498 = vpop.f32.mrb[0].mxu0
  %v11499 = vadd.f32 %v11295, %v11498
  %v11500 = vpop.f32.mrb[0].mxu0
  %11501 = vmatprep.mubr.bf16.mxu0 0
  %11502 = vmatmul.mubr.bf16.gmra.mrb[0].mxu0 %v11350
  %v11503 = vpop.f32.mrb[0].mxu0
  %v11504 = vadd.f32 %v11295, %v11503
  %v11505 = vpop.f32.mrb[0].mxu0
  %v11506 = vpop.f32.mrb[0].mxu0
  %v11507 = vadd.f32 %v11295, %v11506
  %v11508 = vpop.f32.mrb[0].mxu0
  %11509 = vmatprep.mubr.bf16.mxu0 0
  %11510 = vmatmul.mubr.bf16.gmra.mrb[0].mxu0 %v11353
  %v11511 = vpop.f32.mrb[0].mxu0
  %v11512 = vadd.f32 %v11295, %v11511
  %v11513 = vpop.f32.mrb[0].mxu0
  %v11514 = vpop.f32.mrb[0].mxu0
  %v11515 = vadd.f32 %v11295, %v11514
  %v11516 = vpop.f32.mrb[0].mxu0
  %11517 = vmatprep.mubr.bf16.mxu0 0
  %11518 = vmatmul.mubr.bf16.gmra.mrb[0].mxu0 %v11356
  %v11519 = vpop.f32.mrb[0].mxu0
  %v11520 = vadd.f32 %v11295, %v11519
  %v11521 = vpop.f32.mrb[0].mxu0
  %v11522 = vpop.f32.mrb[0].mxu0
  %v11523 = vadd.f32 %v11295, %v11522
  %v11524 = vpop.f32.mrb[0].mxu0
  %11525 = vmatprep.mubr.bf16.mxu0 0
  %11526 = vmatmul.mubr.bf16.gmra.mrb[0].mxu0 %v11359
  %v11527 = vpop.f32.mrb[0].mxu0
  %v11528 = vadd.f32 %v11295, %v11527
  %v11529 = vpop.f32.mrb[0].mxu0
  %v11530 = vpop.f32.mrb[0].mxu0
  %v11531 = vadd.f32 %v11295, %v11530
  %v11532 = vpop.f32.mrb[0].mxu0
  %11533 = vmatprep.mubr.bf16.mxu0 0
  %11534 = vmatmul.mubr.bf16.gmra.mrb[0].mxu0 %v11362
  %v11535 = vpop.f32.mrb[0].mxu0
  %v11536 = vadd.f32 %v11295, %v11535
  %v11537 = vpop.f32.mrb[0].mxu0
  %v11538 = vpop.f32.mrb[0].mxu0
  %v11539 = vadd.f32 %v11295, %v11538
  %v11540 = vpop.f32.mrb[0].mxu0
  %11541 = vmatprep.mubr.bf16.mxu0 0
  %11542 = vmatmul.mubr.bf16.gmra.mrb[0].mxu0 %v11365
  %v11543 = vpop.f32.mrb[0].mxu0
  %v11544 = vadd.f32 %v11295, %v11543
  %v11545 = vpop.f32.mrb[0].mxu0
  %v11546 = vpop.f32.mrb[0].mxu0
  %v11547 = vadd.f32 %v11295, %v11546
  %v11548 = vpop.f32.mrb[0].mxu0
  %11549 = vmatprep.mubr.bf16.mxu0 0
  %11550 = vmatmul.mubr.bf16.gmra.mrb[0].mxu0 %v11368
  %v11551 = vpop.f32.mrb[0].mxu0
  %v11552 = vadd.f32 %v11295, %v11551
  %v11553 = vpop.f32.mrb[0].mxu0
  %v11554 = vpop.f32.mrb[0].mxu0
  %v11555 = vadd.f32 %v11295, %v11554
  %v11556 = vpop.f32.mrb[0].mxu0
  %11557 = vmatprep.mubr.bf16.mxu0 0
  %11558 = vmatmul.mubr.bf16.gmra.mrb[0].mxu0 %v11371
  %v11559 = vpop.f32.mrb[0].mxu0
  %v11560 = vadd.f32 %v11295, %v11559
  %v11561 = vpop.f32.mrb[0].mxu0
  %v11562 = vpop.f32.mrb[0].mxu0
  %v11563 = vadd.f32 %v11295, %v11562
  %v11564 = vpop.f32.mrb[0].mxu0
  %11565 = vmatprep.mubr.bf16.mxu0 0
  %11566 = vmatmul.mubr.bf16.gmra.mrb[0].mxu0 %v11374
  %v11567 = vpop.f32.mrb[0].mxu0
  %v11568 = vadd.f32 %v11295, %v11567
  %v11569 = vpop.f32.mrb[0].mxu0
  %v11570 = vpop.f32.mrb[0].mxu0
  %v11571 = vadd.f32 %v11295, %v11570
  %v11572 = vpop.f32.mrb[0].mxu0
  %11573 = vmatprep.mubr.bf16.mxu0 0
  %11574 = vmatmul.mubr.bf16.gmra.mrb[0].mxu0 %v11377
  %v11575 = vpop.f32.mrb[0].mxu0
  %v11576 = vadd.f32 %v11295, %v11575
  %v11577 = vpop.f32.mrb[0].mxu0
  %v11578 = vpop.f32.mrb[0].mxu0
  %v11579 = vadd.f32 %v11295, %v11578
  %v11580 = vpop.f32.mrb[0].mxu0
  %11581 = vmatprep.mubr.bf16.mxu0 0
  %11582 = vmatmul.mubr.bf16.gmra.mrb[0].mxu0 %v11380
  %v11583 = vpop.f32.mrb[0].mxu0
  %v11584 = vadd.f32 %v11295, %v11583
  %v11585 = vpop.f32.mrb[0].mxu0
  %v11586 = vpop.f32.mrb[0].mxu0
  %v11587 = vadd.f32 %v11295, %v11586
  %v11588 = vpop.f32.mrb[0].mxu0
  %11589 = vmatprep.mubr.bf16.mxu0 0
  %11590 = vmatmul.mubr.bf16.gmra.mrb[0].mxu0 %v11383
  %v11591 = vpop.f32.mrb[0].mxu0
  %v11592 = vadd.f32 %v11295, %v11591
  %v11593 = vpop.f32.mrb[0].mxu0
  %v11594 = vpop.f32.mrb[0].mxu0
  %v11595 = vadd.f32 %v11295, %v11594
  %v11596 = vpop.f32.mrb[0].mxu0
  %11597 = vmatprep.mubr.bf16.mxu0 0
  %11598 = vmatmul.mubr.bf16.gmra.mrb[0].mxu0 %v11386
  %v11599 = vpop.f32.mrb[0].mxu0
  %v11600 = vadd.f32 %v11295, %v11599
  %v11601 = vpop.f32.mrb[0].mxu0
  %v11602 = vpop.f32.mrb[0].mxu0
  %v11603 = vadd.f32 %v11295, %v11602
  %v11604 = vpop.f32.mrb[0].mxu0
  %11605 = vmatprep.mubr.bf16.mxu0 0
  %11606 = vmatmul.mubr.bf16.gmra.mrb[0].mxu0 %v11389
  %v11607 = vpop.f32.mrb[0].mxu0
  %v11608 = vadd.f32 %v11295, %v11607
  %v11609 = vpop.f32.mrb[0].mxu0
  %v11610 = vpop.f32.mrb[0].mxu0
  %v11611 = vadd.f32 %v11295, %v11610
  %v11612 = vpop.f32.mrb[0].mxu0
  %11613 = vmatprep.mubr.bf16.mxu0 0
  %11614 = vmatmul.mubr.bf16.gmra.mrb[0].mxu0 %v11392
  %v11615 = vpop.f32.mrb[0].mxu0
  %v11616 = vadd.f32 %v11295, %v11615
  %v11617 = vpop.f32.mrb[0].mxu0
  %v11618 = vpop.f32.mrb[0].mxu0
  %v11619 = vadd.f32 %v11295, %v11618
  %v11620 = vpop.f32.mrb[0].mxu0
  %11621 = vmatprep.mubr.bf16.mxu0 0
  %11622 = vmatmul.mubr.bf16.gmra.mrb[0].mxu0 %v11395
  %v11623 = vpop.f32.mrb[0].mxu0
  %v11624 = vadd.f32 %v11295, %v11623
  %v11625 = vpop.f32.mrb[0].mxu0
  %v11626 = vpop.f32.mrb[0].mxu0
  %v11627 = vadd.f32 %v11295, %v11626
  %v11628 = vpop.f32.mrb[0].mxu0
  %11629 = vmatprep.mubr.bf16.mxu0 0
  %11630 = vmatmul.mubr.bf16.gmra.mrb[0].mxu0 %v11398
  %v11631 = vpop.f32.mrb[0].mxu0
  %v11632 = vadd.f32 %v11295, %v11631
  %v11633 = vpop.f32.mrb[0].mxu0
  %v11634 = vpop.f32.mrb[0].mxu0
  %v11635 = vadd.f32 %v11295, %v11634
  %v11636 = vpop.f32.mrb[0].mxu0
  %11637 = vmatprep.mubr.bf16.mxu0 0
  %11638 = vmatmul.mubr.bf16.gmra.mrb[0].mxu0 %v11401
  %v11639 = vpop.f32.mrb[0].mxu0
  %v11640 = vadd.f32 %v11295, %v11639
  %v11641 = vpop.f32.mrb[0].mxu0
  %v11642 = vpop.f32.mrb[0].mxu0
  %v11643 = vadd.f32 %v11295, %v11642
  %v11644 = vpop.f32.mrb[0].mxu0
  %11645 = vmatprep.mubr.bf16.mxu0 0
  %11646 = vmatmul.mubr.bf16.gmra.mrb[0].mxu0 %v11404
  %v11647 = vpop.f32.mrb[0].mxu0
  %v11648 = vadd.f32 %v11295, %v11647
  %v11649 = vpop.f32.mrb[0].mxu0
  %v11650 = vpop.f32.mrb[0].mxu0
  %v11651 = vadd.f32 %v11295, %v11650
  %v11652 = vpop.f32.mrb[0].mxu0
  %11653 = vmatprep.mubr.bf16.mxu0 0
  %11654 = vmatmul.mubr.bf16.gmra.mrb[0].mxu0 %v11407
  %v11655 = vpop.f32.mrb[0].mxu0
  %v11656 = vadd.f32 %v11295, %v11655
  %v11657 = vpop.f32.mrb[0].mxu0
  %v11658 = vpop.f32.mrb[0].mxu0
  %v11659 = vadd.f32 %v11295, %v11658
  %v11660 = vpop.f32.mrb[0].mxu0
  %11661 = vmatprep.mubr.bf16.mxu0 0
  %11662 = vmatmul.mubr.bf16.gmra.mrb[0].mxu0 %v11410
  %v11663 = vpop.f32.mrb[0].mxu0
  %v11664 = vadd.f32 %v11295, %v11663
  %v11665 = vpop.f32.mrb[0].mxu0
  %v11666 = vpop.f32.mrb[0].mxu0
  %v11667 = vadd.f32 %v11295, %v11666
  %v11668 = vpop.f32.mrb[0].mxu0
  %11669 = vmatprep.mubr.bf16.mxu0 0
  %11670 = vmatmul.mubr.bf16.gmra.mrb[0].mxu0 %v11413
  %v11671 = vpop.f32.mrb[0].mxu0
  %v11672 = vadd.f32 %v11295, %v11671
  %v11673 = vpop.f32.mrb[0].mxu0
  %v11674 = vpop.f32.mrb[0].mxu0
  %v11675 = vadd.f32 %v11295, %v11674
  %v11676 = vpop.f32.mrb[0].mxu0
  %11677 = vmatprep.mubr.bf16.mxu0 0
  %11678 = vmatmul.mubr.bf16.gmra.mrb[0].mxu0 %v11416
  %v11679 = vpop.f32.mrb[0].mxu0
  %v11680 = vadd.f32 %v11295, %v11679
  %v11681 = vpop.f32.mrb[0].mxu0
  %v11682 = vpop.f32.mrb[0].mxu0
  %v11683 = vadd.f32 %v11295, %v11682
  %v11684 = vpop.f32.mrb[0].mxu0
  %11685 = vmatprep.mubr.bf16.mxu0 0
  %11686 = vmatmul.mubr.bf16.gmra.mrb[0].mxu0 %v11419
  %v11687 = vpop.f32.mrb[0].mxu0
  %v11688 = vadd.f32 %v11295, %v11687
  %v11689 = vpop.f32.mrb[0].mxu0
  %v11690 = vpop.f32.mrb[0].mxu0
  %v11691 = vadd.f32 %v11295, %v11690
  %v11692 = vpop.f32.mrb[0].mxu0
  %11693 = vmatprep.mubr.bf16.mxu0 0
  %11694 = vmatmul.mubr.bf16.gmra.mrb[0].mxu0 %v11422
  %v11695 = vpop.f32.mrb[0].mxu0
  %v11696 = vadd.f32 %v11295, %v11695
  %v11697 = vpop.f32.mrb[0].mxu0
  %v11698 = vpop.f32.mrb[0].mxu0
  %v11699 = vadd.f32 %v11295, %v11698
  %v11700 = vpop.f32.mrb[0].mxu0
  %11701 = vmatprep.mubr.bf16.mxu0 0
  %11702 = vmatmul.mubr.bf16.gmra.mrb[0].mxu0 %v11425
  %v11703 = vpop.f32.mrb[0].mxu0
  %v11704 = vadd.f32 %v11295, %v11703
  %v11705 = vpop.f32.mrb[0].mxu0
  %v11706 = vpop.f32.mrb[0].mxu0
  %v11707 = vadd.f32 %v11295, %v11706
  %v11708 = vpop.f32.mrb[0].mxu0
  %11709 = vmatprep.mubr.bf16.mxu0 0
  %11710 = vmatmul.mubr.bf16.gmra.mrb[0].mxu0 %v11428
  %v11711 = vpop.f32.mrb[0].mxu0
  %v11712 = vadd.f32 %v11295, %v11711
  %v11713 = vpop.f32.mrb[0].mxu0
  %v11714 = vpop.f32.mrb[0].mxu0
  %v11715 = vadd.f32 %v11295, %v11714
  %v11716 = vpop.f32.mrb[0].mxu0
  %11717 = vmatprep.mubr.bf16.mxu0 0
  %11718 = vmatmul.mubr.bf16.gmra.mrb[0].mxu0 %v11431
  %v11719 = vpop.f32.mrb[0].mxu0
  %v11720 = vadd.f32 %v11295, %v11719
  %v11721 = vpop.f32.mrb[0].mxu0
  %v11722 = vpop.f32.mrb[0].mxu0
  %v11723 = vadd.f32 %v11295, %v11722
  %v11724 = vpop.f32.mrb[0].mxu0
  %11725 = vdwg.mxu0
  %v11726 = vsub.f32 0.0, %v11472
  %v11727 = vsub.f32 0.0, %v11475
  %v11728 = vsub.f32 0.0, %v11480
  %v11729 = vsub.f32 0.0, %v11483
  %v11730 = vsub.f32 0.0, %v11488
  %v11731 = vsub.f32 0.0, %v11491
  %v11732 = vsub.f32 0.0, %v11496
  %v11733 = vsub.f32 0.0, %v11499
  %v11734 = vsub.f32 0.0, %v11504
  %v11735 = vsub.f32 0.0, %v11507
  %v11736 = vsub.f32 0.0, %v11512
  %v11737 = vsub.f32 0.0, %v11515
  %v11738 = vsub.f32 0.0, %v11520
  %v11739 = vsub.f32 0.0, %v11523
  %v11740 = vsub.f32 0.0, %v11528
  %v11741 = vsub.f32 0.0, %v11531
  %v11742 = vsub.f32 0.0, %v11536
  %v11743 = vsub.f32 0.0, %v11539
  %v11744 = vsub.f32 0.0, %v11544
  %v11745 = vsub.f32 0.0, %v11547
  %v11746 = vsub.f32 0.0, %v11552
  %v11747 = vsub.f32 0.0, %v11555
  %v11748 = vsub.f32 0.0, %v11560
  %v11749 = vsub.f32 0.0, %v11563
  %v11750 = vsub.f32 0.0, %v11568
  %v11751 = vsub.f32 0.0, %v11571
  %v11752 = vsub.f32 0.0, %v11576
  %v11753 = vsub.f32 0.0, %v11579
  %v11754 = vsub.f32 0.0, %v11584
  %v11755 = vsub.f32 0.0, %v11587
  %v11756 = vsub.f32 0.0, %v11592
  %v11757 = vsub.f32 0.0, %v11595
  %v11758 = vsub.f32 0.0, %v11600
  %v11759 = vsub.f32 0.0, %v11603
  %v11760 = vsub.f32 0.0, %v11608
  %v11761 = vsub.f32 0.0, %v11611
  %v11762 = vsub.f32 0.0, %v11616
  %v11763 = vsub.f32 0.0, %v11619
  %v11764 = vsub.f32 0.0, %v11624
  %v11765 = vsub.f32 0.0, %v11627
  %v11766 = vsub.f32 0.0, %v11632
  %v11767 = vsub.f32 0.0, %v11635
  %v11768 = vsub.f32 0.0, %v11640
  %v11769 = vsub.f32 0.0, %v11643
  %v11770 = vsub.f32 0.0, %v11648
  %v11771 = vsub.f32 0.0, %v11651
  %v11772 = vsub.f32 0.0, %v11656
  %v11773 = vsub.f32 0.0, %v11659
  %v11774 = vsub.f32 0.0, %v11664
  %v11775 = vsub.f32 0.0, %v11667
  %v11776 = vsub.f32 0.0, %v11672
  %v11777 = vsub.f32 0.0, %v11675
  %v11778 = vsub.f32 0.0, %v11680
  %v11779 = vsub.f32 0.0, %v11683
  %v11780 = vsub.f32 0.0, %v11688
  %v11781 = vsub.f32 0.0, %v11691
  %v11782 = vsub.f32 0.0, %v11696
  %v11783 = vsub.f32 0.0, %v11699
  %v11784 = vsub.f32 0.0, %v11704
  %v11785 = vsub.f32 0.0, %v11707
  %v11786 = vsub.f32 0.0, %v11712
  %v11787 = vsub.f32 0.0, %v11715
  %v11788 = vsub.f32 0.0, %v11720
  %v11789 = vsub.f32 0.0, %v11723
  %v11790 = vmul.f32 %v11726, 1.442695
  %v11791 = vpow.pop %v11790
  %v11792 = vmul.f32 %v11727, 1.442695
  %v11793 = vpow.pop %v11792
  %v11794 = vmul.f32 %v11728, 1.442695
  %v11795 = vpow.pop %v11794
  %v11796 = vmul.f32 %v11729, 1.442695
  %v11797 = vpow.pop %v11796
  %v11798 = vmul.f32 %v11730, 1.442695
  %v11799 = vpow.pop %v11798
  %v11800 = vmul.f32 %v11731, 1.442695
  %v11801 = vpow.pop %v11800
  %v11802 = vmul.f32 %v11732, 1.442695
  %v11803 = vpow.pop %v11802
  %v11804 = vmul.f32 %v11733, 1.442695
  %v11805 = vpow.pop %v11804
  %v11806 = vmul.f32 %v11734, 1.442695
  %v11807 = vpow.pop %v11806
  %v11808 = vmul.f32 %v11735, 1.442695
  %v11809 = vpow.pop %v11808
  %v11810 = vmul.f32 %v11736, 1.442695
  %v11811 = vpow.pop %v11810
  %v11812 = vmul.f32 %v11737, 1.442695
  %v11813 = vpow.pop %v11812
  %v11814 = vmul.f32 %v11738, 1.442695
  %v11815 = vpow.pop %v11814
  %v11816 = vmul.f32 %v11739, 1.442695
  %v11817 = vpow.pop %v11816
  %v11818 = vmul.f32 %v11740, 1.442695
  %v11819 = vpow.pop %v11818
  %v11820 = vmul.f32 %v11741, 1.442695
  %v11821 = vpow.pop %v11820
  %v11822 = vmul.f32 %v11742, 1.442695
  %v11823 = vpow.pop %v11822
  %v11824 = vmul.f32 %v11743, 1.442695
  %v11825 = vpow.pop %v11824
  %v11826 = vmul.f32 %v11744, 1.442695
  %v11827 = vpow.pop %v11826
  %v11828 = vmul.f32 %v11745, 1.442695
  %v11829 = vpow.pop %v11828
  %v11830 = vmul.f32 %v11746, 1.442695
  %v11831 = vpow.pop %v11830
  %v11832 = vmul.f32 %v11747, 1.442695
  %v11833 = vpow.pop %v11832
  %v11834 = vmul.f32 %v11748, 1.442695
  %v11835 = vpow.pop %v11834
  %v11836 = vmul.f32 %v11749, 1.442695
  %v11837 = vpow.pop %v11836
  %v11838 = vmul.f32 %v11750, 1.442695
  %v11839 = vpow.pop %v11838
  %v11840 = vmul.f32 %v11751, 1.442695
  %v11841 = vpow.pop %v11840
  %v11842 = vmul.f32 %v11752, 1.442695
  %v11843 = vpow.pop %v11842
  %v11844 = vmul.f32 %v11753, 1.442695
  %v11845 = vpow.pop %v11844
  %v11846 = vmul.f32 %v11754, 1.442695
  %v11847 = vpow.pop %v11846
  %v11848 = vmul.f32 %v11755, 1.442695
  %v11849 = vpow.pop %v11848
  %v11850 = vmul.f32 %v11756, 1.442695
  %v11851 = vpow.pop %v11850
  %v11852 = vmul.f32 %v11757, 1.442695
  %v11853 = vpow.pop %v11852
  %v11854 = vmul.f32 %v11758, 1.442695
  %v11855 = vpow.pop %v11854
  %v11856 = vmul.f32 %v11759, 1.442695
  %v11857 = vpow.pop %v11856
  %v11858 = vmul.f32 %v11760, 1.442695
  %v11859 = vpow.pop %v11858
  %v11860 = vmul.f32 %v11761, 1.442695
  %v11861 = vpow.pop %v11860
  %v11862 = vmul.f32 %v11762, 1.442695
  %v11863 = vpow.pop %v11862
  %v11864 = vmul.f32 %v11763, 1.442695
  %v11865 = vpow.pop %v11864
  %v11866 = vmul.f32 %v11764, 1.442695
  %v11867 = vpow.pop %v11866
  %v11868 = vmul.f32 %v11765, 1.442695
  %v11869 = vpow.pop %v11868
  %v11870 = vmul.f32 %v11766, 1.442695
  %v11871 = vpow.pop %v11870
  %v11872 = vmul.f32 %v11767, 1.442695
  %v11873 = vpow.pop %v11872
  %v11874 = vmul.f32 %v11768, 1.442695
  %v11875 = vpow.pop %v11874
  %v11876 = vmul.f32 %v11769, 1.442695
  %v11877 = vpow.pop %v11876
  %v11878 = vmul.f32 %v11770, 1.442695
  %v11879 = vpow.pop %v11878
  %v11880 = vmul.f32 %v11771, 1.442695
  %v11881 = vpow.pop %v11880
  %v11882 = vmul.f32 %v11772, 1.442695
  %v11883 = vpow.pop %v11882
  %v11884 = vmul.f32 %v11773, 1.442695
  %v11885 = vpow.pop %v11884
  %v11886 = vmul.f32 %v11774, 1.442695
  %v11887 = vpow.pop %v11886
  %v11888 = vmul.f32 %v11775, 1.442695
  %v11889 = vpow.pop %v11888
  %v11890 = vmul.f32 %v11776, 1.442695
  %v11891 = vpow.pop %v11890
  %v11892 = vmul.f32 %v11777, 1.442695
  %v11893 = vpow.pop %v11892
  %v11894 = vmul.f32 %v11778, 1.442695
  %v11895 = vpow.pop %v11894
  %v11896 = vmul.f32 %v11779, 1.442695
  %v11897 = vpow.pop %v11896
  %v11898 = vmul.f32 %v11780, 1.442695
  %v11899 = vpow.pop %v11898
  %v11900 = vmul.f32 %v11781, 1.442695
  %v11901 = vpow.pop %v11900
  %v11902 = vmul.f32 %v11782, 1.442695
  %v11903 = vpow.pop %v11902
  %v11904 = vmul.f32 %v11783, 1.442695
  %v11905 = vpow.pop %v11904
  %v11906 = vmul.f32 %v11784, 1.442695
  %v11907 = vpow.pop %v11906
  %v11908 = vmul.f32 %v11785, 1.442695
  %v11909 = vpow.pop %v11908
  %v11910 = vmul.f32 %v11786, 1.442695
  %v11911 = vpow.pop %v11910
  %v11912 = vmul.f32 %v11787, 1.442695
  %v11913 = vpow.pop %v11912
  %v11914 = vmul.f32 %v11788, 1.442695
  %v11915 = vpow.pop %v11914
  %v11916 = vmul.f32 %v11789, 1.442695
  %v11917 = vpow.pop %v11916
  %v11918 = vadd.f32 %v11791, 1.0
  %v11919 = vadd.f32 %v11793, 1.0
  %v11920 = vadd.f32 %v11795, 1.0
  %v11921 = vadd.f32 %v11797, 1.0
  %v11922 = vadd.f32 %v11799, 1.0
  %v11923 = vadd.f32 %v11801, 1.0
  %v11924 = vadd.f32 %v11803, 1.0
  %v11925 = vadd.f32 %v11805, 1.0
  %v11926 = vadd.f32 %v11807, 1.0
  %v11927 = vadd.f32 %v11809, 1.0
  %v11928 = vadd.f32 %v11811, 1.0
  %v11929 = vadd.f32 %v11813, 1.0
  %v11930 = vadd.f32 %v11815, 1.0
  %v11931 = vadd.f32 %v11817, 1.0
  %v11932 = vadd.f32 %v11819, 1.0
  %v11933 = vadd.f32 %v11821, 1.0
  %v11934 = vadd.f32 %v11823, 1.0
  %v11935 = vadd.f32 %v11825, 1.0
  %v11936 = vadd.f32 %v11827, 1.0
  %v11937 = vadd.f32 %v11829, 1.0
  %v11938 = vadd.f32 %v11831, 1.0
  %v11939 = vadd.f32 %v11833, 1.0
  %v11940 = vadd.f32 %v11835, 1.0
  %v11941 = vadd.f32 %v11837, 1.0
  %v11942 = vadd.f32 %v11839, 1.0
  %v11943 = vadd.f32 %v11841, 1.0
  %v11944 = vadd.f32 %v11843, 1.0
  %v11945 = vadd.f32 %v11845, 1.0
  %v11946 = vadd.f32 %v11847, 1.0
  %v11947 = vadd.f32 %v11849, 1.0
  %v11948 = vadd.f32 %v11851, 1.0
  %v11949 = vadd.f32 %v11853, 1.0
  %v11950 = vadd.f32 %v11855, 1.0
  %v11951 = vadd.f32 %v11857, 1.0
  %v11952 = vadd.f32 %v11859, 1.0
  %v11953 = vadd.f32 %v11861, 1.0
  %v11954 = vadd.f32 %v11863, 1.0
  %v11955 = vadd.f32 %v11865, 1.0
  %v11956 = vadd.f32 %v11867, 1.0
  %v11957 = vadd.f32 %v11869, 1.0
  %v11958 = vadd.f32 %v11871, 1.0
  %v11959 = vadd.f32 %v11873, 1.0
  %v11960 = vadd.f32 %v11875, 1.0
  %v11961 = vadd.f32 %v11877, 1.0
  %v11962 = vadd.f32 %v11879, 1.0
  %v11963 = vadd.f32 %v11881, 1.0
  %v11964 = vadd.f32 %v11883, 1.0
  %v11965 = vadd.f32 %v11885, 1.0
  %v11966 = vadd.f32 %v11887, 1.0
  %v11967 = vadd.f32 %v11889, 1.0
  %v11968 = vadd.f32 %v11891, 1.0
  %v11969 = vadd.f32 %v11893, 1.0
  %v11970 = vadd.f32 %v11895, 1.0
  %v11971 = vadd.f32 %v11897, 1.0
  %v11972 = vadd.f32 %v11899, 1.0
  %v11973 = vadd.f32 %v11901, 1.0
  %v11974 = vadd.f32 %v11903, 1.0
  %v11975 = vadd.f32 %v11905, 1.0
  %v11976 = vadd.f32 %v11907, 1.0
  %v11977 = vadd.f32 %v11909, 1.0
  %v11978 = vadd.f32 %v11911, 1.0
  %v11979 = vadd.f32 %v11913, 1.0
  %v11980 = vadd.f32 %v11915, 1.0
  %v11981 = vadd.f32 %v11917, 1.0
  %v11982 = vrcp.pop %v11918
  %v11983 = vrcp.pop %v11919
  %v11984 = vrcp.pop %v11920
  %v11985 = vrcp.pop %v11921
  %v11986 = vrcp.pop %v11922
  %v11987 = vrcp.pop %v11923
  %v11988 = vrcp.pop %v11924
  %v11989 = vrcp.pop %v11925
  %v11990 = vrcp.pop %v11926
  %v11991 = vrcp.pop %v11927
  %v11992 = vrcp.pop %v11928
  %v11993 = vrcp.pop %v11929
  %v11994 = vrcp.pop %v11930
  %v11995 = vrcp.pop %v11931
  %v11996 = vrcp.pop %v11932
  %v11997 = vrcp.pop %v11933
  %v11998 = vrcp.pop %v11934
  %v11999 = vrcp.pop %v11935
  %v12000 = vrcp.pop %v11936
  %v12001 = vrcp.pop %v11937
  %v12002 = vrcp.pop %v11938
  %v12003 = vrcp.pop %v11939
  %v12004 = vrcp.pop %v11940
  %v12005 = vrcp.pop %v11941
  %v12006 = vrcp.pop %v11942
  %v12007 = vrcp.pop %v11943
  %v12008 = vrcp.pop %v11944
  %v12009 = vrcp.pop %v11945
  %v12010 = vrcp.pop %v11946
  %v12011 = vrcp.pop %v11947
  %v12012 = vrcp.pop %v11948
  %v12013 = vrcp.pop %v11949
  %v12014 = vrcp.pop %v11950
  %v12015 = vrcp.pop %v11951
  %v12016 = vrcp.pop %v11952
  %v12017 = vrcp.pop %v11953
  %v12018 = vrcp.pop %v11954
  %v12019 = vrcp.pop %v11955
  %v12020 = vrcp.pop %v11956
  %v12021 = vrcp.pop %v11957
  %v12022 = vrcp.pop %v11958
  %v12023 = vrcp.pop %v11959
  %v12024 = vrcp.pop %v11960
  %v12025 = vrcp.pop %v11961
  %v12026 = vrcp.pop %v11962
  %v12027 = vrcp.pop %v11963
  %v12028 = vrcp.pop %v11964
  %v12029 = vrcp.pop %v11965
  %v12030 = vrcp.pop %v11966
  %v12031 = vrcp.pop %v11967
  %v12032 = vrcp.pop %v11968
  %v12033 = vrcp.pop %v11969
  %v12034 = vrcp.pop %v11970
  %v12035 = vrcp.pop %v11971
  %v12036 = vrcp.pop %v11972
  %v12037 = vrcp.pop %v11973
  %v12038 = vrcp.pop %v11974
  %v12039 = vrcp.pop %v11975
  %v12040 = vrcp.pop %v11976
  %v12041 = vrcp.pop %v11977
  %v12042 = vrcp.pop %v11978
  %v12043 = vrcp.pop %v11979
  %v12044 = vrcp.pop %v11980
  %v12045 = vrcp.pop %v11981
  %12046 = vst.msk [vmem:[%s3] sm:$0xff] %vm3917, %v11982
  %12047 = vst.msk [vmem:[%s3 + $0x8] sm:$0xff] %vm3917, %v11983
  %12048 = vst.msk [vmem:[%s3 + $0x10] sm:$0xff] %vm3917, %v11984
  %12049 = vst.msk [vmem:[%s3 + $0x18] sm:$0xff] %vm3917, %v11985
  %12050 = vst.msk [vmem:[%s3 + $0x20] sm:$0xff] %vm3917, %v11986
  %12051 = vst.msk [vmem:[%s3 + $0x28] sm:$0xff] %vm3917, %v11987
  %12052 = vst.msk [vmem:[%s3 + $0x30] sm:$0xff] %vm3917, %v11988
  %12053 = vst.msk [vmem:[%s3 + $0x38] sm:$0xff] %vm3917, %v11989
  %12054 = vst.msk [vmem:[%s3 + $0x40] sm:$0xff] %vm3917, %v11990
  %12055 = vst.msk [vmem:[%s3 + $0x48] sm:$0xff] %vm3917, %v11991
  %12056 = vst.msk [vmem:[%s3 + $0x50] sm:$0xff] %vm3917, %v11992
  %12057 = vst.msk [vmem:[%s3 + $0x58] sm:$0xff] %vm3917, %v11993
  %12058 = vst.msk [vmem:[%s3 + $0x60] sm:$0xff] %vm3917, %v11994
  %12059 = vst.msk [vmem:[%s3 + $0x68] sm:$0xff] %vm3917, %v11995
  %12060 = vst.msk [vmem:[%s3 + $0x70] sm:$0xff] %vm3917, %v11996
  %12061 = vst.msk [vmem:[%s3 + $0x78] sm:$0xff] %vm3917, %v11997
  %12062 = vst.msk [vmem:[%s3 + $0x80] sm:$0xff] %vm3917, %v11998
  %12063 = vst.msk [vmem:[%s3 + $0x88] sm:$0xff] %vm3917, %v11999
  %12064 = vst.msk [vmem:[%s3 + $0x90] sm:$0xff] %vm3917, %v12000
  %12065 = vst.msk [vmem:[%s3 + $0x98] sm:$0xff] %vm3917, %v12001
  %12066 = vst.msk [vmem:[%s3 + $0xa0] sm:$0xff] %vm3917, %v12002
  %12067 = vst.msk [vmem:[%s3 + $0xa8] sm:$0xff] %vm3917, %v12003
  %12068 = vst.msk [vmem:[%s3 + $0xb0] sm:$0xff] %vm3917, %v12004
  %12069 = vst.msk [vmem:[%s3 + $0xb8] sm:$0xff] %vm3917, %v12005
  %12070 = vst.msk [vmem:[%s3 + $0xc0] sm:$0xff] %vm3917, %v12006
  %12071 = vst.msk [vmem:[%s3 + $0xc8] sm:$0xff] %vm3917, %v12007
  %12072 = vst.msk [vmem:[%s3 + $0xd0] sm:$0xff] %vm3917, %v12008
  %12073 = vst.msk [vmem:[%s3 + $0xd8] sm:$0xff] %vm3917, %v12009
  %12074 = vst.msk [vmem:[%s3 + $0xe0] sm:$0xff] %vm3917, %v12010
  %12075 = vst.msk [vmem:[%s3 + $0xe8] sm:$0xff] %vm3917, %v12011
  %12076 = vst.msk [vmem:[%s3 + $0xf0] sm:$0xff] %vm3917, %v12012
  %12077 = vst.msk [vmem:[%s3 + $0xf8] sm:$0xff] %vm3917, %v12013
  %12078 = vst.msk [vmem:[%s3 + $0x100] sm:$0xff] %vm3917, %v12014
  %12079 = vst.msk [vmem:[%s3 + $0x108] sm:$0xff] %vm3917, %v12015
  %12080 = vst.msk [vmem:[%s3 + $0x110] sm:$0xff] %vm3917, %v12016
  %12081 = vst.msk [vmem:[%s3 + $0x118] sm:$0xff] %vm3917, %v12017
  %12082 = vst.msk [vmem:[%s3 + $0x120] sm:$0xff] %vm3917, %v12018
  %12083 = vst.msk [vmem:[%s3 + $0x128] sm:$0xff] %vm3917, %v12019
  %12084 = vst.msk [vmem:[%s3 + $0x130] sm:$0xff] %vm3917, %v12020
  %12085 = vst.msk [vmem:[%s3 + $0x138] sm:$0xff] %vm3917, %v12021
  %12086 = vst.msk [vmem:[%s3 + $0x140] sm:$0xff] %vm3917, %v12022
  %12087 = vst.msk [vmem:[%s3 + $0x148] sm:$0xff] %vm3917, %v12023
  %12088 = vst.msk [vmem:[%s3 + $0x150] sm:$0xff] %vm3917, %v12024
  %12089 = vst.msk [vmem:[%s3 + $0x158] sm:$0xff] %vm3917, %v12025
  %12090 = vst.msk [vmem:[%s3 + $0x160] sm:$0xff] %vm3917, %v12026
  %12091 = vst.msk [vmem:[%s3 + $0x168] sm:$0xff] %vm3917, %v12027
  %12092 = vst.msk [vmem:[%s3 + $0x170] sm:$0xff] %vm3917, %v12028
  %12093 = vst.msk [vmem:[%s3 + $0x178] sm:$0xff] %vm3917, %v12029
  %12094 = vst.msk [vmem:[%s3 + $0x180] sm:$0xff] %vm3917, %v12030
  %12095 = vst.msk [vmem:[%s3 + $0x188] sm:$0xff] %vm3917, %v12031
  %12096 = vst.msk [vmem:[%s3 + $0x190] sm:$0xff] %vm3917, %v12032
  %12097 = vst.msk [vmem:[%s3 + $0x198] sm:$0xff] %vm3917, %v12033
  %12098 = vst.msk [vmem:[%s3 + $0x1a0] sm:$0xff] %vm3917, %v12034
  %12099 = vst.msk [vmem:[%s3 + $0x1a8] sm:$0xff] %vm3917, %v12035
  %12100 = vst.msk [vmem:[%s3 + $0x1b0] sm:$0xff] %vm3917, %v12036
  %12101 = vst.msk [vmem:[%s3 + $0x1b8] sm:$0xff] %vm3917, %v12037
  %12102 = vst.msk [vmem:[%s3 + $0x1c0] sm:$0xff] %vm3917, %v12038
  %12103 = vst.msk [vmem:[%s3 + $0x1c8] sm:$0xff] %vm3917, %v12039
  %12104 = vst.msk [vmem:[%s3 + $0x1d0] sm:$0xff] %vm3917, %v12040
  %12105 = vst.msk [vmem:[%s3 + $0x1d8] sm:$0xff] %vm3917, %v12041
  %12106 = vst.msk [vmem:[%s3 + $0x1e0] sm:$0xff] %vm3917, %v12042
  %12107 = vst.msk [vmem:[%s3 + $0x1e8] sm:$0xff] %vm3917, %v12043
  %12108 = vst.msk [vmem:[%s3 + $0x1f0] sm:$0xff] %vm3917, %v12044
  %12109 = vst.msk [vmem:[%s3 + $0x1f8] sm:$0xff] %vm3917, %v12045
  // Predicated region
  $region14: #{conv_autoencoder_forward.1} parent=0 // pred_check
    _
  $region15: #{conv_autoencoder_forward.1} parent=0 // pred_check_branch
    %12111 = sbr.rel (0) target = $region17
  $region16: #{conv_autoencoder_forward.1} parent=0 // pred_region
    _
  $region17: #{conv_autoencoder_forward.1} parent=0 // pred_fallthru
    _
  // Predicated region
  $region18: #{conv_autoencoder_forward.1} parent=0 // pred_check
    _
  $region19: #{conv_autoencoder_forward.1} parent=0 // pred_check_branch
    %12113 = sbr.rel (0) target = $region21
  $region20: #{conv_autoencoder_forward.1} parent=0 // pred_region
    _
  $region21: #{conv_autoencoder_forward.1} parent=0 // pred_fallthru
    _
  // Predicated region
  $region22: #{conv_autoencoder_forward.1} parent=0 // pred_check
    _
  $region23: #{conv_autoencoder_forward.1} parent=0 // pred_check_branch
    %12115 = sbr.rel (0) target = $region25
  $region24: #{conv_autoencoder_forward.1} parent=0 // pred_region
    _
  $region25: #{conv_autoencoder_forward.1} parent=0 // pred_fallthru
    _
  // Predicated region
  $region26: #{conv_autoencoder_forward.1} parent=0 // pred_check
    _
  $region27: #{conv_autoencoder_forward.1} parent=0 // pred_check_branch
    %12117 = sbr.rel (0) target = $region29
  $region28: #{conv_autoencoder_forward.1} parent=0 // pred_region
    _
  $region29: #{conv_autoencoder_forward.1} parent=0 // pred_fallthru
    _

</llo_original>
